<compile_context>
chip_gen: v6e
topology: v6e:2x2x1
jax: 0.10.0
libtpu: 0.0.40
codegen_flags: <defaults>
</compile_context>

<pallas_src>
import functools

import jax
import jax.numpy as jnp
import numpy as np
from jax.experimental import pallas as pl
from jax.experimental.pallas import tpu as pltpu


# ---------------------------------------------------------------------------
# small in-kernel helpers
# ---------------------------------------------------------------------------
def _upsample_nn(x2d, h, w, s):
    """Nearest-neighbour x`s` upsample of a row-major (h*w, c) map -> ((h*s)*(w*s), c).

    Pure broadcast / layout work in VMEM; never touches the MXU or HBM.
    """
    c = x2d.shape[-1]
    x = jnp.broadcast_to(x2d.reshape(h, 1, w, 1, c), (h, s, w, s, c))
    return x.reshape(h * s * w * s, c)


def _zero_halo(ref):
    """Zero only the 1-pixel spatial border of a (1, h+2, w+2, c) padded buffer."""
    _, hp, wp, c = ref.shape
    z_row = jnp.zeros((1, 1, wp, c), ref.dtype)
    z_col = jnp.zeros((1, hp, 1, c), ref.dtype)
    ref[:, 0:1, :, :] = z_row
    ref[:, hp - 1:hp, :, :] = z_row
    ref[:, :, 0:1, :] = z_col
    ref[:, :, wp - 1:wp, :] = z_col


def _conv3x3_acc(dot, src_ref, h, w, w_ref):
    """3x3 'same' conv as 9 accumulated per-tap matmuls (no im2col concat).

    src_ref: (1, h+2, w+2, cin) zero-halo padded VMEM buffer.
    w_ref  : (3, 3, cin, cout) HWIO weights.
    returns: (h*w, cout) f32.
    """
    cin = src_ref.shape[-1]
    cout = w_ref.shape[-1]
    acc = jnp.zeros((h * w, cout), jnp.float32)
    for dy in range(3):
        for dx in range(3):
            patch = src_ref[:, dy:dy + h, dx:dx + w, :].reshape(h * w, cin)
            acc = acc + dot(patch, w_ref[dy, dx])
    return acc


# ---------------------------------------------------------------------------
# Kernel 1: FPN neck -> zero-halo-padded `fuse`  (one grid step per batch element)
# ---------------------------------------------------------------------------
def _neck_kernel(c2_ref, c3_ref, c4_ref, c5_ref,
                 wi2_ref, wi3_ref, wi4_ref, wi5_ref,
                 wo2_ref, wo3_ref, wo4_ref, wo5_ref,
                 fuse_ref,
                 s5_ref, s4_ref, s3_ref, s2_ref,
                 *, mm_dtype):
    dot = lambda a, b: jnp.dot(a.astype(mm_dtype), b.astype(mm_dtype),
                               preferred_element_type=jnp.float32)

    def flat(ref):
        _, h, w, c = ref.shape
        return ref[...].reshape(h * w, c)

    h5, w5 = c5_ref.shape[1], c5_ref.shape[2]
    h4, w4 = c4_ref.shape[1], c4_ref.shape[2]
    h3, w3 = c3_ref.shape[1], c3_ref.shape[2]
    h2, w2 = c2_ref.shape[1], c2_ref.shape[2]
    inner = wi5_ref.shape[-1]

    # 1x1 lateral convs (bias-free, MXU) + top-down adds; the x2 nearest upsample of the
    # coarser level is an in-VMEM broadcast (no replication matmul, no HBM operand).
    in5 = dot(flat(c5_ref), wi5_ref[...])                                     # (h5*w5, inner)
    out4 = dot(flat(c4_ref), wi4_ref[...]) + _upsample_nn(in5, h5, w5, 2)     # (h4*w4, inner)
    out3 = dot(flat(c3_ref), wi3_ref[...]) + _upsample_nn(out4, h4, w4, 2)
    out2 = dot(flat(c2_ref), wi2_ref[...]) + _upsample_nn(out3, h3, w3, 2)

    # 3x3 'same' convs: halo-only zero of the padded scratch (interior always overwritten),
    # then 9 accumulated per-tap matmuls.
    def conv(x2d, h, w, scr_ref, wo_ref):
        _zero_halo(scr_ref)
        scr_ref[:, 1:h + 1, 1:w + 1, :] = x2d.reshape(1, h, w, x2d.shape[-1])
        return _conv3x3_acc(dot, scr_ref, h, w, wo_ref)

    q5 = conv(in5, h5, w5, s5_ref, wo5_ref)
    q4 = conv(out4, h4, w4, s4_ref, wo4_ref)
    q3 = conv(out3, h3, w3, s3_ref, wo3_ref)
    q2 = conv(out2, h2, w2, s2_ref, wo2_ref)

    # x8 / x4 / x2 nearest upsample of the pyramid heads (broadcast in VMEM) + channel concat.
    fuse = jnp.concatenate([
        _upsample_nn(q5, h5, w5, 8),
        _upsample_nn(q4, h4, w4, 4),
        _upsample_nn(q3, h3, w3, 2),
        q2,
    ], axis=1)                                                                # (h2*w2, inner)

    # Write `fuse` zero-halo-padded so the head's 3x3 conv needs no separate pad pass.
    _zero_halo(fuse_ref)
    fuse_ref[:, 1:h2 + 1, 1:w2 + 1, :] = (
        fuse.reshape(1, h2, w2, inner).astype(fuse_ref.dtype))


# ---------------------------------------------------------------------------
# Kernel 2: fused (binarize || thresh) head, grid = (phase, batch)
#   phase 0: accumulate BN1 batch stats
#   phase 1: finalize BN1, accumulate BN2 batch stats
#   phase 2: finalize BN2, apply full head + DB map, write outputs
# ---------------------------------------------------------------------------
def _head_kernel(fuse_ref, wc_ref, g1_ref, b1_ref, w1_ref, bd1_ref,
                 g2_ref, b2_ref, w2_ref, bd2_ref,
                 out_ref,
                 s1_ref, ss1_ref, s2_ref, ss2_ref,
                 sc1_ref, sh1_ref, sc2_ref, sh2_ref,
                 *, k, n_total, mm_dtype):
    phase = pl.program_id(0)
    n = pl.program_id(1)
    dot = lambda a, b: jnp.dot(a.astype(mm_dtype), b.astype(mm_dtype),
                               preferred_element_type=jnp.float32)

    _, Hp, Wp, Cf = fuse_ref.shape
    H, W = Hp - 2, Wp - 2
    M = H * W
    C1 = g1_ref.shape[-1]                      # fused (bin||th) channels = inner // 2

    # fused (bin||th) 3x3 conv, recomputed each phase (keeps VMEM flat at production scale).
    h1 = _conv3x3_acc(dot, fuse_ref, H, W, wc_ref)                            # (M, C1) f32

    # ---------------- phase 0: accumulate BN1 batch statistics ----------------
    @pl.when(jnp.logical_and(phase == 0, n == 0))
    def _():
        s1_ref[...] = jnp.zeros_like(s1_ref)
        ss1_ref[...] = jnp.zeros_like(ss1_ref)

    @pl.when(phase == 0)
    def _():
        s1_ref[...] += jnp.sum(h1, axis=0, keepdims=True)
        ss1_ref[...] += jnp.sum(h1 * h1, axis=0, keepdims=True)

    # ------- start of phase 1: finalize BN1 scale/shift, reset BN2 accumulators -------
    # TODO(synk): shifted / Welford accumulation at production M (f32 cancellation risk).
    @pl.when(jnp.logical_and(phase == 1, n == 0))
    def _():
        cnt = float(n_total * M)
        mean = s1_ref[...] / cnt
        var = ss1_ref[...] / cnt - mean * mean
        sc = jax.lax.rsqrt(var + 1e-5) * g1_ref[...]
        sc1_ref[...] = sc
        sh1_ref[...] = b1_ref[...] - mean * sc
        s2_ref[...] = jnp.zeros_like(s2_ref)
        ss2_ref[...] = jnp.zeros_like(ss2_ref)

    @pl.when(phase >= 1)
    def _():
        # BN1 (batch stats) + ReLU, then ConvTranspose2d(2,2) #1 with the 2x2 output taps
        # packed along lanes (block-diagonal fused bin||th weight): (M, 4*C1).
        h1n = jnp.maximum(h1 * sc1_ref[...] + sh1_ref[...], 0.0)
        y1 = dot(h1n, w1_ref[...]) + bd1_ref[...]

        @pl.when(phase == 1)
        def _():
            # BN2 statistics: per-channel sums combined over the 4 tap groups, which
            # enumerate exactly the (N, 2H, 2W) pixels of each channel.
            s = jnp.sum(y1, axis=0, keepdims=True)
            ss = jnp.sum(y1 * y1, axis=0, keepdims=True)
            s2_ref[...] += (s[:, 0:C1] + s[:, C1:2 * C1]
                            + s[:, 2 * C1:3 * C1] + s[:, 3 * C1:4 * C1])
            ss2_ref[...] += (ss[:, 0:C1] + ss[:, C1:2 * C1]
                             + ss[:, 2 * C1:3 * C1] + ss[:, 3 * C1:4 * C1])

        @pl.when(phase == 2)
        def _():
            @pl.when(n == 0)
            def _():
                cnt2 = float(4 * n_total * M)
                m2 = s2_ref[...] / cnt2
                v2 = ss2_ref[...] / cnt2 - m2 * m2
                sc = jax.lax.rsqrt(v2 + 1e-5) * g2_ref[...]
                sh = b2_ref[...] - m2 * sc
                # broadcast once to the packed (1, 4*C1) tap-group layout
                sc2_ref[...] = jnp.concatenate([sc, sc, sc, sc], axis=1)
                sh2_ref[...] = jnp.concatenate([sh, sh, sh, sh], axis=1)

            # BN2 + ReLU on the packed layout, ConvTranspose2d(2,2) #2 (block-diagonal over
            # the dc1 tap groups), sigmoid, and the DB map B = sigmoid(k*(p - t)).
            y1n = jnp.maximum(y1 * sc2_ref[...] + sh2_ref[...], 0.0)
            y2 = dot(y1n, w2_ref[...]) + bd2_ref[...]                         # (M, 32)
            sm = jax.nn.sigmoid(y2)
            p = sm[:, 0:16]
            t = sm[:, 16:32]
            b = jax.nn.sigmoid(k * (p - t))
            # one fused output slab (prob | thresh | binary, 16 packed taps each)
            out = jnp.concatenate([p, t, b], axis=1)                          # (M, 48)
            out_ref[...] = out.reshape(1, H, W, 48)


# ---------------------------------------------------------------------------
# Parameter init (deterministic, kaiming-normal-like scales)
# ---------------------------------------------------------------------------
def init_params(key, in_channels=(8, 16, 32, 64), inner=32):
    inner4 = inner // 4
    keys = iter(jax.random.split(key, 64))

    def kconv(shape, fan_in):
        return jax.random.normal(next(keys), shape, jnp.float32) * np.sqrt(2.0 / fan_in)

    P = {}
    P["in5"] = kconv((in_channels[3], inner), in_channels[3])   # 1x1 conv weights as (Cin, Cout)
    P["in4"] = kconv((in_channels[2], inner), in_channels[2])
    P["in3"] = kconv((in_channels[1], inner), in_channels[1])
    P["in2"] = kconv((in_channels[0], inner), in_channels[0])
    for name in ("out5", "out4", "out3", "out2"):
        P[name] = kconv((3, 3, inner, inner4), inner * 9)       # 3x3 conv weights, HWIO
    for pfx in ("bin", "th"):
        P[pfx + "_conv"] = kconv((3, 3, inner, inner4), inner * 9)
        P[pfx + "_bn1_g"] = jnp.ones((inner4,), jnp.float32)
        P[pfx + "_bn1_b"] = jnp.full((inner4,), 1e-4, jnp.float32)
        P[pfx + "_dc1_w"] = kconv((inner4, inner4, 2, 2), inner4 * 4)  # ConvTranspose2d (Cin,Cout,2,2)
        P[pfx + "_dc1_b"] = jax.random.normal(next(keys), (inner4,), jnp.float32) * 0.05
        P[pfx + "_bn2_g"] = jnp.ones((inner4,), jnp.float32)
        P[pfx + "_bn2_b"] = jnp.full((inner4,), 1e-4, jnp.float32)
        P[pfx + "_dc2_w"] = kconv((inner4, 1, 2, 2), inner4 * 4)
        P[pfx + "_dc2_b"] = jax.random.normal(next(keys), (1,), jnp.float32) * 0.05
    return P


# ---------------------------------------------------------------------------
# wrapper-side helpers
# ---------------------------------------------------------------------------
def _rep_spec(arr):
    nd = arr.ndim
    return pl.BlockSpec(arr.shape, lambda *_: (0,) * nd)


def _vmem_limit_bytes():
    # Derive the scoped VMEM limit from the actual chip and leave headroom for double
    # buffering; fall back to a conservative 48 MiB if the query is unavailable.
    try:
        cap = getattr(pltpu.get_tpu_info(), "vmem_capacity_bytes", None)
        if cap:
            return int(cap) * 3 // 4
    except Exception:
        pass
    return 48 * 1024 * 1024


# ---------------------------------------------------------------------------
# Pallas-backed forward
# ---------------------------------------------------------------------------
def dbnet_decoder_forward(x, params, k=50.0, compute_dtype=jnp.float32):
    """Pallas forward of DBNetDecoder (training mode, serial=False, smooth=False).

    compute_dtype:
      float32  -> matches the f32 reference at tight tolerance (used in the toy test).
      bfloat16 -> recommended MXU-operand / fuse-storage dtype on v6e/v7x (BN statistics,
                  rsqrt, sigmoid and the DB epilogue stay in f32 either way).
    """
    c2, c3, c4, c5 = [jnp.transpose(a, (0, 2, 3, 1)) for a in x]   # NCHW -> NHWC
    N, H, W, _ = c2.shape
    h3, w3 = c3.shape[1], c3.shape[2]
    h4, w4 = c4.shape[1], c4.shape[2]
    h5, w5 = c5.shape[1], c5.shape[2]
    inner = params["in5"].shape[1]
    q = inner // 4
    wdt = compute_dtype
    vmem_limit = _vmem_limit_bytes()

    # ------------- one-time weight / constant packing (tiny, trace-time XLA) -------------
    wi = [params[nm].astype(wdt) for nm in ("in2", "in3", "in4", "in5")]      # (Cin, inner)
    wo = [params[nm].astype(wdt) for nm in ("out2", "out3", "out4", "out5")]  # (3,3,inner,q)

    # fused (bin||th) head parameters
    wc_f = jnp.concatenate([params["bin_conv"], params["th_conv"]], axis=-1).astype(wdt)
    g1f = jnp.concatenate([params["bin_bn1_g"], params["th_bn1_g"]]).reshape(1, 2 * q)
    b1f = jnp.concatenate([params["bin_bn1_b"], params["th_bn1_b"]]).reshape(1, 2 * q)
    g2f = jnp.concatenate([params["bin_bn2_g"], params["th_bn2_g"]]).reshape(1, 2 * q)
    b2f = jnp.concatenate([params["bin_bn2_b"], params["th_bn2_b"]]).reshape(1, 2 * q)

    def pack_dc1(wb, wt):   # (q,q,2,2) x2 -> (2q, 4*2q), cols ordered (dy1, dx1, co_fused)
        z = jnp.zeros_like(wb)
        wf = jnp.concatenate([jnp.concatenate([wb, z], axis=1),
                              jnp.concatenate([z, wt], axis=1)], axis=0)     # (2q, 2q, 2, 2)
        return jnp.transpose(wf, (0, 2, 3, 1)).reshape(2 * q, 4 * 2 * q)

    w1p = pack_dc1(params["bin_dc1_w"], params["th_dc1_w"]).astype(wdt)
    b1p = jnp.tile(jnp.concatenate([params["bin_dc1_b"], params["th_dc1_b"]]), 4).reshape(1, 4 * 2 * q)

    def pack_dc2(wb, wt):   # (q,1,2,2) x2 -> (4*2q, 32), cols ordered (head, dy1, dx1, dy2, dx2)
        head_b = jnp.concatenate([wb[:, 0].reshape(q, 4), jnp.zeros((q, 4), wb.dtype)], axis=0)
        head_t = jnp.concatenate([jnp.zeros((q, 4), wt.dtype), wt[:, 0].reshape(q, 4)], axis=0)

        def bdiag(wh):      # (2q, 4) -> (4*2q, 16) block-diagonal over the 4 dc1 tap groups
            z = jnp.zeros_like(wh)
            rows = []
            for g in range(4):
                blocks = [z] * 4
                blocks[g] = wh
                rows.append(jnp.concatenate(blocks, axis=1))
            return jnp.concatenate(rows, axis=0)

        return jnp.concatenate([bdiag(head_b), bdiag(head_t)], axis=1)

    w2p = pack_dc2(params["bin_dc2_w"], params["th_dc2_w"]).astype(wdt)
    b2p = jnp.concatenate([jnp.full((1, 16), params["bin_dc2_b"][0], jnp.float32),
                           jnp.full((1, 16), params["th_dc2_b"][0], jnp.float32)], axis=1)

    # ---------------------------- cost estimates (advisory) ----------------------------
    isz = np.dtype(wdt).itemsize
    fuse_elems = N * (H + 2) * (W + 2) * inner
    flops_neck = 0
    for (hh, ww, cc) in ((H, W, c2.shape[-1]), (h3, w3, c3.shape[-1]),
                         (h4, w4, c4.shape[-1]), (h5, w5, c5.shape[-1])):
        flops_neck += 2 * hh * ww * cc * inner          # 1x1 lateral conv
        flops_neck += 2 * hh * ww * 9 * inner * q       # 3x3 conv
    flops_neck *= N
    bytes_neck = (sum(int(np.prod(a.shape)) * 4 for a in (c2, c3, c4, c5))
                  + sum(int(np.prod(a.shape)) * isz for a in wi + wo)
                  + fuse_elems * isz)
    neck_cost = pl.CostEstimate(flops=int(flops_neck), transcendentals=0,
                                bytes_accessed=int(bytes_neck))

    Mtot = N * H * W
    flops_head = (3 * 2 * Mtot * 9 * inner * 2 * q      # fused 3x3 conv, recomputed per phase
                  + 2 * 2 * Mtot * 2 * q * 8 * q        # deconv #1 in phases 1 and 2
                  + 2 * Mtot * 8 * q * 32)              # deconv #2 in phase 2
    bytes_head = (3 * fuse_elems * isz + Mtot * 48 * 4
                  + sum(int(np.prod(a.shape)) * np.dtype(a.dtype).itemsize
                        for a in (wc_f, g1f, b1f, w1p, b1p, g2f, b2f, w2p, b2p)))
    head_cost = pl.CostEstimate(flops=int(flops_head), transcendentals=int(Mtot * 48),
                                bytes_accessed=int(bytes_head))

    # ------------------------------- kernel 1: neck -> padded fuse -------------------------------
    neck_weights = (wi[0], wi[1], wi[2], wi[3], wo[0], wo[1], wo[2], wo[3])
    fuse_pad = pl.pallas_call(
        functools.partial(_neck_kernel, mm_dtype=wdt),
        out_shape=jax.ShapeDtypeStruct((N, H + 2, W + 2, inner), wdt),
        grid=(N,),
        in_specs=[
            pl.BlockSpec((1, H, W, c2.shape[-1]), lambda n: (n, 0, 0, 0)),
            pl.BlockSpec((1, h3, w3, c3.shape[-1]), lambda n: (n, 0, 0, 0)),
            pl.BlockSpec((1, h4, w4, c4.shape[-1]), lambda n: (n, 0, 0, 0)),
            pl.BlockSpec((1, h5, w5, c5.shape[-1]), lambda n: (n, 0, 0, 0)),
        ] + [_rep_spec(w) for w in neck_weights],
        out_specs=pl.BlockSpec((1, H + 2, W + 2, inner), lambda n: (n, 0, 0, 0)),
        scratch_shapes=[
            pltpu.VMEM((1, h5 + 2, w5 + 2, inner), jnp.float32),
            pltpu.VMEM((1, h4 + 2, w4 + 2, inner), jnp.float32),
            pltpu.VMEM((1, h3 + 2, w3 + 2, inner), jnp.float32),
            pltpu.VMEM((1, H + 2, W + 2, inner), jnp.float32),
        ],
        compiler_params=pltpu.CompilerParams(
            dimension_semantics=("parallel",),          # megacore split over batch on v7x (N>=2)
            vmem_limit_bytes=vmem_limit,
        ),
        cost_estimate=neck_cost,
    )(c2, c3, c4, c5, *neck_weights)

    # ------------------------------- kernel 2: fused heads -------------------------------
    head_ops = (fuse_pad, wc_f, g1f, b1f, w1p, b1p, g2f, b2f, w2p, b2p)
    out_slab = pl.pallas_call(
        functools.partial(_head_kernel, k=k, n_total=N, mm_dtype=wdt),
        out_shape=jax.ShapeDtypeStruct((N, H, W, 48), jnp.float32),
        grid=(3, N),                                    # (phase, batch)
        in_specs=[pl.BlockSpec((1, H + 2, W + 2, inner), lambda p, n: (n, 0, 0, 0))]
                 + [_rep_spec(w) for w in head_ops[1:]],
        out_specs=pl.BlockSpec((1, H, W, 48), lambda p, n: (n, 0, 0, 0)),
        scratch_shapes=[pltpu.VMEM((1, 2 * q), jnp.float32) for _ in range(6)]   # s1 ss1 s2 ss2 sc1 sh1
                       + [pltpu.VMEM((1, 8 * q), jnp.float32) for _ in range(2)],  # sc2 sh2 (packed)
        compiler_params=pltpu.CompilerParams(
            dimension_semantics=("arbitrary", "arbitrary"),
            vmem_limit_bytes=vmem_limit,
        ),
        cost_estimate=head_cost,
    )(*head_ops)

    # ------------- final (tiny) split + de-interleave of the packed 4x4 deconv taps -> NCHW -------------
    def unpack(xp):   # (N, H, W, 16) packed (dy1, dx1, dy2, dx2) -> (N, 1, 4H, 4W)
        y = xp.reshape(N, H, W, 2, 2, 2, 2)
        y = jnp.transpose(y, (0, 1, 3, 5, 2, 4, 6))
        return y.reshape(N, 1, 4 * H, 4 * W)

    return {
        "prob_map": unpack(out_slab[..., 0:16]),
        "thresh_map": unpack(out_slab[..., 16:32]),
        "binary_map": unpack(out_slab[..., 32:48]),
    }


# ---------------------------------------------------------------------------
# Pure-JAX reference for validation
# ---------------------------------------------------------------------------
def ref_forward(x, P, k=50.0):
    c2, c3, c4, c5 = x
    dn = ("NCHW", "HWIO", "NCHW")
    conv = lambda a, w, pad: jax.lax.conv_general_dilated(a, w, (1, 1), pad, dimension_numbers=dn)
    c1 = lambda a, w2: conv(a, w2[None, None], "VALID")
    c3x3 = lambda a, w: conv(a, w, ((1, 1), (1, 1)))
    up = lambda a, s: jnp.repeat(jnp.repeat(a, s, axis=2), s, axis=3)

    def bn_relu(a, g, b):
        m = jnp.mean(a, axis=(0, 2, 3), keepdims=True)
        v = jnp.mean((a - m) ** 2, axis=(0, 2, 3), keepdims=True)
        y = (a - m) / jnp.sqrt(v + 1e-5) * g.reshape(1, -1, 1, 1) + b.reshape(1, -1, 1, 1)
        return jnp.maximum(y, 0.0)

    def deconv(a, w, b):
        y = jnp.einsum("nihw,iodk->nohdwk", a, w)
        N, Co, H, _, W, _ = y.shape
        return y.reshape(N, Co, 2 * H, 2 * W) + b.reshape(1, -1, 1, 1)

    in5 = c1(c5, P["in5"]); in4 = c1(c4, P["in4"])
    in3 = c1(c3, P["in3"]); in2 = c1(c2, P["in2"])
    out4 = in4 + up(in5, 2); out3 = in3 + up(out4, 2); out2 = in2 + up(out3, 2)
    p5 = up(c3x3(in5, P["out5"]), 8); p4 = up(c3x3(out4, P["out4"]), 4)
    p3 = up(c3x3(out3, P["out3"]), 2); p2 = c3x3(out2, P["out2"])
    fuse = jnp.concatenate([p5, p4, p3, p2], axis=1)

    def head(pfx):
        h = c3x3(fuse, P[pfx + "_conv"])
        h = bn_relu(h, P[pfx + "_bn1_g"], P[pfx + "_bn1_b"])
        h = deconv(h, P[pfx + "_dc1_w"], P[pfx + "_dc1_b"])
        h = bn_relu(h, P[pfx + "_bn2_g"], P[pfx + "_bn2_b"])
        h = deconv(h, P[pfx + "_dc2_w"], P[pfx + "_dc2_b"])
        return jax.nn.sigmoid(h)

    prob = head("bin"); thresh = head("th")
    binary = 1.0 / (1.0 + jnp.exp(-k * (prob - thresh)))
    return {"prob_map": prob, "thresh_map": thresh, "binary_map": binary}


if __name__ == "__main__":
    key = jax.random.PRNGKey(0)
    k_in, k_p = jax.random.split(key)
    in_channels = (8, 16, 32, 64)  # scaled-down [64, 128, 256, 512]
    inner = 32                     # scaled-down inner_channels=256
    N, H, W = 2, 16, 16

    ks = jax.random.split(k_in, 4)
    c2 = jax.random.normal(ks[0], (N, in_channels[0], H, W), jnp.float32)
    c3 = jax.random.normal(ks[1], (N, in_channels[1], H // 2, W // 2), jnp.float32)
    c4 = jax.random.normal(ks[2], (N, in_channels[2], H // 4, W // 4), jnp.float32)
    c5 = jax.random.normal(ks[3], (N, in_channels[3], H // 8, W // 8), jnp.float32)
    params = init_params(k_p, in_channels=in_channels, inner=inner)

    # f32 run so it can be validated against the f32 reference at tight tolerance;
    # pass compute_dtype=jnp.bfloat16 on v6e/v7x for the bf16-MXU / bf16-fuse path.
    out = jax.block_until_ready(dbnet_decoder_forward((c2, c3, c4, c5), params, k=50.0))
    ref = jax.block_until_ready(ref_forward((c2, c3, c4, c5), params, k=50.0))

    for name in ("prob_map", "thresh_map", "binary_map"):
        assert out[name].shape == (N, 1, 4 * H, 4 * W), (name, out[name].shape)
        np.testing.assert_allclose(np.asarray(out[name]), np.asarray(ref[name]),
                                   rtol=2e-3, atol=2e-3)

    print("KERNEL_OK")
</pallas_src>

<mosaic_0001>
module attributes {stable_mosaic.version = 11 : i64} {
  func.func @_neck_kernel(%arg0: i32, %arg1: memref<1x16x16x8xf32, #tpu.memory_space<vmem>>, %arg2: memref<1x8x8x16xf32, #tpu.memory_space<vmem>>, %arg3: memref<1x4x4x32xf32, #tpu.memory_space<vmem>>, %arg4: memref<1x2x2x64xf32, #tpu.memory_space<vmem>>, %arg5: memref<8x32xf32, #tpu.memory_space<vmem>>, %arg6: memref<16x32xf32, #tpu.memory_space<vmem>>, %arg7: memref<32x32xf32, #tpu.memory_space<vmem>>, %arg8: memref<64x32xf32, #tpu.memory_space<vmem>>, %arg9: memref<3x3x32x8xf32, #tpu.memory_space<vmem>>, %arg10: memref<3x3x32x8xf32, #tpu.memory_space<vmem>>, %arg11: memref<3x3x32x8xf32, #tpu.memory_space<vmem>>, %arg12: memref<3x3x32x8xf32, #tpu.memory_space<vmem>>, %arg13: memref<1x18x18x32xf32, #tpu.memory_space<vmem>>, %arg14: memref<1x4x4x32xf32, #tpu.memory_space<vmem>>, %arg15: memref<1x6x6x32xf32, #tpu.memory_space<vmem>>, %arg16: memref<1x10x10x32xf32, #tpu.memory_space<vmem>>, %arg17: memref<1x18x18x32xf32, #tpu.memory_space<vmem>>) attributes {dimension_semantics = [#tpu.dimension_semantics<parallel>], iteration_bounds = array<i64: 2>, scalar_prefetch = 0 : i64, scratch_operands = 4 : i64, tpu.core_type = #tpu.core_type<tc>, window_params = [{transform_indices = @transform_0, window_bounds = array<i64: 1, 16, 16, 8>}, {transform_indices = @transform_1, window_bounds = array<i64: 1, 8, 8, 16>}, {transform_indices = @transform_2, window_bounds = array<i64: 1, 4, 4, 32>}, {transform_indices = @transform_3, window_bounds = array<i64: 1, 2, 2, 64>}, {pipeline_mode = #tpu.pipeline_mode<synchronous>, transform_indices = @transform_4, window_bounds = array<i64: 8, 32>}, {pipeline_mode = #tpu.pipeline_mode<synchronous>, transform_indices = @transform_5, window_bounds = array<i64: 16, 32>}, {pipeline_mode = #tpu.pipeline_mode<synchronous>, transform_indices = @transform_6, window_bounds = array<i64: 32, 32>}, {pipeline_mode = #tpu.pipeline_mode<synchronous>, transform_indices = @transform_7, window_bounds = array<i64: 64, 32>}, {pipeline_mode = #tpu.pipeline_mode<synchronous>, transform_indices = @transform_8, window_bounds = array<i64: 3, 3, 32, 8>}, {pipeline_mode = #tpu.pipeline_mode<synchronous>, transform_indices = @transform_9, window_bounds = array<i64: 3, 3, 32, 8>}, {pipeline_mode = #tpu.pipeline_mode<synchronous>, transform_indices = @transform_10, window_bounds = array<i64: 3, 3, 32, 8>}, {pipeline_mode = #tpu.pipeline_mode<synchronous>, transform_indices = @transform_11, window_bounds = array<i64: 3, 3, 32, 8>}, {transform_indices = @transform_12, window_bounds = array<i64: 1, 18, 18, 32>}]} {
    %c0 = arith.constant 0 : index
    %c0_0 = arith.constant 0 : index
    %c0_1 = arith.constant 0 : index
    %c0_2 = arith.constant 0 : index
    %0 = vector.load %arg4[%c0, %c0_0, %c0_1, %c0_2] : memref<1x2x2x64xf32, #tpu.memory_space<vmem>>, vector<1x2x2x64xf32>
    %1 = vector.shape_cast %0 : vector<1x2x2x64xf32> to vector<4x64xf32>
    %c0_3 = arith.constant 0 : index
    %c0_4 = arith.constant 0 : index
    %2 = vector.load %arg8[%c0_3, %c0_4] : memref<64x32xf32, #tpu.memory_space<vmem>>, vector<64x32xf32>
    %cst = arith.constant dense<0.000000e+00> : vector<4x32xf32>
    %3 = tpu.matmul %1, %2, %cst {dimension_numbers = #tpu.dot_dimension_numbers<[1], [0], [0], [1], [0, 0, 1, 1], [], []>} : vector<4x64xf32>, vector<64x32xf32>, vector<4x32xf32> -> vector<4x32xf32>
    %c0_5 = arith.constant 0 : index
    %c0_6 = arith.constant 0 : index
    %c0_7 = arith.constant 0 : index
    %c0_8 = arith.constant 0 : index
    %4 = vector.load %arg3[%c0_5, %c0_6, %c0_7, %c0_8] : memref<1x4x4x32xf32, #tpu.memory_space<vmem>>, vector<1x4x4x32xf32>
    %5 = vector.shape_cast %4 : vector<1x4x4x32xf32> to vector<16x32xf32>
    %c0_9 = arith.constant 0 : index
    %c0_10 = arith.constant 0 : index
    %6 = vector.load %arg7[%c0_9, %c0_10] : memref<32x32xf32, #tpu.memory_space<vmem>>, vector<32x32xf32>
    %cst_11 = arith.constant dense<0.000000e+00> : vector<16x32xf32>
    %7 = tpu.matmul %5, %6, %cst_11 {dimension_numbers = #tpu.dot_dimension_numbers<[1], [0], [0], [1], [0, 0, 1, 1], [], []>} : vector<16x32xf32>, vector<32x32xf32>, vector<16x32xf32> -> vector<16x32xf32>
    %8 = vector.shape_cast %3 : vector<4x32xf32> to vector<2x1x2x1x32xf32>
    %9 = vector.shape_cast %8 : vector<2x1x2x1x32xf32> to vector<2x1x2x1x32xf32>
    %10 = vector.broadcast %9 : vector<2x1x2x1x32xf32> to vector<2x2x2x2x32xf32>
    %11 = vector.shape_cast %10 : vector<2x2x2x2x32xf32> to vector<16x32xf32>
    %12 = arith.addf %7, %11 : vector<16x32xf32>
    %c0_12 = arith.constant 0 : index
    %c0_13 = arith.constant 0 : index
    %c0_14 = arith.constant 0 : index
    %c0_15 = arith.constant 0 : index
    %13 = vector.load %arg2[%c0_12, %c0_13, %c0_14, %c0_15] : memref<1x8x8x16xf32, #tpu.memory_space<vmem>>, vector<1x8x8x16xf32>
    %14 = vector.shape_cast %13 : vector<1x8x8x16xf32> to vector<64x16xf32>
    %c0_16 = arith.constant 0 : index
    %c0_17 = arith.constant 0 : index
    %15 = vector.load %arg6[%c0_16, %c0_17] : memref<16x32xf32, #tpu.memory_space<vmem>>, vector<16x32xf32>
    %cst_18 = arith.constant dense<0.000000e+00> : vector<64x32xf32>
    %16 = tpu.matmul %14, %15, %cst_18 {dimension_numbers = #tpu.dot_dimension_numbers<[1], [0], [0], [1], [0, 0, 1, 1], [], []>} : vector<64x16xf32>, vector<16x32xf32>, vector<64x32xf32> -> vector<64x32xf32>
    %17 = vector.shape_cast %12 : vector<16x32xf32> to vector<4x1x4x1x32xf32>
    %18 = vector.shape_cast %17 : vector<4x1x4x1x32xf32> to vector<4x1x4x1x32xf32>
    %19 = vector.broadcast %18 : vector<4x1x4x1x32xf32> to vector<4x2x4x2x32xf32>
    %20 = vector.shape_cast %19 : vector<4x2x4x2x32xf32> to vector<64x32xf32>
    %21 = arith.addf %16, %20 : vector<64x32xf32>
    %c0_19 = arith.constant 0 : index
    %c0_20 = arith.constant 0 : index
    %c0_21 = arith.constant 0 : index
    %c0_22 = arith.constant 0 : index
    %22 = vector.load %arg1[%c0_19, %c0_20, %c0_21, %c0_22] : memref<1x16x16x8xf32, #tpu.memory_space<vmem>>, vector<1x16x16x8xf32>
    %23 = vector.shape_cast %22 : vector<1x16x16x8xf32> to vector<256x8xf32>
    %c0_23 = arith.constant 0 : index
    %c0_24 = arith.constant 0 : index
    %24 = vector.load %arg5[%c0_23, %c0_24] : memref<8x32xf32, #tpu.memory_space<vmem>>, vector<8x32xf32>
    %cst_25 = arith.constant dense<0.000000e+00> : vector<256x32xf32>
    %25 = tpu.matmul %23, %24, %cst_25 {dimension_numbers = #tpu.dot_dimension_numbers<[1], [0], [0], [1], [0, 0, 1, 1], [], []>} : vector<256x8xf32>, vector<8x32xf32>, vector<256x32xf32> -> vector<256x32xf32>
    %26 = vector.shape_cast %21 : vector<64x32xf32> to vector<8x1x8x1x32xf32>
    %27 = vector.shape_cast %26 : vector<8x1x8x1x32xf32> to vector<8x1x8x1x32xf32>
    %28 = vector.broadcast %27 : vector<8x1x8x1x32xf32> to vector<8x2x8x2x32xf32>
    %29 = vector.shape_cast %28 : vector<8x2x8x2x32xf32> to vector<256x32xf32>
    %30 = arith.addf %25, %29 : vector<256x32xf32>
    %cst_26 = arith.constant 0.000000e+00 : f32
    %31 = vector.broadcast %cst_26 : f32 to vector<1x1x4x32xf32>
    %cst_27 = arith.constant 0.000000e+00 : f32
    %32 = vector.broadcast %cst_27 : f32 to vector<1x4x1x32xf32>
    %c0_28 = arith.constant 0 : index
    %c0_29 = arith.constant 0 : index
    %c0_30 = arith.constant 0 : index
    %c0_31 = arith.constant 0 : index
    %33 = vector.load %arg14[%c0_28, %c0_29, %c0_30, %c0_31] : memref<1x4x4x32xf32, #tpu.memory_space<vmem>>, vector<1x1x4x32xf32>
    tpu.vector_store %arg14[%c0_28, %c0_29, %c0_30, %c0_31], %31 {strides = array<i32>} : memref<1x4x4x32xf32, #tpu.memory_space<vmem>>, vector<1x1x4x32xf32>,
    %c0_32 = arith.constant 0 : index
    %c3 = arith.constant 3 : index
    %c0_33 = arith.constant 0 : index
    %c0_34 = arith.constant 0 : index
    %34 = vector.load %arg14[%c0_32, %c3, %c0_33, %c0_34] : memref<1x4x4x32xf32, #tpu.memory_space<vmem>>, vector<1x1x4x32xf32>
    tpu.vector_store %arg14[%c0_32, %c3, %c0_33, %c0_34], %31 {strides = array<i32>} : memref<1x4x4x32xf32, #tpu.memory_space<vmem>>, vector<1x1x4x32xf32>,
    %c0_35 = arith.constant 0 : index
    %c0_36 = arith.constant 0 : index
    %c0_37 = arith.constant 0 : index
    %c0_38 = arith.constant 0 : index
    %35 = vector.load %arg14[%c0_35, %c0_36, %c0_37, %c0_38] : memref<1x4x4x32xf32, #tpu.memory_space<vmem>>, vector<1x4x1x32xf32>
    tpu.vector_store %arg14[%c0_35, %c0_36, %c0_37, %c0_38], %32 {strides = array<i32>} : memref<1x4x4x32xf32, #tpu.memory_space<vmem>>, vector<1x4x1x32xf32>,
    %c0_39 = arith.constant 0 : index
    %c0_40 = arith.constant 0 : index
    %c3_41 = arith.constant 3 : index
    %c0_42 = arith.constant 0 : index
    %36 = vector.load %arg14[%c0_39, %c0_40, %c3_41, %c0_42] : memref<1x4x4x32xf32, #tpu.memory_space<vmem>>, vector<1x4x1x32xf32>
    tpu.vector_store %arg14[%c0_39, %c0_40, %c3_41, %c0_42], %32 {strides = array<i32>} : memref<1x4x4x32xf32, #tpu.memory_space<vmem>>, vector<1x4x1x32xf32>,
    %37 = vector.shape_cast %3 : vector<4x32xf32> to vector<1x2x2x32xf32>
    %c0_43 = arith.constant 0 : index
    %c1 = arith.constant 1 : index
    %c1_44 = arith.constant 1 : index
    %c0_45 = arith.constant 0 : index
    %38 = vector.load %arg14[%c0_43, %c1, %c1_44, %c0_45] : memref<1x4x4x32xf32, #tpu.memory_space<vmem>>, vector<1x2x2x32xf32>
    tpu.vector_store %arg14[%c0_43, %c1, %c1_44, %c0_45], %37 {strides = array<i32>} : memref<1x4x4x32xf32, #tpu.memory_space<vmem>>, vector<1x2x2x32xf32>,
    %cst_46 = arith.constant 0.000000e+00 : f32
    %39 = vector.broadcast %cst_46 : f32 to vector<4x8xf32>
    %c0_47 = arith.constant 0 : index
    %c0_48 = arith.constant 0 : index
    %c0_49 = arith.constant 0 : index
    %c0_50 = arith.constant 0 : index
    %40 = vector.load %arg14[%c0_47, %c0_48, %c0_49, %c0_50] : memref<1x4x4x32xf32, #tpu.memory_space<vmem>>, vector<1x2x2x32xf32>
    %41 = vector.shape_cast %40 : vector<1x2x2x32xf32> to vector<4x32xf32>
    %c0_51 = arith.constant 0 : index
    %c0_52 = arith.constant 0 : index
    %c0_53 = arith.constant 0 : index
    %c0_54 = arith.constant 0 : index
    %42 = vector.load %arg12[%c0_51, %c0_52, %c0_53, %c0_54] : memref<3x3x32x8xf32, #tpu.memory_space<vmem>>, vector<1x1x32x8xf32>
    %43 = vector.shape_cast %42 : vector<1x1x32x8xf32> to vector<32x8xf32>
    %cst_55 = arith.constant dense<0.000000e+00> : vector<4x8xf32>
    %44 = tpu.matmul %41, %43, %cst_55 {dimension_numbers = #tpu.dot_dimension_numbers<[1], [0], [0], [1], [0, 0, 1, 1], [], []>} : vector<4x32xf32>, vector<32x8xf32>, vector<4x8xf32> -> vector<4x8xf32>
    %45 = arith.addf %39, %44 : vector<4x8xf32>
    %c0_56 = arith.constant 0 : index
    %c0_57 = arith.constant 0 : index
    %c1_58 = arith.constant 1 : index
    %c0_59 = arith.constant 0 : index
    %46 = vector.load %arg14[%c0_56, %c0_57, %c1_58, %c0_59] : memref<1x4x4x32xf32, #tpu.memory_space<vmem>>, vector<1x2x2x32xf32>
    %47 = vector.shape_cast %46 : vector<1x2x2x32xf32> to vector<4x32xf32>
    %c0_60 = arith.constant 0 : index
    %c1_61 = arith.constant 1 : index
    %c0_62 = arith.constant 0 : index
    %c0_63 = arith.constant 0 : index
    %48 = vector.load %arg12[%c0_60, %c1_61, %c0_62, %c0_63] : memref<3x3x32x8xf32, #tpu.memory_space<vmem>>, vector<1x1x32x8xf32>
    %49 = vector.shape_cast %48 : vector<1x1x32x8xf32> to vector<32x8xf32>
    %cst_64 = arith.constant dense<0.000000e+00> : vector<4x8xf32>
    %50 = tpu.matmul %47, %49, %cst_64 {dimension_numbers = #tpu.dot_dimension_numbers<[1], [0], [0], [1], [0, 0, 1, 1], [], []>} : vector<4x32xf32>, vector<32x8xf32>, vector<4x8xf32> -> vector<4x8xf32>
    %51 = arith.addf %45, %50 : vector<4x8xf32>
    %c0_65 = arith.constant 0 : index
    %c0_66 = arith.constant 0 : index
    %c2 = arith.constant 2 : index
    %c0_67 = arith.constant 0 : index
    %52 = vector.load %arg14[%c0_65, %c0_66, %c2, %c0_67] : memref<1x4x4x32xf32, #tpu.memory_space<vmem>>, vector<1x2x2x32xf32>
    %53 = vector.shape_cast %52 : vector<1x2x2x32xf32> to vector<4x32xf32>
    %c0_68 = arith.constant 0 : index
    %c2_69 = arith.constant 2 : index
    %c0_70 = arith.constant 0 : index
    %c0_71 = arith.constant 0 : index
    %54 = vector.load %arg12[%c0_68, %c2_69, %c0_70, %c0_71] : memref<3x3x32x8xf32, #tpu.memory_space<vmem>>, vector<1x1x32x8xf32>
    %55 = vector.shape_cast %54 : vector<1x1x32x8xf32> to vector<32x8xf32>
    %cst_72 = arith.constant dense<0.000000e+00> : vector<4x8xf32>
    %56 = tpu.matmul %53, %55, %cst_72 {dimension_numbers = #tpu.dot_dimension_numbers<[1], [0], [0], [1], [0, 0, 1, 1], [], []>} : vector<4x32xf32>, vector<32x8xf32>, vector<4x8xf32> -> vector<4x8xf32>
    %57 = arith.addf %51, %56 : vector<4x8xf32>
    %c0_73 = arith.constant 0 : index
    %c1_74 = arith.constant 1 : index
    %c0_75 = arith.constant 0 : index
    %c0_76 = arith.constant 0 : index
    %58 = vector.load %arg14[%c0_73, %c1_74, %c0_75, %c0_76] : memref<1x4x4x32xf32, #tpu.memory_space<vmem>>, vector<1x2x2x32xf32>
    %59 = vector.shape_cast %58 : vector<1x2x2x32xf32> to vector<4x32xf32>
    %c1_77 = arith.constant 1 : index
    %c0_78 = arith.constant 0 : index
    %c0_79 = arith.constant 0 : index
    %c0_80 = arith.constant 0 : index
    %60 = vector.load %arg12[%c1_77, %c0_78, %c0_79, %c0_80] : memref<3x3x32x8xf32, #tpu.memory_space<vmem>>, vector<1x1x32x8xf32>
    %61 = vector.shape_cast %60 : vector<1x1x32x8xf32> to vector<32x8xf32>
    %cst_81 = arith.constant dense<0.000000e+00> : vector<4x8xf32>
    %62 = tpu.matmul %59, %61, %cst_81 {dimension_numbers = #tpu.dot_dimension_numbers<[1], [0], [0], [1], [0, 0, 1, 1], [], []>} : vector<4x32xf32>, vector<32x8xf32>, vector<4x8xf32> -> vector<4x8xf32>
    %63 = arith.addf %57, %62 : vector<4x8xf32>
    %c0_82 = arith.constant 0 : index
    %c1_83 = arith.constant 1 : index
    %c1_84 = arith.constant 1 : index
    %c0_85 = arith.constant 0 : index
    %64 = vector.load %arg14[%c0_82, %c1_83, %c1_84, %c0_85] : memref<1x4x4x32xf32, #tpu.memory_space<vmem>>, vector<1x2x2x32xf32>
    %65 = vector.shape_cast %64 : vector<1x2x2x32xf32> to vector<4x32xf32>
    %c1_86 = arith.constant 1 : index
    %c1_87 = arith.constant 1 : index
    %c0_88 = arith.constant 0 : index
    %c0_89 = arith.constant 0 : index
    %66 = vector.load %arg12[%c1_86, %c1_87, %c0_88, %c0_89] : memref<3x3x32x8xf32, #tpu.memory_space<vmem>>, vector<1x1x32x8xf32>
    %67 = vector.shape_cast %66 : vector<1x1x32x8xf32> to vector<32x8xf32>
    %cst_90 = arith.constant dense<0.000000e+00> : vector<4x8xf32>
    %68 = tpu.matmul %65, %67, %cst_90 {dimension_numbers = #tpu.dot_dimension_numbers<[1], [0], [0], [1], [0, 0, 1, 1], [], []>} : vector<4x32xf32>, vector<32x8xf32>, vector<4x8xf32> -> vector<4x8xf32>
    %69 = arith.addf %63, %68 : vector<4x8xf32>
    %c0_91 = arith.constant 0 : index
    %c1_92 = arith.constant 1 : index
    %c2_93 = arith.constant 2 : index
    %c0_94 = arith.constant 0 : index
    %70 = vector.load %arg14[%c0_91, %c1_92, %c2_93, %c0_94] : memref<1x4x4x32xf32, #tpu.memory_space<vmem>>, vector<1x2x2x32xf32>
    %71 = vector.shape_cast %70 : vector<1x2x2x32xf32> to vector<4x32xf32>
    %c1_95 = arith.constant 1 : index
    %c2_96 = arith.constant 2 : index
    %c0_97 = arith.constant 0 : index
    %c0_98 = arith.constant 0 : index
    %72 = vector.load %arg12[%c1_95, %c2_96, %c0_97, %c0_98] : memref<3x3x32x8xf32, #tpu.memory_space<vmem>>, vector<1x1x32x8xf32>
    %73 = vector.shape_cast %72 : vector<1x1x32x8xf32> to vector<32x8xf32>
    %cst_99 = arith.constant dense<0.000000e+00> : vector<4x8xf32>
    %74 = tpu.matmul %71, %73, %cst_99 {dimension_numbers = #tpu.dot_dimension_numbers<[1], [0], [0], [1], [0, 0, 1, 1], [], []>} : vector<4x32xf32>, vector<32x8xf32>, vector<4x8xf32> -> vector<4x8xf32>
    %75 = arith.addf %69, %74 : vector<4x8xf32>
    %c0_100 = arith.constant 0 : index
    %c2_101 = arith.constant 2 : index
    %c0_102 = arith.constant 0 : index
    %c0_103 = arith.constant 0 : index
    %76 = vector.load %arg14[%c0_100, %c2_101, %c0_102, %c0_103] : memref<1x4x4x32xf32, #tpu.memory_space<vmem>>, vector<1x2x2x32xf32>
    %77 = vector.shape_cast %76 : vector<1x2x2x32xf32> to vector<4x32xf32>
    %c2_104 = arith.constant 2 : index
    %c0_105 = arith.constant 0 : index
    %c0_106 = arith.constant 0 : index
    %c0_107 = arith.constant 0 : index
    %78 = vector.load %arg12[%c2_104, %c0_105, %c0_106, %c0_107] : memref<3x3x32x8xf32, #tpu.memory_space<vmem>>, vector<1x1x32x8xf32>
    %79 = vector.shape_cast %78 : vector<1x1x32x8xf32> to vector<32x8xf32>
    %cst_108 = arith.constant dense<0.000000e+00> : vector<4x8xf32>
    %80 = tpu.matmul %77, %79, %cst_108 {dimension_numbers = #tpu.dot_dimension_numbers<[1], [0], [0], [1], [0, 0, 1, 1], [], []>} : vector<4x32xf32>, vector<32x8xf32>, vector<4x8xf32> -> vector<4x8xf32>
    %81 = arith.addf %75, %80 : vector<4x8xf32>
    %c0_109 = arith.constant 0 : index
    %c2_110 = arith.constant 2 : index
    %c1_111 = arith.constant 1 : index
    %c0_112 = arith.constant 0 : index
    %82 = vector.load %arg14[%c0_109, %c2_110, %c1_111, %c0_112] : memref<1x4x4x32xf32, #tpu.memory_space<vmem>>, vector<1x2x2x32xf32>
    %83 = vector.shape_cast %82 : vector<1x2x2x32xf32> to vector<4x32xf32>
    %c2_113 = arith.constant 2 : index
    %c1_114 = arith.constant 1 : index
    %c0_115 = arith.constant 0 : index
    %c0_116 = arith.constant 0 : index
    %84 = vector.load %arg12[%c2_113, %c1_114, %c0_115, %c0_116] : memref<3x3x32x8xf32, #tpu.memory_space<vmem>>, vector<1x1x32x8xf32>
    %85 = vector.shape_cast %84 : vector<1x1x32x8xf32> to vector<32x8xf32>
    %cst_117 = arith.constant dense<0.000000e+00> : vector<4x8xf32>
    %86 = tpu.matmul %83, %85, %cst_117 {dimension_numbers = #tpu.dot_dimension_numbers<[1], [0], [0], [1], [0, 0, 1, 1], [], []>} : vector<4x32xf32>, vector<32x8xf32>, vector<4x8xf32> -> vector<4x8xf32>
    %87 = arith.addf %81, %86 : vector<4x8xf32>
    %c0_118 = arith.constant 0 : index
    %c2_119 = arith.constant 2 : index
    %c2_120 = arith.constant 2 : index
    %c0_121 = arith.constant 0 : index
    %88 = vector.load %arg14[%c0_118, %c2_119, %c2_120, %c0_121] : memref<1x4x4x32xf32, #tpu.memory_space<vmem>>, vector<1x2x2x32xf32>
    %89 = vector.shape_cast %88 : vector<1x2x2x32xf32> to vector<4x32xf32>
    %c2_122 = arith.constant 2 : index
    %c2_123 = arith.constant 2 : index
    %c0_124 = arith.constant 0 : index
    %c0_125 = arith.constant 0 : index
    %90 = vector.load %arg12[%c2_122, %c2_123, %c0_124, %c0_125] : memref<3x3x32x8xf32, #tpu.memory_space<vmem>>, vector<1x1x32x8xf32>
    %91 = vector.shape_cast %90 : vector<1x1x32x8xf32> to vector<32x8xf32>
    %cst_126 = arith.constant dense<0.000000e+00> : vector<4x8xf32>
    %92 = tpu.matmul %89, %91, %cst_126 {dimension_numbers = #tpu.dot_dimension_numbers<[1], [0], [0], [1], [0, 0, 1, 1], [], []>} : vector<4x32xf32>, vector<32x8xf32>, vector<4x8xf32> -> vector<4x8xf32>
    %93 = arith.addf %87, %92 : vector<4x8xf32>
    %cst_127 = arith.constant 0.000000e+00 : f32
    %94 = vector.broadcast %cst_127 : f32 to vector<1x1x6x32xf32>
    %cst_128 = arith.constant 0.000000e+00 : f32
    %95 = vector.broadcast %cst_128 : f32 to vector<1x6x1x32xf32>
    %c0_129 = arith.constant 0 : index
    %c0_130 = arith.constant 0 : index
    %c0_131 = arith.constant 0 : index
    %c0_132 = arith.constant 0 : index
    %96 = vector.load %arg15[%c0_129, %c0_130, %c0_131, %c0_132] : memref<1x6x6x32xf32, #tpu.memory_space<vmem>>, vector<1x1x6x32xf32>
    tpu.vector_store %arg15[%c0_129, %c0_130, %c0_131, %c0_132], %94 {strides = array<i32>} : memref<1x6x6x32xf32, #tpu.memory_space<vmem>>, vector<1x1x6x32xf32>,
    %c0_133 = arith.constant 0 : index
    %c5 = arith.constant 5 : index
    %c0_134 = arith.constant 0 : index
    %c0_135 = arith.constant 0 : index
    %97 = vector.load %arg15[%c0_133, %c5, %c0_134, %c0_135] : memref<1x6x6x32xf32, #tpu.memory_space<vmem>>, vector<1x1x6x32xf32>
    tpu.vector_store %arg15[%c0_133, %c5, %c0_134, %c0_135], %94 {strides = array<i32>} : memref<1x6x6x32xf32, #tpu.memory_space<vmem>>, vector<1x1x6x32xf32>,
    %c0_136 = arith.constant 0 : index
    %c0_137 = arith.constant 0 : index
    %c0_138 = arith.constant 0 : index
    %c0_139 = arith.constant 0 : index
    %98 = vector.load %arg15[%c0_136, %c0_137, %c0_138, %c0_139] : memref<1x6x6x32xf32, #tpu.memory_space<vmem>>, vector<1x6x1x32xf32>
    tpu.vector_store %arg15[%c0_136, %c0_137, %c0_138, %c0_139], %95 {strides = array<i32>} : memref<1x6x6x32xf32, #tpu.memory_space<vmem>>, vector<1x6x1x32xf32>,
    %c0_140 = arith.constant 0 : index
    %c0_141 = arith.constant 0 : index
    %c5_142 = arith.constant 5 : index
    %c0_143 = arith.constant 0 : index
    %99 = vector.load %arg15[%c0_140, %c0_141, %c5_142, %c0_143] : memref<1x6x6x32xf32, #tpu.memory_space<vmem>>, vector<1x6x1x32xf32>
    tpu.vector_store %arg15[%c0_140, %c0_141, %c5_142, %c0_143], %95 {strides = array<i32>} : memref<1x6x6x32xf32, #tpu.memory_space<vmem>>, vector<1x6x1x32xf32>,
    %100 = vector.shape_cast %12 : vector<16x32xf32> to vector<1x4x4x32xf32>
    %c0_144 = arith.constant 0 : index
    %c1_145 = arith.constant 1 : index
    %c1_146 = arith.constant 1 : index
    %c0_147 = arith.constant 0 : index
    %101 = vector.load %arg15[%c0_144, %c1_145, %c1_146, %c0_147] : memref<1x6x6x32xf32, #tpu.memory_space<vmem>>, vector<1x4x4x32xf32>
    tpu.vector_store %arg15[%c0_144, %c1_145, %c1_146, %c0_147], %100 {strides = array<i32>} : memref<1x6x6x32xf32, #tpu.memory_space<vmem>>, vector<1x4x4x32xf32>,
    %cst_148 = arith.constant 0.000000e+00 : f32
    %102 = vector.broadcast %cst_148 : f32 to vector<16x8xf32>
    %c0_149 = arith.constant 0 : index
    %c0_150 = arith.constant 0 : index
    %c0_151 = arith.constant 0 : index
    %c0_152 = arith.constant 0 : index
    %103 = vector.load %arg15[%c0_149, %c0_150, %c0_151, %c0_152] : memref<1x6x6x32xf32, #tpu.memory_space<vmem>>, vector<1x4x4x32xf32>
    %104 = vector.shape_cast %103 : vector<1x4x4x32xf32> to vector<16x32xf32>
    %c0_153 = arith.constant 0 : index
    %c0_154 = arith.constant 0 : index
    %c0_155 = arith.constant 0 : index
    %c0_156 = arith.constant 0 : index
    %105 = vector.load %arg11[%c0_153, %c0_154, %c0_155, %c0_156] : memref<3x3x32x8xf32, #tpu.memory_space<vmem>>, vector<1x1x32x8xf32>
    %106 = vector.shape_cast %105 : vector<1x1x32x8xf32> to vector<32x8xf32>
    %cst_157 = arith.constant dense<0.000000e+00> : vector<16x8xf32>
    %107 = tpu.matmul %104, %106, %cst_157 {dimension_numbers = #tpu.dot_dimension_numbers<[1], [0], [0], [1], [0, 0, 1, 1], [], []>} : vector<16x32xf32>, vector<32x8xf32>, vector<16x8xf32> -> vector<16x8xf32>
    %108 = arith.addf %102, %107 : vector<16x8xf32>
    %c0_158 = arith.constant 0 : index
    %c0_159 = arith.constant 0 : index
    %c1_160 = arith.constant 1 : index
    %c0_161 = arith.constant 0 : index
    %109 = vector.load %arg15[%c0_158, %c0_159, %c1_160, %c0_161] : memref<1x6x6x32xf32, #tpu.memory_space<vmem>>, vector<1x4x4x32xf32>
    %110 = vector.shape_cast %109 : vector<1x4x4x32xf32> to vector<16x32xf32>
    %c0_162 = arith.constant 0 : index
    %c1_163 = arith.constant 1 : index
    %c0_164 = arith.constant 0 : index
    %c0_165 = arith.constant 0 : index
    %111 = vector.load %arg11[%c0_162, %c1_163, %c0_164, %c0_165] : memref<3x3x32x8xf32, #tpu.memory_space<vmem>>, vector<1x1x32x8xf32>
    %112 = vector.shape_cast %111 : vector<1x1x32x8xf32> to vector<32x8xf32>
    %cst_166 = arith.constant dense<0.000000e+00> : vector<16x8xf32>
    %113 = tpu.matmul %110, %112, %cst_166 {dimension_numbers = #tpu.dot_dimension_numbers<[1], [0], [0], [1], [0, 0, 1, 1], [], []>} : vector<16x32xf32>, vector<32x8xf32>, vector<16x8xf32> -> vector<16x8xf32>
    %114 = arith.addf %108, %113 : vector<16x8xf32>
    %c0_167 = arith.constant 0 : index
    %c0_168 = arith.constant 0 : index
    %c2_169 = arith.constant 2 : index
    %c0_170 = arith.constant 0 : index
    %115 = vector.load %arg15[%c0_167, %c0_168, %c2_169, %c0_170] : memref<1x6x6x32xf32, #tpu.memory_space<vmem>>, vector<1x4x4x32xf32>
    %116 = vector.shape_cast %115 : vector<1x4x4x32xf32> to vector<16x32xf32>
    %c0_171 = arith.constant 0 : index
    %c2_172 = arith.constant 2 : index
    %c0_173 = arith.constant 0 : index
    %c0_174 = arith.constant 0 : index
    %117 = vector.load %arg11[%c0_171, %c2_172, %c0_173, %c0_174] : memref<3x3x32x8xf32, #tpu.memory_space<vmem>>, vector<1x1x32x8xf32>
    %118 = vector.shape_cast %117 : vector<1x1x32x8xf32> to vector<32x8xf32>
    %cst_175 = arith.constant dense<0.000000e+00> : vector<16x8xf32>
    %119 = tpu.matmul %116, %118, %cst_175 {dimension_numbers = #tpu.dot_dimension_numbers<[1], [0], [0], [1], [0, 0, 1, 1], [], []>} : vector<16x32xf32>, vector<32x8xf32>, vector<16x8xf32> -> vector<16x8xf32>
    %120 = arith.addf %114, %119 : vector<16x8xf32>
    %c0_176 = arith.constant 0 : index
    %c1_177 = arith.constant 1 : index
    %c0_178 = arith.constant 0 : index
    %c0_179 = arith.constant 0 : index
    %121 = vector.load %arg15[%c0_176, %c1_177, %c0_178, %c0_179] : memref<1x6x6x32xf32, #tpu.memory_space<vmem>>, vector<1x4x4x32xf32>
    %122 = vector.shape_cast %121 : vector<1x4x4x32xf32> to vector<16x32xf32>
    %c1_180 = arith.constant 1 : index
    %c0_181 = arith.constant 0 : index
    %c0_182 = arith.constant 0 : index
    %c0_183 = arith.constant 0 : index
    %123 = vector.load %arg11[%c1_180, %c0_181, %c0_182, %c0_183] : memref<3x3x32x8xf32, #tpu.memory_space<vmem>>, vector<1x1x32x8xf32>
    %124 = vector.shape_cast %123 : vector<1x1x32x8xf32> to vector<32x8xf32>
    %cst_184 = arith.constant dense<0.000000e+00> : vector<16x8xf32>
    %125 = tpu.matmul %122, %124, %cst_184 {dimension_numbers = #tpu.dot_dimension_numbers<[1], [0], [0], [1], [0, 0, 1, 1], [], []>} : vector<16x32xf32>, vector<32x8xf32>, vector<16x8xf32> -> vector<16x8xf32>
    %126 = arith.addf %120, %125 : vector<16x8xf32>
    %c0_185 = arith.constant 0 : index
    %c1_186 = arith.constant 1 : index
    %c1_187 = arith.constant 1 : index
    %c0_188 = arith.constant 0 : index
    %127 = vector.load %arg15[%c0_185, %c1_186, %c1_187, %c0_188] : memref<1x6x6x32xf32, #tpu.memory_space<vmem>>, vector<1x4x4x32xf32>
    %128 = vector.shape_cast %127 : vector<1x4x4x32xf32> to vector<16x32xf32>
    %c1_189 = arith.constant 1 : index
    %c1_190 = arith.constant 1 : index
    %c0_191 = arith.constant 0 : index
    %c0_192 = arith.constant 0 : index
    %129 = vector.load %arg11[%c1_189, %c1_190, %c0_191, %c0_192] : memref<3x3x32x8xf32, #tpu.memory_space<vmem>>, vector<1x1x32x8xf32>
    %130 = vector.shape_cast %129 : vector<1x1x32x8xf32> to vector<32x8xf32>
    %cst_193 = arith.constant dense<0.000000e+00> : vector<16x8xf32>
    %131 = tpu.matmul %128, %130, %cst_193 {dimension_numbers = #tpu.dot_dimension_numbers<[1], [0], [0], [1], [0, 0, 1, 1], [], []>} : vector<16x32xf32>, vector<32x8xf32>, vector<16x8xf32> -> vector<16x8xf32>
    %132 = arith.addf %126, %131 : vector<16x8xf32>
    %c0_194 = arith.constant 0 : index
    %c1_195 = arith.constant 1 : index
    %c2_196 = arith.constant 2 : index
    %c0_197 = arith.constant 0 : index
    %133 = vector.load %arg15[%c0_194, %c1_195, %c2_196, %c0_197] : memref<1x6x6x32xf32, #tpu.memory_space<vmem>>, vector<1x4x4x32xf32>
    %134 = vector.shape_cast %133 : vector<1x4x4x32xf32> to vector<16x32xf32>
    %c1_198 = arith.constant 1 : index
    %c2_199 = arith.constant 2 : index
    %c0_200 = arith.constant 0 : index
    %c0_201 = arith.constant 0 : index
    %135 = vector.load %arg11[%c1_198, %c2_199, %c0_200, %c0_201] : memref<3x3x32x8xf32, #tpu.memory_space<vmem>>, vector<1x1x32x8xf32>
    %136 = vector.shape_cast %135 : vector<1x1x32x8xf32> to vector<32x8xf32>
    %cst_202 = arith.constant dense<0.000000e+00> : vector<16x8xf32>
    %137 = tpu.matmul %134, %136, %cst_202 {dimension_numbers = #tpu.dot_dimension_numbers<[1], [0], [0], [1], [0, 0, 1, 1], [], []>} : vector<16x32xf32>, vector<32x8xf32>, vector<16x8xf32> -> vector<16x8xf32>
    %138 = arith.addf %132, %137 : vector<16x8xf32>
    %c0_203 = arith.constant 0 : index
    %c2_204 = arith.constant 2 : index
    %c0_205 = arith.constant 0 : index
    %c0_206 = arith.constant 0 : index
    %139 = vector.load %arg15[%c0_203, %c2_204, %c0_205, %c0_206] : memref<1x6x6x32xf32, #tpu.memory_space<vmem>>, vector<1x4x4x32xf32>
    %140 = vector.shape_cast %139 : vector<1x4x4x32xf32> to vector<16x32xf32>
    %c2_207 = arith.constant 2 : index
    %c0_208 = arith.constant 0 : index
    %c0_209 = arith.constant 0 : index
    %c0_210 = arith.constant 0 : index
    %141 = vector.load %arg11[%c2_207, %c0_208, %c0_209, %c0_210] : memref<3x3x32x8xf32, #tpu.memory_space<vmem>>, vector<1x1x32x8xf32>
    %142 = vector.shape_cast %141 : vector<1x1x32x8xf32> to vector<32x8xf32>
    %cst_211 = arith.constant dense<0.000000e+00> : vector<16x8xf32>
    %143 = tpu.matmul %140, %142, %cst_211 {dimension_numbers = #tpu.dot_dimension_numbers<[1], [0], [0], [1], [0, 0, 1, 1], [], []>} : vector<16x32xf32>, vector<32x8xf32>, vector<16x8xf32> -> vector<16x8xf32>
    %144 = arith.addf %138, %143 : vector<16x8xf32>
    %c0_212 = arith.constant 0 : index
    %c2_213 = arith.constant 2 : index
    %c1_214 = arith.constant 1 : index
    %c0_215 = arith.constant 0 : index
    %145 = vector.load %arg15[%c0_212, %c2_213, %c1_214, %c0_215] : memref<1x6x6x32xf32, #tpu.memory_space<vmem>>, vector<1x4x4x32xf32>
    %146 = vector.shape_cast %145 : vector<1x4x4x32xf32> to vector<16x32xf32>
    %c2_216 = arith.constant 2 : index
    %c1_217 = arith.constant 1 : index
    %c0_218 = arith.constant 0 : index
    %c0_219 = arith.constant 0 : index
    %147 = vector.load %arg11[%c2_216, %c1_217, %c0_218, %c0_219] : memref<3x3x32x8xf32, #tpu.memory_space<vmem>>, vector<1x1x32x8xf32>
    %148 = vector.shape_cast %147 : vector<1x1x32x8xf32> to vector<32x8xf32>
    %cst_220 = arith.constant dense<0.000000e+00> : vector<16x8xf32>
    %149 = tpu.matmul %146, %148, %cst_220 {dimension_numbers = #tpu.dot_dimension_numbers<[1], [0], [0], [1], [0, 0, 1, 1], [], []>} : vector<16x32xf32>, vector<32x8xf32>, vector<16x8xf32> -> vector<16x8xf32>
    %150 = arith.addf %144, %149 : vector<16x8xf32>
    %c0_221 = arith.constant 0 : index
    %c2_222 = arith.constant 2 : index
    %c2_223 = arith.constant 2 : index
    %c0_224 = arith.constant 0 : index
    %151 = vector.load %arg15[%c0_221, %c2_222, %c2_223, %c0_224] : memref<1x6x6x32xf32, #tpu.memory_space<vmem>>, vector<1x4x4x32xf32>
    %152 = vector.shape_cast %151 : vector<1x4x4x32xf32> to vector<16x32xf32>
    %c2_225 = arith.constant 2 : index
    %c2_226 = arith.constant 2 : index
    %c0_227 = arith.constant 0 : index
    %c0_228 = arith.constant 0 : index
    %153 = vector.load %arg11[%c2_225, %c2_226, %c0_227, %c0_228] : memref<3x3x32x8xf32, #tpu.memory_space<vmem>>, vector<1x1x32x8xf32>
    %154 = vector.shape_cast %153 : vector<1x1x32x8xf32> to vector<32x8xf32>
    %cst_229 = arith.constant dense<0.000000e+00> : vector<16x8xf32>
    %155 = tpu.matmul %152, %154, %cst_229 {dimension_numbers = #tpu.dot_dimension_numbers<[1], [0], [0], [1], [0, 0, 1, 1], [], []>} : vector<16x32xf32>, vector<32x8xf32>, vector<16x8xf32> -> vector<16x8xf32>
    %156 = arith.addf %150, %155 : vector<16x8xf32>
    %cst_230 = arith.constant 0.000000e+00 : f32
    %157 = vector.broadcast %cst_230 : f32 to vector<1x1x10x32xf32>
    %cst_231 = arith.constant 0.000000e+00 : f32
    %158 = vector.broadcast %cst_231 : f32 to vector<1x10x1x32xf32>
    %c0_232 = arith.constant 0 : index
    %c0_233 = arith.constant 0 : index
    %c0_234 = arith.constant 0 : index
    %c0_235 = arith.constant 0 : index
    %159 = vector.load %arg16[%c0_232, %c0_233, %c0_234, %c0_235] : memref<1x10x10x32xf32, #tpu.memory_space<vmem>>, vector<1x1x10x32xf32>
    tpu.vector_store %arg16[%c0_232, %c0_233, %c0_234, %c0_235], %157 {strides = array<i32>} : memref<1x10x10x32xf32, #tpu.memory_space<vmem>>, vector<1x1x10x32xf32>,
    %c0_236 = arith.constant 0 : index
    %c9 = arith.constant 9 : index
    %c0_237 = arith.constant 0 : index
    %c0_238 = arith.constant 0 : index
    %160 = vector.load %arg16[%c0_236, %c9, %c0_237, %c0_238] : memref<1x10x10x32xf32, #tpu.memory_space<vmem>>, vector<1x1x10x32xf32>
    tpu.vector_store %arg16[%c0_236, %c9, %c0_237, %c0_238], %157 {strides = array<i32>} : memref<1x10x10x32xf32, #tpu.memory_space<vmem>>, vector<1x1x10x32xf32>,
    %c0_239 = arith.constant 0 : index
    %c0_240 = arith.constant 0 : index
    %c0_241 = arith.constant 0 : index
    %c0_242 = arith.constant 0 : index
    %161 = vector.load %arg16[%c0_239, %c0_240, %c0_241, %c0_242] : memref<1x10x10x32xf32, #tpu.memory_space<vmem>>, vector<1x10x1x32xf32>
    tpu.vector_store %arg16[%c0_239, %c0_240, %c0_241, %c0_242], %158 {strides = array<i32>} : memref<1x10x10x32xf32, #tpu.memory_space<vmem>>, vector<1x10x1x32xf32>,
    %c0_243 = arith.constant 0 : index
    %c0_244 = arith.constant 0 : index
    %c9_245 = arith.constant 9 : index
    %c0_246 = arith.constant 0 : index
    %162 = vector.load %arg16[%c0_243, %c0_244, %c9_245, %c0_246] : memref<1x10x10x32xf32, #tpu.memory_space<vmem>>, vector<1x10x1x32xf32>
    tpu.vector_store %arg16[%c0_243, %c0_244, %c9_245, %c0_246], %158 {strides = array<i32>} : memref<1x10x10x32xf32, #tpu.memory_space<vmem>>, vector<1x10x1x32xf32>,
    %163 = vector.shape_cast %21 : vector<64x32xf32> to vector<1x8x8x32xf32>
    %c0_247 = arith.constant 0 : index
    %c1_248 = arith.constant 1 : index
    %c1_249 = arith.constant 1 : index
    %c0_250 = arith.constant 0 : index
    %164 = vector.load %arg16[%c0_247, %c1_248, %c1_249, %c0_250] : memref<1x10x10x32xf32, #tpu.memory_space<vmem>>, vector<1x8x8x32xf32>
    tpu.vector_store %arg16[%c0_247, %c1_248, %c1_249, %c0_250], %163 {strides = array<i32>} : memref<1x10x10x32xf32, #tpu.memory_space<vmem>>, vector<1x8x8x32xf32>,
    %cst_251 = arith.constant 0.000000e+00 : f32
    %165 = vector.broadcast %cst_251 : f32 to vector<64x8xf32>
    %c0_252 = arith.constant 0 : index
    %c0_253 = arith.constant 0 : index
    %c0_254 = arith.constant 0 : index
    %c0_255 = arith.constant 0 : index
    %166 = vector.load %arg16[%c0_252, %c0_253, %c0_254, %c0_255] : memref<1x10x10x32xf32, #tpu.memory_space<vmem>>, vector<1x8x8x32xf32>
    %167 = vector.shape_cast %166 : vector<1x8x8x32xf32> to vector<64x32xf32>
    %c0_256 = arith.constant 0 : index
    %c0_257 = arith.constant 0 : index
    %c0_258 = arith.constant 0 : index
    %c0_259 = arith.constant 0 : index
    %168 = vector.load %arg10[%c0_256, %c0_257, %c0_258, %c0_259] : memref<3x3x32x8xf32, #tpu.memory_space<vmem>>, vector<1x1x32x8xf32>
    %169 = vector.shape_cast %168 : vector<1x1x32x8xf32> to vector<32x8xf32>
    %cst_260 = arith.constant dense<0.000000e+00> : vector<64x8xf32>
    %170 = tpu.matmul %167, %169, %cst_260 {dimension_numbers = #tpu.dot_dimension_numbers<[1], [0], [0], [1], [0, 0, 1, 1], [], []>} : vector<64x32xf32>, vector<32x8xf32>, vector<64x8xf32> -> vector<64x8xf32>
    %171 = arith.addf %165, %170 : vector<64x8xf32>
    %c0_261 = arith.constant 0 : index
    %c0_262 = arith.constant 0 : index
    %c1_263 = arith.constant 1 : index
    %c0_264 = arith.constant 0 : index
    %172 = vector.load %arg16[%c0_261, %c0_262, %c1_263, %c0_264] : memref<1x10x10x32xf32, #tpu.memory_space<vmem>>, vector<1x8x8x32xf32>
    %173 = vector.shape_cast %172 : vector<1x8x8x32xf32> to vector<64x32xf32>
    %c0_265 = arith.constant 0 : index
    %c1_266 = arith.constant 1 : index
    %c0_267 = arith.constant 0 : index
    %c0_268 = arith.constant 0 : index
    %174 = vector.load %arg10[%c0_265, %c1_266, %c0_267, %c0_268] : memref<3x3x32x8xf32, #tpu.memory_space<vmem>>, vector<1x1x32x8xf32>
    %175 = vector.shape_cast %174 : vector<1x1x32x8xf32> to vector<32x8xf32>
    %cst_269 = arith.constant dense<0.000000e+00> : vector<64x8xf32>
    %176 = tpu.matmul %173, %175, %cst_269 {dimension_numbers = #tpu.dot_dimension_numbers<[1], [0], [0], [1], [0, 0, 1, 1], [], []>} : vector<64x32xf32>, vector<32x8xf32>, vector<64x8xf32> -> vector<64x8xf32>
    %177 = arith.addf %171, %176 : vector<64x8xf32>
    %c0_270 = arith.constant 0 : index
    %c0_271 = arith.constant 0 : index
    %c2_272 = arith.constant 2 : index
    %c0_273 = arith.constant 0 : index
    %178 = vector.load %arg16[%c0_270, %c0_271, %c2_272, %c0_273] : memref<1x10x10x32xf32, #tpu.memory_space<vmem>>, vector<1x8x8x32xf32>
    %179 = vector.shape_cast %178 : vector<1x8x8x32xf32> to vector<64x32xf32>
    %c0_274 = arith.constant 0 : index
    %c2_275 = arith.constant 2 : index
    %c0_276 = arith.constant 0 : index
    %c0_277 = arith.constant 0 : index
    %180 = vector.load %arg10[%c0_274, %c2_275, %c0_276, %c0_277] : memref<3x3x32x8xf32, #tpu.memory_space<vmem>>, vector<1x1x32x8xf32>
    %181 = vector.shape_cast %180 : vector<1x1x32x8xf32> to vector<32x8xf32>
    %cst_278 = arith.constant dense<0.000000e+00> : vector<64x8xf32>
    %182 = tpu.matmul %179, %181, %cst_278 {dimension_numbers = #tpu.dot_dimension_numbers<[1], [0], [0], [1], [0, 0, 1, 1], [], []>} : vector<64x32xf32>, vector<32x8xf32>, vector<64x8xf32> -> vector<64x8xf32>
    %183 = arith.addf %177, %182 : vector<64x8xf32>
    %c0_279 = arith.constant 0 : index
    %c1_280 = arith.constant 1 : index
    %c0_281 = arith.constant 0 : index
    %c0_282 = arith.constant 0 : index
    %184 = vector.load %arg16[%c0_279, %c1_280, %c0_281, %c0_282] : memref<1x10x10x32xf32, #tpu.memory_space<vmem>>, vector<1x8x8x32xf32>
    %185 = vector.shape_cast %184 : vector<1x8x8x32xf32> to vector<64x32xf32>
    %c1_283 = arith.constant 1 : index
    %c0_284 = arith.constant 0 : index
    %c0_285 = arith.constant 0 : index
    %c0_286 = arith.constant 0 : index
    %186 = vector.load %arg10[%c1_283, %c0_284, %c0_285, %c0_286] : memref<3x3x32x8xf32, #tpu.memory_space<vmem>>, vector<1x1x32x8xf32>
    %187 = vector.shape_cast %186 : vector<1x1x32x8xf32> to vector<32x8xf32>
    %cst_287 = arith.constant dense<0.000000e+00> : vector<64x8xf32>
    %188 = tpu.matmul %185, %187, %cst_287 {dimension_numbers = #tpu.dot_dimension_numbers<[1], [0], [0], [1], [0, 0, 1, 1], [], []>} : vector<64x32xf32>, vector<32x8xf32>, vector<64x8xf32> -> vector<64x8xf32>
    %189 = arith.addf %183, %188 : vector<64x8xf32>
    %c0_288 = arith.constant 0 : index
    %c1_289 = arith.constant 1 : index
    %c1_290 = arith.constant 1 : index
    %c0_291 = arith.constant 0 : index
    %190 = vector.load %arg16[%c0_288, %c1_289, %c1_290, %c0_291] : memref<1x10x10x32xf32, #tpu.memory_space<vmem>>, vector<1x8x8x32xf32>
    %191 = vector.shape_cast %190 : vector<1x8x8x32xf32> to vector<64x32xf32>
    %c1_292 = arith.constant 1 : index
    %c1_293 = arith.constant 1 : index
    %c0_294 = arith.constant 0 : index
    %c0_295 = arith.constant 0 : index
    %192 = vector.load %arg10[%c1_292, %c1_293, %c0_294, %c0_295] : memref<3x3x32x8xf32, #tpu.memory_space<vmem>>, vector<1x1x32x8xf32>
    %193 = vector.shape_cast %192 : vector<1x1x32x8xf32> to vector<32x8xf32>
    %cst_296 = arith.constant dense<0.000000e+00> : vector<64x8xf32>
    %194 = tpu.matmul %191, %193, %cst_296 {dimension_numbers = #tpu.dot_dimension_numbers<[1], [0], [0], [1], [0, 0, 1, 1], [], []>} : vector<64x32xf32>, vector<32x8xf32>, vector<64x8xf32> -> vector<64x8xf32>
    %195 = arith.addf %189, %194 : vector<64x8xf32>
    %c0_297 = arith.constant 0 : index
    %c1_298 = arith.constant 1 : index
    %c2_299 = arith.constant 2 : index
    %c0_300 = arith.constant 0 : index
    %196 = vector.load %arg16[%c0_297, %c1_298, %c2_299, %c0_300] : memref<1x10x10x32xf32, #tpu.memory_space<vmem>>, vector<1x8x8x32xf32>
    %197 = vector.shape_cast %196 : vector<1x8x8x32xf32> to vector<64x32xf32>
    %c1_301 = arith.constant 1 : index
    %c2_302 = arith.constant 2 : index
    %c0_303 = arith.constant 0 : index
    %c0_304 = arith.constant 0 : index
    %198 = vector.load %arg10[%c1_301, %c2_302, %c0_303, %c0_304] : memref<3x3x32x8xf32, #tpu.memory_space<vmem>>, vector<1x1x32x8xf32>
    %199 = vector.shape_cast %198 : vector<1x1x32x8xf32> to vector<32x8xf32>
    %cst_305 = arith.constant dense<0.000000e+00> : vector<64x8xf32>
    %200 = tpu.matmul %197, %199, %cst_305 {dimension_numbers = #tpu.dot_dimension_numbers<[1], [0], [0], [1], [0, 0, 1, 1], [], []>} : vector<64x32xf32>, vector<32x8xf32>, vector<64x8xf32> -> vector<64x8xf32>
    %201 = arith.addf %195, %200 : vector<64x8xf32>
    %c0_306 = arith.constant 0 : index
    %c2_307 = arith.constant 2 : index
    %c0_308 = arith.constant 0 : index
    %c0_309 = arith.constant 0 : index
    %202 = vector.load %arg16[%c0_306, %c2_307, %c0_308, %c0_309] : memref<1x10x10x32xf32, #tpu.memory_space<vmem>>, vector<1x8x8x32xf32>
    %203 = vector.shape_cast %202 : vector<1x8x8x32xf32> to vector<64x32xf32>
    %c2_310 = arith.constant 2 : index
    %c0_311 = arith.constant 0 : index
    %c0_312 = arith.constant 0 : index
    %c0_313 = arith.constant 0 : index
    %204 = vector.load %arg10[%c2_310, %c0_311, %c0_312, %c0_313] : memref<3x3x32x8xf32, #tpu.memory_space<vmem>>, vector<1x1x32x8xf32>
    %205 = vector.shape_cast %204 : vector<1x1x32x8xf32> to vector<32x8xf32>
    %cst_314 = arith.constant dense<0.000000e+00> : vector<64x8xf32>
    %206 = tpu.matmul %203, %205, %cst_314 {dimension_numbers = #tpu.dot_dimension_numbers<[1], [0], [0], [1], [0, 0, 1, 1], [], []>} : vector<64x32xf32>, vector<32x8xf32>, vector<64x8xf32> -> vector<64x8xf32>
    %207 = arith.addf %201, %206 : vector<64x8xf32>
    %c0_315 = arith.constant 0 : index
    %c2_316 = arith.constant 2 : index
    %c1_317 = arith.constant 1 : index
    %c0_318 = arith.constant 0 : index
    %208 = vector.load %arg16[%c0_315, %c2_316, %c1_317, %c0_318] : memref<1x10x10x32xf32, #tpu.memory_space<vmem>>, vector<1x8x8x32xf32>
    %209 = vector.shape_cast %208 : vector<1x8x8x32xf32> to vector<64x32xf32>
    %c2_319 = arith.constant 2 : index
    %c1_320 = arith.constant 1 : index
    %c0_321 = arith.constant 0 : index
    %c0_322 = arith.constant 0 : index
    %210 = vector.load %arg10[%c2_319, %c1_320, %c0_321, %c0_322] : memref<3x3x32x8xf32, #tpu.memory_space<vmem>>, vector<1x1x32x8xf32>
    %211 = vector.shape_cast %210 : vector<1x1x32x8xf32> to vector<32x8xf32>
    %cst_323 = arith.constant dense<0.000000e+00> : vector<64x8xf32>
    %212 = tpu.matmul %209, %211, %cst_323 {dimension_numbers = #tpu.dot_dimension_numbers<[1], [0], [0], [1], [0, 0, 1, 1], [], []>} : vector<64x32xf32>, vector<32x8xf32>, vector<64x8xf32> -> vector<64x8xf32>
    %213 = arith.addf %207, %212 : vector<64x8xf32>
    %c0_324 = arith.constant 0 : index
    %c2_325 = arith.constant 2 : index
    %c2_326 = arith.constant 2 : index
    %c0_327 = arith.constant 0 : index
    %214 = vector.load %arg16[%c0_324, %c2_325, %c2_326, %c0_327] : memref<1x10x10x32xf32, #tpu.memory_space<vmem>>, vector<1x8x8x32xf32>
    %215 = vector.shape_cast %214 : vector<1x8x8x32xf32> to vector<64x32xf32>
    %c2_328 = arith.constant 2 : index
    %c2_329 = arith.constant 2 : index
    %c0_330 = arith.constant 0 : index
    %c0_331 = arith.constant 0 : index
    %216 = vector.load %arg10[%c2_328, %c2_329, %c0_330, %c0_331] : memref<3x3x32x8xf32, #tpu.memory_space<vmem>>, vector<1x1x32x8xf32>
    %217 = vector.shape_cast %216 : vector<1x1x32x8xf32> to vector<32x8xf32>
    %cst_332 = arith.constant dense<0.000000e+00> : vector<64x8xf32>
    %218 = tpu.matmul %215, %217, %cst_332 {dimension_numbers = #tpu.dot_dimension_numbers<[1], [0], [0], [1], [0, 0, 1, 1], [], []>} : vector<64x32xf32>, vector<32x8xf32>, vector<64x8xf32> -> vector<64x8xf32>
    %219 = arith.addf %213, %218 : vector<64x8xf32>
    %cst_333 = arith.constant 0.000000e+00 : f32
    %220 = vector.broadcast %cst_333 : f32 to vector<1x1x18x32xf32>
    %cst_334 = arith.constant 0.000000e+00 : f32
    %221 = vector.broadcast %cst_334 : f32 to vector<1x18x1x32xf32>
    %c0_335 = arith.constant 0 : index
    %c0_336 = arith.constant 0 : index
    %c0_337 = arith.constant 0 : index
    %c0_338 = arith.constant 0 : index
    %222 = vector.load %arg17[%c0_335, %c0_336, %c0_337, %c0_338] : memref<1x18x18x32xf32, #tpu.memory_space<vmem>>, vector<1x1x18x32xf32>
    tpu.vector_store %arg17[%c0_335, %c0_336, %c0_337, %c0_338], %220 {strides = array<i32>} : memref<1x18x18x32xf32, #tpu.memory_space<vmem>>, vector<1x1x18x32xf32>,
    %c0_339 = arith.constant 0 : index
    %c17 = arith.constant 17 : index
    %c0_340 = arith.constant 0 : index
    %c0_341 = arith.constant 0 : index
    %223 = vector.load %arg17[%c0_339, %c17, %c0_340, %c0_341] : memref<1x18x18x32xf32, #tpu.memory_space<vmem>>, vector<1x1x18x32xf32>
    tpu.vector_store %arg17[%c0_339, %c17, %c0_340, %c0_341], %220 {strides = array<i32>} : memref<1x18x18x32xf32, #tpu.memory_space<vmem>>, vector<1x1x18x32xf32>,
    %c0_342 = arith.constant 0 : index
    %c0_343 = arith.constant 0 : index
    %c0_344 = arith.constant 0 : index
    %c0_345 = arith.constant 0 : index
    %224 = vector.load %arg17[%c0_342, %c0_343, %c0_344, %c0_345] : memref<1x18x18x32xf32, #tpu.memory_space<vmem>>, vector<1x18x1x32xf32>
    tpu.vector_store %arg17[%c0_342, %c0_343, %c0_344, %c0_345], %221 {strides = array<i32>} : memref<1x18x18x32xf32, #tpu.memory_space<vmem>>, vector<1x18x1x32xf32>,
    %c0_346 = arith.constant 0 : index
    %c0_347 = arith.constant 0 : index
    %c17_348 = arith.constant 17 : index
    %c0_349 = arith.constant 0 : index
    %225 = vector.load %arg17[%c0_346, %c0_347, %c17_348, %c0_349] : memref<1x18x18x32xf32, #tpu.memory_space<vmem>>, vector<1x18x1x32xf32>
    tpu.vector_store %arg17[%c0_346, %c0_347, %c17_348, %c0_349], %221 {strides = array<i32>} : memref<1x18x18x32xf32, #tpu.memory_space<vmem>>, vector<1x18x1x32xf32>,
    %226 = vector.shape_cast %30 : vector<256x32xf32> to vector<1x16x16x32xf32>
    %c0_350 = arith.constant 0 : index
    %c1_351 = arith.constant 1 : index
    %c1_352 = arith.constant 1 : index
    %c0_353 = arith.constant 0 : index
    %227 = vector.load %arg17[%c0_350, %c1_351, %c1_352, %c0_353] : memref<1x18x18x32xf32, #tpu.memory_space<vmem>>, vector<1x16x16x32xf32>
    tpu.vector_store %arg17[%c0_350, %c1_351, %c1_352, %c0_353], %226 {strides = array<i32>} : memref<1x18x18x32xf32, #tpu.memory_space<vmem>>, vector<1x16x16x32xf32>,
    %cst_354 = arith.constant 0.000000e+00 : f32
    %228 = vector.broadcast %cst_354 : f32 to vector<256x8xf32>
    %c0_355 = arith.constant 0 : index
    %c0_356 = arith.constant 0 : index
    %c0_357 = arith.constant 0 : index
    %c0_358 = arith.constant 0 : index
    %229 = vector.load %arg17[%c0_355, %c0_356, %c0_357, %c0_358] : memref<1x18x18x32xf32, #tpu.memory_space<vmem>>, vector<1x16x16x32xf32>
    %230 = vector.shape_cast %229 : vector<1x16x16x32xf32> to vector<256x32xf32>
    %c0_359 = arith.constant 0 : index
    %c0_360 = arith.constant 0 : index
    %c0_361 = arith.constant 0 : index
    %c0_362 = arith.constant 0 : index
    %231 = vector.load %arg9[%c0_359, %c0_360, %c0_361, %c0_362] : memref<3x3x32x8xf32, #tpu.memory_space<vmem>>, vector<1x1x32x8xf32>
    %232 = vector.shape_cast %231 : vector<1x1x32x8xf32> to vector<32x8xf32>
    %cst_363 = arith.constant dense<0.000000e+00> : vector<256x8xf32>
    %233 = tpu.matmul %230, %232, %cst_363 {dimension_numbers = #tpu.dot_dimension_numbers<[1], [0], [0], [1], [0, 0, 1, 1], [], []>} : vector<256x32xf32>, vector<32x8xf32>, vector<256x8xf32> -> vector<256x8xf32>
    %234 = arith.addf %228, %233 : vector<256x8xf32>
    %c0_364 = arith.constant 0 : index
    %c0_365 = arith.constant 0 : index
    %c1_366 = arith.constant 1 : index
    %c0_367 = arith.constant 0 : index
    %235 = vector.load %arg17[%c0_364, %c0_365, %c1_366, %c0_367] : memref<1x18x18x32xf32, #tpu.memory_space<vmem>>, vector<1x16x16x32xf32>
    %236 = vector.shape_cast %235 : vector<1x16x16x32xf32> to vector<256x32xf32>
    %c0_368 = arith.constant 0 : index
    %c1_369 = arith.constant 1 : index
    %c0_370 = arith.constant 0 : index
    %c0_371 = arith.constant 0 : index
    %237 = vector.load %arg9[%c0_368, %c1_369, %c0_370, %c0_371] : memref<3x3x32x8xf32, #tpu.memory_space<vmem>>, vector<1x1x32x8xf32>
    %238 = vector.shape_cast %237 : vector<1x1x32x8xf32> to vector<32x8xf32>
    %cst_372 = arith.constant dense<0.000000e+00> : vector<256x8xf32>
    %239 = tpu.matmul %236, %238, %cst_372 {dimension_numbers = #tpu.dot_dimension_numbers<[1], [0], [0], [1], [0, 0, 1, 1], [], []>} : vector<256x32xf32>, vector<32x8xf32>, vector<256x8xf32> -> vector<256x8xf32>
    %240 = arith.addf %234, %239 : vector<256x8xf32>
    %c0_373 = arith.constant 0 : index
    %c0_374 = arith.constant 0 : index
    %c2_375 = arith.constant 2 : index
    %c0_376 = arith.constant 0 : index
    %241 = vector.load %arg17[%c0_373, %c0_374, %c2_375, %c0_376] : memref<1x18x18x32xf32, #tpu.memory_space<vmem>>, vector<1x16x16x32xf32>
    %242 = vector.shape_cast %241 : vector<1x16x16x32xf32> to vector<256x32xf32>
    %c0_377 = arith.constant 0 : index
    %c2_378 = arith.constant 2 : index
    %c0_379 = arith.constant 0 : index
    %c0_380 = arith.constant 0 : index
    %243 = vector.load %arg9[%c0_377, %c2_378, %c0_379, %c0_380] : memref<3x3x32x8xf32, #tpu.memory_space<vmem>>, vector<1x1x32x8xf32>
    %244 = vector.shape_cast %243 : vector<1x1x32x8xf32> to vector<32x8xf32>
    %cst_381 = arith.constant dense<0.000000e+00> : vector<256x8xf32>
    %245 = tpu.matmul %242, %244, %cst_381 {dimension_numbers = #tpu.dot_dimension_numbers<[1], [0], [0], [1], [0, 0, 1, 1], [], []>} : vector<256x32xf32>, vector<32x8xf32>, vector<256x8xf32> -> vector<256x8xf32>
    %246 = arith.addf %240, %245 : vector<256x8xf32>
    %c0_382 = arith.constant 0 : index
    %c1_383 = arith.constant 1 : index
    %c0_384 = arith.constant 0 : index
    %c0_385 = arith.constant 0 : index
    %247 = vector.load %arg17[%c0_382, %c1_383, %c0_384, %c0_385] : memref<1x18x18x32xf32, #tpu.memory_space<vmem>>, vector<1x16x16x32xf32>
    %248 = vector.shape_cast %247 : vector<1x16x16x32xf32> to vector<256x32xf32>
    %c1_386 = arith.constant 1 : index
    %c0_387 = arith.constant 0 : index
    %c0_388 = arith.constant 0 : index
    %c0_389 = arith.constant 0 : index
    %249 = vector.load %arg9[%c1_386, %c0_387, %c0_388, %c0_389] : memref<3x3x32x8xf32, #tpu.memory_space<vmem>>, vector<1x1x32x8xf32>
    %250 = vector.shape_cast %249 : vector<1x1x32x8xf32> to vector<32x8xf32>
    %cst_390 = arith.constant dense<0.000000e+00> : vector<256x8xf32>
    %251 = tpu.matmul %248, %250, %cst_390 {dimension_numbers = #tpu.dot_dimension_numbers<[1], [0], [0], [1], [0, 0, 1, 1], [], []>} : vector<256x32xf32>, vector<32x8xf32>, vector<256x8xf32> -> vector<256x8xf32>
    %252 = arith.addf %246, %251 : vector<256x8xf32>
    %c0_391 = arith.constant 0 : index
    %c1_392 = arith.constant 1 : index
    %c1_393 = arith.constant 1 : index
    %c0_394 = arith.constant 0 : index
    %253 = vector.load %arg17[%c0_391, %c1_392, %c1_393, %c0_394] : memref<1x18x18x32xf32, #tpu.memory_space<vmem>>, vector<1x16x16x32xf32>
    %254 = vector.shape_cast %253 : vector<1x16x16x32xf32> to vector<256x32xf32>
    %c1_395 = arith.constant 1 : index
    %c1_396 = arith.constant 1 : index
    %c0_397 = arith.constant 0 : index
    %c0_398 = arith.constant 0 : index
    %255 = vector.load %arg9[%c1_395, %c1_396, %c0_397, %c0_398] : memref<3x3x32x8xf32, #tpu.memory_space<vmem>>, vector<1x1x32x8xf32>
    %256 = vector.shape_cast %255 : vector<1x1x32x8xf32> to vector<32x8xf32>
    %cst_399 = arith.constant dense<0.000000e+00> : vector<256x8xf32>
    %257 = tpu.matmul %254, %256, %cst_399 {dimension_numbers = #tpu.dot_dimension_numbers<[1], [0], [0], [1], [0, 0, 1, 1], [], []>} : vector<256x32xf32>, vector<32x8xf32>, vector<256x8xf32> -> vector<256x8xf32>
    %258 = arith.addf %252, %257 : vector<256x8xf32>
    %c0_400 = arith.constant 0 : index
    %c1_401 = arith.constant 1 : index
    %c2_402 = arith.constant 2 : index
    %c0_403 = arith.constant 0 : index
    %259 = vector.load %arg17[%c0_400, %c1_401, %c2_402, %c0_403] : memref<1x18x18x32xf32, #tpu.memory_space<vmem>>, vector<1x16x16x32xf32>
    %260 = vector.shape_cast %259 : vector<1x16x16x32xf32> to vector<256x32xf32>
    %c1_404 = arith.constant 1 : index
    %c2_405 = arith.constant 2 : index
    %c0_406 = arith.constant 0 : index
    %c0_407 = arith.constant 0 : index
    %261 = vector.load %arg9[%c1_404, %c2_405, %c0_406, %c0_407] : memref<3x3x32x8xf32, #tpu.memory_space<vmem>>, vector<1x1x32x8xf32>
    %262 = vector.shape_cast %261 : vector<1x1x32x8xf32> to vector<32x8xf32>
    %cst_408 = arith.constant dense<0.000000e+00> : vector<256x8xf32>
    %263 = tpu.matmul %260, %262, %cst_408 {dimension_numbers = #tpu.dot_dimension_numbers<[1], [0], [0], [1], [0, 0, 1, 1], [], []>} : vector<256x32xf32>, vector<32x8xf32>, vector<256x8xf32> -> vector<256x8xf32>
    %264 = arith.addf %258, %263 : vector<256x8xf32>
    %c0_409 = arith.constant 0 : index
    %c2_410 = arith.constant 2 : index
    %c0_411 = arith.constant 0 : index
    %c0_412 = arith.constant 0 : index
    %265 = vector.load %arg17[%c0_409, %c2_410, %c0_411, %c0_412] : memref<1x18x18x32xf32, #tpu.memory_space<vmem>>, vector<1x16x16x32xf32>
    %266 = vector.shape_cast %265 : vector<1x16x16x32xf32> to vector<256x32xf32>
    %c2_413 = arith.constant 2 : index
    %c0_414 = arith.constant 0 : index
    %c0_415 = arith.constant 0 : index
    %c0_416 = arith.constant 0 : index
    %267 = vector.load %arg9[%c2_413, %c0_414, %c0_415, %c0_416] : memref<3x3x32x8xf32, #tpu.memory_space<vmem>>, vector<1x1x32x8xf32>
    %268 = vector.shape_cast %267 : vector<1x1x32x8xf32> to vector<32x8xf32>
    %cst_417 = arith.constant dense<0.000000e+00> : vector<256x8xf32>
    %269 = tpu.matmul %266, %268, %cst_417 {dimension_numbers = #tpu.dot_dimension_numbers<[1], [0], [0], [1], [0, 0, 1, 1], [], []>} : vector<256x32xf32>, vector<32x8xf32>, vector<256x8xf32> -> vector<256x8xf32>
    %270 = arith.addf %264, %269 : vector<256x8xf32>
    %c0_418 = arith.constant 0 : index
    %c2_419 = arith.constant 2 : index
    %c1_420 = arith.constant 1 : index
    %c0_421 = arith.constant 0 : index
    %271 = vector.load %arg17[%c0_418, %c2_419, %c1_420, %c0_421] : memref<1x18x18x32xf32, #tpu.memory_space<vmem>>, vector<1x16x16x32xf32>
    %272 = vector.shape_cast %271 : vector<1x16x16x32xf32> to vector<256x32xf32>
    %c2_422 = arith.constant 2 : index
    %c1_423 = arith.constant 1 : index
    %c0_424 = arith.constant 0 : index
    %c0_425 = arith.constant 0 : index
    %273 = vector.load %arg9[%c2_422, %c1_423, %c0_424, %c0_425] : memref<3x3x32x8xf32, #tpu.memory_space<vmem>>, vector<1x1x32x8xf32>
    %274 = vector.shape_cast %273 : vector<1x1x32x8xf32> to vector<32x8xf32>
    %cst_426 = arith.constant dense<0.000000e+00> : vector<256x8xf32>
    %275 = tpu.matmul %272, %274, %cst_426 {dimension_numbers = #tpu.dot_dimension_numbers<[1], [0], [0], [1], [0, 0, 1, 1], [], []>} : vector<256x32xf32>, vector<32x8xf32>, vector<256x8xf32> -> vector<256x8xf32>
    %276 = arith.addf %270, %275 : vector<256x8xf32>
    %c0_427 = arith.constant 0 : index
    %c2_428 = arith.constant 2 : index
    %c2_429 = arith.constant 2 : index
    %c0_430 = arith.constant 0 : index
    %277 = vector.load %arg17[%c0_427, %c2_428, %c2_429, %c0_430] : memref<1x18x18x32xf32, #tpu.memory_space<vmem>>, vector<1x16x16x32xf32>
    %278 = vector.shape_cast %277 : vector<1x16x16x32xf32> to vector<256x32xf32>
    %c2_431 = arith.constant 2 : index
    %c2_432 = arith.constant 2 : index
    %c0_433 = arith.constant 0 : index
    %c0_434 = arith.constant 0 : index
    %279 = vector.load %arg9[%c2_431, %c2_432, %c0_433, %c0_434] : memref<3x3x32x8xf32, #tpu.memory_space<vmem>>, vector<1x1x32x8xf32>
    %280 = vector.shape_cast %279 : vector<1x1x32x8xf32> to vector<32x8xf32>
    %cst_435 = arith.constant dense<0.000000e+00> : vector<256x8xf32>
    %281 = tpu.matmul %278, %280, %cst_435 {dimension_numbers = #tpu.dot_dimension_numbers<[1], [0], [0], [1], [0, 0, 1, 1], [], []>} : vector<256x32xf32>, vector<32x8xf32>, vector<256x8xf32> -> vector<256x8xf32>
    %282 = arith.addf %276, %281 : vector<256x8xf32>
    %283 = vector.shape_cast %93 : vector<4x8xf32> to vector<2x1x2x1x8xf32>
    %284 = vector.shape_cast %283 : vector<2x1x2x1x8xf32> to vector<2x1x2x1x8xf32>
    %285 = vector.broadcast %284 : vector<2x1x2x1x8xf32> to vector<2x8x2x8x8xf32>
    %286 = vector.shape_cast %285 : vector<2x8x2x8x8xf32> to vector<256x8xf32>
    %287 = vector.shape_cast %156 : vector<16x8xf32> to vector<4x1x4x1x8xf32>
    %288 = vector.shape_cast %287 : vector<4x1x4x1x8xf32> to vector<4x1x4x1x8xf32>
    %289 = vector.broadcast %288 : vector<4x1x4x1x8xf32> to vector<4x4x4x4x8xf32>
    %290 = vector.shape_cast %289 : vector<4x4x4x4x8xf32> to vector<256x8xf32>
    %291 = vector.shape_cast %219 : vector<64x8xf32> to vector<8x1x8x1x8xf32>
    %292 = vector.shape_cast %291 : vector<8x1x8x1x8xf32> to vector<8x1x8x1x8xf32>
    %293 = vector.broadcast %292 : vector<8x1x8x1x8xf32> to vector<8x2x8x2x8xf32>
    %294 = vector.shape_cast %293 : vector<8x2x8x2x8xf32> to vector<256x8xf32>
    %295 = tpu.concatenate %286, %290, %294, %282 in 1 : vector<256x8xf32>, vector<256x8xf32>, vector<256x8xf32>, vector<256x8xf32> -> vector<256x32xf32>
    %cst_436 = arith.constant 0.000000e+00 : f32
    %296 = vector.broadcast %cst_436 : f32 to vector<1x1x18x32xf32>
    %cst_437 = arith.constant 0.000000e+00 : f32
    %297 = vector.broadcast %cst_437 : f32 to vector<1x18x1x32xf32>
    %c0_438 = arith.constant 0 : index
    %c0_439 = arith.constant 0 : index
    %c0_440 = arith.constant 0 : index
    %c0_441 = arith.constant 0 : index
    %298 = vector.load %arg13[%c0_438, %c0_439, %c0_440, %c0_441] : memref<1x18x18x32xf32, #tpu.memory_space<vmem>>, vector<1x1x18x32xf32>
    tpu.vector_store %arg13[%c0_438, %c0_439, %c0_440, %c0_441], %296 {strides = array<i32>} : memref<1x18x18x32xf32, #tpu.memory_space<vmem>>, vector<1x1x18x32xf32>,
    %c0_442 = arith.constant 0 : index
    %c17_443 = arith.constant 17 : index
    %c0_444 = arith.constant 0 : index
    %c0_445 = arith.constant 0 : index
    %299 = vector.load %arg13[%c0_442, %c17_443, %c0_444, %c0_445] : memref<1x18x18x32xf32, #tpu.memory_space<vmem>>, vector<1x1x18x32xf32>
    tpu.vector_store %arg13[%c0_442, %c17_443, %c0_444, %c0_445], %296 {strides = array<i32>} : memref<1x18x18x32xf32, #tpu.memory_space<vmem>>, vector<1x1x18x32xf32>,
    %c0_446 = arith.constant 0 : index
    %c0_447 = arith.constant 0 : index
    %c0_448 = arith.constant 0 : index
    %c0_449 = arith.constant 0 : index
    %300 = vector.load %arg13[%c0_446, %c0_447, %c0_448, %c0_449] : memref<1x18x18x32xf32, #tpu.memory_space<vmem>>, vector<1x18x1x32xf32>
    tpu.vector_store %arg13[%c0_446, %c0_447, %c0_448, %c0_449], %297 {strides = array<i32>} : memref<1x18x18x32xf32, #tpu.memory_space<vmem>>, vector<1x18x1x32xf32>,
    %c0_450 = arith.constant 0 : index
    %c0_451 = arith.constant 0 : index
    %c17_452 = arith.constant 17 : index
    %c0_453 = arith.constant 0 : index
    %301 = vector.load %arg13[%c0_450, %c0_451, %c17_452, %c0_453] : memref<1x18x18x32xf32, #tpu.memory_space<vmem>>, vector<1x18x1x32xf32>
    tpu.vector_store %arg13[%c0_450, %c0_451, %c17_452, %c0_453], %297 {strides = array<i32>} : memref<1x18x18x32xf32, #tpu.memory_space<vmem>>, vector<1x18x1x32xf32>,
    %302 = vector.shape_cast %295 : vector<256x32xf32> to vector<1x16x16x32xf32>
    %c0_454 = arith.constant 0 : index
    %c1_455 = arith.constant 1 : index
    %c1_456 = arith.constant 1 : index
    %c0_457 = arith.constant 0 : index
    %303 = vector.load %arg13[%c0_454, %c1_455, %c1_456, %c0_457] : memref<1x18x18x32xf32, #tpu.memory_space<vmem>>, vector<1x16x16x32xf32>
    tpu.vector_store %arg13[%c0_454, %c1_455, %c1_456, %c0_457], %302 {strides = array<i32>} : memref<1x18x18x32xf32, #tpu.memory_space<vmem>>, vector<1x16x16x32xf32>,
    return
  }
  func.func @transform_0(%arg0: i32) -> (i32, i32, i32, i32) {
    %c0_i32 = arith.constant 0 : i32
    %c0_i32_0 = arith.constant 0 : i32
    %c0_i32_1 = arith.constant 0 : i32
    %c0_i32_2 = arith.constant 0 : i32
    return %arg0, %c0_i32, %c0_i32_0, %c0_i32_1 : i32, i32, i32, i32
  }
  func.func @transform_1(%arg0: i32) -> (i32, i32, i32, i32) {
    %c0_i32 = arith.constant 0 : i32
    %c0_i32_0 = arith.constant 0 : i32
    %c0_i32_1 = arith.constant 0 : i32
    %c0_i32_2 = arith.constant 0 : i32
    return %arg0, %c0_i32, %c0_i32_0, %c0_i32_1 : i32, i32, i32, i32
  }
  func.func @transform_2(%arg0: i32) -> (i32, i32, i32, i32) {
    %c0_i32 = arith.constant 0 : i32
    %c0_i32_0 = arith.constant 0 : i32
    %c0_i32_1 = arith.constant 0 : i32
    %c0_i32_2 = arith.constant 0 : i32
    return %arg0, %c0_i32, %c0_i32_0, %c0_i32_1 : i32, i32, i32, i32
  }
  func.func @transform_3(%arg0: i32) -> (i32, i32, i32, i32) {
    %c0_i32 = arith.constant 0 : i32
    %c0_i32_0 = arith.constant 0 : i32
    %c0_i32_1 = arith.constant 0 : i32
    %c0_i32_2 = arith.constant 0 : i32
    return %arg0, %c0_i32, %c0_i32_0, %c0_i32_1 : i32, i32, i32, i32
  }
  func.func @transform_4(%arg0: i32) -> (i32, i32) {
    %c0_i32 = arith.constant 0 : i32
    %c0_i32_0 = arith.constant 0 : i32
    %c0_i32_1 = arith.constant 0 : i32
    return %c0_i32, %c0_i32_0 : i32, i32
  }
  func.func @transform_5(%arg0: i32) -> (i32, i32) {
    %c0_i32 = arith.constant 0 : i32
    %c0_i32_0 = arith.constant 0 : i32
    %c0_i32_1 = arith.constant 0 : i32
    return %c0_i32, %c0_i32_0 : i32, i32
  }
  func.func @transform_6(%arg0: i32) -> (i32, i32) {
    %c0_i32 = arith.constant 0 : i32
    %c0_i32_0 = arith.constant 0 : i32
    %c0_i32_1 = arith.constant 0 : i32
    return %c0_i32, %c0_i32_0 : i32, i32
  }
  func.func @transform_7(%arg0: i32) -> (i32, i32) {
    %c0_i32 = arith.constant 0 : i32
    %c0_i32_0 = arith.constant 0 : i32
    %c0_i32_1 = arith.constant 0 : i32
    return %c0_i32, %c0_i32_0 : i32, i32
  }
  func.func @transform_8(%arg0: i32) -> (i32, i32, i32, i32) {
    %c0_i32 = arith.constant 0 : i32
    %c0_i32_0 = arith.constant 0 : i32
    %c0_i32_1 = arith.constant 0 : i32
    %c0_i32_2 = arith.constant 0 : i32
    %c0_i32_3 = arith.constant 0 : i32
    return %c0_i32, %c0_i32_0, %c0_i32_1, %c0_i32_2 : i32, i32, i32, i32
  }
  func.func @transform_9(%arg0: i32) -> (i32, i32, i32, i32) {
    %c0_i32 = arith.constant 0 : i32
    %c0_i32_0 = arith.constant 0 : i32
    %c0_i32_1 = arith.constant 0 : i32
    %c0_i32_2 = arith.constant 0 : i32
    %c0_i32_3 = arith.constant 0 : i32
    return %c0_i32, %c0_i32_0, %c0_i32_1, %c0_i32_2 : i32, i32, i32, i32
  }
  func.func @transform_10(%arg0: i32) -> (i32, i32, i32, i32) {
    %c0_i32 = arith.constant 0 : i32
    %c0_i32_0 = arith.constant 0 : i32
    %c0_i32_1 = arith.constant 0 : i32
    %c0_i32_2 = arith.constant 0 : i32
    %c0_i32_3 = arith.constant 0 : i32
    return %c0_i32, %c0_i32_0, %c0_i32_1, %c0_i32_2 : i32, i32, i32, i32
  }
  func.func @transform_11(%arg0: i32) -> (i32, i32, i32, i32) {
    %c0_i32 = arith.constant 0 : i32
    %c0_i32_0 = arith.constant 0 : i32
    %c0_i32_1 = arith.constant 0 : i32
    %c0_i32_2 = arith.constant 0 : i32
    %c0_i32_3 = arith.constant 0 : i32
    return %c0_i32, %c0_i32_0, %c0_i32_1, %c0_i32_2 : i32, i32, i32, i32
  }
  func.func @transform_12(%arg0: i32) -> (i32, i32, i32, i32) {
    %c0_i32 = arith.constant 0 : i32
    %c0_i32_0 = arith.constant 0 : i32
    %c0_i32_1 = arith.constant 0 : i32
    %c0_i32_2 = arith.constant 0 : i32
    return %arg0, %c0_i32, %c0_i32_0, %c0_i32_1 : i32, i32, i32, i32
  }
}

</mosaic_0001>

<llo_original>
// kernel: tpu_custom_call.1
$region0: #{tpu_custom_call.1}
  #allocation0 [shape = 'u32[]', space=smem, size = 0x4, offset = 0x4, fixed_abs, tag = 'smem constant byte address 0x4 - core index']
  #allocation1 [shape = 'u32[144,128]{1,0:T(1,128)}', space=vmem, size = 0x12000, scoped, tag = 'internal scratch']
  #allocation2 [shape = 'f32[1,4,4,32]{3,2,1,0:T(4,128)}', space=vmem, size = 0x2000, scoped, tag = 'scratch operand']
  #allocation3 [shape = 'f32[1,6,6,32]{3,2,1,0:T(8,128)}', space=vmem, size = 0x6000, scoped, tag = 'scratch operand']
  #allocation4 [shape = 'f32[1,10,10,32]{3,2,1,0:T(8,128)}', space=vmem, size = 0x14000, scoped, tag = 'scratch operand']
  #allocation5 [shape = 'f32[1,18,18,32]{3,2,1,0:T(8,128)}', space=vmem, size = 0x36000, scoped, tag = 'scratch operand']
  %s0 = inlined_call_operand.vmem [shape: f32[2,16,16,8], index: 0, kind: input, shape index: {}]
  %s1 = inlined_call_operand.vmem [shape: f32[2,8,8,16], index: 1, kind: input, shape index: {}]
  %s2 = inlined_call_operand.vmem [shape: f32[2,4,4,32], index: 2, kind: input, shape index: {}]
  %s3 = inlined_call_operand.vmem [shape: f32[2,2,2,64], index: 3, kind: input, shape index: {}]
  %s4 = inlined_call_operand.vmem [shape: f32[8,32], index: 4, kind: input, shape index: {}]
  %s5 = inlined_call_operand.vmem [shape: f32[16,32], index: 5, kind: input, shape index: {}]
  %s6 = inlined_call_operand.vmem [shape: f32[32,32], index: 6, kind: input, shape index: {}]
  %s7 = inlined_call_operand.vmem [shape: f32[64,32], index: 7, kind: input, shape index: {}]
  %s8 = inlined_call_operand.vmem [shape: f32[3,3,32,8], index: 8, kind: input, shape index: {}]
  %s9 = inlined_call_operand.vmem [shape: f32[3,3,32,8], index: 9, kind: input, shape index: {}]
  %s10 = inlined_call_operand.vmem [shape: f32[3,3,32,8], index: 10, kind: input, shape index: {}]
  %s11 = inlined_call_operand.vmem [shape: f32[3,3,32,8], index: 11, kind: input, shape index: {}]
  %s12 = inlined_call_operand.vmem [shape: f32[2,18,18,32], index: 12, kind: output, shape index: {}]
  %s13 = sld [smem:[#allocation0]]
  $region81: #{tpu_custom_call.1} parent=0
    _
  %s15 = ssub.s32 1, %s13
  %s16 = scalar_select 0, %s15, %s13
  loop: start=0, step=1, limit=4
  $region2: #{tpu_custom_call.1} parent=0 // loop_pre_header
    _
  $region3: #{tpu_custom_call.1} parent=0 // loop_header
    %s18 = sphi 0, %s22
    %p19 = scmp.ge.s32.totalorder %s18, 4
    %s28 = sphi 0, %s30
    %s31 = sphi 0, %s28
    %s32 = sphi 0, %s31
    %s48 = sphi 0, %s32
    %s54 = sphi 0, %s56
    %s57 = sphi 0, %s54
    %s58 = sphi 0, %s57
    %s74 = sphi 0, %s58
    %s80 = sphi 0, %s82
    %s83 = sphi 0, %s80
    %s84 = sphi 0, %s83
    %s100 = sphi 0, %s84
    %s106 = sphi 0, %s108
    %s109 = sphi 0, %s106
    %s110 = sphi 0, %s109
    %s126 = sphi 0, %s110
    %s130 = sphi 0, %s130
    %s132 = sphi 0, %s130
    %s133 = sphi 0, %s132
    %s147 = sphi 0, %s133
    %s151 = sphi 0, %s151
    %s153 = sphi 0, %s151
    %s154 = sphi 0, %s153
    %s168 = sphi 0, %s154
    %s172 = sphi 0, %s172
    %s174 = sphi 0, %s172
    %s175 = sphi 0, %s174
    %s189 = sphi 0, %s175
    %s193 = sphi 0, %s193
    %s195 = sphi 0, %s193
    %s196 = sphi 0, %s195
    %s210 = sphi 0, %s196
    %s214 = sphi 0, %s214
    %s216 = sphi 0, %s214
    %s217 = sphi 0, %s216
    %s231 = sphi 0, %s217
    %s235 = sphi 0, %s235
    %s237 = sphi 0, %s235
    %s238 = sphi 0, %s237
    %s252 = sphi 0, %s238
    %s256 = sphi 0, %s256
    %s258 = sphi 0, %s256
    %s259 = sphi 0, %s258
    %s273 = sphi 0, %s259
    %s277 = sphi 0, %s277
    %s279 = sphi 0, %s277
    %s280 = sphi 0, %s279
    %s294 = sphi 0, %s280
    %s300 = sphi 0, %s302
    %s303 = sphi 0, %s300
    %s304 = sphi 0, %s303
    %s320 = sphi 0, %s304
  $region4: #{tpu_custom_call.1} parent=0 // loop_header_branch
    %21 = sbr.rel (%p19) target = $region8
  $region5: #{tpu_custom_call.1} parent=0 // loop_body
    %s23 = ssub.s32 %s18, 1
    %s24 = ssub.s32 %s18, 2
    %s25 = sadd.s32 %s18, 1
    %s26 = ssub.s32 %s18, %s25
    %p27 = scmp.eq.s32.totalorder %s26, 0
    %s29 = sadd.s32 %s28, 1
    %s30 = scalar_select %p27, %s28, %s29
    %p33 = pneg %p27
    %p34 = scmp.eq.s32.totalorder %s18, 1
    %p35 = por %p33, %p34
    %p36 = scmp.ne.s32.totalorder %s28, %s31
    %p37 = scmp.eq.s32.totalorder %s18, 0
    %p38 = por %p36, %p37
    %p39 = scmp.ne.s32.totalorder %s28, %s31
    %p40 = scmp.eq.s32.totalorder %s23, 1
    %p41 = por %p39, %p40
    %p42 = scmp.ne.s32.totalorder %s31, %s32
    %p43 = scmp.eq.s32.totalorder %s23, 0
    %p44 = por %p42, %p43
    %p45 = scmp.ne.s32.totalorder %s31, %s32
    %p46 = scmp.eq.s32.totalorder %s24, 1
    %p47 = por %p45, %p46
    %p49 = scmp.ne.s32.totalorder %s32, %s48
    %p50 = scmp.eq.s32.totalorder %s24, 0
    %p51 = por %p49, %p50
    %s52 = ssub.s32 %s18, %s25
    %p53 = scmp.eq.s32.totalorder %s52, 0
    %s55 = sadd.s32 %s54, 1
    %s56 = scalar_select %p53, %s54, %s55
    %p59 = pneg %p53
    %p60 = scmp.eq.s32.totalorder %s18, 1
    %p61 = por %p59, %p60
    %p62 = scmp.ne.s32.totalorder %s54, %s57
    %p63 = scmp.eq.s32.totalorder %s18, 0
    %p64 = por %p62, %p63
    %p65 = scmp.ne.s32.totalorder %s54, %s57
    %p66 = scmp.eq.s32.totalorder %s23, 1
    %p67 = por %p65, %p66
    %p68 = scmp.ne.s32.totalorder %s57, %s58
    %p69 = scmp.eq.s32.totalorder %s23, 0
    %p70 = por %p68, %p69
    %p71 = scmp.ne.s32.totalorder %s57, %s58
    %p72 = scmp.eq.s32.totalorder %s24, 1
    %p73 = por %p71, %p72
    %p75 = scmp.ne.s32.totalorder %s58, %s74
    %p76 = scmp.eq.s32.totalorder %s24, 0
    %p77 = por %p75, %p76
    %s78 = ssub.s32 %s18, %s25
    %p79 = scmp.eq.s32.totalorder %s78, 0
    %s81 = sadd.s32 %s80, 1
    %s82 = scalar_select %p79, %s80, %s81
    %p85 = pneg %p79
    %p86 = scmp.eq.s32.totalorder %s18, 1
    %p87 = por %p85, %p86
    %p88 = scmp.ne.s32.totalorder %s80, %s83
    %p89 = scmp.eq.s32.totalorder %s18, 0
    %p90 = por %p88, %p89
    %p91 = scmp.ne.s32.totalorder %s80, %s83
    %p92 = scmp.eq.s32.totalorder %s23, 1
    %p93 = por %p91, %p92
    %p94 = scmp.ne.s32.totalorder %s83, %s84
    %p95 = scmp.eq.s32.totalorder %s23, 0
    %p96 = por %p94, %p95
    %p97 = scmp.ne.s32.totalorder %s83, %s84
    %p98 = scmp.eq.s32.totalorder %s24, 1
    %p99 = por %p97, %p98
    %p101 = scmp.ne.s32.totalorder %s84, %s100
    %p102 = scmp.eq.s32.totalorder %s24, 0
    %p103 = por %p101, %p102
    %s104 = ssub.s32 %s18, %s25
    %p105 = scmp.eq.s32.totalorder %s104, 0
    %s107 = sadd.s32 %s106, 1
    %s108 = scalar_select %p105, %s106, %s107
    %p111 = pneg %p105
    %p112 = scmp.eq.s32.totalorder %s18, 1
    %p113 = por %p111, %p112
    %p114 = scmp.ne.s32.totalorder %s106, %s109
    %p115 = scmp.eq.s32.totalorder %s18, 0
    %p116 = por %p114, %p115
    %p117 = scmp.ne.s32.totalorder %s106, %s109
    %p118 = scmp.eq.s32.totalorder %s23, 1
    %p119 = por %p117, %p118
    %p120 = scmp.ne.s32.totalorder %s109, %s110
    %p121 = scmp.eq.s32.totalorder %s23, 0
    %p122 = por %p120, %p121
    %p123 = scmp.ne.s32.totalorder %s109, %s110
    %p124 = scmp.eq.s32.totalorder %s24, 1
    %p125 = por %p123, %p124
    %p127 = scmp.ne.s32.totalorder %s110, %s126
    %p128 = scmp.eq.s32.totalorder %s24, 0
    %p129 = por %p127, %p128
    %s131 = sadd.s32 %s130, 1
    %p134 = scmp.eq.s32.totalorder %s18, 1
    %p135 = scmp.ne.s32.totalorder %s130, %s132
    %p136 = scmp.eq.s32.totalorder %s18, 0
    %p137 = por %p135, %p136
    %p138 = scmp.ne.s32.totalorder %s130, %s132
    %p139 = scmp.eq.s32.totalorder %s23, 1
    %p140 = por %p138, %p139
    %p141 = scmp.ne.s32.totalorder %s132, %s133
    %p142 = scmp.eq.s32.totalorder %s23, 0
    %p143 = por %p141, %p142
    %p144 = scmp.ne.s32.totalorder %s132, %s133
    %p145 = scmp.eq.s32.totalorder %s24, 1
    %p146 = por %p144, %p145
    %p148 = scmp.ne.s32.totalorder %s133, %s147
    %p149 = scmp.eq.s32.totalorder %s24, 0
    %p150 = por %p148, %p149
    %s152 = sadd.s32 %s151, 1
    %p155 = scmp.eq.s32.totalorder %s18, 1
    %p156 = scmp.ne.s32.totalorder %s151, %s153
    %p157 = scmp.eq.s32.totalorder %s18, 0
    %p158 = por %p156, %p157
    %p159 = scmp.ne.s32.totalorder %s151, %s153
    %p160 = scmp.eq.s32.totalorder %s23, 1
    %p161 = por %p159, %p160
    %p162 = scmp.ne.s32.totalorder %s153, %s154
    %p163 = scmp.eq.s32.totalorder %s23, 0
    %p164 = por %p162, %p163
    %p165 = scmp.ne.s32.totalorder %s153, %s154
    %p166 = scmp.eq.s32.totalorder %s24, 1
    %p167 = por %p165, %p166
    %p169 = scmp.ne.s32.totalorder %s154, %s168
    %p170 = scmp.eq.s32.totalorder %s24, 0
    %p171 = por %p169, %p170
    %s173 = sadd.s32 %s172, 1
    %p176 = scmp.eq.s32.totalorder %s18, 1
    %p177 = scmp.ne.s32.totalorder %s172, %s174
    %p178 = scmp.eq.s32.totalorder %s18, 0
    %p179 = por %p177, %p178
    %p180 = scmp.ne.s32.totalorder %s172, %s174
    %p181 = scmp.eq.s32.totalorder %s23, 1
    %p182 = por %p180, %p181
    %p183 = scmp.ne.s32.totalorder %s174, %s175
    %p184 = scmp.eq.s32.totalorder %s23, 0
    %p185 = por %p183, %p184
    %p186 = scmp.ne.s32.totalorder %s174, %s175
    %p187 = scmp.eq.s32.totalorder %s24, 1
    %p188 = por %p186, %p187
    %p190 = scmp.ne.s32.totalorder %s175, %s189
    %p191 = scmp.eq.s32.totalorder %s24, 0
    %p192 = por %p190, %p191
    %s194 = sadd.s32 %s193, 1
    %p197 = scmp.eq.s32.totalorder %s18, 1
    %p198 = scmp.ne.s32.totalorder %s193, %s195
    %p199 = scmp.eq.s32.totalorder %s18, 0
    %p200 = por %p198, %p199
    %p201 = scmp.ne.s32.totalorder %s193, %s195
    %p202 = scmp.eq.s32.totalorder %s23, 1
    %p203 = por %p201, %p202
    %p204 = scmp.ne.s32.totalorder %s195, %s196
    %p205 = scmp.eq.s32.totalorder %s23, 0
    %p206 = por %p204, %p205
    %p207 = scmp.ne.s32.totalorder %s195, %s196
    %p208 = scmp.eq.s32.totalorder %s24, 1
    %p209 = por %p207, %p208
    %p211 = scmp.ne.s32.totalorder %s196, %s210
    %p212 = scmp.eq.s32.totalorder %s24, 0
    %p213 = por %p211, %p212
    %s215 = sadd.s32 %s214, 1
    %p218 = scmp.eq.s32.totalorder %s18, 1
    %p219 = scmp.ne.s32.totalorder %s214, %s216
    %p220 = scmp.eq.s32.totalorder %s18, 0
    %p221 = por %p219, %p220
    %p222 = scmp.ne.s32.totalorder %s214, %s216
    %p223 = scmp.eq.s32.totalorder %s23, 1
    %p224 = por %p222, %p223
    %p225 = scmp.ne.s32.totalorder %s216, %s217
    %p226 = scmp.eq.s32.totalorder %s23, 0
    %p227 = por %p225, %p226
    %p228 = scmp.ne.s32.totalorder %s216, %s217
    %p229 = scmp.eq.s32.totalorder %s24, 1
    %p230 = por %p228, %p229
    %p232 = scmp.ne.s32.totalorder %s217, %s231
    %p233 = scmp.eq.s32.totalorder %s24, 0
    %p234 = por %p232, %p233
    %s236 = sadd.s32 %s235, 1
    %p239 = scmp.eq.s32.totalorder %s18, 1
    %p240 = scmp.ne.s32.totalorder %s235, %s237
    %p241 = scmp.eq.s32.totalorder %s18, 0
    %p242 = por %p240, %p241
    %p243 = scmp.ne.s32.totalorder %s235, %s237
    %p244 = scmp.eq.s32.totalorder %s23, 1
    %p245 = por %p243, %p244
    %p246 = scmp.ne.s32.totalorder %s237, %s238
    %p247 = scmp.eq.s32.totalorder %s23, 0
    %p248 = por %p246, %p247
    %p249 = scmp.ne.s32.totalorder %s237, %s238
    %p250 = scmp.eq.s32.totalorder %s24, 1
    %p251 = por %p249, %p250
    %p253 = scmp.ne.s32.totalorder %s238, %s252
    %p254 = scmp.eq.s32.totalorder %s24, 0
    %p255 = por %p253, %p254
    %s257 = sadd.s32 %s256, 1
    %p260 = scmp.eq.s32.totalorder %s18, 1
    %p261 = scmp.ne.s32.totalorder %s256, %s258
    %p262 = scmp.eq.s32.totalorder %s18, 0
    %p263 = por %p261, %p262
    %p264 = scmp.ne.s32.totalorder %s256, %s258
    %p265 = scmp.eq.s32.totalorder %s23, 1
    %p266 = por %p264, %p265
    %p267 = scmp.ne.s32.totalorder %s258, %s259
    %p268 = scmp.eq.s32.totalorder %s23, 0
    %p269 = por %p267, %p268
    %p270 = scmp.ne.s32.totalorder %s258, %s259
    %p271 = scmp.eq.s32.totalorder %s24, 1
    %p272 = por %p270, %p271
    %p274 = scmp.ne.s32.totalorder %s259, %s273
    %p275 = scmp.eq.s32.totalorder %s24, 0
    %p276 = por %p274, %p275
    %s278 = sadd.s32 %s277, 1
    %p281 = scmp.eq.s32.totalorder %s18, 1
    %p282 = scmp.ne.s32.totalorder %s277, %s279
    %p283 = scmp.eq.s32.totalorder %s18, 0
    %p284 = por %p282, %p283
    %p285 = scmp.ne.s32.totalorder %s277, %s279
    %p286 = scmp.eq.s32.totalorder %s23, 1
    %p287 = por %p285, %p286
    %p288 = scmp.ne.s32.totalorder %s279, %s280
    %p289 = scmp.eq.s32.totalorder %s23, 0
    %p290 = por %p288, %p289
    %p291 = scmp.ne.s32.totalorder %s279, %s280
    %p292 = scmp.eq.s32.totalorder %s24, 1
    %p293 = por %p291, %p292
    %p295 = scmp.ne.s32.totalorder %s280, %s294
    %p296 = scmp.eq.s32.totalorder %s24, 0
    %p297 = por %p295, %p296
    %s298 = ssub.s32 %s18, %s25
    %p299 = scmp.eq.s32.totalorder %s298, 0
    %s301 = sadd.s32 %s300, 1
    %s302 = scalar_select %p299, %s300, %s301
    %p305 = pneg %p299
    %p306 = scmp.eq.s32.totalorder %s18, 1
    %p307 = por %p305, %p306
    %p308 = scmp.ne.s32.totalorder %s300, %s303
    %p309 = scmp.eq.s32.totalorder %s18, 0
    %p310 = por %p308, %p309
    %p311 = scmp.ne.s32.totalorder %s300, %s303
    %p312 = scmp.eq.s32.totalorder %s23, 1
    %p313 = por %p311, %p312
    %p314 = scmp.ne.s32.totalorder %s303, %s304
    %p315 = scmp.eq.s32.totalorder %s23, 0
    %p316 = por %p314, %p315
    %p317 = scmp.ne.s32.totalorder %s303, %s304
    %p318 = scmp.eq.s32.totalorder %s24, 1
    %p319 = por %p317, %p318
    %p321 = scmp.ne.s32.totalorder %s304, %s320
    %p322 = scmp.eq.s32.totalorder %s24, 0
    %p323 = por %p321, %p322
    %p324 = scmp.le.s32.totalorder 1, %s18
    %p325 = scmp.lt.s32.totalorder %s18, 3
    %p326 = pnand %p324, %p325
    %p327 = pneg %p326
    // Predicated region
    $region9: #{tpu_custom_call.1} parent=5 // pred_check
      _
    $region10: #{tpu_custom_call.1} parent=5 // pred_check_branch
      %329 = sbr.rel (%p326) target = $region12
    $region11: #{tpu_custom_call.1} parent=5 // pred_region
      %s330 = ssub.s32 %s18, 1
      // Predicated region
      $region13: #{tpu_custom_call.1} parent=11 // pred_check
        %p331 = pneg %p143
      $region14: #{tpu_custom_call.1} parent=11 // pred_check_branch
        %333 = sbr.rel (%p331) target = $region16
      $region15: #{tpu_custom_call.1} parent=11 // pred_region
        _
      $region16: #{tpu_custom_call.1} parent=11 // pred_fallthru
        _
      // Predicated region
      $region17: #{tpu_custom_call.1} parent=11 // pred_check
        %p334 = pneg %p164
      $region18: #{tpu_custom_call.1} parent=11 // pred_check_branch
        %336 = sbr.rel (%p334) target = $region20
      $region19: #{tpu_custom_call.1} parent=11 // pred_region
        _
      $region20: #{tpu_custom_call.1} parent=11 // pred_fallthru
        _
      // Predicated region
      $region21: #{tpu_custom_call.1} parent=11 // pred_check
        %p337 = pneg %p185
      $region22: #{tpu_custom_call.1} parent=11 // pred_check_branch
        %339 = sbr.rel (%p337) target = $region24
      $region23: #{tpu_custom_call.1} parent=11 // pred_region
        _
      $region24: #{tpu_custom_call.1} parent=11 // pred_fallthru
        _
      // Predicated region
      $region25: #{tpu_custom_call.1} parent=11 // pred_check
        %p340 = pneg %p206
      $region26: #{tpu_custom_call.1} parent=11 // pred_check_branch
        %342 = sbr.rel (%p340) target = $region28
      $region27: #{tpu_custom_call.1} parent=11 // pred_region
        _
      $region28: #{tpu_custom_call.1} parent=11 // pred_fallthru
        _
      // Predicated region
      $region29: #{tpu_custom_call.1} parent=11 // pred_check
        %p343 = pneg %p227
      $region30: #{tpu_custom_call.1} parent=11 // pred_check_branch
        %345 = sbr.rel (%p343) target = $region32
      $region31: #{tpu_custom_call.1} parent=11 // pred_region
        _
      $region32: #{tpu_custom_call.1} parent=11 // pred_fallthru
        _
      // Predicated region
      $region33: #{tpu_custom_call.1} parent=11 // pred_check
        %p346 = pneg %p248
      $region34: #{tpu_custom_call.1} parent=11 // pred_check_branch
        %348 = sbr.rel (%p346) target = $region36
      $region35: #{tpu_custom_call.1} parent=11 // pred_region
        _
      $region36: #{tpu_custom_call.1} parent=11 // pred_fallthru
        _
      // Predicated region
      $region37: #{tpu_custom_call.1} parent=11 // pred_check
        %p349 = pneg %p269
      $region38: #{tpu_custom_call.1} parent=11 // pred_check_branch
        %351 = sbr.rel (%p349) target = $region40
      $region39: #{tpu_custom_call.1} parent=11 // pred_region
        _
      $region40: #{tpu_custom_call.1} parent=11 // pred_fallthru
        _
      // Predicated region
      $region41: #{tpu_custom_call.1} parent=11 // pred_check
        %p352 = pneg %p290
      $region42: #{tpu_custom_call.1} parent=11 // pred_check_branch
        %354 = sbr.rel (%p352) target = $region44
      $region43: #{tpu_custom_call.1} parent=11 // pred_region
        _
      $region44: #{tpu_custom_call.1} parent=11 // pred_fallthru
        _
    $region12: #{tpu_custom_call.1} parent=5 // pred_fallthru
      _
    %p355 = scmp.lt.s32.totalorder %s18, 2
    // Predicated region
    $region45: #{tpu_custom_call.1} parent=5 // pred_check
      %p356 = pneg %p355
    $region46: #{tpu_custom_call.1} parent=5 // pred_check_branch
      %358 = sbr.rel (%p356) target = $region48
    $region47: #{tpu_custom_call.1} parent=5 // pred_region
      // Predicated region
      $region49: #{tpu_custom_call.1} parent=47 // pred_check
        %p359 = pneg %p38
      $region50: #{tpu_custom_call.1} parent=47 // pred_check_branch
        %361 = sbr.rel (%p359) target = $region52
      $region51: #{tpu_custom_call.1} parent=47 // pred_region
        %p362 = scmp.lt.s32.totalorder %s18, 1
        %s363 = scalar_select %p362, %s18, 1
        %s364 = smul.addr %s363, 32
        %s365 = smul.addr %s364, 8
        %s366 = scalar_lea.vmem %s0, %s365
      $region52: #{tpu_custom_call.1} parent=47 // pred_fallthru
        _
      // Predicated region
      $region53: #{tpu_custom_call.1} parent=47 // pred_check
        %p367 = pneg %p64
      $region54: #{tpu_custom_call.1} parent=47 // pred_check_branch
        %369 = sbr.rel (%p367) target = $region56
      $region55: #{tpu_custom_call.1} parent=47 // pred_region
        %p370 = scmp.lt.s32.totalorder %s18, 1
        %s371 = scalar_select %p370, %s18, 1
        %s372 = smul.addr %s371, 8
        %s373 = smul.addr %s372, 8
        %s374 = scalar_lea.vmem %s1, %s373
      $region56: #{tpu_custom_call.1} parent=47 // pred_fallthru
        _
      // Predicated region
      $region57: #{tpu_custom_call.1} parent=47 // pred_check
        %p375 = pneg %p90
      $region58: #{tpu_custom_call.1} parent=47 // pred_check_branch
        %377 = sbr.rel (%p375) target = $region60
      $region59: #{tpu_custom_call.1} parent=47 // pred_region
        %p378 = scmp.lt.s32.totalorder %s18, 1
        %s379 = scalar_select %p378, %s18, 1
        %s380 = smul.addr %s379, 4
        %s381 = smul.addr %s380, 4
        %s382 = scalar_lea.vmem %s2, %s381
      $region60: #{tpu_custom_call.1} parent=47 // pred_fallthru
        _
      // Predicated region
      $region61: #{tpu_custom_call.1} parent=47 // pred_check
        %p383 = pneg %p116
      $region62: #{tpu_custom_call.1} parent=47 // pred_check_branch
        %385 = sbr.rel (%p383) target = $region64
      $region63: #{tpu_custom_call.1} parent=47 // pred_region
        %p386 = scmp.lt.s32.totalorder %s18, 1
        %s387 = scalar_select %p386, %s18, 1
        %s388 = smul.addr %s387, 2
        %s389 = smul.addr %s388, 2
        %s390 = scalar_lea.vmem %s3, %s389
      $region64: #{tpu_custom_call.1} parent=47 // pred_fallthru
        _
    $region48: #{tpu_custom_call.1} parent=5 // pred_fallthru
      _
    %p391 = scmp.le.s32.totalorder 1, %s18
    %p392 = scmp.lt.s32.totalorder %s18, 3
    %p393 = pnand %p391, %p392
    %p394 = pneg %p393
    // Predicated region
    $region65: #{tpu_custom_call.1} parent=5 // pred_check
      _
    $region66: #{tpu_custom_call.1} parent=5 // pred_check_branch
      %396 = sbr.rel (%p393) target = $region68
    $region67: #{tpu_custom_call.1} parent=5 // pred_region
      %s397 = ssub.s32 %s18, 1
      %p398 = scmp.lt.s32.totalorder %s23, 1
      %s399 = scalar_select %p398, %s23, 1
      %s400 = smul.addr %s399, 32
      %s401 = smul.addr %s400, 8
      %s402 = scalar_lea.vmem %s0, %s401
      %p403 = pneg %p44
      %p404 = pneg %p41
      %p405 = scmp.lt.s32.totalorder %s23, 1
      %s406 = scalar_select %p405, %s23, 1
      %s407 = smul.addr %s406, 8
      %s408 = smul.addr %s407, 8
      %s409 = scalar_lea.vmem %s1, %s408
      %p410 = pneg %p70
      %p411 = pneg %p67
      %p412 = scmp.lt.s32.totalorder %s23, 1
      %s413 = scalar_select %p412, %s23, 1
      %s414 = smul.addr %s413, 4
      %s415 = smul.addr %s414, 4
      %s416 = scalar_lea.vmem %s2, %s415
      %p417 = pneg %p96
      %p418 = pneg %p93
      %p419 = scmp.lt.s32.totalorder %s23, 1
      %s420 = scalar_select %p419, %s23, 1
      %s421 = smul.addr %s420, 2
      %s422 = smul.addr %s421, 2
      %s423 = scalar_lea.vmem %s3, %s422
      %p424 = pneg %p122
      %p425 = pneg %p119
      %p426 = pneg %p143
      %p427 = pneg %p140
      %p428 = pneg %p164
      %p429 = pneg %p161
      %p430 = pneg %p185
      %p431 = pneg %p182
      %p432 = pneg %p206
      %p433 = pneg %p203
      %p434 = pneg %p227
      %p435 = pneg %p224
      %p436 = pneg %p248
      %p437 = pneg %p245
      %p438 = pneg %p269
      %p439 = pneg %p266
      %p440 = pneg %p290
      %p441 = pneg %p287
      %p442 = pneg %p316
      %p443 = pneg %p313
      %p444 = scmp.lt.s32.totalorder %s23, 1
      %s445 = scalar_select %p444, %s23, 1
      %s446 = smul.addr %s445, 54
      %s447 = smul.addr %s446, 8
      %s448 = scalar_lea.vmem %s12, %s447
      %p449 = scmp.lt.s32.totalorder %s23, 1
      %s450 = scalar_select %p449, %s23, 1
      %s451 = smul.addr %s450, 32
      %s452 = smul.addr %s451, 8
      %s453 = scalar_lea.vmem %s0, %s452
      %p454 = scmp.lt.s32.totalorder %s23, 1
      %s455 = scalar_select %p454, %s23, 1
      %s456 = smul.addr %s455, 8
      %s457 = smul.addr %s456, 8
      %s458 = scalar_lea.vmem %s1, %s457
      %p459 = scmp.lt.s32.totalorder %s23, 1
      %s460 = scalar_select %p459, %s23, 1
      %s461 = smul.addr %s460, 4
      %s462 = smul.addr %s461, 4
      %s463 = scalar_lea.vmem %s2, %s462
      %p464 = scmp.lt.s32.totalorder %s23, 1
      %s465 = scalar_select %p464, %s23, 1
      %s466 = smul.addr %s465, 2
      %s467 = smul.addr %s466, 2
      %s468 = scalar_lea.vmem %s3, %s467
      %p469 = scmp.lt.s32.totalorder %s23, 1
      %s470 = scalar_select %p469, %s23, 1
      %s471 = smul.addr %s470, 54
      %s472 = smul.addr %s471, 8
      %s473 = scalar_lea.vmem %s12, %s472
      %v474 = vld [vmem:[%s468] sm:$0x3]
      %v475 = vld [vmem:[%s468 + $0x2] sm:$0x3]
      %v476 = vld [vmem:[%s7] sm:$0xff]
      %v477 = vld [vmem:[%s7 + $0x8] sm:$0xff]
      %v478 = vld [vmem:[%s7 + $0x10] sm:$0xff]
      %v479 = vld [vmem:[%s7 + $0x18] sm:$0xff]
      %v480 = vld [vmem:[%s7 + $0x20] sm:$0xff]
      %v481 = vld [vmem:[%s7 + $0x28] sm:$0xff]
      %v482 = vld [vmem:[%s7 + $0x30] sm:$0xff]
      %v483 = vld [vmem:[%s7 + $0x38] sm:$0xff]
      %v486 = vcombine.low %v474, %v475
      %v488 = vunpack.c.l.s4 1983009808
      %v489 = vunpack.c.0.s8 %v488
      %v490 = vlaneseq
      %v491 = vshrl.u32 %v490, 7
      %v492 = vsub.s32 %v489, %v491
      %v493 = vrot.slane %v486, %v492
      %vm494 = vcmask 523264
      %v495 = vsel %vm494, %v493, 0
      %497 = vmatprep.subr.mxu0 0.0
      %498 = vmatpush1.msra.mxu0 0.0
      %499 = vmatprep.subr.mxu0 0.0
      %500 = vmatpush1.msra.mxu0 0.0
      %501 = vmatprep.subr.mxu0 0.0
      %502 = vmatpush1.msra.mxu0 0.0
      %503 = vmatprep.subr.mxu0 0.0
      %504 = vmatpush1.msra.mxu0 0.0
      %505 = vmatprep.subr.mxu0 0.0
      %506 = vmatpush1.msra.mxu0 0.0
      %507 = vmatprep.subr.mxu0 0.0
      %508 = vmatpush1.msra.mxu0 0.0
      %509 = vmatprep.subr.mxu0 0.0
      %510 = vmatpush1.msra.mxu0 0.0
      %511 = vmatprep.subr.mxu0 0.0
      %512 = vmatpush1.msra.mxu0 0.0
      %513 = vmatprep.subr.mxu0 0.0
      %514 = vmatpush1.msra.mxu0 %v483
      %515 = vmatprep.subr.mxu0 0.0
      %516 = vmatpush1.msra.mxu0 %v482
      %517 = vmatprep.subr.mxu0 0.0
      %518 = vmatpush1.msra.mxu0 %v481
      %519 = vmatprep.subr.mxu0 0.0
      %520 = vmatpush1.msra.mxu0 %v480
      %521 = vmatprep.subr.mxu0 0.0
      %522 = vmatpush1.msra.mxu0 %v479
      %523 = vmatprep.subr.mxu0 0.0
      %524 = vmatpush1.msra.mxu0 %v478
      %525 = vmatprep.subr.mxu0 0.0
      %526 = vmatpush1.msra.mxu0 %v477
      %527 = vmatprep.subr.mxu0 0.0
      %528 = vmatpush1.msra.mxu0 %v476
      %529 = vmatprep.subr.mxu0 0.0
      %530 = vmatpush2.msra.mxu0 0.0
      %531 = vmatprep.subr.mxu0 0.0
      %532 = vmatpush2.msra.mxu0 0.0
      %533 = vmatprep.subr.mxu0 0.0
      %534 = vmatpush2.msra.mxu0 0.0
      %535 = vmatprep.subr.mxu0 0.0
      %536 = vmatpush2.msra.mxu0 0.0
      %537 = vmatprep.subr.mxu0 0.0
      %538 = vmatpush2.msra.mxu0 0.0
      %539 = vmatprep.subr.mxu0 0.0
      %540 = vmatpush2.msra.mxu0 0.0
      %541 = vmatprep.subr.mxu0 0.0
      %542 = vmatpush2.msra.mxu0 0.0
      %543 = vmatprep.subr.mxu0 0.0
      %544 = vmatpush2.msra.mxu0 0.0
      %545 = vmatprep.subr.mxu0 0.0
      %546 = vmatpush2.msra.mxu0 0.0
      %547 = vmatprep.subr.mxu0 0.0
      %548 = vmatpush2.msra.mxu0 0.0
      %549 = vmatprep.subr.mxu0 0.0
      %550 = vmatpush2.msra.mxu0 0.0
      %551 = vmatprep.subr.mxu0 0.0
      %552 = vmatpush2.msra.mxu0 0.0
      %553 = vmatprep.subr.mxu0 0.0
      %554 = vmatpush2.msra.mxu0 0.0
      %555 = vmatprep.subr.mxu0 0.0
      %556 = vmatpush2.msra.mxu0 0.0
      %557 = vmatprep.subr.mxu0 0.0
      %558 = vmatpush2.msra.mxu0 0.0
      %559 = vmatprep.subr.mxu0 0.0
      %560 = vmatpush2.msra.mxu0 0.0
      %561 = vmatprep.mubr.f32.mxu0 0.0
      %562 = vmatmul.mubr.f32.gmra.mxu0 %v495
      %v563 = vpop.f32.mrf.mxu0
      %v564 = vadd.f32 0.0, %v563
      %v565 = vpop.f32.mrf.mxu0
      %566 = vdwg.mxu0
      %v567 = vld [vmem:[%s463] sm:$0xf]
      %v568 = vld [vmem:[%s463 + $0x4] sm:$0xf]
      %v569 = vld [vmem:[%s463 + $0x8] sm:$0xf]
      %v570 = vld [vmem:[%s463 + $0xc] sm:$0xf]
      %v571 = vld [vmem:[%s6] sm:$0xff]
      %v572 = vld [vmem:[%s6 + $0x8] sm:$0xff]
      %v573 = vld [vmem:[%s6 + $0x10] sm:$0xff]
      %v574 = vld [vmem:[%s6 + $0x18] sm:$0xff]
      %v577 = vunpack.c.l.s4 1966171168
      %v578 = vunpack.c.0.s8 %v577
      %v579 = vlaneseq
      %v580 = vshrl.u32 %v579, 7
      %v581 = vsub.s32 %v578, %v580
      %v582 = vrot.slane %v564, %v581
      %v583 = vcombine.high %v582, %v582
      %v585 = vunpack.c.l.s4 1966171168
      %v586 = vunpack.c.0.s8 %v585
      %v587 = vlaneseq
      %v588 = vshrl.u32 %v587, 7
      %v589 = vsub.s32 %v586, %v588
      %v590 = vrot.slane %v582, %v589
      %v592 = vunpack.c.l.s4 1966171168
      %v593 = vunpack.c.0.s8 %v592
      %v594 = vlaneseq
      %v595 = vshrl.u32 %v594, 7
      %v596 = vsub.s32 %v593, %v595
      %v597 = vrot.slane %v583, %v596
      %v598 = vcombine.high %v590, %v590
      %v599 = vcombine.high %v597, %v597
      %v600 = vlaneseq
      %v601 = vshrl.u32 %v600, 7
      %v602 = vsub.s32 0, %v601
      %v603 = vrot.slane %v590, %v602
      %v604 = vlaneseq
      %v605 = vshrl.u32 %v604, 7
      %v606 = vsub.s32 0, %v605
      %v607 = vrot.slane %v597, %v606
      %v608 = vlaneseq
      %v609 = vshrl.u32 %v608, 7
      %v610 = vsub.s32 0, %v609
      %v611 = vrot.slane %v598, %v610
      %v612 = vlaneseq
      %v613 = vshrl.u32 %v612, 7
      %v614 = vsub.s32 0, %v613
      %v615 = vrot.slane %v599, %v614
      %v620 = vcombine.low %v567, %v568
      %v621 = vcombine.low %v569, %v570
      %v622 = vcombine.low %v603, %v607
      %v624 = vunpack.c.l.s4 1983009808
      %v625 = vunpack.c.0.s8 %v624
      %v626 = vlaneseq
      %v627 = vshrl.u32 %v626, 7
      %v628 = vsub.s32 %v625, %v627
      %v629 = vrot.slane %v622, %v628
      %v630 = vcombine.low %v629, %v629
      %v631 = vcombine.low %v611, %v615
      %v633 = vunpack.c.l.s4 1983009808
      %v634 = vunpack.c.0.s8 %v633
      %v635 = vlaneseq
      %v636 = vshrl.u32 %v635, 7
      %v637 = vsub.s32 %v634, %v636
      %v638 = vrot.slane %v631, %v637
      %v639 = vcombine.low %v638, %v638
      %vm642 = vcmask 261120
      %v643 = vsel %vm642, %v620, 0
      %v645 = vsel %vm642, %v621, 0
      %647 = vmatprep.subr.mxu0 0.0
      %648 = vmatpush1.msra.mxu0 0.0
      %649 = vmatprep.subr.mxu0 0.0
      %650 = vmatpush1.msra.mxu0 0.0
      %651 = vmatprep.subr.mxu0 0.0
      %652 = vmatpush1.msra.mxu0 0.0
      %653 = vmatprep.subr.mxu0 0.0
      %654 = vmatpush1.msra.mxu0 0.0
      %655 = vmatprep.subr.mxu0 0.0
      %656 = vmatpush1.msra.mxu0 0.0
      %657 = vmatprep.subr.mxu0 0.0
      %658 = vmatpush1.msra.mxu0 0.0
      %659 = vmatprep.subr.mxu0 0.0
      %660 = vmatpush1.msra.mxu0 0.0
      %661 = vmatprep.subr.mxu0 0.0
      %662 = vmatpush1.msra.mxu0 0.0
      %663 = vmatprep.subr.mxu0 0.0
      %664 = vmatpush1.msra.mxu0 0.0
      %665 = vmatprep.subr.mxu0 0.0
      %666 = vmatpush1.msra.mxu0 0.0
      %667 = vmatprep.subr.mxu0 0.0
      %668 = vmatpush1.msra.mxu0 0.0
      %669 = vmatprep.subr.mxu0 0.0
      %670 = vmatpush1.msra.mxu0 0.0
      %671 = vmatprep.subr.mxu0 0.0
      %672 = vmatpush1.msra.mxu0 %v574
      %673 = vmatprep.subr.mxu0 0.0
      %674 = vmatpush1.msra.mxu0 %v573
      %675 = vmatprep.subr.mxu0 0.0
      %676 = vmatpush1.msra.mxu0 %v572
      %677 = vmatprep.subr.mxu0 0.0
      %678 = vmatpush1.msra.mxu0 %v571
      %679 = vmatprep.subr.mxu0 0.0
      %680 = vmatpush2.msra.mxu0 0.0
      %681 = vmatprep.subr.mxu0 0.0
      %682 = vmatpush2.msra.mxu0 0.0
      %683 = vmatprep.subr.mxu0 0.0
      %684 = vmatpush2.msra.mxu0 0.0
      %685 = vmatprep.subr.mxu0 0.0
      %686 = vmatpush2.msra.mxu0 0.0
      %687 = vmatprep.subr.mxu0 0.0
      %688 = vmatpush2.msra.mxu0 0.0
      %689 = vmatprep.subr.mxu0 0.0
      %690 = vmatpush2.msra.mxu0 0.0
      %691 = vmatprep.subr.mxu0 0.0
      %692 = vmatpush2.msra.mxu0 0.0
      %693 = vmatprep.subr.mxu0 0.0
      %694 = vmatpush2.msra.mxu0 0.0
      %695 = vmatprep.subr.mxu0 0.0
      %696 = vmatpush2.msra.mxu0 0.0
      %697 = vmatprep.subr.mxu0 0.0
      %698 = vmatpush2.msra.mxu0 0.0
      %699 = vmatprep.subr.mxu0 0.0
      %700 = vmatpush2.msra.mxu0 0.0
      %701 = vmatprep.subr.mxu0 0.0
      %702 = vmatpush2.msra.mxu0 0.0
      %703 = vmatprep.subr.mxu0 0.0
      %704 = vmatpush2.msra.mxu0 0.0
      %705 = vmatprep.subr.mxu0 0.0
      %706 = vmatpush2.msra.mxu0 0.0
      %707 = vmatprep.subr.mxu0 0.0
      %708 = vmatpush2.msra.mxu0 0.0
      %709 = vmatprep.subr.mxu0 0.0
      %710 = vmatpush2.msra.mxu0 0.0
      %711 = vmatprep.mubr.f32.mxu0 0.0
      %712 = vmatmul.mubr.f32.gmra.mxu0 %v643
      %v713 = vpop.f32.mrf.mxu0
      %v714 = vadd.f32 %v630, %v713
      %v715 = vpop.f32.mrf.mxu0
      %716 = vmatprep.mubr.f32.mxu0 0.0
      %717 = vmatmul.mubr.f32.gmra.mxu0 %v645
      %v718 = vpop.f32.mrf.mxu0
      %v719 = vadd.f32 %v639, %v718
      %v720 = vpop.f32.mrf.mxu0
      %721 = vdwg.mxu0
      %v722 = vld [vmem:[%s458] sm:$0xff]
      %v723 = vld [vmem:[%s458 + $0x8] sm:$0xff]
      %v724 = vld [vmem:[%s458 + $0x10] sm:$0xff]
      %v725 = vld [vmem:[%s458 + $0x18] sm:$0xff]
      %v726 = vld [vmem:[%s458 + $0x20] sm:$0xff]
      %v727 = vld [vmem:[%s458 + $0x28] sm:$0xff]
      %v728 = vld [vmem:[%s458 + $0x30] sm:$0xff]
      %v729 = vld [vmem:[%s458 + $0x38] sm:$0xff]
      %v730 = vld [vmem:[%s5] sm:$0xff]
      %v731 = vld [vmem:[%s5 + $0x8] sm:$0xff]
      %v734 = vcombine.high %v714, %v714
      %v736 = vunpack.c.l.s4 1966171168
      %v737 = vunpack.c.0.s8 %v736
      %v738 = vlaneseq
      %v739 = vshrl.u32 %v738, 7
      %v740 = vsub.s32 %v737, %v739
      %v741 = vrot.slane %v714, %v740
      %v743 = vunpack.c.l.s4 1966171168
      %v744 = vunpack.c.0.s8 %v743
      %v745 = vlaneseq
      %v746 = vshrl.u32 %v745, 7
      %v747 = vsub.s32 %v744, %v746
      %v748 = vrot.slane %v734, %v747
      %v749 = vcombine.high %v741, %v741
      %v750 = vcombine.high %v748, %v748
      %v752 = vunpack.c.l.s4 1966171168
      %v753 = vunpack.c.0.s8 %v752
      %v754 = vlaneseq
      %v755 = vshrl.u32 %v754, 7
      %v756 = vsub.s32 %v753, %v755
      %v757 = vrot.slane %v741, %v756
      %v759 = vunpack.c.l.s4 1966171168
      %v760 = vunpack.c.0.s8 %v759
      %v761 = vlaneseq
      %v762 = vshrl.u32 %v761, 7
      %v763 = vsub.s32 %v760, %v762
      %v764 = vrot.slane %v748, %v763
      %v766 = vunpack.c.l.s4 1966171168
      %v767 = vunpack.c.0.s8 %v766
      %v768 = vlaneseq
      %v769 = vshrl.u32 %v768, 7
      %v770 = vsub.s32 %v767, %v769
      %v771 = vrot.slane %v749, %v770
      %v773 = vunpack.c.l.s4 1966171168
      %v774 = vunpack.c.0.s8 %v773
      %v775 = vlaneseq
      %v776 = vshrl.u32 %v775, 7
      %v777 = vsub.s32 %v774, %v776
      %v778 = vrot.slane %v750, %v777
      %v779 = vcombine.high %v757, %v757
      %v780 = vcombine.high %v764, %v764
      %v781 = vcombine.high %v771, %v771
      %v782 = vcombine.high %v778, %v778
      %v783 = vcombine.high %v719, %v719
      %v785 = vunpack.c.l.s4 1966171168
      %v786 = vunpack.c.0.s8 %v785
      %v787 = vlaneseq
      %v788 = vshrl.u32 %v787, 7
      %v789 = vsub.s32 %v786, %v788
      %v790 = vrot.slane %v719, %v789
      %v792 = vunpack.c.l.s4 1966171168
      %v793 = vunpack.c.0.s8 %v792
      %v794 = vlaneseq
      %v795 = vshrl.u32 %v794, 7
      %v796 = vsub.s32 %v793, %v795
      %v797 = vrot.slane %v783, %v796
      %v798 = vcombine.high %v790, %v790
      %v799 = vcombine.high %v797, %v797
      %v801 = vunpack.c.l.s4 1966171168
      %v802 = vunpack.c.0.s8 %v801
      %v803 = vlaneseq
      %v804 = vshrl.u32 %v803, 7
      %v805 = vsub.s32 %v802, %v804
      %v806 = vrot.slane %v790, %v805
      %v808 = vunpack.c.l.s4 1966171168
      %v809 = vunpack.c.0.s8 %v808
      %v810 = vlaneseq
      %v811 = vshrl.u32 %v810, 7
      %v812 = vsub.s32 %v809, %v811
      %v813 = vrot.slane %v797, %v812
      %v815 = vunpack.c.l.s4 1966171168
      %v816 = vunpack.c.0.s8 %v815
      %v817 = vlaneseq
      %v818 = vshrl.u32 %v817, 7
      %v819 = vsub.s32 %v816, %v818
      %v820 = vrot.slane %v798, %v819
      %v822 = vunpack.c.l.s4 1966171168
      %v823 = vunpack.c.0.s8 %v822
      %v824 = vlaneseq
      %v825 = vshrl.u32 %v824, 7
      %v826 = vsub.s32 %v823, %v825
      %v827 = vrot.slane %v799, %v826
      %v828 = vcombine.high %v806, %v806
      %v829 = vcombine.high %v813, %v813
      %v830 = vcombine.high %v820, %v820
      %v831 = vcombine.high %v827, %v827
      %v832 = vlaneseq
      %v833 = vshrl.u32 %v832, 7
      %v834 = vsub.s32 0, %v833
      %v835 = vrot.slane %v757, %v834
      %v836 = vlaneseq
      %v837 = vshrl.u32 %v836, 7
      %v838 = vsub.s32 0, %v837
      %v839 = vrot.slane %v771, %v838
      %v840 = vlaneseq
      %v841 = vshrl.u32 %v840, 7
      %v842 = vsub.s32 0, %v841
      %v843 = vrot.slane %v779, %v842
      %v844 = vlaneseq
      %v845 = vshrl.u32 %v844, 7
      %v846 = vsub.s32 0, %v845
      %v847 = vrot.slane %v781, %v846
      %v848 = vlaneseq
      %v849 = vshrl.u32 %v848, 7
      %v850 = vsub.s32 0, %v849
      %v851 = vrot.slane %v764, %v850
      %v852 = vlaneseq
      %v853 = vshrl.u32 %v852, 7
      %v854 = vsub.s32 0, %v853
      %v855 = vrot.slane %v778, %v854
      %v856 = vlaneseq
      %v857 = vshrl.u32 %v856, 7
      %v858 = vsub.s32 0, %v857
      %v859 = vrot.slane %v780, %v858
      %v860 = vlaneseq
      %v861 = vshrl.u32 %v860, 7
      %v862 = vsub.s32 0, %v861
      %v863 = vrot.slane %v782, %v862
      %v864 = vlaneseq
      %v865 = vshrl.u32 %v864, 7
      %v866 = vsub.s32 0, %v865
      %v867 = vrot.slane %v806, %v866
      %v868 = vlaneseq
      %v869 = vshrl.u32 %v868, 7
      %v870 = vsub.s32 0, %v869
      %v871 = vrot.slane %v820, %v870
      %v872 = vlaneseq
      %v873 = vshrl.u32 %v872, 7
      %v874 = vsub.s32 0, %v873
      %v875 = vrot.slane %v828, %v874
      %v876 = vlaneseq
      %v877 = vshrl.u32 %v876, 7
      %v878 = vsub.s32 0, %v877
      %v879 = vrot.slane %v830, %v878
      %v880 = vlaneseq
      %v881 = vshrl.u32 %v880, 7
      %v882 = vsub.s32 0, %v881
      %v883 = vrot.slane %v813, %v882
      %v884 = vlaneseq
      %v885 = vshrl.u32 %v884, 7
      %v886 = vsub.s32 0, %v885
      %v887 = vrot.slane %v827, %v886
      %v888 = vlaneseq
      %v889 = vshrl.u32 %v888, 7
      %v890 = vsub.s32 0, %v889
      %v891 = vrot.slane %v829, %v890
      %v892 = vlaneseq
      %v893 = vshrl.u32 %v892, 7
      %v894 = vsub.s32 0, %v893
      %v895 = vrot.slane %v831, %v894
      %v896 = vcombine.low %v835, %v839
      %v897 = vcombine.low %v843, %v847
      %v899 = vunpack.c.l.s4 1983009808
      %v900 = vunpack.c.0.s8 %v899
      %v901 = vlaneseq
      %v902 = vshrl.u32 %v901, 7
      %v903 = vsub.s32 %v900, %v902
      %v904 = vrot.slane %v896, %v903
      %v906 = vunpack.c.l.s4 1983009808
      %v907 = vunpack.c.0.s8 %v906
      %v908 = vlaneseq
      %v909 = vshrl.u32 %v908, 7
      %v910 = vsub.s32 %v907, %v909
      %v911 = vrot.slane %v897, %v910
      %v912 = vcombine.low %v904, %v911
      %v913 = vcombine.low %v851, %v855
      %v914 = vcombine.low %v859, %v863
      %v916 = vunpack.c.l.s4 1983009808
      %v917 = vunpack.c.0.s8 %v916
      %v918 = vlaneseq
      %v919 = vshrl.u32 %v918, 7
      %v920 = vsub.s32 %v917, %v919
      %v921 = vrot.slane %v913, %v920
      %v923 = vunpack.c.l.s4 1983009808
      %v924 = vunpack.c.0.s8 %v923
      %v925 = vlaneseq
      %v926 = vshrl.u32 %v925, 7
      %v927 = vsub.s32 %v924, %v926
      %v928 = vrot.slane %v914, %v927
      %v929 = vcombine.low %v921, %v928
      %v930 = vcombine.low %v867, %v871
      %v931 = vcombine.low %v875, %v879
      %v933 = vunpack.c.l.s4 1983009808
      %v934 = vunpack.c.0.s8 %v933
      %v935 = vlaneseq
      %v936 = vshrl.u32 %v935, 7
      %v937 = vsub.s32 %v934, %v936
      %v938 = vrot.slane %v930, %v937
      %v940 = vunpack.c.l.s4 1983009808
      %v941 = vunpack.c.0.s8 %v940
      %v942 = vlaneseq
      %v943 = vshrl.u32 %v942, 7
      %v944 = vsub.s32 %v941, %v943
      %v945 = vrot.slane %v931, %v944
      %v946 = vcombine.low %v938, %v945
      %v947 = vcombine.low %v883, %v887
      %v948 = vcombine.low %v891, %v895
      %v950 = vunpack.c.l.s4 1983009808
      %v951 = vunpack.c.0.s8 %v950
      %v952 = vlaneseq
      %v953 = vshrl.u32 %v952, 7
      %v954 = vsub.s32 %v951, %v953
      %v955 = vrot.slane %v947, %v954
      %v957 = vunpack.c.l.s4 1983009808
      %v958 = vunpack.c.0.s8 %v957
      %v959 = vlaneseq
      %v960 = vshrl.u32 %v959, 7
      %v961 = vsub.s32 %v958, %v960
      %v962 = vrot.slane %v948, %v961
      %v963 = vcombine.low %v955, %v962
      %vm968 = vcmask 130048
      %v970 = vsel %vm968, %v722, 0
      %v973 = vsel %vm968, %v723, 0
      %v976 = vsel %vm968, %v724, 0
      %v979 = vsel %vm968, %v725, 0
      %v982 = vsel %vm968, %v726, 0
      %v985 = vsel %vm968, %v727, 0
      %v988 = vsel %vm968, %v728, 0
      %v991 = vsel %vm968, %v729, 0
      %993 = vmatprep.subr.mxu0 0.0
      %994 = vmatpush1.msra.mxu0 0.0
      %995 = vmatprep.subr.mxu0 0.0
      %996 = vmatpush1.msra.mxu0 0.0
      %997 = vmatprep.subr.mxu0 0.0
      %998 = vmatpush1.msra.mxu0 0.0
      %999 = vmatprep.subr.mxu0 0.0
      %1000 = vmatpush1.msra.mxu0 0.0
      %1001 = vmatprep.subr.mxu0 0.0
      %1002 = vmatpush1.msra.mxu0 0.0
      %1003 = vmatprep.subr.mxu0 0.0
      %1004 = vmatpush1.msra.mxu0 0.0
      %1005 = vmatprep.subr.mxu0 0.0
      %1006 = vmatpush1.msra.mxu0 0.0
      %1007 = vmatprep.subr.mxu0 0.0
      %1008 = vmatpush1.msra.mxu0 0.0
      %1009 = vmatprep.subr.mxu0 0.0
      %1010 = vmatpush1.msra.mxu0 0.0
      %1011 = vmatprep.subr.mxu0 0.0
      %1012 = vmatpush1.msra.mxu0 0.0
      %1013 = vmatprep.subr.mxu0 0.0
      %1014 = vmatpush1.msra.mxu0 0.0
      %1015 = vmatprep.subr.mxu0 0.0
      %1016 = vmatpush1.msra.mxu0 0.0
      %1017 = vmatprep.subr.mxu0 0.0
      %1018 = vmatpush1.msra.mxu0 0.0
      %1019 = vmatprep.subr.mxu0 0.0
      %1020 = vmatpush1.msra.mxu0 0.0
      %1021 = vmatprep.subr.mxu0 0.0
      %1022 = vmatpush1.msra.mxu0 %v731
      %1023 = vmatprep.subr.mxu0 0.0
      %1024 = vmatpush1.msra.mxu0 %v730
      %1025 = vmatprep.subr.mxu0 0.0
      %1026 = vmatpush2.msra.mxu0 0.0
      %1027 = vmatprep.subr.mxu0 0.0
      %1028 = vmatpush2.msra.mxu0 0.0
      %1029 = vmatprep.subr.mxu0 0.0
      %1030 = vmatpush2.msra.mxu0 0.0
      %1031 = vmatprep.subr.mxu0 0.0
      %1032 = vmatpush2.msra.mxu0 0.0
      %1033 = vmatprep.subr.mxu0 0.0
      %1034 = vmatpush2.msra.mxu0 0.0
      %1035 = vmatprep.subr.mxu0 0.0
      %1036 = vmatpush2.msra.mxu0 0.0
      %1037 = vmatprep.subr.mxu0 0.0
      %1038 = vmatpush2.msra.mxu0 0.0
      %1039 = vmatprep.subr.mxu0 0.0
      %1040 = vmatpush2.msra.mxu0 0.0
      %1041 = vmatprep.subr.mxu0 0.0
      %1042 = vmatpush2.msra.mxu0 0.0
      %1043 = vmatprep.subr.mxu0 0.0
      %1044 = vmatpush2.msra.mxu0 0.0
      %1045 = vmatprep.subr.mxu0 0.0
      %1046 = vmatpush2.msra.mxu0 0.0
      %1047 = vmatprep.subr.mxu0 0.0
      %1048 = vmatpush2.msra.mxu0 0.0
      %1049 = vmatprep.subr.mxu0 0.0
      %1050 = vmatpush2.msra.mxu0 0.0
      %1051 = vmatprep.subr.mxu0 0.0
      %1052 = vmatpush2.msra.mxu0 0.0
      %1053 = vmatprep.subr.mxu0 0.0
      %1054 = vmatpush2.msra.mxu0 0.0
      %1055 = vmatprep.subr.mxu0 0.0
      %1056 = vmatpush2.msra.mxu0 0.0
      %1057 = vmatprep.mubr.f32.mxu0 0.0
      %1058 = vmatmul.mubr.f32.gmra.mxu0 %v970
      %v1059 = vpop.f32.mrf.mxu0
      %v1060 = vadd.f32 %v912, %v1059
      %v1061 = vpop.f32.mrf.mxu0
      %1062 = vmatprep.mubr.f32.mxu0 0.0
      %1063 = vmatmul.mubr.f32.gmra.mxu0 %v973
      %v1064 = vpop.f32.mrf.mxu0
      %v1065 = vadd.f32 %v912, %v1064
      %v1066 = vpop.f32.mrf.mxu0
      %1067 = vmatprep.mubr.f32.mxu0 0.0
      %1068 = vmatmul.mubr.f32.gmra.mxu0 %v976
      %v1069 = vpop.f32.mrf.mxu0
      %v1070 = vadd.f32 %v929, %v1069
      %v1071 = vpop.f32.mrf.mxu0
      %1072 = vmatprep.mubr.f32.mxu0 0.0
      %1073 = vmatmul.mubr.f32.gmra.mxu0 %v979
      %v1074 = vpop.f32.mrf.mxu0
      %v1075 = vadd.f32 %v929, %v1074
      %v1076 = vpop.f32.mrf.mxu0
      %1077 = vmatprep.mubr.f32.mxu0 0.0
      %1078 = vmatmul.mubr.f32.gmra.mxu0 %v982
      %v1079 = vpop.f32.mrf.mxu0
      %v1080 = vadd.f32 %v946, %v1079
      %v1081 = vpop.f32.mrf.mxu0
      %1082 = vmatprep.mubr.f32.mxu0 0.0
      %1083 = vmatmul.mubr.f32.gmra.mxu0 %v985
      %v1084 = vpop.f32.mrf.mxu0
      %v1085 = vadd.f32 %v946, %v1084
      %v1086 = vpop.f32.mrf.mxu0
      %1087 = vmatprep.mubr.f32.mxu0 0.0
      %1088 = vmatmul.mubr.f32.gmra.mxu0 %v988
      %v1089 = vpop.f32.mrf.mxu0
      %v1090 = vadd.f32 %v963, %v1089
      %v1091 = vpop.f32.mrf.mxu0
      %1092 = vmatprep.mubr.f32.mxu0 0.0
      %1093 = vmatmul.mubr.f32.gmra.mxu0 %v991
      %v1094 = vpop.f32.mrf.mxu0
      %v1095 = vadd.f32 %v963, %v1094
      %v1096 = vpop.f32.mrf.mxu0
      %1097 = vdwg.mxu0
      %v1098 = vld [vmem:[%s453] sm:$0xff]
      %v1099 = vld [vmem:[%s453 + $0x8] sm:$0xff]
      %v1100 = vld [vmem:[%s453 + $0x10] sm:$0xff]
      %v1101 = vld [vmem:[%s453 + $0x18] sm:$0xff]
      %v1102 = vld [vmem:[%s453 + $0x20] sm:$0xff]
      %v1103 = vld [vmem:[%s453 + $0x28] sm:$0xff]
      %v1104 = vld [vmem:[%s453 + $0x30] sm:$0xff]
      %v1105 = vld [vmem:[%s453 + $0x38] sm:$0xff]
      %v1106 = vld [vmem:[%s453 + $0x40] sm:$0xff]
      %v1107 = vld [vmem:[%s453 + $0x48] sm:$0xff]
      %v1108 = vld [vmem:[%s453 + $0x50] sm:$0xff]
      %v1109 = vld [vmem:[%s453 + $0x58] sm:$0xff]
      %v1110 = vld [vmem:[%s453 + $0x60] sm:$0xff]
      %v1111 = vld [vmem:[%s453 + $0x68] sm:$0xff]
      %v1112 = vld [vmem:[%s453 + $0x70] sm:$0xff]
      %v1113 = vld [vmem:[%s453 + $0x78] sm:$0xff]
      %v1114 = vld [vmem:[%s453 + $0x80] sm:$0xff]
      %v1115 = vld [vmem:[%s453 + $0x88] sm:$0xff]
      %v1116 = vld [vmem:[%s453 + $0x90] sm:$0xff]
      %v1117 = vld [vmem:[%s453 + $0x98] sm:$0xff]
      %v1118 = vld [vmem:[%s453 + $0xa0] sm:$0xff]
      %v1119 = vld [vmem:[%s453 + $0xa8] sm:$0xff]
      %v1120 = vld [vmem:[%s453 + $0xb0] sm:$0xff]
      %v1121 = vld [vmem:[%s453 + $0xb8] sm:$0xff]
      %v1122 = vld [vmem:[%s453 + $0xc0] sm:$0xff]
      %v1123 = vld [vmem:[%s453 + $0xc8] sm:$0xff]
      %v1124 = vld [vmem:[%s453 + $0xd0] sm:$0xff]
      %v1125 = vld [vmem:[%s453 + $0xd8] sm:$0xff]
      %v1126 = vld [vmem:[%s453 + $0xe0] sm:$0xff]
      %v1127 = vld [vmem:[%s453 + $0xe8] sm:$0xff]
      %v1128 = vld [vmem:[%s453 + $0xf0] sm:$0xff]
      %v1129 = vld [vmem:[%s453 + $0xf8] sm:$0xff]
      %v1130 = vld [vmem:[%s4] sm:$0xff]
      %v1139 = vcombine.high %v1060, %v1060
      %v1141 = vunpack.c.l.s4 1966171168
      %v1142 = vunpack.c.0.s8 %v1141
      %v1143 = vlaneseq
      %v1144 = vshrl.u32 %v1143, 7
      %v1145 = vsub.s32 %v1142, %v1144
      %v1146 = vrot.slane %v1060, %v1145
      %v1148 = vunpack.c.l.s4 1966171168
      %v1149 = vunpack.c.0.s8 %v1148
      %v1150 = vlaneseq
      %v1151 = vshrl.u32 %v1150, 7
      %v1152 = vsub.s32 %v1149, %v1151
      %v1153 = vrot.slane %v1139, %v1152
      %v1154 = vcombine.high %v1146, %v1146
      %v1155 = vcombine.high %v1153, %v1153
      %v1157 = vunpack.c.l.s4 1966171168
      %v1158 = vunpack.c.0.s8 %v1157
      %v1159 = vlaneseq
      %v1160 = vshrl.u32 %v1159, 7
      %v1161 = vsub.s32 %v1158, %v1160
      %v1162 = vrot.slane %v1146, %v1161
      %v1164 = vunpack.c.l.s4 1966171168
      %v1165 = vunpack.c.0.s8 %v1164
      %v1166 = vlaneseq
      %v1167 = vshrl.u32 %v1166, 7
      %v1168 = vsub.s32 %v1165, %v1167
      %v1169 = vrot.slane %v1153, %v1168
      %v1171 = vunpack.c.l.s4 1966171168
      %v1172 = vunpack.c.0.s8 %v1171
      %v1173 = vlaneseq
      %v1174 = vshrl.u32 %v1173, 7
      %v1175 = vsub.s32 %v1172, %v1174
      %v1176 = vrot.slane %v1154, %v1175
      %v1178 = vunpack.c.l.s4 1966171168
      %v1179 = vunpack.c.0.s8 %v1178
      %v1180 = vlaneseq
      %v1181 = vshrl.u32 %v1180, 7
      %v1182 = vsub.s32 %v1179, %v1181
      %v1183 = vrot.slane %v1155, %v1182
      %v1184 = vcombine.high %v1162, %v1162
      %v1185 = vcombine.high %v1169, %v1169
      %v1186 = vcombine.high %v1176, %v1176
      %v1187 = vcombine.high %v1183, %v1183
      %v1188 = vcombine.high %v1065, %v1065
      %v1190 = vunpack.c.l.s4 1966171168
      %v1191 = vunpack.c.0.s8 %v1190
      %v1192 = vlaneseq
      %v1193 = vshrl.u32 %v1192, 7
      %v1194 = vsub.s32 %v1191, %v1193
      %v1195 = vrot.slane %v1065, %v1194
      %v1197 = vunpack.c.l.s4 1966171168
      %v1198 = vunpack.c.0.s8 %v1197
      %v1199 = vlaneseq
      %v1200 = vshrl.u32 %v1199, 7
      %v1201 = vsub.s32 %v1198, %v1200
      %v1202 = vrot.slane %v1188, %v1201
      %v1203 = vcombine.high %v1195, %v1195
      %v1204 = vcombine.high %v1202, %v1202
      %v1206 = vunpack.c.l.s4 1966171168
      %v1207 = vunpack.c.0.s8 %v1206
      %v1208 = vlaneseq
      %v1209 = vshrl.u32 %v1208, 7
      %v1210 = vsub.s32 %v1207, %v1209
      %v1211 = vrot.slane %v1195, %v1210
      %v1213 = vunpack.c.l.s4 1966171168
      %v1214 = vunpack.c.0.s8 %v1213
      %v1215 = vlaneseq
      %v1216 = vshrl.u32 %v1215, 7
      %v1217 = vsub.s32 %v1214, %v1216
      %v1218 = vrot.slane %v1202, %v1217
      %v1220 = vunpack.c.l.s4 1966171168
      %v1221 = vunpack.c.0.s8 %v1220
      %v1222 = vlaneseq
      %v1223 = vshrl.u32 %v1222, 7
      %v1224 = vsub.s32 %v1221, %v1223
      %v1225 = vrot.slane %v1203, %v1224
      %v1227 = vunpack.c.l.s4 1966171168
      %v1228 = vunpack.c.0.s8 %v1227
      %v1229 = vlaneseq
      %v1230 = vshrl.u32 %v1229, 7
      %v1231 = vsub.s32 %v1228, %v1230
      %v1232 = vrot.slane %v1204, %v1231
      %v1233 = vcombine.high %v1211, %v1211
      %v1234 = vcombine.high %v1218, %v1218
      %v1235 = vcombine.high %v1225, %v1225
      %v1236 = vcombine.high %v1232, %v1232
      %v1237 = vcombine.high %v1070, %v1070
      %v1239 = vunpack.c.l.s4 1966171168
      %v1240 = vunpack.c.0.s8 %v1239
      %v1241 = vlaneseq
      %v1242 = vshrl.u32 %v1241, 7
      %v1243 = vsub.s32 %v1240, %v1242
      %v1244 = vrot.slane %v1070, %v1243
      %v1246 = vunpack.c.l.s4 1966171168
      %v1247 = vunpack.c.0.s8 %v1246
      %v1248 = vlaneseq
      %v1249 = vshrl.u32 %v1248, 7
      %v1250 = vsub.s32 %v1247, %v1249
      %v1251 = vrot.slane %v1237, %v1250
      %v1252 = vcombine.high %v1244, %v1244
      %v1253 = vcombine.high %v1251, %v1251
      %v1255 = vunpack.c.l.s4 1966171168
      %v1256 = vunpack.c.0.s8 %v1255
      %v1257 = vlaneseq
      %v1258 = vshrl.u32 %v1257, 7
      %v1259 = vsub.s32 %v1256, %v1258
      %v1260 = vrot.slane %v1244, %v1259
      %v1262 = vunpack.c.l.s4 1966171168
      %v1263 = vunpack.c.0.s8 %v1262
      %v1264 = vlaneseq
      %v1265 = vshrl.u32 %v1264, 7
      %v1266 = vsub.s32 %v1263, %v1265
      %v1267 = vrot.slane %v1251, %v1266
      %v1269 = vunpack.c.l.s4 1966171168
      %v1270 = vunpack.c.0.s8 %v1269
      %v1271 = vlaneseq
      %v1272 = vshrl.u32 %v1271, 7
      %v1273 = vsub.s32 %v1270, %v1272
      %v1274 = vrot.slane %v1252, %v1273
      %v1276 = vunpack.c.l.s4 1966171168
      %v1277 = vunpack.c.0.s8 %v1276
      %v1278 = vlaneseq
      %v1279 = vshrl.u32 %v1278, 7
      %v1280 = vsub.s32 %v1277, %v1279
      %v1281 = vrot.slane %v1253, %v1280
      %v1282 = vcombine.high %v1260, %v1260
      %v1283 = vcombine.high %v1267, %v1267
      %v1284 = vcombine.high %v1274, %v1274
      %v1285 = vcombine.high %v1281, %v1281
      %v1286 = vcombine.high %v1075, %v1075
      %v1288 = vunpack.c.l.s4 1966171168
      %v1289 = vunpack.c.0.s8 %v1288
      %v1290 = vlaneseq
      %v1291 = vshrl.u32 %v1290, 7
      %v1292 = vsub.s32 %v1289, %v1291
      %v1293 = vrot.slane %v1075, %v1292
      %v1295 = vunpack.c.l.s4 1966171168
      %v1296 = vunpack.c.0.s8 %v1295
      %v1297 = vlaneseq
      %v1298 = vshrl.u32 %v1297, 7
      %v1299 = vsub.s32 %v1296, %v1298
      %v1300 = vrot.slane %v1286, %v1299
      %v1301 = vcombine.high %v1293, %v1293
      %v1302 = vcombine.high %v1300, %v1300
      %v1304 = vunpack.c.l.s4 1966171168
      %v1305 = vunpack.c.0.s8 %v1304
      %v1306 = vlaneseq
      %v1307 = vshrl.u32 %v1306, 7
      %v1308 = vsub.s32 %v1305, %v1307
      %v1309 = vrot.slane %v1293, %v1308
      %v1311 = vunpack.c.l.s4 1966171168
      %v1312 = vunpack.c.0.s8 %v1311
      %v1313 = vlaneseq
      %v1314 = vshrl.u32 %v1313, 7
      %v1315 = vsub.s32 %v1312, %v1314
      %v1316 = vrot.slane %v1300, %v1315
      %v1318 = vunpack.c.l.s4 1966171168
      %v1319 = vunpack.c.0.s8 %v1318
      %v1320 = vlaneseq
      %v1321 = vshrl.u32 %v1320, 7
      %v1322 = vsub.s32 %v1319, %v1321
      %v1323 = vrot.slane %v1301, %v1322
      %v1325 = vunpack.c.l.s4 1966171168
      %v1326 = vunpack.c.0.s8 %v1325
      %v1327 = vlaneseq
      %v1328 = vshrl.u32 %v1327, 7
      %v1329 = vsub.s32 %v1326, %v1328
      %v1330 = vrot.slane %v1302, %v1329
      %v1331 = vcombine.high %v1309, %v1309
      %v1332 = vcombine.high %v1316, %v1316
      %v1333 = vcombine.high %v1323, %v1323
      %v1334 = vcombine.high %v1330, %v1330
      %v1335 = vcombine.high %v1080, %v1080
      %v1337 = vunpack.c.l.s4 1966171168
      %v1338 = vunpack.c.0.s8 %v1337
      %v1339 = vlaneseq
      %v1340 = vshrl.u32 %v1339, 7
      %v1341 = vsub.s32 %v1338, %v1340
      %v1342 = vrot.slane %v1080, %v1341
      %v1344 = vunpack.c.l.s4 1966171168
      %v1345 = vunpack.c.0.s8 %v1344
      %v1346 = vlaneseq
      %v1347 = vshrl.u32 %v1346, 7
      %v1348 = vsub.s32 %v1345, %v1347
      %v1349 = vrot.slane %v1335, %v1348
      %v1350 = vcombine.high %v1342, %v1342
      %v1351 = vcombine.high %v1349, %v1349
      %v1353 = vunpack.c.l.s4 1966171168
      %v1354 = vunpack.c.0.s8 %v1353
      %v1355 = vlaneseq
      %v1356 = vshrl.u32 %v1355, 7
      %v1357 = vsub.s32 %v1354, %v1356
      %v1358 = vrot.slane %v1342, %v1357
      %v1360 = vunpack.c.l.s4 1966171168
      %v1361 = vunpack.c.0.s8 %v1360
      %v1362 = vlaneseq
      %v1363 = vshrl.u32 %v1362, 7
      %v1364 = vsub.s32 %v1361, %v1363
      %v1365 = vrot.slane %v1349, %v1364
      %v1367 = vunpack.c.l.s4 1966171168
      %v1368 = vunpack.c.0.s8 %v1367
      %v1369 = vlaneseq
      %v1370 = vshrl.u32 %v1369, 7
      %v1371 = vsub.s32 %v1368, %v1370
      %v1372 = vrot.slane %v1350, %v1371
      %v1374 = vunpack.c.l.s4 1966171168
      %v1375 = vunpack.c.0.s8 %v1374
      %v1376 = vlaneseq
      %v1377 = vshrl.u32 %v1376, 7
      %v1378 = vsub.s32 %v1375, %v1377
      %v1379 = vrot.slane %v1351, %v1378
      %v1380 = vcombine.high %v1358, %v1358
      %v1381 = vcombine.high %v1365, %v1365
      %v1382 = vcombine.high %v1372, %v1372
      %v1383 = vcombine.high %v1379, %v1379
      %v1384 = vcombine.high %v1085, %v1085
      %v1386 = vunpack.c.l.s4 1966171168
      %v1387 = vunpack.c.0.s8 %v1386
      %v1388 = vlaneseq
      %v1389 = vshrl.u32 %v1388, 7
      %v1390 = vsub.s32 %v1387, %v1389
      %v1391 = vrot.slane %v1085, %v1390
      %v1393 = vunpack.c.l.s4 1966171168
      %v1394 = vunpack.c.0.s8 %v1393
      %v1395 = vlaneseq
      %v1396 = vshrl.u32 %v1395, 7
      %v1397 = vsub.s32 %v1394, %v1396
      %v1398 = vrot.slane %v1384, %v1397
      %v1399 = vcombine.high %v1391, %v1391
      %v1400 = vcombine.high %v1398, %v1398
      %v1402 = vunpack.c.l.s4 1966171168
      %v1403 = vunpack.c.0.s8 %v1402
      %v1404 = vlaneseq
      %v1405 = vshrl.u32 %v1404, 7
      %v1406 = vsub.s32 %v1403, %v1405
      %v1407 = vrot.slane %v1391, %v1406
      %v1409 = vunpack.c.l.s4 1966171168
      %v1410 = vunpack.c.0.s8 %v1409
      %v1411 = vlaneseq
      %v1412 = vshrl.u32 %v1411, 7
      %v1413 = vsub.s32 %v1410, %v1412
      %v1414 = vrot.slane %v1398, %v1413
      %v1416 = vunpack.c.l.s4 1966171168
      %v1417 = vunpack.c.0.s8 %v1416
      %v1418 = vlaneseq
      %v1419 = vshrl.u32 %v1418, 7
      %v1420 = vsub.s32 %v1417, %v1419
      %v1421 = vrot.slane %v1399, %v1420
      %v1423 = vunpack.c.l.s4 1966171168
      %v1424 = vunpack.c.0.s8 %v1423
      %v1425 = vlaneseq
      %v1426 = vshrl.u32 %v1425, 7
      %v1427 = vsub.s32 %v1424, %v1426
      %v1428 = vrot.slane %v1400, %v1427
      %v1429 = vcombine.high %v1407, %v1407
      %v1430 = vcombine.high %v1414, %v1414
      %v1431 = vcombine.high %v1421, %v1421
      %v1432 = vcombine.high %v1428, %v1428
      %v1433 = vcombine.high %v1090, %v1090
      %v1435 = vunpack.c.l.s4 1966171168
      %v1436 = vunpack.c.0.s8 %v1435
      %v1437 = vlaneseq
      %v1438 = vshrl.u32 %v1437, 7
      %v1439 = vsub.s32 %v1436, %v1438
      %v1440 = vrot.slane %v1090, %v1439
      %v1442 = vunpack.c.l.s4 1966171168
      %v1443 = vunpack.c.0.s8 %v1442
      %v1444 = vlaneseq
      %v1445 = vshrl.u32 %v1444, 7
      %v1446 = vsub.s32 %v1443, %v1445
      %v1447 = vrot.slane %v1433, %v1446
      %v1448 = vcombine.high %v1440, %v1440
      %v1449 = vcombine.high %v1447, %v1447
      %v1451 = vunpack.c.l.s4 1966171168
      %v1452 = vunpack.c.0.s8 %v1451
      %v1453 = vlaneseq
      %v1454 = vshrl.u32 %v1453, 7
      %v1455 = vsub.s32 %v1452, %v1454
      %v1456 = vrot.slane %v1440, %v1455
      %v1458 = vunpack.c.l.s4 1966171168
      %v1459 = vunpack.c.0.s8 %v1458
      %v1460 = vlaneseq
      %v1461 = vshrl.u32 %v1460, 7
      %v1462 = vsub.s32 %v1459, %v1461
      %v1463 = vrot.slane %v1447, %v1462
      %v1465 = vunpack.c.l.s4 1966171168
      %v1466 = vunpack.c.0.s8 %v1465
      %v1467 = vlaneseq
      %v1468 = vshrl.u32 %v1467, 7
      %v1469 = vsub.s32 %v1466, %v1468
      %v1470 = vrot.slane %v1448, %v1469
      %v1472 = vunpack.c.l.s4 1966171168
      %v1473 = vunpack.c.0.s8 %v1472
      %v1474 = vlaneseq
      %v1475 = vshrl.u32 %v1474, 7
      %v1476 = vsub.s32 %v1473, %v1475
      %v1477 = vrot.slane %v1449, %v1476
      %v1478 = vcombine.high %v1456, %v1456
      %v1479 = vcombine.high %v1463, %v1463
      %v1480 = vcombine.high %v1470, %v1470
      %v1481 = vcombine.high %v1477, %v1477
      %v1482 = vcombine.high %v1095, %v1095
      %v1484 = vunpack.c.l.s4 1966171168
      %v1485 = vunpack.c.0.s8 %v1484
      %v1486 = vlaneseq
      %v1487 = vshrl.u32 %v1486, 7
      %v1488 = vsub.s32 %v1485, %v1487
      %v1489 = vrot.slane %v1095, %v1488
      %v1491 = vunpack.c.l.s4 1966171168
      %v1492 = vunpack.c.0.s8 %v1491
      %v1493 = vlaneseq
      %v1494 = vshrl.u32 %v1493, 7
      %v1495 = vsub.s32 %v1492, %v1494
      %v1496 = vrot.slane %v1482, %v1495
      %v1497 = vcombine.high %v1489, %v1489
      %v1498 = vcombine.high %v1496, %v1496
      %v1500 = vunpack.c.l.s4 1966171168
      %v1501 = vunpack.c.0.s8 %v1500
      %v1502 = vlaneseq
      %v1503 = vshrl.u32 %v1502, 7
      %v1504 = vsub.s32 %v1501, %v1503
      %v1505 = vrot.slane %v1489, %v1504
      %v1507 = vunpack.c.l.s4 1966171168
      %v1508 = vunpack.c.0.s8 %v1507
      %v1509 = vlaneseq
      %v1510 = vshrl.u32 %v1509, 7
      %v1511 = vsub.s32 %v1508, %v1510
      %v1512 = vrot.slane %v1496, %v1511
      %v1514 = vunpack.c.l.s4 1966171168
      %v1515 = vunpack.c.0.s8 %v1514
      %v1516 = vlaneseq
      %v1517 = vshrl.u32 %v1516, 7
      %v1518 = vsub.s32 %v1515, %v1517
      %v1519 = vrot.slane %v1497, %v1518
      %v1521 = vunpack.c.l.s4 1966171168
      %v1522 = vunpack.c.0.s8 %v1521
      %v1523 = vlaneseq
      %v1524 = vshrl.u32 %v1523, 7
      %v1525 = vsub.s32 %v1522, %v1524
      %v1526 = vrot.slane %v1498, %v1525
      %v1527 = vcombine.high %v1505, %v1505
      %v1528 = vcombine.high %v1512, %v1512
      %v1529 = vcombine.high %v1519, %v1519
      %v1530 = vcombine.high %v1526, %v1526
      %v1531 = vlaneseq
      %v1532 = vshrl.u32 %v1531, 7
      %v1533 = vsub.s32 0, %v1532
      %v1534 = vrot.slane %v1162, %v1533
      %v1535 = vlaneseq
      %v1536 = vshrl.u32 %v1535, 7
      %v1537 = vsub.s32 0, %v1536
      %v1538 = vrot.slane %v1176, %v1537
      %v1539 = vlaneseq
      %v1540 = vshrl.u32 %v1539, 7
      %v1541 = vsub.s32 0, %v1540
      %v1542 = vrot.slane %v1184, %v1541
      %v1543 = vlaneseq
      %v1544 = vshrl.u32 %v1543, 7
      %v1545 = vsub.s32 0, %v1544
      %v1546 = vrot.slane %v1186, %v1545
      %v1547 = vlaneseq
      %v1548 = vshrl.u32 %v1547, 7
      %v1549 = vsub.s32 0, %v1548
      %v1550 = vrot.slane %v1169, %v1549
      %v1551 = vlaneseq
      %v1552 = vshrl.u32 %v1551, 7
      %v1553 = vsub.s32 0, %v1552
      %v1554 = vrot.slane %v1183, %v1553
      %v1555 = vlaneseq
      %v1556 = vshrl.u32 %v1555, 7
      %v1557 = vsub.s32 0, %v1556
      %v1558 = vrot.slane %v1185, %v1557
      %v1559 = vlaneseq
      %v1560 = vshrl.u32 %v1559, 7
      %v1561 = vsub.s32 0, %v1560
      %v1562 = vrot.slane %v1187, %v1561
      %v1563 = vlaneseq
      %v1564 = vshrl.u32 %v1563, 7
      %v1565 = vsub.s32 0, %v1564
      %v1566 = vrot.slane %v1211, %v1565
      %v1567 = vlaneseq
      %v1568 = vshrl.u32 %v1567, 7
      %v1569 = vsub.s32 0, %v1568
      %v1570 = vrot.slane %v1225, %v1569
      %v1571 = vlaneseq
      %v1572 = vshrl.u32 %v1571, 7
      %v1573 = vsub.s32 0, %v1572
      %v1574 = vrot.slane %v1233, %v1573
      %v1575 = vlaneseq
      %v1576 = vshrl.u32 %v1575, 7
      %v1577 = vsub.s32 0, %v1576
      %v1578 = vrot.slane %v1235, %v1577
      %v1579 = vlaneseq
      %v1580 = vshrl.u32 %v1579, 7
      %v1581 = vsub.s32 0, %v1580
      %v1582 = vrot.slane %v1218, %v1581
      %v1583 = vlaneseq
      %v1584 = vshrl.u32 %v1583, 7
      %v1585 = vsub.s32 0, %v1584
      %v1586 = vrot.slane %v1232, %v1585
      %v1587 = vlaneseq
      %v1588 = vshrl.u32 %v1587, 7
      %v1589 = vsub.s32 0, %v1588
      %v1590 = vrot.slane %v1234, %v1589
      %v1591 = vlaneseq
      %v1592 = vshrl.u32 %v1591, 7
      %v1593 = vsub.s32 0, %v1592
      %v1594 = vrot.slane %v1236, %v1593
      %v1595 = vlaneseq
      %v1596 = vshrl.u32 %v1595, 7
      %v1597 = vsub.s32 0, %v1596
      %v1598 = vrot.slane %v1260, %v1597
      %v1599 = vlaneseq
      %v1600 = vshrl.u32 %v1599, 7
      %v1601 = vsub.s32 0, %v1600
      %v1602 = vrot.slane %v1274, %v1601
      %v1603 = vlaneseq
      %v1604 = vshrl.u32 %v1603, 7
      %v1605 = vsub.s32 0, %v1604
      %v1606 = vrot.slane %v1282, %v1605
      %v1607 = vlaneseq
      %v1608 = vshrl.u32 %v1607, 7
      %v1609 = vsub.s32 0, %v1608
      %v1610 = vrot.slane %v1284, %v1609
      %v1611 = vlaneseq
      %v1612 = vshrl.u32 %v1611, 7
      %v1613 = vsub.s32 0, %v1612
      %v1614 = vrot.slane %v1267, %v1613
      %v1615 = vlaneseq
      %v1616 = vshrl.u32 %v1615, 7
      %v1617 = vsub.s32 0, %v1616
      %v1618 = vrot.slane %v1281, %v1617
      %v1619 = vlaneseq
      %v1620 = vshrl.u32 %v1619, 7
      %v1621 = vsub.s32 0, %v1620
      %v1622 = vrot.slane %v1283, %v1621
      %v1623 = vlaneseq
      %v1624 = vshrl.u32 %v1623, 7
      %v1625 = vsub.s32 0, %v1624
      %v1626 = vrot.slane %v1285, %v1625
      %v1627 = vlaneseq
      %v1628 = vshrl.u32 %v1627, 7
      %v1629 = vsub.s32 0, %v1628
      %v1630 = vrot.slane %v1309, %v1629
      %v1631 = vlaneseq
      %v1632 = vshrl.u32 %v1631, 7
      %v1633 = vsub.s32 0, %v1632
      %v1634 = vrot.slane %v1323, %v1633
      %v1635 = vlaneseq
      %v1636 = vshrl.u32 %v1635, 7
      %v1637 = vsub.s32 0, %v1636
      %v1638 = vrot.slane %v1331, %v1637
      %v1639 = vlaneseq
      %v1640 = vshrl.u32 %v1639, 7
      %v1641 = vsub.s32 0, %v1640
      %v1642 = vrot.slane %v1333, %v1641
      %v1643 = vlaneseq
      %v1644 = vshrl.u32 %v1643, 7
      %v1645 = vsub.s32 0, %v1644
      %v1646 = vrot.slane %v1316, %v1645
      %v1647 = vlaneseq
      %v1648 = vshrl.u32 %v1647, 7
      %v1649 = vsub.s32 0, %v1648
      %v1650 = vrot.slane %v1330, %v1649
      %v1651 = vlaneseq
      %v1652 = vshrl.u32 %v1651, 7
      %v1653 = vsub.s32 0, %v1652
      %v1654 = vrot.slane %v1332, %v1653
      %v1655 = vlaneseq
      %v1656 = vshrl.u32 %v1655, 7
      %v1657 = vsub.s32 0, %v1656
      %v1658 = vrot.slane %v1334, %v1657
      %v1659 = vlaneseq
      %v1660 = vshrl.u32 %v1659, 7
      %v1661 = vsub.s32 0, %v1660
      %v1662 = vrot.slane %v1358, %v1661
      %v1663 = vlaneseq
      %v1664 = vshrl.u32 %v1663, 7
      %v1665 = vsub.s32 0, %v1664
      %v1666 = vrot.slane %v1372, %v1665
      %v1667 = vlaneseq
      %v1668 = vshrl.u32 %v1667, 7
      %v1669 = vsub.s32 0, %v1668
      %v1670 = vrot.slane %v1380, %v1669
      %v1671 = vlaneseq
      %v1672 = vshrl.u32 %v1671, 7
      %v1673 = vsub.s32 0, %v1672
      %v1674 = vrot.slane %v1382, %v1673
      %v1675 = vlaneseq
      %v1676 = vshrl.u32 %v1675, 7
      %v1677 = vsub.s32 0, %v1676
      %v1678 = vrot.slane %v1365, %v1677
      %v1679 = vlaneseq
      %v1680 = vshrl.u32 %v1679, 7
      %v1681 = vsub.s32 0, %v1680
      %v1682 = vrot.slane %v1379, %v1681
      %v1683 = vlaneseq
      %v1684 = vshrl.u32 %v1683, 7
      %v1685 = vsub.s32 0, %v1684
      %v1686 = vrot.slane %v1381, %v1685
      %v1687 = vlaneseq
      %v1688 = vshrl.u32 %v1687, 7
      %v1689 = vsub.s32 0, %v1688
      %v1690 = vrot.slane %v1383, %v1689
      %v1691 = vlaneseq
      %v1692 = vshrl.u32 %v1691, 7
      %v1693 = vsub.s32 0, %v1692
      %v1694 = vrot.slane %v1407, %v1693
      %v1695 = vlaneseq
      %v1696 = vshrl.u32 %v1695, 7
      %v1697 = vsub.s32 0, %v1696
      %v1698 = vrot.slane %v1421, %v1697
      %v1699 = vlaneseq
      %v1700 = vshrl.u32 %v1699, 7
      %v1701 = vsub.s32 0, %v1700
      %v1702 = vrot.slane %v1429, %v1701
      %v1703 = vlaneseq
      %v1704 = vshrl.u32 %v1703, 7
      %v1705 = vsub.s32 0, %v1704
      %v1706 = vrot.slane %v1431, %v1705
      %v1707 = vlaneseq
      %v1708 = vshrl.u32 %v1707, 7
      %v1709 = vsub.s32 0, %v1708
      %v1710 = vrot.slane %v1414, %v1709
      %v1711 = vlaneseq
      %v1712 = vshrl.u32 %v1711, 7
      %v1713 = vsub.s32 0, %v1712
      %v1714 = vrot.slane %v1428, %v1713
      %v1715 = vlaneseq
      %v1716 = vshrl.u32 %v1715, 7
      %v1717 = vsub.s32 0, %v1716
      %v1718 = vrot.slane %v1430, %v1717
      %v1719 = vlaneseq
      %v1720 = vshrl.u32 %v1719, 7
      %v1721 = vsub.s32 0, %v1720
      %v1722 = vrot.slane %v1432, %v1721
      %v1723 = vlaneseq
      %v1724 = vshrl.u32 %v1723, 7
      %v1725 = vsub.s32 0, %v1724
      %v1726 = vrot.slane %v1456, %v1725
      %v1727 = vlaneseq
      %v1728 = vshrl.u32 %v1727, 7
      %v1729 = vsub.s32 0, %v1728
      %v1730 = vrot.slane %v1470, %v1729
      %v1731 = vlaneseq
      %v1732 = vshrl.u32 %v1731, 7
      %v1733 = vsub.s32 0, %v1732
      %v1734 = vrot.slane %v1478, %v1733
      %v1735 = vlaneseq
      %v1736 = vshrl.u32 %v1735, 7
      %v1737 = vsub.s32 0, %v1736
      %v1738 = vrot.slane %v1480, %v1737
      %v1739 = vlaneseq
      %v1740 = vshrl.u32 %v1739, 7
      %v1741 = vsub.s32 0, %v1740
      %v1742 = vrot.slane %v1463, %v1741
      %v1743 = vlaneseq
      %v1744 = vshrl.u32 %v1743, 7
      %v1745 = vsub.s32 0, %v1744
      %v1746 = vrot.slane %v1477, %v1745
      %v1747 = vlaneseq
      %v1748 = vshrl.u32 %v1747, 7
      %v1749 = vsub.s32 0, %v1748
      %v1750 = vrot.slane %v1479, %v1749
      %v1751 = vlaneseq
      %v1752 = vshrl.u32 %v1751, 7
      %v1753 = vsub.s32 0, %v1752
      %v1754 = vrot.slane %v1481, %v1753
      %v1755 = vlaneseq
      %v1756 = vshrl.u32 %v1755, 7
      %v1757 = vsub.s32 0, %v1756
      %v1758 = vrot.slane %v1505, %v1757
      %v1759 = vlaneseq
      %v1760 = vshrl.u32 %v1759, 7
      %v1761 = vsub.s32 0, %v1760
      %v1762 = vrot.slane %v1519, %v1761
      %v1763 = vlaneseq
      %v1764 = vshrl.u32 %v1763, 7
      %v1765 = vsub.s32 0, %v1764
      %v1766 = vrot.slane %v1527, %v1765
      %v1767 = vlaneseq
      %v1768 = vshrl.u32 %v1767, 7
      %v1769 = vsub.s32 0, %v1768
      %v1770 = vrot.slane %v1529, %v1769
      %v1771 = vlaneseq
      %v1772 = vshrl.u32 %v1771, 7
      %v1773 = vsub.s32 0, %v1772
      %v1774 = vrot.slane %v1512, %v1773
      %v1775 = vlaneseq
      %v1776 = vshrl.u32 %v1775, 7
      %v1777 = vsub.s32 0, %v1776
      %v1778 = vrot.slane %v1526, %v1777
      %v1779 = vlaneseq
      %v1780 = vshrl.u32 %v1779, 7
      %v1781 = vsub.s32 0, %v1780
      %v1782 = vrot.slane %v1528, %v1781
      %v1783 = vlaneseq
      %v1784 = vshrl.u32 %v1783, 7
      %v1785 = vsub.s32 0, %v1784
      %v1786 = vrot.slane %v1530, %v1785
      %v1787 = vcombine.low %v1534, %v1538
      %v1788 = vcombine.low %v1542, %v1546
      %v1790 = vunpack.c.l.s4 1983009808
      %v1791 = vunpack.c.0.s8 %v1790
      %v1792 = vlaneseq
      %v1793 = vshrl.u32 %v1792, 7
      %v1794 = vsub.s32 %v1791, %v1793
      %v1795 = vrot.slane %v1787, %v1794
      %v1797 = vunpack.c.l.s4 1983009808
      %v1798 = vunpack.c.0.s8 %v1797
      %v1799 = vlaneseq
      %v1800 = vshrl.u32 %v1799, 7
      %v1801 = vsub.s32 %v1798, %v1800
      %v1802 = vrot.slane %v1788, %v1801
      %v1803 = vcombine.low %v1795, %v1802
      %v1804 = vcombine.low %v1550, %v1554
      %v1805 = vcombine.low %v1558, %v1562
      %v1807 = vunpack.c.l.s4 1983009808
      %v1808 = vunpack.c.0.s8 %v1807
      %v1809 = vlaneseq
      %v1810 = vshrl.u32 %v1809, 7
      %v1811 = vsub.s32 %v1808, %v1810
      %v1812 = vrot.slane %v1804, %v1811
      %v1814 = vunpack.c.l.s4 1983009808
      %v1815 = vunpack.c.0.s8 %v1814
      %v1816 = vlaneseq
      %v1817 = vshrl.u32 %v1816, 7
      %v1818 = vsub.s32 %v1815, %v1817
      %v1819 = vrot.slane %v1805, %v1818
      %v1820 = vcombine.low %v1812, %v1819
      %v1821 = vcombine.low %v1566, %v1570
      %v1822 = vcombine.low %v1574, %v1578
      %v1824 = vunpack.c.l.s4 1983009808
      %v1825 = vunpack.c.0.s8 %v1824
      %v1826 = vlaneseq
      %v1827 = vshrl.u32 %v1826, 7
      %v1828 = vsub.s32 %v1825, %v1827
      %v1829 = vrot.slane %v1821, %v1828
      %v1831 = vunpack.c.l.s4 1983009808
      %v1832 = vunpack.c.0.s8 %v1831
      %v1833 = vlaneseq
      %v1834 = vshrl.u32 %v1833, 7
      %v1835 = vsub.s32 %v1832, %v1834
      %v1836 = vrot.slane %v1822, %v1835
      %v1837 = vcombine.low %v1829, %v1836
      %v1838 = vcombine.low %v1582, %v1586
      %v1839 = vcombine.low %v1590, %v1594
      %v1841 = vunpack.c.l.s4 1983009808
      %v1842 = vunpack.c.0.s8 %v1841
      %v1843 = vlaneseq
      %v1844 = vshrl.u32 %v1843, 7
      %v1845 = vsub.s32 %v1842, %v1844
      %v1846 = vrot.slane %v1838, %v1845
      %v1848 = vunpack.c.l.s4 1983009808
      %v1849 = vunpack.c.0.s8 %v1848
      %v1850 = vlaneseq
      %v1851 = vshrl.u32 %v1850, 7
      %v1852 = vsub.s32 %v1849, %v1851
      %v1853 = vrot.slane %v1839, %v1852
      %v1854 = vcombine.low %v1846, %v1853
      %v1855 = vcombine.low %v1598, %v1602
      %v1856 = vcombine.low %v1606, %v1610
      %v1858 = vunpack.c.l.s4 1983009808
      %v1859 = vunpack.c.0.s8 %v1858
      %v1860 = vlaneseq
      %v1861 = vshrl.u32 %v1860, 7
      %v1862 = vsub.s32 %v1859, %v1861
      %v1863 = vrot.slane %v1855, %v1862
      %v1865 = vunpack.c.l.s4 1983009808
      %v1866 = vunpack.c.0.s8 %v1865
      %v1867 = vlaneseq
      %v1868 = vshrl.u32 %v1867, 7
      %v1869 = vsub.s32 %v1866, %v1868
      %v1870 = vrot.slane %v1856, %v1869
      %v1871 = vcombine.low %v1863, %v1870
      %v1872 = vcombine.low %v1614, %v1618
      %v1873 = vcombine.low %v1622, %v1626
      %v1875 = vunpack.c.l.s4 1983009808
      %v1876 = vunpack.c.0.s8 %v1875
      %v1877 = vlaneseq
      %v1878 = vshrl.u32 %v1877, 7
      %v1879 = vsub.s32 %v1876, %v1878
      %v1880 = vrot.slane %v1872, %v1879
      %v1882 = vunpack.c.l.s4 1983009808
      %v1883 = vunpack.c.0.s8 %v1882
      %v1884 = vlaneseq
      %v1885 = vshrl.u32 %v1884, 7
      %v1886 = vsub.s32 %v1883, %v1885
      %v1887 = vrot.slane %v1873, %v1886
      %v1888 = vcombine.low %v1880, %v1887
      %v1889 = vcombine.low %v1630, %v1634
      %v1890 = vcombine.low %v1638, %v1642
      %v1892 = vunpack.c.l.s4 1983009808
      %v1893 = vunpack.c.0.s8 %v1892
      %v1894 = vlaneseq
      %v1895 = vshrl.u32 %v1894, 7
      %v1896 = vsub.s32 %v1893, %v1895
      %v1897 = vrot.slane %v1889, %v1896
      %v1899 = vunpack.c.l.s4 1983009808
      %v1900 = vunpack.c.0.s8 %v1899
      %v1901 = vlaneseq
      %v1902 = vshrl.u32 %v1901, 7
      %v1903 = vsub.s32 %v1900, %v1902
      %v1904 = vrot.slane %v1890, %v1903
      %v1905 = vcombine.low %v1897, %v1904
      %v1906 = vcombine.low %v1646, %v1650
      %v1907 = vcombine.low %v1654, %v1658
      %v1909 = vunpack.c.l.s4 1983009808
      %v1910 = vunpack.c.0.s8 %v1909
      %v1911 = vlaneseq
      %v1912 = vshrl.u32 %v1911, 7
      %v1913 = vsub.s32 %v1910, %v1912
      %v1914 = vrot.slane %v1906, %v1913
      %v1916 = vunpack.c.l.s4 1983009808
      %v1917 = vunpack.c.0.s8 %v1916
      %v1918 = vlaneseq
      %v1919 = vshrl.u32 %v1918, 7
      %v1920 = vsub.s32 %v1917, %v1919
      %v1921 = vrot.slane %v1907, %v1920
      %v1922 = vcombine.low %v1914, %v1921
      %v1923 = vcombine.low %v1662, %v1666
      %v1924 = vcombine.low %v1670, %v1674
      %v1926 = vunpack.c.l.s4 1983009808
      %v1927 = vunpack.c.0.s8 %v1926
      %v1928 = vlaneseq
      %v1929 = vshrl.u32 %v1928, 7
      %v1930 = vsub.s32 %v1927, %v1929
      %v1931 = vrot.slane %v1923, %v1930
      %v1933 = vunpack.c.l.s4 1983009808
      %v1934 = vunpack.c.0.s8 %v1933
      %v1935 = vlaneseq
      %v1936 = vshrl.u32 %v1935, 7
      %v1937 = vsub.s32 %v1934, %v1936
      %v1938 = vrot.slane %v1924, %v1937
      %v1939 = vcombine.low %v1931, %v1938
      %v1940 = vcombine.low %v1678, %v1682
      %v1941 = vcombine.low %v1686, %v1690
      %v1943 = vunpack.c.l.s4 1983009808
      %v1944 = vunpack.c.0.s8 %v1943
      %v1945 = vlaneseq
      %v1946 = vshrl.u32 %v1945, 7
      %v1947 = vsub.s32 %v1944, %v1946
      %v1948 = vrot.slane %v1940, %v1947
      %v1950 = vunpack.c.l.s4 1983009808
      %v1951 = vunpack.c.0.s8 %v1950
      %v1952 = vlaneseq
      %v1953 = vshrl.u32 %v1952, 7
      %v1954 = vsub.s32 %v1951, %v1953
      %v1955 = vrot.slane %v1941, %v1954
      %v1956 = vcombine.low %v1948, %v1955
      %v1957 = vcombine.low %v1694, %v1698
      %v1958 = vcombine.low %v1702, %v1706
      %v1960 = vunpack.c.l.s4 1983009808
      %v1961 = vunpack.c.0.s8 %v1960
      %v1962 = vlaneseq
      %v1963 = vshrl.u32 %v1962, 7
      %v1964 = vsub.s32 %v1961, %v1963
      %v1965 = vrot.slane %v1957, %v1964
      %v1967 = vunpack.c.l.s4 1983009808
      %v1968 = vunpack.c.0.s8 %v1967
      %v1969 = vlaneseq
      %v1970 = vshrl.u32 %v1969, 7
      %v1971 = vsub.s32 %v1968, %v1970
      %v1972 = vrot.slane %v1958, %v1971
      %v1973 = vcombine.low %v1965, %v1972
      %v1974 = vcombine.low %v1710, %v1714
      %v1975 = vcombine.low %v1718, %v1722
      %v1977 = vunpack.c.l.s4 1983009808
      %v1978 = vunpack.c.0.s8 %v1977
      %v1979 = vlaneseq
      %v1980 = vshrl.u32 %v1979, 7
      %v1981 = vsub.s32 %v1978, %v1980
      %v1982 = vrot.slane %v1974, %v1981
      %v1984 = vunpack.c.l.s4 1983009808
      %v1985 = vunpack.c.0.s8 %v1984
      %v1986 = vlaneseq
      %v1987 = vshrl.u32 %v1986, 7
      %v1988 = vsub.s32 %v1985, %v1987
      %v1989 = vrot.slane %v1975, %v1988
      %v1990 = vcombine.low %v1982, %v1989
      %v1991 = vcombine.low %v1726, %v1730
      %v1992 = vcombine.low %v1734, %v1738
      %v1994 = vunpack.c.l.s4 1983009808
      %v1995 = vunpack.c.0.s8 %v1994
      %v1996 = vlaneseq
      %v1997 = vshrl.u32 %v1996, 7
      %v1998 = vsub.s32 %v1995, %v1997
      %v1999 = vrot.slane %v1991, %v1998
      %v2001 = vunpack.c.l.s4 1983009808
      %v2002 = vunpack.c.0.s8 %v2001
      %v2003 = vlaneseq
      %v2004 = vshrl.u32 %v2003, 7
      %v2005 = vsub.s32 %v2002, %v2004
      %v2006 = vrot.slane %v1992, %v2005
      %v2007 = vcombine.low %v1999, %v2006
      %v2008 = vcombine.low %v1742, %v1746
      %v2009 = vcombine.low %v1750, %v1754
      %v2011 = vunpack.c.l.s4 1983009808
      %v2012 = vunpack.c.0.s8 %v2011
      %v2013 = vlaneseq
      %v2014 = vshrl.u32 %v2013, 7
      %v2015 = vsub.s32 %v2012, %v2014
      %v2016 = vrot.slane %v2008, %v2015
      %v2018 = vunpack.c.l.s4 1983009808
      %v2019 = vunpack.c.0.s8 %v2018
      %v2020 = vlaneseq
      %v2021 = vshrl.u32 %v2020, 7
      %v2022 = vsub.s32 %v2019, %v2021
      %v2023 = vrot.slane %v2009, %v2022
      %v2024 = vcombine.low %v2016, %v2023
      %v2025 = vcombine.low %v1758, %v1762
      %v2026 = vcombine.low %v1766, %v1770
      %v2028 = vunpack.c.l.s4 1983009808
      %v2029 = vunpack.c.0.s8 %v2028
      %v2030 = vlaneseq
      %v2031 = vshrl.u32 %v2030, 7
      %v2032 = vsub.s32 %v2029, %v2031
      %v2033 = vrot.slane %v2025, %v2032
      %v2035 = vunpack.c.l.s4 1983009808
      %v2036 = vunpack.c.0.s8 %v2035
      %v2037 = vlaneseq
      %v2038 = vshrl.u32 %v2037, 7
      %v2039 = vsub.s32 %v2036, %v2038
      %v2040 = vrot.slane %v2026, %v2039
      %v2041 = vcombine.low %v2033, %v2040
      %v2042 = vcombine.low %v1774, %v1778
      %v2043 = vcombine.low %v1782, %v1786
      %v2045 = vunpack.c.l.s4 1983009808
      %v2046 = vunpack.c.0.s8 %v2045
      %v2047 = vlaneseq
      %v2048 = vshrl.u32 %v2047, 7
      %v2049 = vsub.s32 %v2046, %v2048
      %v2050 = vrot.slane %v2042, %v2049
      %v2052 = vunpack.c.l.s4 1983009808
      %v2053 = vunpack.c.0.s8 %v2052
      %v2054 = vlaneseq
      %v2055 = vshrl.u32 %v2054, 7
      %v2056 = vsub.s32 %v2053, %v2055
      %v2057 = vrot.slane %v2043, %v2056
      %v2058 = vcombine.low %v2050, %v2057
      %vm2075 = vcmask 64512
      %v2077 = vsel %vm2075, %v1098, 0
      %v2080 = vsel %vm2075, %v1099, 0
      %v2083 = vsel %vm2075, %v1100, 0
      %v2086 = vsel %vm2075, %v1101, 0
      %v2089 = vsel %vm2075, %v1102, 0
      %v2092 = vsel %vm2075, %v1103, 0
      %v2095 = vsel %vm2075, %v1104, 0
      %v2098 = vsel %vm2075, %v1105, 0
      %v2101 = vsel %vm2075, %v1106, 0
      %v2104 = vsel %vm2075, %v1107, 0
      %v2107 = vsel %vm2075, %v1108, 0
      %v2110 = vsel %vm2075, %v1109, 0
      %v2113 = vsel %vm2075, %v1110, 0
      %v2116 = vsel %vm2075, %v1111, 0
      %v2119 = vsel %vm2075, %v1112, 0
      %v2122 = vsel %vm2075, %v1113, 0
      %v2125 = vsel %vm2075, %v1114, 0
      %v2128 = vsel %vm2075, %v1115, 0
      %v2131 = vsel %vm2075, %v1116, 0
      %v2134 = vsel %vm2075, %v1117, 0
      %v2137 = vsel %vm2075, %v1118, 0
      %v2140 = vsel %vm2075, %v1119, 0
      %v2143 = vsel %vm2075, %v1120, 0
      %v2146 = vsel %vm2075, %v1121, 0
      %v2149 = vsel %vm2075, %v1122, 0
      %v2152 = vsel %vm2075, %v1123, 0
      %v2155 = vsel %vm2075, %v1124, 0
      %v2158 = vsel %vm2075, %v1125, 0
      %v2161 = vsel %vm2075, %v1126, 0
      %v2164 = vsel %vm2075, %v1127, 0
      %v2167 = vsel %vm2075, %v1128, 0
      %v2170 = vsel %vm2075, %v1129, 0
      %2172 = vmatprep.subr.mxu0 0.0
      %2173 = vmatpush1.msra.mxu0 0.0
      %2174 = vmatprep.subr.mxu0 0.0
      %2175 = vmatpush1.msra.mxu0 0.0
      %2176 = vmatprep.subr.mxu0 0.0
      %2177 = vmatpush1.msra.mxu0 0.0
      %2178 = vmatprep.subr.mxu0 0.0
      %2179 = vmatpush1.msra.mxu0 0.0
      %2180 = vmatprep.subr.mxu0 0.0
      %2181 = vmatpush1.msra.mxu0 0.0
      %2182 = vmatprep.subr.mxu0 0.0
      %2183 = vmatpush1.msra.mxu0 0.0
      %2184 = vmatprep.subr.mxu0 0.0
      %2185 = vmatpush1.msra.mxu0 0.0
      %2186 = vmatprep.subr.mxu0 0.0
      %2187 = vmatpush1.msra.mxu0 0.0
      %2188 = vmatprep.subr.mxu0 0.0
      %2189 = vmatpush1.msra.mxu0 0.0
      %2190 = vmatprep.subr.mxu0 0.0
      %2191 = vmatpush1.msra.mxu0 0.0
      %2192 = vmatprep.subr.mxu0 0.0
      %2193 = vmatpush1.msra.mxu0 0.0
      %2194 = vmatprep.subr.mxu0 0.0
      %2195 = vmatpush1.msra.mxu0 0.0
      %2196 = vmatprep.subr.mxu0 0.0
      %2197 = vmatpush1.msra.mxu0 0.0
      %2198 = vmatprep.subr.mxu0 0.0
      %2199 = vmatpush1.msra.mxu0 0.0
      %2200 = vmatprep.subr.mxu0 0.0
      %2201 = vmatpush1.msra.mxu0 0.0
      %2202 = vmatprep.subr.mxu0 0.0
      %2203 = vmatpush1.msra.mxu0 %v1130
      %2204 = vmatprep.subr.mxu0 0.0
      %2205 = vmatpush2.msra.mxu0 0.0
      %2206 = vmatprep.subr.mxu0 0.0
      %2207 = vmatpush2.msra.mxu0 0.0
      %2208 = vmatprep.subr.mxu0 0.0
      %2209 = vmatpush2.msra.mxu0 0.0
      %2210 = vmatprep.subr.mxu0 0.0
      %2211 = vmatpush2.msra.mxu0 0.0
      %2212 = vmatprep.subr.mxu0 0.0
      %2213 = vmatpush2.msra.mxu0 0.0
      %2214 = vmatprep.subr.mxu0 0.0
      %2215 = vmatpush2.msra.mxu0 0.0
      %2216 = vmatprep.subr.mxu0 0.0
      %2217 = vmatpush2.msra.mxu0 0.0
      %2218 = vmatprep.subr.mxu0 0.0
      %2219 = vmatpush2.msra.mxu0 0.0
      %2220 = vmatprep.subr.mxu0 0.0
      %2221 = vmatpush2.msra.mxu0 0.0
      %2222 = vmatprep.subr.mxu0 0.0
      %2223 = vmatpush2.msra.mxu0 0.0
      %2224 = vmatprep.subr.mxu0 0.0
      %2225 = vmatpush2.msra.mxu0 0.0
      %2226 = vmatprep.subr.mxu0 0.0
      %2227 = vmatpush2.msra.mxu0 0.0
      %2228 = vmatprep.subr.mxu0 0.0
      %2229 = vmatpush2.msra.mxu0 0.0
      %2230 = vmatprep.subr.mxu0 0.0
      %2231 = vmatpush2.msra.mxu0 0.0
      %2232 = vmatprep.subr.mxu0 0.0
      %2233 = vmatpush2.msra.mxu0 0.0
      %2234 = vmatprep.subr.mxu0 0.0
      %2235 = vmatpush2.msra.mxu0 0.0
      %2236 = vmatprep.mubr.f32.mxu0 0.0
      %2237 = vmatmul.mubr.f32.gmra.mxu0 %v2077
      %v2238 = vpop.f32.mrf.mxu0
      %v2239 = vadd.f32 %v1803, %v2238
      %v2240 = vpop.f32.mrf.mxu0
      %2241 = vmatprep.mubr.f32.mxu0 0.0
      %2242 = vmatmul.mubr.f32.gmra.mxu0 %v2080
      %v2243 = vpop.f32.mrf.mxu0
      %v2244 = vadd.f32 %v1820, %v2243
      %v2245 = vpop.f32.mrf.mxu0
      %2246 = vmatprep.mubr.f32.mxu0 0.0
      %2247 = vmatmul.mubr.f32.gmra.mxu0 %v2083
      %v2248 = vpop.f32.mrf.mxu0
      %v2249 = vadd.f32 %v1803, %v2248
      %v2250 = vpop.f32.mrf.mxu0
      %2251 = vmatprep.mubr.f32.mxu0 0.0
      %2252 = vmatmul.mubr.f32.gmra.mxu0 %v2086
      %v2253 = vpop.f32.mrf.mxu0
      %v2254 = vadd.f32 %v1820, %v2253
      %v2255 = vpop.f32.mrf.mxu0
      %2256 = vmatprep.mubr.f32.mxu0 0.0
      %2257 = vmatmul.mubr.f32.gmra.mxu0 %v2089
      %v2258 = vpop.f32.mrf.mxu0
      %v2259 = vadd.f32 %v1837, %v2258
      %v2260 = vpop.f32.mrf.mxu0
      %2261 = vmatprep.mubr.f32.mxu0 0.0
      %2262 = vmatmul.mubr.f32.gmra.mxu0 %v2092
      %v2263 = vpop.f32.mrf.mxu0
      %v2264 = vadd.f32 %v1854, %v2263
      %v2265 = vpop.f32.mrf.mxu0
      %2266 = vmatprep.mubr.f32.mxu0 0.0
      %2267 = vmatmul.mubr.f32.gmra.mxu0 %v2095
      %v2268 = vpop.f32.mrf.mxu0
      %v2269 = vadd.f32 %v1837, %v2268
      %v2270 = vpop.f32.mrf.mxu0
      %2271 = vmatprep.mubr.f32.mxu0 0.0
      %2272 = vmatmul.mubr.f32.gmra.mxu0 %v2098
      %v2273 = vpop.f32.mrf.mxu0
      %v2274 = vadd.f32 %v1854, %v2273
      %v2275 = vpop.f32.mrf.mxu0
      %2276 = vmatprep.mubr.f32.mxu0 0.0
      %2277 = vmatmul.mubr.f32.gmra.mxu0 %v2101
      %v2278 = vpop.f32.mrf.mxu0
      %v2279 = vadd.f32 %v1871, %v2278
      %v2280 = vpop.f32.mrf.mxu0
      %2281 = vmatprep.mubr.f32.mxu0 0.0
      %2282 = vmatmul.mubr.f32.gmra.mxu0 %v2104
      %v2283 = vpop.f32.mrf.mxu0
      %v2284 = vadd.f32 %v1888, %v2283
      %v2285 = vpop.f32.mrf.mxu0
      %2286 = vmatprep.mubr.f32.mxu0 0.0
      %2287 = vmatmul.mubr.f32.gmra.mxu0 %v2107
      %v2288 = vpop.f32.mrf.mxu0
      %v2289 = vadd.f32 %v1871, %v2288
      %v2290 = vpop.f32.mrf.mxu0
      %2291 = vmatprep.mubr.f32.mxu0 0.0
      %2292 = vmatmul.mubr.f32.gmra.mxu0 %v2110
      %v2293 = vpop.f32.mrf.mxu0
      %v2294 = vadd.f32 %v1888, %v2293
      %v2295 = vpop.f32.mrf.mxu0
      %2296 = vmatprep.mubr.f32.mxu0 0.0
      %2297 = vmatmul.mubr.f32.gmra.mxu0 %v2113
      %v2298 = vpop.f32.mrf.mxu0
      %v2299 = vadd.f32 %v1905, %v2298
      %v2300 = vpop.f32.mrf.mxu0
      %2301 = vmatprep.mubr.f32.mxu0 0.0
      %2302 = vmatmul.mubr.f32.gmra.mxu0 %v2116
      %v2303 = vpop.f32.mrf.mxu0
      %v2304 = vadd.f32 %v1922, %v2303
      %v2305 = vpop.f32.mrf.mxu0
      %2306 = vmatprep.mubr.f32.mxu0 0.0
      %2307 = vmatmul.mubr.f32.gmra.mxu0 %v2119
      %v2308 = vpop.f32.mrf.mxu0
      %v2309 = vadd.f32 %v1905, %v2308
      %v2310 = vpop.f32.mrf.mxu0
      %2311 = vmatprep.mubr.f32.mxu0 0.0
      %2312 = vmatmul.mubr.f32.gmra.mxu0 %v2122
      %v2313 = vpop.f32.mrf.mxu0
      %v2314 = vadd.f32 %v1922, %v2313
      %v2315 = vpop.f32.mrf.mxu0
      %2316 = vmatprep.mubr.f32.mxu0 0.0
      %2317 = vmatmul.mubr.f32.gmra.mxu0 %v2125
      %v2318 = vpop.f32.mrf.mxu0
      %v2319 = vadd.f32 %v1939, %v2318
      %v2320 = vpop.f32.mrf.mxu0
      %2321 = vmatprep.mubr.f32.mxu0 0.0
      %2322 = vmatmul.mubr.f32.gmra.mxu0 %v2128
      %v2323 = vpop.f32.mrf.mxu0
      %v2324 = vadd.f32 %v1956, %v2323
      %v2325 = vpop.f32.mrf.mxu0
      %2326 = vmatprep.mubr.f32.mxu0 0.0
      %2327 = vmatmul.mubr.f32.gmra.mxu0 %v2131
      %v2328 = vpop.f32.mrf.mxu0
      %v2329 = vadd.f32 %v1939, %v2328
      %v2330 = vpop.f32.mrf.mxu0
      %2331 = vmatprep.mubr.f32.mxu0 0.0
      %2332 = vmatmul.mubr.f32.gmra.mxu0 %v2134
      %v2333 = vpop.f32.mrf.mxu0
      %v2334 = vadd.f32 %v1956, %v2333
      %v2335 = vpop.f32.mrf.mxu0
      %2336 = vmatprep.mubr.f32.mxu0 0.0
      %2337 = vmatmul.mubr.f32.gmra.mxu0 %v2137
      %v2338 = vpop.f32.mrf.mxu0
      %v2339 = vadd.f32 %v1973, %v2338
      %v2340 = vpop.f32.mrf.mxu0
      %2341 = vmatprep.mubr.f32.mxu0 0.0
      %2342 = vmatmul.mubr.f32.gmra.mxu0 %v2140
      %v2343 = vpop.f32.mrf.mxu0
      %v2344 = vadd.f32 %v1990, %v2343
      %v2345 = vpop.f32.mrf.mxu0
      %2346 = vmatprep.mubr.f32.mxu0 0.0
      %2347 = vmatmul.mubr.f32.gmra.mxu0 %v2143
      %v2348 = vpop.f32.mrf.mxu0
      %v2349 = vadd.f32 %v1973, %v2348
      %v2350 = vpop.f32.mrf.mxu0
      %2351 = vmatprep.mubr.f32.mxu0 0.0
      %2352 = vmatmul.mubr.f32.gmra.mxu0 %v2146
      %v2353 = vpop.f32.mrf.mxu0
      %v2354 = vadd.f32 %v1990, %v2353
      %v2355 = vpop.f32.mrf.mxu0
      %2356 = vmatprep.mubr.f32.mxu0 0.0
      %2357 = vmatmul.mubr.f32.gmra.mxu0 %v2149
      %v2358 = vpop.f32.mrf.mxu0
      %v2359 = vadd.f32 %v2007, %v2358
      %v2360 = vpop.f32.mrf.mxu0
      %2361 = vmatprep.mubr.f32.mxu0 0.0
      %2362 = vmatmul.mubr.f32.gmra.mxu0 %v2152
      %v2363 = vpop.f32.mrf.mxu0
      %v2364 = vadd.f32 %v2024, %v2363
      %v2365 = vpop.f32.mrf.mxu0
      %2366 = vmatprep.mubr.f32.mxu0 0.0
      %2367 = vmatmul.mubr.f32.gmra.mxu0 %v2155
      %v2368 = vpop.f32.mrf.mxu0
      %v2369 = vadd.f32 %v2007, %v2368
      %v2370 = vpop.f32.mrf.mxu0
      %2371 = vmatprep.mubr.f32.mxu0 0.0
      %2372 = vmatmul.mubr.f32.gmra.mxu0 %v2158
      %v2373 = vpop.f32.mrf.mxu0
      %v2374 = vadd.f32 %v2024, %v2373
      %v2375 = vpop.f32.mrf.mxu0
      %2376 = vmatprep.mubr.f32.mxu0 0.0
      %2377 = vmatmul.mubr.f32.gmra.mxu0 %v2161
      %v2378 = vpop.f32.mrf.mxu0
      %v2379 = vadd.f32 %v2041, %v2378
      %v2380 = vpop.f32.mrf.mxu0
      %2381 = vmatprep.mubr.f32.mxu0 0.0
      %2382 = vmatmul.mubr.f32.gmra.mxu0 %v2164
      %v2383 = vpop.f32.mrf.mxu0
      %v2384 = vadd.f32 %v2058, %v2383
      %v2385 = vpop.f32.mrf.mxu0
      %2386 = vmatprep.mubr.f32.mxu0 0.0
      %2387 = vmatmul.mubr.f32.gmra.mxu0 %v2167
      %v2388 = vpop.f32.mrf.mxu0
      %v2389 = vadd.f32 %v2041, %v2388
      %v2390 = vpop.f32.mrf.mxu0
      %2391 = vmatprep.mubr.f32.mxu0 0.0
      %2392 = vmatmul.mubr.f32.gmra.mxu0 %v2170
      %v2393 = vpop.f32.mrf.mxu0
      %v2394 = vadd.f32 %v2058, %v2393
      %v2395 = vpop.f32.mrf.mxu0
      %2396 = vdwg.mxu0
      %vm2397 = vcmask 257024
      %2398 = vst.msk [vmem:[#allocation2] sm:$0xf] %vm2397, 0.0
      %s2399 = scalar_lea.vmem [#allocation2], 12
      %2400 = vst.msk [vmem:[%s2399] sm:$0xf] %vm2397, 0.0
      %vm2401 = vcmask 253952
      %2402 = vst.msk [vmem:[#allocation2] sm:$0x1] %vm2401, 0.0
      %2403 = vst.msk [vmem:[#allocation2 + $0x4] sm:$0x1] %vm2401, 0.0
      %2404 = vst.msk [vmem:[#allocation2 + $0x8] sm:$0x1] %vm2401, 0.0
      %2405 = vst.msk [vmem:[#allocation2 + $0xc] sm:$0x1] %vm2401, 0.0
      %2406 = vst.msk [vmem:[#allocation2 + $0x3] sm:$0x1] %vm2401, 0.0
      %2407 = vst.msk [vmem:[#allocation2 + $0x7] sm:$0x1] %vm2401, 0.0
      %2408 = vst.msk [vmem:[#allocation2 + $0xb] sm:$0x1] %vm2401, 0.0
      %2409 = vst.msk [vmem:[#allocation2 + $0xf] sm:$0x1] %vm2401, 0.0
      %v2411 = vunpack.c.l.s4 1983009808
      %v2412 = vunpack.c.0.s8 %v2411
      %v2413 = vlaneseq
      %v2414 = vshrl.u32 %v2413, 7
      %v2415 = vsub.s32 %v2412, %v2414
      %v2416 = vrot.slane %v564, %v2415
      %v2417 = vcombine.high %v2416, %v2416
      %s2420 = scalar_lea.vmem [#allocation2], 4
      %vm2421 = vcmask 254976
      %2422 = vst.msk [vmem:[%s2420 + $0x1] sm:$0x3] %vm2421, %v2416
      %2423 = vst.msk [vmem:[%s2420 + $0x5] sm:$0x3] %vm2421, %v2417
      %v2424 = vld [vmem:[#allocation2] sm:$0x3]
      %v2425 = vld [vmem:[#allocation2 + $0x4] sm:$0x3]
      %v2426 = vld [vmem:[%s11] sm:$0xff]
      %v2427 = vld [vmem:[%s11 + $0x8] sm:$0xff]
      %v2428 = vld [vmem:[%s11 + $0x10] sm:$0xff]
      %v2429 = vld [vmem:[%s11 + $0x18] sm:$0xff]
      %v2430 = vld [vmem:[#allocation2 + $0x1] sm:$0x3]
      %v2431 = vld [vmem:[#allocation2 + $0x5] sm:$0x3]
      %s2432 = scalar_lea.vmem %s11, 32
      %v2433 = vld [vmem:[%s2432] sm:$0xff]
      %v2434 = vld [vmem:[%s2432 + $0x8] sm:$0xff]
      %v2435 = vld [vmem:[%s2432 + $0x10] sm:$0xff]
      %v2436 = vld [vmem:[%s2432 + $0x18] sm:$0xff]
      %v2439 = vcombine.low %v2430, %v2431
      %v2441 = vunpack.c.l.s4 1983009808
      %v2442 = vunpack.c.0.s8 %v2441
      %v2443 = vlaneseq
      %v2444 = vshrl.u32 %v2443, 7
      %v2445 = vsub.s32 %v2442, %v2444
      %v2446 = vrot.slane %v2439, %v2445
      %v2447 = vsel %vm642, %v2446, 0
      %2449 = vmatprep.subr.mxu0 0.0
      %2450 = vmatpush1.msra.mxu0 0.0
      %2451 = vmatprep.subr.mxu0 0.0
      %2452 = vmatpush1.msra.mxu0 0.0
      %2453 = vmatprep.subr.mxu0 0.0
      %2454 = vmatpush1.msra.mxu0 0.0
      %2455 = vmatprep.subr.mxu0 0.0
      %2456 = vmatpush1.msra.mxu0 0.0
      %2457 = vmatprep.subr.mxu0 0.0
      %2458 = vmatpush1.msra.mxu0 0.0
      %2459 = vmatprep.subr.mxu0 0.0
      %2460 = vmatpush1.msra.mxu0 0.0
      %2461 = vmatprep.subr.mxu0 0.0
      %2462 = vmatpush1.msra.mxu0 0.0
      %2463 = vmatprep.subr.mxu0 0.0
      %2464 = vmatpush1.msra.mxu0 0.0
      %2465 = vmatprep.subr.mxu0 0.0
      %2466 = vmatpush1.msra.mxu0 0.0
      %2467 = vmatprep.subr.mxu0 0.0
      %2468 = vmatpush1.msra.mxu0 0.0
      %2469 = vmatprep.subr.mxu0 0.0
      %2470 = vmatpush1.msra.mxu0 0.0
      %2471 = vmatprep.subr.mxu0 0.0
      %2472 = vmatpush1.msra.mxu0 0.0
      %2473 = vmatprep.subr.mxu0 0.0
      %2474 = vmatpush1.msra.mxu0 %v2436
      %2475 = vmatprep.subr.mxu0 0.0
      %2476 = vmatpush1.msra.mxu0 %v2435
      %2477 = vmatprep.subr.mxu0 0.0
      %2478 = vmatpush1.msra.mxu0 %v2434
      %2479 = vmatprep.subr.mxu0 0.0
      %2480 = vmatpush1.msra.mxu0 %v2433
      %2481 = vmatprep.subr.mxu0 0.0
      %2482 = vmatpush2.msra.mxu0 0.0
      %2483 = vmatprep.subr.mxu0 0.0
      %2484 = vmatpush2.msra.mxu0 0.0
      %2485 = vmatprep.subr.mxu0 0.0
      %2486 = vmatpush2.msra.mxu0 0.0
      %2487 = vmatprep.subr.mxu0 0.0
      %2488 = vmatpush2.msra.mxu0 0.0
      %2489 = vmatprep.subr.mxu0 0.0
      %2490 = vmatpush2.msra.mxu0 0.0
      %2491 = vmatprep.subr.mxu0 0.0
      %2492 = vmatpush2.msra.mxu0 0.0
      %2493 = vmatprep.subr.mxu0 0.0
      %2494 = vmatpush2.msra.mxu0 0.0
      %2495 = vmatprep.subr.mxu0 0.0
      %2496 = vmatpush2.msra.mxu0 0.0
      %2497 = vmatprep.subr.mxu0 0.0
      %2498 = vmatpush2.msra.mxu0 0.0
      %2499 = vmatprep.subr.mxu0 0.0
      %2500 = vmatpush2.msra.mxu0 0.0
      %2501 = vmatprep.subr.mxu0 0.0
      %2502 = vmatpush2.msra.mxu0 0.0
      %2503 = vmatprep.subr.mxu0 0.0
      %2504 = vmatpush2.msra.mxu0 0.0
      %2505 = vmatprep.subr.mxu0 0.0
      %2506 = vmatpush2.msra.mxu0 0.0
      %2507 = vmatprep.subr.mxu0 0.0
      %2508 = vmatpush2.msra.mxu0 0.0
      %2509 = vmatprep.subr.mxu0 0.0
      %2510 = vmatpush2.msra.mxu0 0.0
      %2511 = vmatprep.subr.mxu0 0.0
      %2512 = vmatpush2.msra.mxu0 0.0
      %2513 = vmatprep.mubr.f32.mxu0 0.0
      %2514 = vmatmul.mubr.f32.gmra.mxu0 %v2447
      %v2515 = vpop.f32.mrf.mxu0
      %v2516 = vadd.f32 0.0, %v2515
      %v2517 = vpop.f32.mrf.mxu0
      %2518 = vdwg.mxu0
      %v2521 = vcombine.low %v2424, %v2425
      %v2523 = vunpack.c.l.s4 1983009808
      %v2524 = vunpack.c.0.s8 %v2523
      %v2525 = vlaneseq
      %v2526 = vshrl.u32 %v2525, 7
      %v2527 = vsub.s32 %v2524, %v2526
      %v2528 = vrot.slane %v2521, %v2527
      %v2529 = vsel %vm642, %v2528, 0
      %2531 = vmatprep.subr.mxu0 0.0
      %2532 = vmatpush1.msra.mxu0 0.0
      %2533 = vmatprep.subr.mxu0 0.0
      %2534 = vmatpush1.msra.mxu0 0.0
      %2535 = vmatprep.subr.mxu0 0.0
      %2536 = vmatpush1.msra.mxu0 0.0
      %2537 = vmatprep.subr.mxu0 0.0
      %2538 = vmatpush1.msra.mxu0 0.0
      %2539 = vmatprep.subr.mxu0 0.0
      %2540 = vmatpush1.msra.mxu0 0.0
      %2541 = vmatprep.subr.mxu0 0.0
      %2542 = vmatpush1.msra.mxu0 0.0
      %2543 = vmatprep.subr.mxu0 0.0
      %2544 = vmatpush1.msra.mxu0 0.0
      %2545 = vmatprep.subr.mxu0 0.0
      %2546 = vmatpush1.msra.mxu0 0.0
      %2547 = vmatprep.subr.mxu0 0.0
      %2548 = vmatpush1.msra.mxu0 0.0
      %2549 = vmatprep.subr.mxu0 0.0
      %2550 = vmatpush1.msra.mxu0 0.0
      %2551 = vmatprep.subr.mxu0 0.0
      %2552 = vmatpush1.msra.mxu0 0.0
      %2553 = vmatprep.subr.mxu0 0.0
      %2554 = vmatpush1.msra.mxu0 0.0
      %2555 = vmatprep.subr.mxu0 0.0
      %2556 = vmatpush1.msra.mxu0 %v2429
      %2557 = vmatprep.subr.mxu0 0.0
      %2558 = vmatpush1.msra.mxu0 %v2428
      %2559 = vmatprep.subr.mxu0 0.0
      %2560 = vmatpush1.msra.mxu0 %v2427
      %2561 = vmatprep.subr.mxu0 0.0
      %2562 = vmatpush1.msra.mxu0 %v2426
      %2563 = vmatprep.subr.mxu0 0.0
      %2564 = vmatpush2.msra.mxu0 0.0
      %2565 = vmatprep.subr.mxu0 0.0
      %2566 = vmatpush2.msra.mxu0 0.0
      %2567 = vmatprep.subr.mxu0 0.0
      %2568 = vmatpush2.msra.mxu0 0.0
      %2569 = vmatprep.subr.mxu0 0.0
      %2570 = vmatpush2.msra.mxu0 0.0
      %2571 = vmatprep.subr.mxu0 0.0
      %2572 = vmatpush2.msra.mxu0 0.0
      %2573 = vmatprep.subr.mxu0 0.0
      %2574 = vmatpush2.msra.mxu0 0.0
      %2575 = vmatprep.subr.mxu0 0.0
      %2576 = vmatpush2.msra.mxu0 0.0
      %2577 = vmatprep.subr.mxu0 0.0
      %2578 = vmatpush2.msra.mxu0 0.0
      %2579 = vmatprep.subr.mxu0 0.0
      %2580 = vmatpush2.msra.mxu0 0.0
      %2581 = vmatprep.subr.mxu0 0.0
      %2582 = vmatpush2.msra.mxu0 0.0
      %2583 = vmatprep.subr.mxu0 0.0
      %2584 = vmatpush2.msra.mxu0 0.0
      %2585 = vmatprep.subr.mxu0 0.0
      %2586 = vmatpush2.msra.mxu0 0.0
      %2587 = vmatprep.subr.mxu0 0.0
      %2588 = vmatpush2.msra.mxu0 0.0
      %2589 = vmatprep.subr.mxu0 0.0
      %2590 = vmatpush2.msra.mxu0 0.0
      %2591 = vmatprep.subr.mxu0 0.0
      %2592 = vmatpush2.msra.mxu0 0.0
      %2593 = vmatprep.subr.mxu0 0.0
      %2594 = vmatpush2.msra.mxu0 0.0
      %2595 = vmatprep.mubr.f32.mxu0 0.0
      %2596 = vmatmul.mubr.f32.gmra.mxu0 %v2529
      %v2597 = vpop.f32.mrf.mxu0
      %v2598 = vadd.f32 %v2516, %v2597
      %v2599 = vpop.f32.mrf.mxu0
      %2600 = vdwg.mxu0
      %v2601 = vld [vmem:[#allocation2 + $0x2] sm:$0x3]
      %v2602 = vld [vmem:[#allocation2 + $0x6] sm:$0x3]
      %s2603 = scalar_lea.vmem %s11, 64
      %v2604 = vld [vmem:[%s2603] sm:$0xff]
      %v2605 = vld [vmem:[%s2603 + $0x8] sm:$0xff]
      %v2606 = vld [vmem:[%s2603 + $0x10] sm:$0xff]
      %v2607 = vld [vmem:[%s2603 + $0x18] sm:$0xff]
      %v2610 = vcombine.low %v2601, %v2602
      %v2612 = vunpack.c.l.s4 1983009808
      %v2613 = vunpack.c.0.s8 %v2612
      %v2614 = vlaneseq
      %v2615 = vshrl.u32 %v2614, 7
      %v2616 = vsub.s32 %v2613, %v2615
      %v2617 = vrot.slane %v2610, %v2616
      %v2618 = vsel %vm642, %v2617, 0
      %2620 = vmatprep.subr.mxu0 0.0
      %2621 = vmatpush1.msra.mxu0 0.0
      %2622 = vmatprep.subr.mxu0 0.0
      %2623 = vmatpush1.msra.mxu0 0.0
      %2624 = vmatprep.subr.mxu0 0.0
      %2625 = vmatpush1.msra.mxu0 0.0
      %2626 = vmatprep.subr.mxu0 0.0
      %2627 = vmatpush1.msra.mxu0 0.0
      %2628 = vmatprep.subr.mxu0 0.0
      %2629 = vmatpush1.msra.mxu0 0.0
      %2630 = vmatprep.subr.mxu0 0.0
      %2631 = vmatpush1.msra.mxu0 0.0
      %2632 = vmatprep.subr.mxu0 0.0
      %2633 = vmatpush1.msra.mxu0 0.0
      %2634 = vmatprep.subr.mxu0 0.0
      %2635 = vmatpush1.msra.mxu0 0.0
      %2636 = vmatprep.subr.mxu0 0.0
      %2637 = vmatpush1.msra.mxu0 0.0
      %2638 = vmatprep.subr.mxu0 0.0
      %2639 = vmatpush1.msra.mxu0 0.0
      %2640 = vmatprep.subr.mxu0 0.0
      %2641 = vmatpush1.msra.mxu0 0.0
      %2642 = vmatprep.subr.mxu0 0.0
      %2643 = vmatpush1.msra.mxu0 0.0
      %2644 = vmatprep.subr.mxu0 0.0
      %2645 = vmatpush1.msra.mxu0 %v2607
      %2646 = vmatprep.subr.mxu0 0.0
      %2647 = vmatpush1.msra.mxu0 %v2606
      %2648 = vmatprep.subr.mxu0 0.0
      %2649 = vmatpush1.msra.mxu0 %v2605
      %2650 = vmatprep.subr.mxu0 0.0
      %2651 = vmatpush1.msra.mxu0 %v2604
      %2652 = vmatprep.subr.mxu0 0.0
      %2653 = vmatpush2.msra.mxu0 0.0
      %2654 = vmatprep.subr.mxu0 0.0
      %2655 = vmatpush2.msra.mxu0 0.0
      %2656 = vmatprep.subr.mxu0 0.0
      %2657 = vmatpush2.msra.mxu0 0.0
      %2658 = vmatprep.subr.mxu0 0.0
      %2659 = vmatpush2.msra.mxu0 0.0
      %2660 = vmatprep.subr.mxu0 0.0
      %2661 = vmatpush2.msra.mxu0 0.0
      %2662 = vmatprep.subr.mxu0 0.0
      %2663 = vmatpush2.msra.mxu0 0.0
      %2664 = vmatprep.subr.mxu0 0.0
      %2665 = vmatpush2.msra.mxu0 0.0
      %2666 = vmatprep.subr.mxu0 0.0
      %2667 = vmatpush2.msra.mxu0 0.0
      %2668 = vmatprep.subr.mxu0 0.0
      %2669 = vmatpush2.msra.mxu0 0.0
      %2670 = vmatprep.subr.mxu0 0.0
      %2671 = vmatpush2.msra.mxu0 0.0
      %2672 = vmatprep.subr.mxu0 0.0
      %2673 = vmatpush2.msra.mxu0 0.0
      %2674 = vmatprep.subr.mxu0 0.0
      %2675 = vmatpush2.msra.mxu0 0.0
      %2676 = vmatprep.subr.mxu0 0.0
      %2677 = vmatpush2.msra.mxu0 0.0
      %2678 = vmatprep.subr.mxu0 0.0
      %2679 = vmatpush2.msra.mxu0 0.0
      %2680 = vmatprep.subr.mxu0 0.0
      %2681 = vmatpush2.msra.mxu0 0.0
      %2682 = vmatprep.subr.mxu0 0.0
      %2683 = vmatpush2.msra.mxu0 0.0
      %2684 = vmatprep.mubr.f32.mxu0 0.0
      %2685 = vmatmul.mubr.f32.gmra.mxu0 %v2618
      %v2686 = vpop.f32.mrf.mxu0
      %v2687 = vadd.f32 0.0, %v2686
      %v2688 = vpop.f32.mrf.mxu0
      %2689 = vdwg.mxu0
      %v2690 = vadd.f32 %v2598, %v2687
      %v2691 = vld [vmem:[%s2420] sm:$0x3]
      %v2692 = vld [vmem:[%s2420 + $0x4] sm:$0x3]
      %s2693 = scalar_lea.vmem %s11, 96
      %v2694 = vld [vmem:[%s2693] sm:$0xff]
      %v2695 = vld [vmem:[%s2693 + $0x8] sm:$0xff]
      %v2696 = vld [vmem:[%s2693 + $0x10] sm:$0xff]
      %v2697 = vld [vmem:[%s2693 + $0x18] sm:$0xff]
      %v2700 = vcombine.low %v2691, %v2692
      %v2702 = vunpack.c.l.s4 1983009808
      %v2703 = vunpack.c.0.s8 %v2702
      %v2704 = vlaneseq
      %v2705 = vshrl.u32 %v2704, 7
      %v2706 = vsub.s32 %v2703, %v2705
      %v2707 = vrot.slane %v2700, %v2706
      %v2708 = vsel %vm642, %v2707, 0
      %2710 = vmatprep.subr.mxu0 0.0
      %2711 = vmatpush1.msra.mxu0 0.0
      %2712 = vmatprep.subr.mxu0 0.0
      %2713 = vmatpush1.msra.mxu0 0.0
      %2714 = vmatprep.subr.mxu0 0.0
      %2715 = vmatpush1.msra.mxu0 0.0
      %2716 = vmatprep.subr.mxu0 0.0
      %2717 = vmatpush1.msra.mxu0 0.0
      %2718 = vmatprep.subr.mxu0 0.0
      %2719 = vmatpush1.msra.mxu0 0.0
      %2720 = vmatprep.subr.mxu0 0.0
      %2721 = vmatpush1.msra.mxu0 0.0
      %2722 = vmatprep.subr.mxu0 0.0
      %2723 = vmatpush1.msra.mxu0 0.0
      %2724 = vmatprep.subr.mxu0 0.0
      %2725 = vmatpush1.msra.mxu0 0.0
      %2726 = vmatprep.subr.mxu0 0.0
      %2727 = vmatpush1.msra.mxu0 0.0
      %2728 = vmatprep.subr.mxu0 0.0
      %2729 = vmatpush1.msra.mxu0 0.0
      %2730 = vmatprep.subr.mxu0 0.0
      %2731 = vmatpush1.msra.mxu0 0.0
      %2732 = vmatprep.subr.mxu0 0.0
      %2733 = vmatpush1.msra.mxu0 0.0
      %2734 = vmatprep.subr.mxu0 0.0
      %2735 = vmatpush1.msra.mxu0 %v2697
      %2736 = vmatprep.subr.mxu0 0.0
      %2737 = vmatpush1.msra.mxu0 %v2696
      %2738 = vmatprep.subr.mxu0 0.0
      %2739 = vmatpush1.msra.mxu0 %v2695
      %2740 = vmatprep.subr.mxu0 0.0
      %2741 = vmatpush1.msra.mxu0 %v2694
      %2742 = vmatprep.subr.mxu0 0.0
      %2743 = vmatpush2.msra.mxu0 0.0
      %2744 = vmatprep.subr.mxu0 0.0
      %2745 = vmatpush2.msra.mxu0 0.0
      %2746 = vmatprep.subr.mxu0 0.0
      %2747 = vmatpush2.msra.mxu0 0.0
      %2748 = vmatprep.subr.mxu0 0.0
      %2749 = vmatpush2.msra.mxu0 0.0
      %2750 = vmatprep.subr.mxu0 0.0
      %2751 = vmatpush2.msra.mxu0 0.0
      %2752 = vmatprep.subr.mxu0 0.0
      %2753 = vmatpush2.msra.mxu0 0.0
      %2754 = vmatprep.subr.mxu0 0.0
      %2755 = vmatpush2.msra.mxu0 0.0
      %2756 = vmatprep.subr.mxu0 0.0
      %2757 = vmatpush2.msra.mxu0 0.0
      %2758 = vmatprep.subr.mxu0 0.0
      %2759 = vmatpush2.msra.mxu0 0.0
      %2760 = vmatprep.subr.mxu0 0.0
      %2761 = vmatpush2.msra.mxu0 0.0
      %2762 = vmatprep.subr.mxu0 0.0
      %2763 = vmatpush2.msra.mxu0 0.0
      %2764 = vmatprep.subr.mxu0 0.0
      %2765 = vmatpush2.msra.mxu0 0.0
      %2766 = vmatprep.subr.mxu0 0.0
      %2767 = vmatpush2.msra.mxu0 0.0
      %2768 = vmatprep.subr.mxu0 0.0
      %2769 = vmatpush2.msra.mxu0 0.0
      %2770 = vmatprep.subr.mxu0 0.0
      %2771 = vmatpush2.msra.mxu0 0.0
      %2772 = vmatprep.subr.mxu0 0.0
      %2773 = vmatpush2.msra.mxu0 0.0
      %2774 = vmatprep.mubr.f32.mxu0 0.0
      %2775 = vmatmul.mubr.f32.gmra.mxu0 %v2708
      %v2776 = vpop.f32.mrf.mxu0
      %v2777 = vadd.f32 0.0, %v2776
      %v2778 = vpop.f32.mrf.mxu0
      %2779 = vdwg.mxu0
      %v2780 = vadd.f32 %v2690, %v2777
      %v2781 = vld [vmem:[%s2420 + $0x1] sm:$0x3]
      %v2782 = vld [vmem:[%s2420 + $0x5] sm:$0x3]
      %s2783 = scalar_lea.vmem %s11, 128
      %v2784 = vld [vmem:[%s2783] sm:$0xff]
      %v2785 = vld [vmem:[%s2783 + $0x8] sm:$0xff]
      %v2786 = vld [vmem:[%s2783 + $0x10] sm:$0xff]
      %v2787 = vld [vmem:[%s2783 + $0x18] sm:$0xff]
      %v2790 = vcombine.low %v2781, %v2782
      %v2792 = vunpack.c.l.s4 1983009808
      %v2793 = vunpack.c.0.s8 %v2792
      %v2794 = vlaneseq
      %v2795 = vshrl.u32 %v2794, 7
      %v2796 = vsub.s32 %v2793, %v2795
      %v2797 = vrot.slane %v2790, %v2796
      %v2798 = vsel %vm642, %v2797, 0
      %2800 = vmatprep.subr.mxu0 0.0
      %2801 = vmatpush1.msra.mxu0 0.0
      %2802 = vmatprep.subr.mxu0 0.0
      %2803 = vmatpush1.msra.mxu0 0.0
      %2804 = vmatprep.subr.mxu0 0.0
      %2805 = vmatpush1.msra.mxu0 0.0
      %2806 = vmatprep.subr.mxu0 0.0
      %2807 = vmatpush1.msra.mxu0 0.0
      %2808 = vmatprep.subr.mxu0 0.0
      %2809 = vmatpush1.msra.mxu0 0.0
      %2810 = vmatprep.subr.mxu0 0.0
      %2811 = vmatpush1.msra.mxu0 0.0
      %2812 = vmatprep.subr.mxu0 0.0
      %2813 = vmatpush1.msra.mxu0 0.0
      %2814 = vmatprep.subr.mxu0 0.0
      %2815 = vmatpush1.msra.mxu0 0.0
      %2816 = vmatprep.subr.mxu0 0.0
      %2817 = vmatpush1.msra.mxu0 0.0
      %2818 = vmatprep.subr.mxu0 0.0
      %2819 = vmatpush1.msra.mxu0 0.0
      %2820 = vmatprep.subr.mxu0 0.0
      %2821 = vmatpush1.msra.mxu0 0.0
      %2822 = vmatprep.subr.mxu0 0.0
      %2823 = vmatpush1.msra.mxu0 0.0
      %2824 = vmatprep.subr.mxu0 0.0
      %2825 = vmatpush1.msra.mxu0 %v2787
      %2826 = vmatprep.subr.mxu0 0.0
      %2827 = vmatpush1.msra.mxu0 %v2786
      %2828 = vmatprep.subr.mxu0 0.0
      %2829 = vmatpush1.msra.mxu0 %v2785
      %2830 = vmatprep.subr.mxu0 0.0
      %2831 = vmatpush1.msra.mxu0 %v2784
      %2832 = vmatprep.subr.mxu0 0.0
      %2833 = vmatpush2.msra.mxu0 0.0
      %2834 = vmatprep.subr.mxu0 0.0
      %2835 = vmatpush2.msra.mxu0 0.0
      %2836 = vmatprep.subr.mxu0 0.0
      %2837 = vmatpush2.msra.mxu0 0.0
      %2838 = vmatprep.subr.mxu0 0.0
      %2839 = vmatpush2.msra.mxu0 0.0
      %2840 = vmatprep.subr.mxu0 0.0
      %2841 = vmatpush2.msra.mxu0 0.0
      %2842 = vmatprep.subr.mxu0 0.0
      %2843 = vmatpush2.msra.mxu0 0.0
      %2844 = vmatprep.subr.mxu0 0.0
      %2845 = vmatpush2.msra.mxu0 0.0
      %2846 = vmatprep.subr.mxu0 0.0
      %2847 = vmatpush2.msra.mxu0 0.0
      %2848 = vmatprep.subr.mxu0 0.0
      %2849 = vmatpush2.msra.mxu0 0.0
      %2850 = vmatprep.subr.mxu0 0.0
      %2851 = vmatpush2.msra.mxu0 0.0
      %2852 = vmatprep.subr.mxu0 0.0
      %2853 = vmatpush2.msra.mxu0 0.0
      %2854 = vmatprep.subr.mxu0 0.0
      %2855 = vmatpush2.msra.mxu0 0.0
      %2856 = vmatprep.subr.mxu0 0.0
      %2857 = vmatpush2.msra.mxu0 0.0
      %2858 = vmatprep.subr.mxu0 0.0
      %2859 = vmatpush2.msra.mxu0 0.0
      %2860 = vmatprep.subr.mxu0 0.0
      %2861 = vmatpush2.msra.mxu0 0.0
      %2862 = vmatprep.subr.mxu0 0.0
      %2863 = vmatpush2.msra.mxu0 0.0
      %2864 = vmatprep.mubr.f32.mxu0 0.0
      %2865 = vmatmul.mubr.f32.gmra.mxu0 %v2798
      %v2866 = vpop.f32.mrf.mxu0
      %v2867 = vadd.f32 0.0, %v2866
      %v2868 = vpop.f32.mrf.mxu0
      %2869 = vdwg.mxu0
      %v2870 = vadd.f32 %v2780, %v2867
      %v2871 = vld [vmem:[%s2420 + $0x2] sm:$0x3]
      %v2872 = vld [vmem:[%s2420 + $0x6] sm:$0x3]
      %s2873 = scalar_lea.vmem %s11, 160
      %v2874 = vld [vmem:[%s2873] sm:$0xff]
      %v2875 = vld [vmem:[%s2873 + $0x8] sm:$0xff]
      %v2876 = vld [vmem:[%s2873 + $0x10] sm:$0xff]
      %v2877 = vld [vmem:[%s2873 + $0x18] sm:$0xff]
      %v2880 = vcombine.low %v2871, %v2872
      %v2882 = vunpack.c.l.s4 1983009808
      %v2883 = vunpack.c.0.s8 %v2882
      %v2884 = vlaneseq
      %v2885 = vshrl.u32 %v2884, 7
      %v2886 = vsub.s32 %v2883, %v2885
      %v2887 = vrot.slane %v2880, %v2886
      %v2888 = vsel %vm642, %v2887, 0
      %2890 = vmatprep.subr.mxu0 0.0
      %2891 = vmatpush1.msra.mxu0 0.0
      %2892 = vmatprep.subr.mxu0 0.0
      %2893 = vmatpush1.msra.mxu0 0.0
      %2894 = vmatprep.subr.mxu0 0.0
      %2895 = vmatpush1.msra.mxu0 0.0
      %2896 = vmatprep.subr.mxu0 0.0
      %2897 = vmatpush1.msra.mxu0 0.0
      %2898 = vmatprep.subr.mxu0 0.0
      %2899 = vmatpush1.msra.mxu0 0.0
      %2900 = vmatprep.subr.mxu0 0.0
      %2901 = vmatpush1.msra.mxu0 0.0
      %2902 = vmatprep.subr.mxu0 0.0
      %2903 = vmatpush1.msra.mxu0 0.0
      %2904 = vmatprep.subr.mxu0 0.0
      %2905 = vmatpush1.msra.mxu0 0.0
      %2906 = vmatprep.subr.mxu0 0.0
      %2907 = vmatpush1.msra.mxu0 0.0
      %2908 = vmatprep.subr.mxu0 0.0
      %2909 = vmatpush1.msra.mxu0 0.0
      %2910 = vmatprep.subr.mxu0 0.0
      %2911 = vmatpush1.msra.mxu0 0.0
      %2912 = vmatprep.subr.mxu0 0.0
      %2913 = vmatpush1.msra.mxu0 0.0
      %2914 = vmatprep.subr.mxu0 0.0
      %2915 = vmatpush1.msra.mxu0 %v2877
      %2916 = vmatprep.subr.mxu0 0.0
      %2917 = vmatpush1.msra.mxu0 %v2876
      %2918 = vmatprep.subr.mxu0 0.0
      %2919 = vmatpush1.msra.mxu0 %v2875
      %2920 = vmatprep.subr.mxu0 0.0
      %2921 = vmatpush1.msra.mxu0 %v2874
      %2922 = vmatprep.subr.mxu0 0.0
      %2923 = vmatpush2.msra.mxu0 0.0
      %2924 = vmatprep.subr.mxu0 0.0
      %2925 = vmatpush2.msra.mxu0 0.0
      %2926 = vmatprep.subr.mxu0 0.0
      %2927 = vmatpush2.msra.mxu0 0.0
      %2928 = vmatprep.subr.mxu0 0.0
      %2929 = vmatpush2.msra.mxu0 0.0
      %2930 = vmatprep.subr.mxu0 0.0
      %2931 = vmatpush2.msra.mxu0 0.0
      %2932 = vmatprep.subr.mxu0 0.0
      %2933 = vmatpush2.msra.mxu0 0.0
      %2934 = vmatprep.subr.mxu0 0.0
      %2935 = vmatpush2.msra.mxu0 0.0
      %2936 = vmatprep.subr.mxu0 0.0
      %2937 = vmatpush2.msra.mxu0 0.0
      %2938 = vmatprep.subr.mxu0 0.0
      %2939 = vmatpush2.msra.mxu0 0.0
      %2940 = vmatprep.subr.mxu0 0.0
      %2941 = vmatpush2.msra.mxu0 0.0
      %2942 = vmatprep.subr.mxu0 0.0
      %2943 = vmatpush2.msra.mxu0 0.0
      %2944 = vmatprep.subr.mxu0 0.0
      %2945 = vmatpush2.msra.mxu0 0.0
      %2946 = vmatprep.subr.mxu0 0.0
      %2947 = vmatpush2.msra.mxu0 0.0
      %2948 = vmatprep.subr.mxu0 0.0
      %2949 = vmatpush2.msra.mxu0 0.0
      %2950 = vmatprep.subr.mxu0 0.0
      %2951 = vmatpush2.msra.mxu0 0.0
      %2952 = vmatprep.subr.mxu0 0.0
      %2953 = vmatpush2.msra.mxu0 0.0
      %2954 = vmatprep.mubr.f32.mxu0 0.0
      %2955 = vmatmul.mubr.f32.gmra.mxu0 %v2888
      %v2956 = vpop.f32.mrf.mxu0
      %v2957 = vadd.f32 0.0, %v2956
      %v2958 = vpop.f32.mrf.mxu0
      %2959 = vdwg.mxu0
      %v2960 = vadd.f32 %v2870, %v2957
      %s2961 = scalar_lea.vmem [#allocation2], 8
      %v2962 = vld [vmem:[%s2961] sm:$0x3]
      %v2963 = vld [vmem:[%s2961 + $0x4] sm:$0x3]
      %s2964 = scalar_lea.vmem %s11, 192
      %v2965 = vld [vmem:[%s2964] sm:$0xff]
      %v2966 = vld [vmem:[%s2964 + $0x8] sm:$0xff]
      %v2967 = vld [vmem:[%s2964 + $0x10] sm:$0xff]
      %v2968 = vld [vmem:[%s2964 + $0x18] sm:$0xff]
      %v2971 = vcombine.low %v2962, %v2963
      %v2973 = vunpack.c.l.s4 1983009808
      %v2974 = vunpack.c.0.s8 %v2973
      %v2975 = vlaneseq
      %v2976 = vshrl.u32 %v2975, 7
      %v2977 = vsub.s32 %v2974, %v2976
      %v2978 = vrot.slane %v2971, %v2977
      %v2979 = vsel %vm642, %v2978, 0
      %2981 = vmatprep.subr.mxu0 0.0
      %2982 = vmatpush1.msra.mxu0 0.0
      %2983 = vmatprep.subr.mxu0 0.0
      %2984 = vmatpush1.msra.mxu0 0.0
      %2985 = vmatprep.subr.mxu0 0.0
      %2986 = vmatpush1.msra.mxu0 0.0
      %2987 = vmatprep.subr.mxu0 0.0
      %2988 = vmatpush1.msra.mxu0 0.0
      %2989 = vmatprep.subr.mxu0 0.0
      %2990 = vmatpush1.msra.mxu0 0.0
      %2991 = vmatprep.subr.mxu0 0.0
      %2992 = vmatpush1.msra.mxu0 0.0
      %2993 = vmatprep.subr.mxu0 0.0
      %2994 = vmatpush1.msra.mxu0 0.0
      %2995 = vmatprep.subr.mxu0 0.0
      %2996 = vmatpush1.msra.mxu0 0.0
      %2997 = vmatprep.subr.mxu0 0.0
      %2998 = vmatpush1.msra.mxu0 0.0
      %2999 = vmatprep.subr.mxu0 0.0
      %3000 = vmatpush1.msra.mxu0 0.0
      %3001 = vmatprep.subr.mxu0 0.0
      %3002 = vmatpush1.msra.mxu0 0.0
      %3003 = vmatprep.subr.mxu0 0.0
      %3004 = vmatpush1.msra.mxu0 0.0
      %3005 = vmatprep.subr.mxu0 0.0
      %3006 = vmatpush1.msra.mxu0 %v2968
      %3007 = vmatprep.subr.mxu0 0.0
      %3008 = vmatpush1.msra.mxu0 %v2967
      %3009 = vmatprep.subr.mxu0 0.0
      %3010 = vmatpush1.msra.mxu0 %v2966
      %3011 = vmatprep.subr.mxu0 0.0
      %3012 = vmatpush1.msra.mxu0 %v2965
      %3013 = vmatprep.subr.mxu0 0.0
      %3014 = vmatpush2.msra.mxu0 0.0
      %3015 = vmatprep.subr.mxu0 0.0
      %3016 = vmatpush2.msra.mxu0 0.0
      %3017 = vmatprep.subr.mxu0 0.0
      %3018 = vmatpush2.msra.mxu0 0.0
      %3019 = vmatprep.subr.mxu0 0.0
      %3020 = vmatpush2.msra.mxu0 0.0
      %3021 = vmatprep.subr.mxu0 0.0
      %3022 = vmatpush2.msra.mxu0 0.0
      %3023 = vmatprep.subr.mxu0 0.0
      %3024 = vmatpush2.msra.mxu0 0.0
      %3025 = vmatprep.subr.mxu0 0.0
      %3026 = vmatpush2.msra.mxu0 0.0
      %3027 = vmatprep.subr.mxu0 0.0
      %3028 = vmatpush2.msra.mxu0 0.0
      %3029 = vmatprep.subr.mxu0 0.0
      %3030 = vmatpush2.msra.mxu0 0.0
      %3031 = vmatprep.subr.mxu0 0.0
      %3032 = vmatpush2.msra.mxu0 0.0
      %3033 = vmatprep.subr.mxu0 0.0
      %3034 = vmatpush2.msra.mxu0 0.0
      %3035 = vmatprep.subr.mxu0 0.0
      %3036 = vmatpush2.msra.mxu0 0.0
      %3037 = vmatprep.subr.mxu0 0.0
      %3038 = vmatpush2.msra.mxu0 0.0
      %3039 = vmatprep.subr.mxu0 0.0
      %3040 = vmatpush2.msra.mxu0 0.0
      %3041 = vmatprep.subr.mxu0 0.0
      %3042 = vmatpush2.msra.mxu0 0.0
      %3043 = vmatprep.subr.mxu0 0.0
      %3044 = vmatpush2.msra.mxu0 0.0
      %3045 = vmatprep.mubr.f32.mxu0 0.0
      %3046 = vmatmul.mubr.f32.gmra.mxu0 %v2979
      %v3047 = vpop.f32.mrf.mxu0
      %v3048 = vadd.f32 0.0, %v3047
      %v3049 = vpop.f32.mrf.mxu0
      %3050 = vdwg.mxu0
      %v3051 = vadd.f32 %v2960, %v3048
      %v3052 = vld [vmem:[%s2961 + $0x1] sm:$0x3]
      %v3053 = vld [vmem:[%s2961 + $0x5] sm:$0x3]
      %s3054 = scalar_lea.vmem %s11, 224
      %v3055 = vld [vmem:[%s3054] sm:$0xff]
      %v3056 = vld [vmem:[%s3054 + $0x8] sm:$0xff]
      %v3057 = vld [vmem:[%s3054 + $0x10] sm:$0xff]
      %v3058 = vld [vmem:[%s3054 + $0x18] sm:$0xff]
      %v3061 = vcombine.low %v3052, %v3053
      %v3063 = vunpack.c.l.s4 1983009808
      %v3064 = vunpack.c.0.s8 %v3063
      %v3065 = vlaneseq
      %v3066 = vshrl.u32 %v3065, 7
      %v3067 = vsub.s32 %v3064, %v3066
      %v3068 = vrot.slane %v3061, %v3067
      %v3069 = vsel %vm642, %v3068, 0
      %3071 = vmatprep.subr.mxu0 0.0
      %3072 = vmatpush1.msra.mxu0 0.0
      %3073 = vmatprep.subr.mxu0 0.0
      %3074 = vmatpush1.msra.mxu0 0.0
      %3075 = vmatprep.subr.mxu0 0.0
      %3076 = vmatpush1.msra.mxu0 0.0
      %3077 = vmatprep.subr.mxu0 0.0
      %3078 = vmatpush1.msra.mxu0 0.0
      %3079 = vmatprep.subr.mxu0 0.0
      %3080 = vmatpush1.msra.mxu0 0.0
      %3081 = vmatprep.subr.mxu0 0.0
      %3082 = vmatpush1.msra.mxu0 0.0
      %3083 = vmatprep.subr.mxu0 0.0
      %3084 = vmatpush1.msra.mxu0 0.0
      %3085 = vmatprep.subr.mxu0 0.0
      %3086 = vmatpush1.msra.mxu0 0.0
      %3087 = vmatprep.subr.mxu0 0.0
      %3088 = vmatpush1.msra.mxu0 0.0
      %3089 = vmatprep.subr.mxu0 0.0
      %3090 = vmatpush1.msra.mxu0 0.0
      %3091 = vmatprep.subr.mxu0 0.0
      %3092 = vmatpush1.msra.mxu0 0.0
      %3093 = vmatprep.subr.mxu0 0.0
      %3094 = vmatpush1.msra.mxu0 0.0
      %3095 = vmatprep.subr.mxu0 0.0
      %3096 = vmatpush1.msra.mxu0 %v3058
      %3097 = vmatprep.subr.mxu0 0.0
      %3098 = vmatpush1.msra.mxu0 %v3057
      %3099 = vmatprep.subr.mxu0 0.0
      %3100 = vmatpush1.msra.mxu0 %v3056
      %3101 = vmatprep.subr.mxu0 0.0
      %3102 = vmatpush1.msra.mxu0 %v3055
      %3103 = vmatprep.subr.mxu0 0.0
      %3104 = vmatpush2.msra.mxu0 0.0
      %3105 = vmatprep.subr.mxu0 0.0
      %3106 = vmatpush2.msra.mxu0 0.0
      %3107 = vmatprep.subr.mxu0 0.0
      %3108 = vmatpush2.msra.mxu0 0.0
      %3109 = vmatprep.subr.mxu0 0.0
      %3110 = vmatpush2.msra.mxu0 0.0
      %3111 = vmatprep.subr.mxu0 0.0
      %3112 = vmatpush2.msra.mxu0 0.0
      %3113 = vmatprep.subr.mxu0 0.0
      %3114 = vmatpush2.msra.mxu0 0.0
      %3115 = vmatprep.subr.mxu0 0.0
      %3116 = vmatpush2.msra.mxu0 0.0
      %3117 = vmatprep.subr.mxu0 0.0
      %3118 = vmatpush2.msra.mxu0 0.0
      %3119 = vmatprep.subr.mxu0 0.0
      %3120 = vmatpush2.msra.mxu0 0.0
      %3121 = vmatprep.subr.mxu0 0.0
      %3122 = vmatpush2.msra.mxu0 0.0
      %3123 = vmatprep.subr.mxu0 0.0
      %3124 = vmatpush2.msra.mxu0 0.0
      %3125 = vmatprep.subr.mxu0 0.0
      %3126 = vmatpush2.msra.mxu0 0.0
      %3127 = vmatprep.subr.mxu0 0.0
      %3128 = vmatpush2.msra.mxu0 0.0
      %3129 = vmatprep.subr.mxu0 0.0
      %3130 = vmatpush2.msra.mxu0 0.0
      %3131 = vmatprep.subr.mxu0 0.0
      %3132 = vmatpush2.msra.mxu0 0.0
      %3133 = vmatprep.subr.mxu0 0.0
      %3134 = vmatpush2.msra.mxu0 0.0
      %3135 = vmatprep.mubr.f32.mxu0 0.0
      %3136 = vmatmul.mubr.f32.gmra.mxu0 %v3069
      %v3137 = vpop.f32.mrf.mxu0
      %v3138 = vadd.f32 0.0, %v3137
      %v3139 = vpop.f32.mrf.mxu0
      %3140 = vdwg.mxu0
      %v3141 = vadd.f32 %v3051, %v3138
      %v3142 = vld [vmem:[%s2961 + $0x2] sm:$0x3]
      %v3143 = vld [vmem:[%s2961 + $0x6] sm:$0x3]
      %s3144 = scalar_lea.vmem %s11, 256
      %v3145 = vld [vmem:[%s3144] sm:$0xff]
      %v3146 = vld [vmem:[%s3144 + $0x8] sm:$0xff]
      %v3147 = vld [vmem:[%s3144 + $0x10] sm:$0xff]
      %v3148 = vld [vmem:[%s3144 + $0x18] sm:$0xff]
      %v3151 = vcombine.low %v3142, %v3143
      %v3153 = vunpack.c.l.s4 1983009808
      %v3154 = vunpack.c.0.s8 %v3153
      %v3155 = vlaneseq
      %v3156 = vshrl.u32 %v3155, 7
      %v3157 = vsub.s32 %v3154, %v3156
      %v3158 = vrot.slane %v3151, %v3157
      %v3159 = vsel %vm642, %v3158, 0
      %3161 = vmatprep.subr.mxu0 0.0
      %3162 = vmatpush1.msra.mxu0 0.0
      %3163 = vmatprep.subr.mxu0 0.0
      %3164 = vmatpush1.msra.mxu0 0.0
      %3165 = vmatprep.subr.mxu0 0.0
      %3166 = vmatpush1.msra.mxu0 0.0
      %3167 = vmatprep.subr.mxu0 0.0
      %3168 = vmatpush1.msra.mxu0 0.0
      %3169 = vmatprep.subr.mxu0 0.0
      %3170 = vmatpush1.msra.mxu0 0.0
      %3171 = vmatprep.subr.mxu0 0.0
      %3172 = vmatpush1.msra.mxu0 0.0
      %3173 = vmatprep.subr.mxu0 0.0
      %3174 = vmatpush1.msra.mxu0 0.0
      %3175 = vmatprep.subr.mxu0 0.0
      %3176 = vmatpush1.msra.mxu0 0.0
      %3177 = vmatprep.subr.mxu0 0.0
      %3178 = vmatpush1.msra.mxu0 0.0
      %3179 = vmatprep.subr.mxu0 0.0
      %3180 = vmatpush1.msra.mxu0 0.0
      %3181 = vmatprep.subr.mxu0 0.0
      %3182 = vmatpush1.msra.mxu0 0.0
      %3183 = vmatprep.subr.mxu0 0.0
      %3184 = vmatpush1.msra.mxu0 0.0
      %3185 = vmatprep.subr.mxu0 0.0
      %3186 = vmatpush1.msra.mxu0 %v3148
      %3187 = vmatprep.subr.mxu0 0.0
      %3188 = vmatpush1.msra.mxu0 %v3147
      %3189 = vmatprep.subr.mxu0 0.0
      %3190 = vmatpush1.msra.mxu0 %v3146
      %3191 = vmatprep.subr.mxu0 0.0
      %3192 = vmatpush1.msra.mxu0 %v3145
      %3193 = vmatprep.subr.mxu0 0.0
      %3194 = vmatpush2.msra.mxu0 0.0
      %3195 = vmatprep.subr.mxu0 0.0
      %3196 = vmatpush2.msra.mxu0 0.0
      %3197 = vmatprep.subr.mxu0 0.0
      %3198 = vmatpush2.msra.mxu0 0.0
      %3199 = vmatprep.subr.mxu0 0.0
      %3200 = vmatpush2.msra.mxu0 0.0
      %3201 = vmatprep.subr.mxu0 0.0
      %3202 = vmatpush2.msra.mxu0 0.0
      %3203 = vmatprep.subr.mxu0 0.0
      %3204 = vmatpush2.msra.mxu0 0.0
      %3205 = vmatprep.subr.mxu0 0.0
      %3206 = vmatpush2.msra.mxu0 0.0
      %3207 = vmatprep.subr.mxu0 0.0
      %3208 = vmatpush2.msra.mxu0 0.0
      %3209 = vmatprep.subr.mxu0 0.0
      %3210 = vmatpush2.msra.mxu0 0.0
      %3211 = vmatprep.subr.mxu0 0.0
      %3212 = vmatpush2.msra.mxu0 0.0
      %3213 = vmatprep.subr.mxu0 0.0
      %3214 = vmatpush2.msra.mxu0 0.0
      %3215 = vmatprep.subr.mxu0 0.0
      %3216 = vmatpush2.msra.mxu0 0.0
      %3217 = vmatprep.subr.mxu0 0.0
      %3218 = vmatpush2.msra.mxu0 0.0
      %3219 = vmatprep.subr.mxu0 0.0
      %3220 = vmatpush2.msra.mxu0 0.0
      %3221 = vmatprep.subr.mxu0 0.0
      %3222 = vmatpush2.msra.mxu0 0.0
      %3223 = vmatprep.subr.mxu0 0.0
      %3224 = vmatpush2.msra.mxu0 0.0
      %3225 = vmatprep.mubr.f32.mxu0 0.0
      %3226 = vmatmul.mubr.f32.gmra.mxu0 %v3159
      %v3227 = vpop.f32.mrf.mxu0
      %v3228 = vadd.f32 0.0, %v3227
      %v3229 = vpop.f32.mrf.mxu0
      %3230 = vdwg.mxu0
      %v3231 = vadd.f32 %v3141, %v3228
      %vm3232 = vcmask 259072
      %3233 = vst.msk [vmem:[#allocation3] sm:$0x3f] %vm3232, 0.0
      %s3234 = scalar_lea.vmem [#allocation3], 40
      %3235 = vst.msk [vmem:[%s3234] sm:$0x3f] %vm3232, 0.0
      %3236 = vst.msk [vmem:[#allocation3] sm:$0x1] %vm2401, 0.0
      %3237 = vst.msk [vmem:[#allocation3 + $0x8] sm:$0x1] %vm2401, 0.0
      %3238 = vst.msk [vmem:[#allocation3 + $0x10] sm:$0x1] %vm2401, 0.0
      %3239 = vst.msk [vmem:[#allocation3 + $0x18] sm:$0x1] %vm2401, 0.0
      %3240 = vst.msk [vmem:[#allocation3 + $0x20] sm:$0x1] %vm2401, 0.0
      %3241 = vst.msk [vmem:[#allocation3 + $0x28] sm:$0x1] %vm2401, 0.0
      %3242 = vst.msk [vmem:[#allocation3 + $0x5] sm:$0x1] %vm2401, 0.0
      %3243 = vst.msk [vmem:[#allocation3 + $0xd] sm:$0x1] %vm2401, 0.0
      %3244 = vst.msk [vmem:[#allocation3 + $0x15] sm:$0x1] %vm2401, 0.0
      %3245 = vst.msk [vmem:[#allocation3 + $0x1d] sm:$0x1] %vm2401, 0.0
      %3246 = vst.msk [vmem:[#allocation3 + $0x25] sm:$0x1] %vm2401, 0.0
      %3247 = vst.msk [vmem:[#allocation3 + $0x2d] sm:$0x1] %vm2401, 0.0
      %s3250 = scalar_lea.vmem [#allocation3], 8
      %3251 = vst.msk [vmem:[%s3250 + $0x1] sm:$0xf] %vm2397, %v714
      %3252 = vst.msk [vmem:[%s3250 + $0x9] sm:$0xf] %vm2397, %v734
      %3253 = vst.msk [vmem:[%s3250 + $0x11] sm:$0xf] %vm2397, %v719
      %3254 = vst.msk [vmem:[%s3250 + $0x19] sm:$0xf] %vm2397, %v783
      %v3255 = vld [vmem:[#allocation3] sm:$0xf]
      %v3256 = vld [vmem:[#allocation3 + $0x8] sm:$0xf]
      %v3257 = vld [vmem:[#allocation3 + $0x10] sm:$0xf]
      %v3258 = vld [vmem:[#allocation3 + $0x18] sm:$0xf]
      %v3259 = vld [vmem:[%s10] sm:$0xff]
      %v3260 = vld [vmem:[%s10 + $0x8] sm:$0xff]
      %v3261 = vld [vmem:[%s10 + $0x10] sm:$0xff]
      %v3262 = vld [vmem:[%s10 + $0x18] sm:$0xff]
      %v3263 = vld [vmem:[#allocation3 + $0x1] sm:$0xf]
      %v3264 = vld [vmem:[#allocation3 + $0x9] sm:$0xf]
      %v3265 = vld [vmem:[#allocation3 + $0x11] sm:$0xf]
      %v3266 = vld [vmem:[#allocation3 + $0x19] sm:$0xf]
      %s3267 = scalar_lea.vmem %s10, 32
      %v3268 = vld [vmem:[%s3267] sm:$0xff]
      %v3269 = vld [vmem:[%s3267 + $0x8] sm:$0xff]
      %v3270 = vld [vmem:[%s3267 + $0x10] sm:$0xff]
      %v3271 = vld [vmem:[%s3267 + $0x18] sm:$0xff]
      %v3276 = vcombine.low %v3263, %v3264
      %v3277 = vcombine.low %v3265, %v3266
      %v3278 = vsel %vm642, %v3276, 0
      %v3280 = vsel %vm642, %v3277, 0
      %3282 = vmatprep.subr.mxu0 0.0
      %3283 = vmatpush1.msra.mxu0 0.0
      %3284 = vmatprep.subr.mxu0 0.0
      %3285 = vmatpush1.msra.mxu0 0.0
      %3286 = vmatprep.subr.mxu0 0.0
      %3287 = vmatpush1.msra.mxu0 0.0
      %3288 = vmatprep.subr.mxu0 0.0
      %3289 = vmatpush1.msra.mxu0 0.0
      %3290 = vmatprep.subr.mxu0 0.0
      %3291 = vmatpush1.msra.mxu0 0.0
      %3292 = vmatprep.subr.mxu0 0.0
      %3293 = vmatpush1.msra.mxu0 0.0
      %3294 = vmatprep.subr.mxu0 0.0
      %3295 = vmatpush1.msra.mxu0 0.0
      %3296 = vmatprep.subr.mxu0 0.0
      %3297 = vmatpush1.msra.mxu0 0.0
      %3298 = vmatprep.subr.mxu0 0.0
      %3299 = vmatpush1.msra.mxu0 0.0
      %3300 = vmatprep.subr.mxu0 0.0
      %3301 = vmatpush1.msra.mxu0 0.0
      %3302 = vmatprep.subr.mxu0 0.0
      %3303 = vmatpush1.msra.mxu0 0.0
      %3304 = vmatprep.subr.mxu0 0.0
      %3305 = vmatpush1.msra.mxu0 0.0
      %3306 = vmatprep.subr.mxu0 0.0
      %3307 = vmatpush1.msra.mxu0 %v3271
      %3308 = vmatprep.subr.mxu0 0.0
      %3309 = vmatpush1.msra.mxu0 %v3270
      %3310 = vmatprep.subr.mxu0 0.0
      %3311 = vmatpush1.msra.mxu0 %v3269
      %3312 = vmatprep.subr.mxu0 0.0
      %3313 = vmatpush1.msra.mxu0 %v3268
      %3314 = vmatprep.subr.mxu0 0.0
      %3315 = vmatpush2.msra.mxu0 0.0
      %3316 = vmatprep.subr.mxu0 0.0
      %3317 = vmatpush2.msra.mxu0 0.0
      %3318 = vmatprep.subr.mxu0 0.0
      %3319 = vmatpush2.msra.mxu0 0.0
      %3320 = vmatprep.subr.mxu0 0.0
      %3321 = vmatpush2.msra.mxu0 0.0
      %3322 = vmatprep.subr.mxu0 0.0
      %3323 = vmatpush2.msra.mxu0 0.0
      %3324 = vmatprep.subr.mxu0 0.0
      %3325 = vmatpush2.msra.mxu0 0.0
      %3326 = vmatprep.subr.mxu0 0.0
      %3327 = vmatpush2.msra.mxu0 0.0
      %3328 = vmatprep.subr.mxu0 0.0
      %3329 = vmatpush2.msra.mxu0 0.0
      %3330 = vmatprep.subr.mxu0 0.0
      %3331 = vmatpush2.msra.mxu0 0.0
      %3332 = vmatprep.subr.mxu0 0.0
      %3333 = vmatpush2.msra.mxu0 0.0
      %3334 = vmatprep.subr.mxu0 0.0
      %3335 = vmatpush2.msra.mxu0 0.0
      %3336 = vmatprep.subr.mxu0 0.0
      %3337 = vmatpush2.msra.mxu0 0.0
      %3338 = vmatprep.subr.mxu0 0.0
      %3339 = vmatpush2.msra.mxu0 0.0
      %3340 = vmatprep.subr.mxu0 0.0
      %3341 = vmatpush2.msra.mxu0 0.0
      %3342 = vmatprep.subr.mxu0 0.0
      %3343 = vmatpush2.msra.mxu0 0.0
      %3344 = vmatprep.subr.mxu0 0.0
      %3345 = vmatpush2.msra.mxu0 0.0
      %3346 = vmatprep.mubr.f32.mxu0 0.0
      %3347 = vmatmul.mubr.f32.gmra.mxu0 %v3278
      %v3348 = vpop.f32.mrf.mxu0
      %v3349 = vadd.f32 0.0, %v3348
      %v3350 = vpop.f32.mrf.mxu0
      %3351 = vmatprep.mubr.f32.mxu0 0.0
      %3352 = vmatmul.mubr.f32.gmra.mxu0 %v3280
      %v3353 = vpop.f32.mrf.mxu0
      %v3354 = vadd.f32 0.0, %v3353
      %v3355 = vpop.f32.mrf.mxu0
      %3356 = vdwg.mxu0
      %v3361 = vcombine.low %v3255, %v3256
      %v3362 = vcombine.low %v3257, %v3258
      %v3363 = vsel %vm642, %v3361, 0
      %v3365 = vsel %vm642, %v3362, 0
      %3367 = vmatprep.subr.mxu0 0.0
      %3368 = vmatpush1.msra.mxu0 0.0
      %3369 = vmatprep.subr.mxu0 0.0
      %3370 = vmatpush1.msra.mxu0 0.0
      %3371 = vmatprep.subr.mxu0 0.0
      %3372 = vmatpush1.msra.mxu0 0.0
      %3373 = vmatprep.subr.mxu0 0.0
      %3374 = vmatpush1.msra.mxu0 0.0
      %3375 = vmatprep.subr.mxu0 0.0
      %3376 = vmatpush1.msra.mxu0 0.0
      %3377 = vmatprep.subr.mxu0 0.0
      %3378 = vmatpush1.msra.mxu0 0.0
      %3379 = vmatprep.subr.mxu0 0.0
      %3380 = vmatpush1.msra.mxu0 0.0
      %3381 = vmatprep.subr.mxu0 0.0
      %3382 = vmatpush1.msra.mxu0 0.0
      %3383 = vmatprep.subr.mxu0 0.0
      %3384 = vmatpush1.msra.mxu0 0.0
      %3385 = vmatprep.subr.mxu0 0.0
      %3386 = vmatpush1.msra.mxu0 0.0
      %3387 = vmatprep.subr.mxu0 0.0
      %3388 = vmatpush1.msra.mxu0 0.0
      %3389 = vmatprep.subr.mxu0 0.0
      %3390 = vmatpush1.msra.mxu0 0.0
      %3391 = vmatprep.subr.mxu0 0.0
      %3392 = vmatpush1.msra.mxu0 %v3262
      %3393 = vmatprep.subr.mxu0 0.0
      %3394 = vmatpush1.msra.mxu0 %v3261
      %3395 = vmatprep.subr.mxu0 0.0
      %3396 = vmatpush1.msra.mxu0 %v3260
      %3397 = vmatprep.subr.mxu0 0.0
      %3398 = vmatpush1.msra.mxu0 %v3259
      %3399 = vmatprep.subr.mxu0 0.0
      %3400 = vmatpush2.msra.mxu0 0.0
      %3401 = vmatprep.subr.mxu0 0.0
      %3402 = vmatpush2.msra.mxu0 0.0
      %3403 = vmatprep.subr.mxu0 0.0
      %3404 = vmatpush2.msra.mxu0 0.0
      %3405 = vmatprep.subr.mxu0 0.0
      %3406 = vmatpush2.msra.mxu0 0.0
      %3407 = vmatprep.subr.mxu0 0.0
      %3408 = vmatpush2.msra.mxu0 0.0
      %3409 = vmatprep.subr.mxu0 0.0
      %3410 = vmatpush2.msra.mxu0 0.0
      %3411 = vmatprep.subr.mxu0 0.0
      %3412 = vmatpush2.msra.mxu0 0.0
      %3413 = vmatprep.subr.mxu0 0.0
      %3414 = vmatpush2.msra.mxu0 0.0
      %3415 = vmatprep.subr.mxu0 0.0
      %3416 = vmatpush2.msra.mxu0 0.0
      %3417 = vmatprep.subr.mxu0 0.0
      %3418 = vmatpush2.msra.mxu0 0.0
      %3419 = vmatprep.subr.mxu0 0.0
      %3420 = vmatpush2.msra.mxu0 0.0
      %3421 = vmatprep.subr.mxu0 0.0
      %3422 = vmatpush2.msra.mxu0 0.0
      %3423 = vmatprep.subr.mxu0 0.0
      %3424 = vmatpush2.msra.mxu0 0.0
      %3425 = vmatprep.subr.mxu0 0.0
      %3426 = vmatpush2.msra.mxu0 0.0
      %3427 = vmatprep.subr.mxu0 0.0
      %3428 = vmatpush2.msra.mxu0 0.0
      %3429 = vmatprep.subr.mxu0 0.0
      %3430 = vmatpush2.msra.mxu0 0.0
      %3431 = vmatprep.mubr.f32.mxu0 0.0
      %3432 = vmatmul.mubr.f32.gmra.mxu0 %v3363
      %v3433 = vpop.f32.mrf.mxu0
      %v3434 = vadd.f32 %v3349, %v3433
      %v3435 = vpop.f32.mrf.mxu0
      %3436 = vmatprep.mubr.f32.mxu0 0.0
      %3437 = vmatmul.mubr.f32.gmra.mxu0 %v3365
      %v3438 = vpop.f32.mrf.mxu0
      %v3439 = vadd.f32 %v3354, %v3438
      %v3440 = vpop.f32.mrf.mxu0
      %3441 = vdwg.mxu0
      %v3442 = vld [vmem:[#allocation3 + $0x2] sm:$0xf]
      %v3443 = vld [vmem:[#allocation3 + $0xa] sm:$0xf]
      %v3444 = vld [vmem:[#allocation3 + $0x12] sm:$0xf]
      %v3445 = vld [vmem:[#allocation3 + $0x1a] sm:$0xf]
      %s3446 = scalar_lea.vmem %s10, 64
      %v3447 = vld [vmem:[%s3446] sm:$0xff]
      %v3448 = vld [vmem:[%s3446 + $0x8] sm:$0xff]
      %v3449 = vld [vmem:[%s3446 + $0x10] sm:$0xff]
      %v3450 = vld [vmem:[%s3446 + $0x18] sm:$0xff]
      %v3455 = vcombine.low %v3442, %v3443
      %v3456 = vcombine.low %v3444, %v3445
      %v3457 = vsel %vm642, %v3455, 0
      %v3459 = vsel %vm642, %v3456, 0
      %3461 = vmatprep.subr.mxu0 0.0
      %3462 = vmatpush1.msra.mxu0 0.0
      %3463 = vmatprep.subr.mxu0 0.0
      %3464 = vmatpush1.msra.mxu0 0.0
      %3465 = vmatprep.subr.mxu0 0.0
      %3466 = vmatpush1.msra.mxu0 0.0
      %3467 = vmatprep.subr.mxu0 0.0
      %3468 = vmatpush1.msra.mxu0 0.0
      %3469 = vmatprep.subr.mxu0 0.0
      %3470 = vmatpush1.msra.mxu0 0.0
      %3471 = vmatprep.subr.mxu0 0.0
      %3472 = vmatpush1.msra.mxu0 0.0
      %3473 = vmatprep.subr.mxu0 0.0
      %3474 = vmatpush1.msra.mxu0 0.0
      %3475 = vmatprep.subr.mxu0 0.0
      %3476 = vmatpush1.msra.mxu0 0.0
      %3477 = vmatprep.subr.mxu0 0.0
      %3478 = vmatpush1.msra.mxu0 0.0
      %3479 = vmatprep.subr.mxu0 0.0
      %3480 = vmatpush1.msra.mxu0 0.0
      %3481 = vmatprep.subr.mxu0 0.0
      %3482 = vmatpush1.msra.mxu0 0.0
      %3483 = vmatprep.subr.mxu0 0.0
      %3484 = vmatpush1.msra.mxu0 0.0
      %3485 = vmatprep.subr.mxu0 0.0
      %3486 = vmatpush1.msra.mxu0 %v3450
      %3487 = vmatprep.subr.mxu0 0.0
      %3488 = vmatpush1.msra.mxu0 %v3449
      %3489 = vmatprep.subr.mxu0 0.0
      %3490 = vmatpush1.msra.mxu0 %v3448
      %3491 = vmatprep.subr.mxu0 0.0
      %3492 = vmatpush1.msra.mxu0 %v3447
      %3493 = vmatprep.subr.mxu0 0.0
      %3494 = vmatpush2.msra.mxu0 0.0
      %3495 = vmatprep.subr.mxu0 0.0
      %3496 = vmatpush2.msra.mxu0 0.0
      %3497 = vmatprep.subr.mxu0 0.0
      %3498 = vmatpush2.msra.mxu0 0.0
      %3499 = vmatprep.subr.mxu0 0.0
      %3500 = vmatpush2.msra.mxu0 0.0
      %3501 = vmatprep.subr.mxu0 0.0
      %3502 = vmatpush2.msra.mxu0 0.0
      %3503 = vmatprep.subr.mxu0 0.0
      %3504 = vmatpush2.msra.mxu0 0.0
      %3505 = vmatprep.subr.mxu0 0.0
      %3506 = vmatpush2.msra.mxu0 0.0
      %3507 = vmatprep.subr.mxu0 0.0
      %3508 = vmatpush2.msra.mxu0 0.0
      %3509 = vmatprep.subr.mxu0 0.0
      %3510 = vmatpush2.msra.mxu0 0.0
      %3511 = vmatprep.subr.mxu0 0.0
      %3512 = vmatpush2.msra.mxu0 0.0
      %3513 = vmatprep.subr.mxu0 0.0
      %3514 = vmatpush2.msra.mxu0 0.0
      %3515 = vmatprep.subr.mxu0 0.0
      %3516 = vmatpush2.msra.mxu0 0.0
      %3517 = vmatprep.subr.mxu0 0.0
      %3518 = vmatpush2.msra.mxu0 0.0
      %3519 = vmatprep.subr.mxu0 0.0
      %3520 = vmatpush2.msra.mxu0 0.0
      %3521 = vmatprep.subr.mxu0 0.0
      %3522 = vmatpush2.msra.mxu0 0.0
      %3523 = vmatprep.subr.mxu0 0.0
      %3524 = vmatpush2.msra.mxu0 0.0
      %3525 = vmatprep.mubr.f32.mxu0 0.0
      %3526 = vmatmul.mubr.f32.gmra.mxu0 %v3457
      %v3527 = vpop.f32.mrf.mxu0
      %v3528 = vadd.f32 0.0, %v3527
      %v3529 = vpop.f32.mrf.mxu0
      %3530 = vmatprep.mubr.f32.mxu0 0.0
      %3531 = vmatmul.mubr.f32.gmra.mxu0 %v3459
      %v3532 = vpop.f32.mrf.mxu0
      %v3533 = vadd.f32 0.0, %v3532
      %v3534 = vpop.f32.mrf.mxu0
      %3535 = vdwg.mxu0
      %v3536 = vadd.f32 %v3434, %v3528
      %v3537 = vadd.f32 %v3439, %v3533
      %v3538 = vld [vmem:[%s3250] sm:$0xf]
      %v3539 = vld [vmem:[%s3250 + $0x8] sm:$0xf]
      %v3540 = vld [vmem:[%s3250 + $0x10] sm:$0xf]
      %v3541 = vld [vmem:[%s3250 + $0x18] sm:$0xf]
      %s3542 = scalar_lea.vmem %s10, 96
      %v3543 = vld [vmem:[%s3542] sm:$0xff]
      %v3544 = vld [vmem:[%s3542 + $0x8] sm:$0xff]
      %v3545 = vld [vmem:[%s3542 + $0x10] sm:$0xff]
      %v3546 = vld [vmem:[%s3542 + $0x18] sm:$0xff]
      %v3551 = vcombine.low %v3538, %v3539
      %v3552 = vcombine.low %v3540, %v3541
      %v3553 = vsel %vm642, %v3551, 0
      %v3555 = vsel %vm642, %v3552, 0
      %3557 = vmatprep.subr.mxu0 0.0
      %3558 = vmatpush1.msra.mxu0 0.0
      %3559 = vmatprep.subr.mxu0 0.0
      %3560 = vmatpush1.msra.mxu0 0.0
      %3561 = vmatprep.subr.mxu0 0.0
      %3562 = vmatpush1.msra.mxu0 0.0
      %3563 = vmatprep.subr.mxu0 0.0
      %3564 = vmatpush1.msra.mxu0 0.0
      %3565 = vmatprep.subr.mxu0 0.0
      %3566 = vmatpush1.msra.mxu0 0.0
      %3567 = vmatprep.subr.mxu0 0.0
      %3568 = vmatpush1.msra.mxu0 0.0
      %3569 = vmatprep.subr.mxu0 0.0
      %3570 = vmatpush1.msra.mxu0 0.0
      %3571 = vmatprep.subr.mxu0 0.0
      %3572 = vmatpush1.msra.mxu0 0.0
      %3573 = vmatprep.subr.mxu0 0.0
      %3574 = vmatpush1.msra.mxu0 0.0
      %3575 = vmatprep.subr.mxu0 0.0
      %3576 = vmatpush1.msra.mxu0 0.0
      %3577 = vmatprep.subr.mxu0 0.0
      %3578 = vmatpush1.msra.mxu0 0.0
      %3579 = vmatprep.subr.mxu0 0.0
      %3580 = vmatpush1.msra.mxu0 0.0
      %3581 = vmatprep.subr.mxu0 0.0
      %3582 = vmatpush1.msra.mxu0 %v3546
      %3583 = vmatprep.subr.mxu0 0.0
      %3584 = vmatpush1.msra.mxu0 %v3545
      %3585 = vmatprep.subr.mxu0 0.0
      %3586 = vmatpush1.msra.mxu0 %v3544
      %3587 = vmatprep.subr.mxu0 0.0
      %3588 = vmatpush1.msra.mxu0 %v3543
      %3589 = vmatprep.subr.mxu0 0.0
      %3590 = vmatpush2.msra.mxu0 0.0
      %3591 = vmatprep.subr.mxu0 0.0
      %3592 = vmatpush2.msra.mxu0 0.0
      %3593 = vmatprep.subr.mxu0 0.0
      %3594 = vmatpush2.msra.mxu0 0.0
      %3595 = vmatprep.subr.mxu0 0.0
      %3596 = vmatpush2.msra.mxu0 0.0
      %3597 = vmatprep.subr.mxu0 0.0
      %3598 = vmatpush2.msra.mxu0 0.0
      %3599 = vmatprep.subr.mxu0 0.0
      %3600 = vmatpush2.msra.mxu0 0.0
      %3601 = vmatprep.subr.mxu0 0.0
      %3602 = vmatpush2.msra.mxu0 0.0
      %3603 = vmatprep.subr.mxu0 0.0
      %3604 = vmatpush2.msra.mxu0 0.0
      %3605 = vmatprep.subr.mxu0 0.0
      %3606 = vmatpush2.msra.mxu0 0.0
      %3607 = vmatprep.subr.mxu0 0.0
      %3608 = vmatpush2.msra.mxu0 0.0
      %3609 = vmatprep.subr.mxu0 0.0
      %3610 = vmatpush2.msra.mxu0 0.0
      %3611 = vmatprep.subr.mxu0 0.0
      %3612 = vmatpush2.msra.mxu0 0.0
      %3613 = vmatprep.subr.mxu0 0.0
      %3614 = vmatpush2.msra.mxu0 0.0
      %3615 = vmatprep.subr.mxu0 0.0
      %3616 = vmatpush2.msra.mxu0 0.0
      %3617 = vmatprep.subr.mxu0 0.0
      %3618 = vmatpush2.msra.mxu0 0.0
      %3619 = vmatprep.subr.mxu0 0.0
      %3620 = vmatpush2.msra.mxu0 0.0
      %3621 = vmatprep.mubr.f32.mxu0 0.0
      %3622 = vmatmul.mubr.f32.gmra.mxu0 %v3553
      %v3623 = vpop.f32.mrf.mxu0
      %v3624 = vadd.f32 0.0, %v3623
      %v3625 = vpop.f32.mrf.mxu0
      %3626 = vmatprep.mubr.f32.mxu0 0.0
      %3627 = vmatmul.mubr.f32.gmra.mxu0 %v3555
      %v3628 = vpop.f32.mrf.mxu0
      %v3629 = vadd.f32 0.0, %v3628
      %v3630 = vpop.f32.mrf.mxu0
      %3631 = vdwg.mxu0
      %v3632 = vadd.f32 %v3536, %v3624
      %v3633 = vadd.f32 %v3537, %v3629
      %v3634 = vld [vmem:[%s3250 + $0x1] sm:$0xf]
      %v3635 = vld [vmem:[%s3250 + $0x9] sm:$0xf]
      %v3636 = vld [vmem:[%s3250 + $0x11] sm:$0xf]
      %v3637 = vld [vmem:[%s3250 + $0x19] sm:$0xf]
      %s3638 = scalar_lea.vmem %s10, 128
      %v3639 = vld [vmem:[%s3638] sm:$0xff]
      %v3640 = vld [vmem:[%s3638 + $0x8] sm:$0xff]
      %v3641 = vld [vmem:[%s3638 + $0x10] sm:$0xff]
      %v3642 = vld [vmem:[%s3638 + $0x18] sm:$0xff]
      %v3647 = vcombine.low %v3634, %v3635
      %v3648 = vcombine.low %v3636, %v3637
      %v3649 = vsel %vm642, %v3647, 0
      %v3651 = vsel %vm642, %v3648, 0
      %3653 = vmatprep.subr.mxu0 0.0
      %3654 = vmatpush1.msra.mxu0 0.0
      %3655 = vmatprep.subr.mxu0 0.0
      %3656 = vmatpush1.msra.mxu0 0.0
      %3657 = vmatprep.subr.mxu0 0.0
      %3658 = vmatpush1.msra.mxu0 0.0
      %3659 = vmatprep.subr.mxu0 0.0
      %3660 = vmatpush1.msra.mxu0 0.0
      %3661 = vmatprep.subr.mxu0 0.0
      %3662 = vmatpush1.msra.mxu0 0.0
      %3663 = vmatprep.subr.mxu0 0.0
      %3664 = vmatpush1.msra.mxu0 0.0
      %3665 = vmatprep.subr.mxu0 0.0
      %3666 = vmatpush1.msra.mxu0 0.0
      %3667 = vmatprep.subr.mxu0 0.0
      %3668 = vmatpush1.msra.mxu0 0.0
      %3669 = vmatprep.subr.mxu0 0.0
      %3670 = vmatpush1.msra.mxu0 0.0
      %3671 = vmatprep.subr.mxu0 0.0
      %3672 = vmatpush1.msra.mxu0 0.0
      %3673 = vmatprep.subr.mxu0 0.0
      %3674 = vmatpush1.msra.mxu0 0.0
      %3675 = vmatprep.subr.mxu0 0.0
      %3676 = vmatpush1.msra.mxu0 0.0
      %3677 = vmatprep.subr.mxu0 0.0
      %3678 = vmatpush1.msra.mxu0 %v3642
      %3679 = vmatprep.subr.mxu0 0.0
      %3680 = vmatpush1.msra.mxu0 %v3641
      %3681 = vmatprep.subr.mxu0 0.0
      %3682 = vmatpush1.msra.mxu0 %v3640
      %3683 = vmatprep.subr.mxu0 0.0
      %3684 = vmatpush1.msra.mxu0 %v3639
      %3685 = vmatprep.subr.mxu0 0.0
      %3686 = vmatpush2.msra.mxu0 0.0
      %3687 = vmatprep.subr.mxu0 0.0
      %3688 = vmatpush2.msra.mxu0 0.0
      %3689 = vmatprep.subr.mxu0 0.0
      %3690 = vmatpush2.msra.mxu0 0.0
      %3691 = vmatprep.subr.mxu0 0.0
      %3692 = vmatpush2.msra.mxu0 0.0
      %3693 = vmatprep.subr.mxu0 0.0
      %3694 = vmatpush2.msra.mxu0 0.0
      %3695 = vmatprep.subr.mxu0 0.0
      %3696 = vmatpush2.msra.mxu0 0.0
      %3697 = vmatprep.subr.mxu0 0.0
      %3698 = vmatpush2.msra.mxu0 0.0
      %3699 = vmatprep.subr.mxu0 0.0
      %3700 = vmatpush2.msra.mxu0 0.0
      %3701 = vmatprep.subr.mxu0 0.0
      %3702 = vmatpush2.msra.mxu0 0.0
      %3703 = vmatprep.subr.mxu0 0.0
      %3704 = vmatpush2.msra.mxu0 0.0
      %3705 = vmatprep.subr.mxu0 0.0
      %3706 = vmatpush2.msra.mxu0 0.0
      %3707 = vmatprep.subr.mxu0 0.0
      %3708 = vmatpush2.msra.mxu0 0.0
      %3709 = vmatprep.subr.mxu0 0.0
      %3710 = vmatpush2.msra.mxu0 0.0
      %3711 = vmatprep.subr.mxu0 0.0
      %3712 = vmatpush2.msra.mxu0 0.0
      %3713 = vmatprep.subr.mxu0 0.0
      %3714 = vmatpush2.msra.mxu0 0.0
      %3715 = vmatprep.subr.mxu0 0.0
      %3716 = vmatpush2.msra.mxu0 0.0
      %3717 = vmatprep.mubr.f32.mxu0 0.0
      %3718 = vmatmul.mubr.f32.gmra.mxu0 %v3649
      %v3719 = vpop.f32.mrf.mxu0
      %v3720 = vadd.f32 0.0, %v3719
      %v3721 = vpop.f32.mrf.mxu0
      %3722 = vmatprep.mubr.f32.mxu0 0.0
      %3723 = vmatmul.mubr.f32.gmra.mxu0 %v3651
      %v3724 = vpop.f32.mrf.mxu0
      %v3725 = vadd.f32 0.0, %v3724
      %v3726 = vpop.f32.mrf.mxu0
      %3727 = vdwg.mxu0
      %v3728 = vadd.f32 %v3632, %v3720
      %v3729 = vadd.f32 %v3633, %v3725
      %v3730 = vld [vmem:[%s3250 + $0x2] sm:$0xf]
      %v3731 = vld [vmem:[%s3250 + $0xa] sm:$0xf]
      %v3732 = vld [vmem:[%s3250 + $0x12] sm:$0xf]
      %v3733 = vld [vmem:[%s3250 + $0x1a] sm:$0xf]
      %s3734 = scalar_lea.vmem %s10, 160
      %v3735 = vld [vmem:[%s3734] sm:$0xff]
      %v3736 = vld [vmem:[%s3734 + $0x8] sm:$0xff]
      %v3737 = vld [vmem:[%s3734 + $0x10] sm:$0xff]
      %v3738 = vld [vmem:[%s3734 + $0x18] sm:$0xff]
      %v3743 = vcombine.low %v3730, %v3731
      %v3744 = vcombine.low %v3732, %v3733
      %v3745 = vsel %vm642, %v3743, 0
      %v3747 = vsel %vm642, %v3744, 0
      %3749 = vmatprep.subr.mxu0 0.0
      %3750 = vmatpush1.msra.mxu0 0.0
      %3751 = vmatprep.subr.mxu0 0.0
      %3752 = vmatpush1.msra.mxu0 0.0
      %3753 = vmatprep.subr.mxu0 0.0
      %3754 = vmatpush1.msra.mxu0 0.0
      %3755 = vmatprep.subr.mxu0 0.0
      %3756 = vmatpush1.msra.mxu0 0.0
      %3757 = vmatprep.subr.mxu0 0.0
      %3758 = vmatpush1.msra.mxu0 0.0
      %3759 = vmatprep.subr.mxu0 0.0
      %3760 = vmatpush1.msra.mxu0 0.0
      %3761 = vmatprep.subr.mxu0 0.0
      %3762 = vmatpush1.msra.mxu0 0.0
      %3763 = vmatprep.subr.mxu0 0.0
      %3764 = vmatpush1.msra.mxu0 0.0
      %3765 = vmatprep.subr.mxu0 0.0
      %3766 = vmatpush1.msra.mxu0 0.0
      %3767 = vmatprep.subr.mxu0 0.0
      %3768 = vmatpush1.msra.mxu0 0.0
      %3769 = vmatprep.subr.mxu0 0.0
      %3770 = vmatpush1.msra.mxu0 0.0
      %3771 = vmatprep.subr.mxu0 0.0
      %3772 = vmatpush1.msra.mxu0 0.0
      %3773 = vmatprep.subr.mxu0 0.0
      %3774 = vmatpush1.msra.mxu0 %v3738
      %3775 = vmatprep.subr.mxu0 0.0
      %3776 = vmatpush1.msra.mxu0 %v3737
      %3777 = vmatprep.subr.mxu0 0.0
      %3778 = vmatpush1.msra.mxu0 %v3736
      %3779 = vmatprep.subr.mxu0 0.0
      %3780 = vmatpush1.msra.mxu0 %v3735
      %3781 = vmatprep.subr.mxu0 0.0
      %3782 = vmatpush2.msra.mxu0 0.0
      %3783 = vmatprep.subr.mxu0 0.0
      %3784 = vmatpush2.msra.mxu0 0.0
      %3785 = vmatprep.subr.mxu0 0.0
      %3786 = vmatpush2.msra.mxu0 0.0
      %3787 = vmatprep.subr.mxu0 0.0
      %3788 = vmatpush2.msra.mxu0 0.0
      %3789 = vmatprep.subr.mxu0 0.0
      %3790 = vmatpush2.msra.mxu0 0.0
      %3791 = vmatprep.subr.mxu0 0.0
      %3792 = vmatpush2.msra.mxu0 0.0
      %3793 = vmatprep.subr.mxu0 0.0
      %3794 = vmatpush2.msra.mxu0 0.0
      %3795 = vmatprep.subr.mxu0 0.0
      %3796 = vmatpush2.msra.mxu0 0.0
      %3797 = vmatprep.subr.mxu0 0.0
      %3798 = vmatpush2.msra.mxu0 0.0
      %3799 = vmatprep.subr.mxu0 0.0
      %3800 = vmatpush2.msra.mxu0 0.0
      %3801 = vmatprep.subr.mxu0 0.0
      %3802 = vmatpush2.msra.mxu0 0.0
      %3803 = vmatprep.subr.mxu0 0.0
      %3804 = vmatpush2.msra.mxu0 0.0
      %3805 = vmatprep.subr.mxu0 0.0
      %3806 = vmatpush2.msra.mxu0 0.0
      %3807 = vmatprep.subr.mxu0 0.0
      %3808 = vmatpush2.msra.mxu0 0.0
      %3809 = vmatprep.subr.mxu0 0.0
      %3810 = vmatpush2.msra.mxu0 0.0
      %3811 = vmatprep.subr.mxu0 0.0
      %3812 = vmatpush2.msra.mxu0 0.0
      %3813 = vmatprep.mubr.f32.mxu0 0.0
      %3814 = vmatmul.mubr.f32.gmra.mxu0 %v3745
      %v3815 = vpop.f32.mrf.mxu0
      %v3816 = vadd.f32 0.0, %v3815
      %v3817 = vpop.f32.mrf.mxu0
      %3818 = vmatprep.mubr.f32.mxu0 0.0
      %3819 = vmatmul.mubr.f32.gmra.mxu0 %v3747
      %v3820 = vpop.f32.mrf.mxu0
      %v3821 = vadd.f32 0.0, %v3820
      %v3822 = vpop.f32.mrf.mxu0
      %3823 = vdwg.mxu0
      %v3824 = vadd.f32 %v3728, %v3816
      %v3825 = vadd.f32 %v3729, %v3821
      %s3826 = scalar_lea.vmem [#allocation3], 16
      %v3827 = vld [vmem:[%s3826] sm:$0xf]
      %v3828 = vld [vmem:[%s3826 + $0x8] sm:$0xf]
      %v3829 = vld [vmem:[%s3826 + $0x10] sm:$0xf]
      %v3830 = vld [vmem:[%s3826 + $0x18] sm:$0xf]
      %s3831 = scalar_lea.vmem %s10, 192
      %v3832 = vld [vmem:[%s3831] sm:$0xff]
      %v3833 = vld [vmem:[%s3831 + $0x8] sm:$0xff]
      %v3834 = vld [vmem:[%s3831 + $0x10] sm:$0xff]
      %v3835 = vld [vmem:[%s3831 + $0x18] sm:$0xff]
      %v3840 = vcombine.low %v3827, %v3828
      %v3841 = vcombine.low %v3829, %v3830
      %v3842 = vsel %vm642, %v3840, 0
      %v3844 = vsel %vm642, %v3841, 0
      %3846 = vmatprep.subr.mxu0 0.0
      %3847 = vmatpush1.msra.mxu0 0.0
      %3848 = vmatprep.subr.mxu0 0.0
      %3849 = vmatpush1.msra.mxu0 0.0
      %3850 = vmatprep.subr.mxu0 0.0
      %3851 = vmatpush1.msra.mxu0 0.0
      %3852 = vmatprep.subr.mxu0 0.0
      %3853 = vmatpush1.msra.mxu0 0.0
      %3854 = vmatprep.subr.mxu0 0.0
      %3855 = vmatpush1.msra.mxu0 0.0
      %3856 = vmatprep.subr.mxu0 0.0
      %3857 = vmatpush1.msra.mxu0 0.0
      %3858 = vmatprep.subr.mxu0 0.0
      %3859 = vmatpush1.msra.mxu0 0.0
      %3860 = vmatprep.subr.mxu0 0.0
      %3861 = vmatpush1.msra.mxu0 0.0
      %3862 = vmatprep.subr.mxu0 0.0
      %3863 = vmatpush1.msra.mxu0 0.0
      %3864 = vmatprep.subr.mxu0 0.0
      %3865 = vmatpush1.msra.mxu0 0.0
      %3866 = vmatprep.subr.mxu0 0.0
      %3867 = vmatpush1.msra.mxu0 0.0
      %3868 = vmatprep.subr.mxu0 0.0
      %3869 = vmatpush1.msra.mxu0 0.0
      %3870 = vmatprep.subr.mxu0 0.0
      %3871 = vmatpush1.msra.mxu0 %v3835
      %3872 = vmatprep.subr.mxu0 0.0
      %3873 = vmatpush1.msra.mxu0 %v3834
      %3874 = vmatprep.subr.mxu0 0.0
      %3875 = vmatpush1.msra.mxu0 %v3833
      %3876 = vmatprep.subr.mxu0 0.0
      %3877 = vmatpush1.msra.mxu0 %v3832
      %3878 = vmatprep.subr.mxu0 0.0
      %3879 = vmatpush2.msra.mxu0 0.0
      %3880 = vmatprep.subr.mxu0 0.0
      %3881 = vmatpush2.msra.mxu0 0.0
      %3882 = vmatprep.subr.mxu0 0.0
      %3883 = vmatpush2.msra.mxu0 0.0
      %3884 = vmatprep.subr.mxu0 0.0
      %3885 = vmatpush2.msra.mxu0 0.0
      %3886 = vmatprep.subr.mxu0 0.0
      %3887 = vmatpush2.msra.mxu0 0.0
      %3888 = vmatprep.subr.mxu0 0.0
      %3889 = vmatpush2.msra.mxu0 0.0
      %3890 = vmatprep.subr.mxu0 0.0
      %3891 = vmatpush2.msra.mxu0 0.0
      %3892 = vmatprep.subr.mxu0 0.0
      %3893 = vmatpush2.msra.mxu0 0.0
      %3894 = vmatprep.subr.mxu0 0.0
      %3895 = vmatpush2.msra.mxu0 0.0
      %3896 = vmatprep.subr.mxu0 0.0
      %3897 = vmatpush2.msra.mxu0 0.0
      %3898 = vmatprep.subr.mxu0 0.0
      %3899 = vmatpush2.msra.mxu0 0.0
      %3900 = vmatprep.subr.mxu0 0.0
      %3901 = vmatpush2.msra.mxu0 0.0
      %3902 = vmatprep.subr.mxu0 0.0
      %3903 = vmatpush2.msra.mxu0 0.0
      %3904 = vmatprep.subr.mxu0 0.0
      %3905 = vmatpush2.msra.mxu0 0.0
      %3906 = vmatprep.subr.mxu0 0.0
      %3907 = vmatpush2.msra.mxu0 0.0
      %3908 = vmatprep.subr.mxu0 0.0
      %3909 = vmatpush2.msra.mxu0 0.0
      %3910 = vmatprep.mubr.f32.mxu0 0.0
      %3911 = vmatmul.mubr.f32.gmra.mxu0 %v3842
      %v3912 = vpop.f32.mrf.mxu0
      %v3913 = vadd.f32 0.0, %v3912
      %v3914 = vpop.f32.mrf.mxu0
      %3915 = vmatprep.mubr.f32.mxu0 0.0
      %3916 = vmatmul.mubr.f32.gmra.mxu0 %v3844
      %v3917 = vpop.f32.mrf.mxu0
      %v3918 = vadd.f32 0.0, %v3917
      %v3919 = vpop.f32.mrf.mxu0
      %3920 = vdwg.mxu0
      %v3921 = vadd.f32 %v3824, %v3913
      %v3922 = vadd.f32 %v3825, %v3918
      %v3923 = vld [vmem:[%s3826 + $0x1] sm:$0xf]
      %v3924 = vld [vmem:[%s3826 + $0x9] sm:$0xf]
      %v3925 = vld [vmem:[%s3826 + $0x11] sm:$0xf]
      %v3926 = vld [vmem:[%s3826 + $0x19] sm:$0xf]
      %s3927 = scalar_lea.vmem %s10, 224
      %v3928 = vld [vmem:[%s3927] sm:$0xff]
      %v3929 = vld [vmem:[%s3927 + $0x8] sm:$0xff]
      %v3930 = vld [vmem:[%s3927 + $0x10] sm:$0xff]
      %v3931 = vld [vmem:[%s3927 + $0x18] sm:$0xff]
      %v3936 = vcombine.low %v3923, %v3924
      %v3937 = vcombine.low %v3925, %v3926
      %v3938 = vsel %vm642, %v3936, 0
      %v3940 = vsel %vm642, %v3937, 0
      %3942 = vmatprep.subr.mxu0 0.0
      %3943 = vmatpush1.msra.mxu0 0.0
      %3944 = vmatprep.subr.mxu0 0.0
      %3945 = vmatpush1.msra.mxu0 0.0
      %3946 = vmatprep.subr.mxu0 0.0
      %3947 = vmatpush1.msra.mxu0 0.0
      %3948 = vmatprep.subr.mxu0 0.0
      %3949 = vmatpush1.msra.mxu0 0.0
      %3950 = vmatprep.subr.mxu0 0.0
      %3951 = vmatpush1.msra.mxu0 0.0
      %3952 = vmatprep.subr.mxu0 0.0
      %3953 = vmatpush1.msra.mxu0 0.0
      %3954 = vmatprep.subr.mxu0 0.0
      %3955 = vmatpush1.msra.mxu0 0.0
      %3956 = vmatprep.subr.mxu0 0.0
      %3957 = vmatpush1.msra.mxu0 0.0
      %3958 = vmatprep.subr.mxu0 0.0
      %3959 = vmatpush1.msra.mxu0 0.0
      %3960 = vmatprep.subr.mxu0 0.0
      %3961 = vmatpush1.msra.mxu0 0.0
      %3962 = vmatprep.subr.mxu0 0.0
      %3963 = vmatpush1.msra.mxu0 0.0
      %3964 = vmatprep.subr.mxu0 0.0
      %3965 = vmatpush1.msra.mxu0 0.0
      %3966 = vmatprep.subr.mxu0 0.0
      %3967 = vmatpush1.msra.mxu0 %v3931
      %3968 = vmatprep.subr.mxu0 0.0
      %3969 = vmatpush1.msra.mxu0 %v3930
      %3970 = vmatprep.subr.mxu0 0.0
      %3971 = vmatpush1.msra.mxu0 %v3929
      %3972 = vmatprep.subr.mxu0 0.0
      %3973 = vmatpush1.msra.mxu0 %v3928
      %3974 = vmatprep.subr.mxu0 0.0
      %3975 = vmatpush2.msra.mxu0 0.0
      %3976 = vmatprep.subr.mxu0 0.0
      %3977 = vmatpush2.msra.mxu0 0.0
      %3978 = vmatprep.subr.mxu0 0.0
      %3979 = vmatpush2.msra.mxu0 0.0
      %3980 = vmatprep.subr.mxu0 0.0
      %3981 = vmatpush2.msra.mxu0 0.0
      %3982 = vmatprep.subr.mxu0 0.0
      %3983 = vmatpush2.msra.mxu0 0.0
      %3984 = vmatprep.subr.mxu0 0.0
      %3985 = vmatpush2.msra.mxu0 0.0
      %3986 = vmatprep.subr.mxu0 0.0
      %3987 = vmatpush2.msra.mxu0 0.0
      %3988 = vmatprep.subr.mxu0 0.0
      %3989 = vmatpush2.msra.mxu0 0.0
      %3990 = vmatprep.subr.mxu0 0.0
      %3991 = vmatpush2.msra.mxu0 0.0
      %3992 = vmatprep.subr.mxu0 0.0
      %3993 = vmatpush2.msra.mxu0 0.0
      %3994 = vmatprep.subr.mxu0 0.0
      %3995 = vmatpush2.msra.mxu0 0.0
      %3996 = vmatprep.subr.mxu0 0.0
      %3997 = vmatpush2.msra.mxu0 0.0
      %3998 = vmatprep.subr.mxu0 0.0
      %3999 = vmatpush2.msra.mxu0 0.0
      %4000 = vmatprep.subr.mxu0 0.0
      %4001 = vmatpush2.msra.mxu0 0.0
      %4002 = vmatprep.subr.mxu0 0.0
      %4003 = vmatpush2.msra.mxu0 0.0
      %4004 = vmatprep.subr.mxu0 0.0
      %4005 = vmatpush2.msra.mxu0 0.0
      %4006 = vmatprep.mubr.f32.mxu0 0.0
      %4007 = vmatmul.mubr.f32.gmra.mxu0 %v3938
      %v4008 = vpop.f32.mrf.mxu0
      %v4009 = vadd.f32 0.0, %v4008
      %v4010 = vpop.f32.mrf.mxu0
      %4011 = vmatprep.mubr.f32.mxu0 0.0
      %4012 = vmatmul.mubr.f32.gmra.mxu0 %v3940
      %v4013 = vpop.f32.mrf.mxu0
      %v4014 = vadd.f32 0.0, %v4013
      %v4015 = vpop.f32.mrf.mxu0
      %4016 = vdwg.mxu0
      %v4017 = vadd.f32 %v3921, %v4009
      %v4018 = vadd.f32 %v3922, %v4014
      %v4019 = vld [vmem:[%s3826 + $0x2] sm:$0xf]
      %v4020 = vld [vmem:[%s3826 + $0xa] sm:$0xf]
      %v4021 = vld [vmem:[%s3826 + $0x12] sm:$0xf]
      %v4022 = vld [vmem:[%s3826 + $0x1a] sm:$0xf]
      %s4023 = scalar_lea.vmem %s10, 256
      %v4024 = vld [vmem:[%s4023] sm:$0xff]
      %v4025 = vld [vmem:[%s4023 + $0x8] sm:$0xff]
      %v4026 = vld [vmem:[%s4023 + $0x10] sm:$0xff]
      %v4027 = vld [vmem:[%s4023 + $0x18] sm:$0xff]
      %v4032 = vcombine.low %v4019, %v4020
      %v4033 = vcombine.low %v4021, %v4022
      %v4034 = vsel %vm642, %v4032, 0
      %v4036 = vsel %vm642, %v4033, 0
      %4038 = vmatprep.subr.mxu0 0.0
      %4039 = vmatpush1.msra.mxu0 0.0
      %4040 = vmatprep.subr.mxu0 0.0
      %4041 = vmatpush1.msra.mxu0 0.0
      %4042 = vmatprep.subr.mxu0 0.0
      %4043 = vmatpush1.msra.mxu0 0.0
      %4044 = vmatprep.subr.mxu0 0.0
      %4045 = vmatpush1.msra.mxu0 0.0
      %4046 = vmatprep.subr.mxu0 0.0
      %4047 = vmatpush1.msra.mxu0 0.0
      %4048 = vmatprep.subr.mxu0 0.0
      %4049 = vmatpush1.msra.mxu0 0.0
      %4050 = vmatprep.subr.mxu0 0.0
      %4051 = vmatpush1.msra.mxu0 0.0
      %4052 = vmatprep.subr.mxu0 0.0
      %4053 = vmatpush1.msra.mxu0 0.0
      %4054 = vmatprep.subr.mxu0 0.0
      %4055 = vmatpush1.msra.mxu0 0.0
      %4056 = vmatprep.subr.mxu0 0.0
      %4057 = vmatpush1.msra.mxu0 0.0
      %4058 = vmatprep.subr.mxu0 0.0
      %4059 = vmatpush1.msra.mxu0 0.0
      %4060 = vmatprep.subr.mxu0 0.0
      %4061 = vmatpush1.msra.mxu0 0.0
      %4062 = vmatprep.subr.mxu0 0.0
      %4063 = vmatpush1.msra.mxu0 %v4027
      %4064 = vmatprep.subr.mxu0 0.0
      %4065 = vmatpush1.msra.mxu0 %v4026
      %4066 = vmatprep.subr.mxu0 0.0
      %4067 = vmatpush1.msra.mxu0 %v4025
      %4068 = vmatprep.subr.mxu0 0.0
      %4069 = vmatpush1.msra.mxu0 %v4024
      %4070 = vmatprep.subr.mxu0 0.0
      %4071 = vmatpush2.msra.mxu0 0.0
      %4072 = vmatprep.subr.mxu0 0.0
      %4073 = vmatpush2.msra.mxu0 0.0
      %4074 = vmatprep.subr.mxu0 0.0
      %4075 = vmatpush2.msra.mxu0 0.0
      %4076 = vmatprep.subr.mxu0 0.0
      %4077 = vmatpush2.msra.mxu0 0.0
      %4078 = vmatprep.subr.mxu0 0.0
      %4079 = vmatpush2.msra.mxu0 0.0
      %4080 = vmatprep.subr.mxu0 0.0
      %4081 = vmatpush2.msra.mxu0 0.0
      %4082 = vmatprep.subr.mxu0 0.0
      %4083 = vmatpush2.msra.mxu0 0.0
      %4084 = vmatprep.subr.mxu0 0.0
      %4085 = vmatpush2.msra.mxu0 0.0
      %4086 = vmatprep.subr.mxu0 0.0
      %4087 = vmatpush2.msra.mxu0 0.0
      %4088 = vmatprep.subr.mxu0 0.0
      %4089 = vmatpush2.msra.mxu0 0.0
      %4090 = vmatprep.subr.mxu0 0.0
      %4091 = vmatpush2.msra.mxu0 0.0
      %4092 = vmatprep.subr.mxu0 0.0
      %4093 = vmatpush2.msra.mxu0 0.0
      %4094 = vmatprep.subr.mxu0 0.0
      %4095 = vmatpush2.msra.mxu0 0.0
      %4096 = vmatprep.subr.mxu0 0.0
      %4097 = vmatpush2.msra.mxu0 0.0
      %4098 = vmatprep.subr.mxu0 0.0
      %4099 = vmatpush2.msra.mxu0 0.0
      %4100 = vmatprep.subr.mxu0 0.0
      %4101 = vmatpush2.msra.mxu0 0.0
      %4102 = vmatprep.mubr.f32.mxu0 0.0
      %4103 = vmatmul.mubr.f32.gmra.mxu0 %v4034
      %v4104 = vpop.f32.mrf.mxu0
      %v4105 = vadd.f32 0.0, %v4104
      %v4106 = vpop.f32.mrf.mxu0
      %4107 = vmatprep.mubr.f32.mxu0 0.0
      %4108 = vmatmul.mubr.f32.gmra.mxu0 %v4036
      %v4109 = vpop.f32.mrf.mxu0
      %v4110 = vadd.f32 0.0, %v4109
      %v4111 = vpop.f32.mrf.mxu0
      %4112 = vdwg.mxu0
      %v4113 = vadd.f32 %v4017, %v4105
      %v4114 = vadd.f32 %v4018, %v4110
      %4115 = vst.msk [vmem:[#allocation4] sm:$0xff] %vm642, 0.0
      %4116 = vst.msk [vmem:[#allocation4 + $0x8] sm:$0x3] %vm2421, 0.0
      %s4117 = scalar_lea.vmem [#allocation4], 144
      %4118 = vst.msk [vmem:[%s4117] sm:$0xff] %vm642, 0.0
      %4119 = vst.msk [vmem:[%s4117 + $0x8] sm:$0x3] %vm2421, 0.0
      %4120 = vst.msk [vmem:[#allocation4] sm:$0x1] %vm2401, 0.0
      %4121 = vst.msk [vmem:[#allocation4 + $0x10] sm:$0x1] %vm2401, 0.0
      %4122 = vst.msk [vmem:[#allocation4 + $0x20] sm:$0x1] %vm2401, 0.0
      %4123 = vst.msk [vmem:[#allocation4 + $0x30] sm:$0x1] %vm2401, 0.0
      %4124 = vst.msk [vmem:[#allocation4 + $0x40] sm:$0x1] %vm2401, 0.0
      %4125 = vst.msk [vmem:[#allocation4 + $0x50] sm:$0x1] %vm2401, 0.0
      %4126 = vst.msk [vmem:[#allocation4 + $0x60] sm:$0x1] %vm2401, 0.0
      %4127 = vst.msk [vmem:[#allocation4 + $0x70] sm:$0x1] %vm2401, 0.0
      %4128 = vst.msk [vmem:[#allocation4 + $0x80] sm:$0x1] %vm2401, 0.0
      %4129 = vst.msk [vmem:[#allocation4 + $0x90] sm:$0x1] %vm2401, 0.0
      %4130 = vst.msk [vmem:[#allocation4 + $0x9] sm:$0x1] %vm2401, 0.0
      %4131 = vst.msk [vmem:[#allocation4 + $0x19] sm:$0x1] %vm2401, 0.0
      %4132 = vst.msk [vmem:[#allocation4 + $0x29] sm:$0x1] %vm2401, 0.0
      %4133 = vst.msk [vmem:[#allocation4 + $0x39] sm:$0x1] %vm2401, 0.0
      %4134 = vst.msk [vmem:[#allocation4 + $0x49] sm:$0x1] %vm2401, 0.0
      %4135 = vst.msk [vmem:[#allocation4 + $0x59] sm:$0x1] %vm2401, 0.0
      %4136 = vst.msk [vmem:[#allocation4 + $0x69] sm:$0x1] %vm2401, 0.0
      %4137 = vst.msk [vmem:[#allocation4 + $0x79] sm:$0x1] %vm2401, 0.0
      %4138 = vst.msk [vmem:[#allocation4 + $0x89] sm:$0x1] %vm2401, 0.0
      %4139 = vst.msk [vmem:[#allocation4 + $0x99] sm:$0x1] %vm2401, 0.0
      %s4140 = scalar_lea.vmem [#allocation4], 16
      %4141 = vst.msk [vmem:[%s4140 + $0x1] sm:$0xff] %vm642, %v1060
      %4142 = vst.msk [vmem:[%s4140 + $0x11] sm:$0xff] %vm642, %v1065
      %4143 = vst.msk [vmem:[%s4140 + $0x21] sm:$0xff] %vm642, %v1070
      %4144 = vst.msk [vmem:[%s4140 + $0x31] sm:$0xff] %vm642, %v1075
      %4145 = vst.msk [vmem:[%s4140 + $0x41] sm:$0xff] %vm642, %v1080
      %4146 = vst.msk [vmem:[%s4140 + $0x51] sm:$0xff] %vm642, %v1085
      %4147 = vst.msk [vmem:[%s4140 + $0x61] sm:$0xff] %vm642, %v1090
      %4148 = vst.msk [vmem:[%s4140 + $0x71] sm:$0xff] %vm642, %v1095
      %v4149 = vld [vmem:[#allocation4] sm:$0xff]
      %v4150 = vld [vmem:[#allocation4 + $0x10] sm:$0xff]
      %v4151 = vld [vmem:[#allocation4 + $0x20] sm:$0xff]
      %v4152 = vld [vmem:[#allocation4 + $0x30] sm:$0xff]
      %v4153 = vld [vmem:[#allocation4 + $0x40] sm:$0xff]
      %v4154 = vld [vmem:[#allocation4 + $0x50] sm:$0xff]
      %v4155 = vld [vmem:[#allocation4 + $0x60] sm:$0xff]
      %v4156 = vld [vmem:[#allocation4 + $0x70] sm:$0xff]
      %v4157 = vld [vmem:[%s9] sm:$0xff]
      %v4158 = vld [vmem:[%s9 + $0x8] sm:$0xff]
      %v4159 = vld [vmem:[%s9 + $0x10] sm:$0xff]
      %v4160 = vld [vmem:[%s9 + $0x18] sm:$0xff]
      %v4161 = vld [vmem:[#allocation4 + $0x1] sm:$0xff]
      %v4162 = vld [vmem:[#allocation4 + $0x11] sm:$0xff]
      %v4163 = vld [vmem:[#allocation4 + $0x21] sm:$0xff]
      %v4164 = vld [vmem:[#allocation4 + $0x31] sm:$0xff]
      %v4165 = vld [vmem:[#allocation4 + $0x41] sm:$0xff]
      %v4166 = vld [vmem:[#allocation4 + $0x51] sm:$0xff]
      %v4167 = vld [vmem:[#allocation4 + $0x61] sm:$0xff]
      %v4168 = vld [vmem:[#allocation4 + $0x71] sm:$0xff]
      %s4169 = scalar_lea.vmem %s9, 32
      %v4170 = vld [vmem:[%s4169] sm:$0xff]
      %v4171 = vld [vmem:[%s4169 + $0x8] sm:$0xff]
      %v4172 = vld [vmem:[%s4169 + $0x10] sm:$0xff]
      %v4173 = vld [vmem:[%s4169 + $0x18] sm:$0xff]
      %v4175 = vsel %vm642, %v4161, 0
      %v4178 = vsel %vm642, %v4162, 0
      %v4181 = vsel %vm642, %v4163, 0
      %v4184 = vsel %vm642, %v4164, 0
      %v4187 = vsel %vm642, %v4165, 0
      %v4190 = vsel %vm642, %v4166, 0
      %v4193 = vsel %vm642, %v4167, 0
      %v4196 = vsel %vm642, %v4168, 0
      %4198 = vmatprep.subr.mxu0 0.0
      %4199 = vmatpush1.msra.mxu0 0.0
      %4200 = vmatprep.subr.mxu0 0.0
      %4201 = vmatpush1.msra.mxu0 0.0
      %4202 = vmatprep.subr.mxu0 0.0
      %4203 = vmatpush1.msra.mxu0 0.0
      %4204 = vmatprep.subr.mxu0 0.0
      %4205 = vmatpush1.msra.mxu0 0.0
      %4206 = vmatprep.subr.mxu0 0.0
      %4207 = vmatpush1.msra.mxu0 0.0
      %4208 = vmatprep.subr.mxu0 0.0
      %4209 = vmatpush1.msra.mxu0 0.0
      %4210 = vmatprep.subr.mxu0 0.0
      %4211 = vmatpush1.msra.mxu0 0.0
      %4212 = vmatprep.subr.mxu0 0.0
      %4213 = vmatpush1.msra.mxu0 0.0
      %4214 = vmatprep.subr.mxu0 0.0
      %4215 = vmatpush1.msra.mxu0 0.0
      %4216 = vmatprep.subr.mxu0 0.0
      %4217 = vmatpush1.msra.mxu0 0.0
      %4218 = vmatprep.subr.mxu0 0.0
      %4219 = vmatpush1.msra.mxu0 0.0
      %4220 = vmatprep.subr.mxu0 0.0
      %4221 = vmatpush1.msra.mxu0 0.0
      %4222 = vmatprep.subr.mxu0 0.0
      %4223 = vmatpush1.msra.mxu0 %v4173
      %4224 = vmatprep.subr.mxu0 0.0
      %4225 = vmatpush1.msra.mxu0 %v4172
      %4226 = vmatprep.subr.mxu0 0.0
      %4227 = vmatpush1.msra.mxu0 %v4171
      %4228 = vmatprep.subr.mxu0 0.0
      %4229 = vmatpush1.msra.mxu0 %v4170
      %4230 = vmatprep.subr.mxu0 0.0
      %4231 = vmatpush2.msra.mxu0 0.0
      %4232 = vmatprep.subr.mxu0 0.0
      %4233 = vmatpush2.msra.mxu0 0.0
      %4234 = vmatprep.subr.mxu0 0.0
      %4235 = vmatpush2.msra.mxu0 0.0
      %4236 = vmatprep.subr.mxu0 0.0
      %4237 = vmatpush2.msra.mxu0 0.0
      %4238 = vmatprep.subr.mxu0 0.0
      %4239 = vmatpush2.msra.mxu0 0.0
      %4240 = vmatprep.subr.mxu0 0.0
      %4241 = vmatpush2.msra.mxu0 0.0
      %4242 = vmatprep.subr.mxu0 0.0
      %4243 = vmatpush2.msra.mxu0 0.0
      %4244 = vmatprep.subr.mxu0 0.0
      %4245 = vmatpush2.msra.mxu0 0.0
      %4246 = vmatprep.subr.mxu0 0.0
      %4247 = vmatpush2.msra.mxu0 0.0
      %4248 = vmatprep.subr.mxu0 0.0
      %4249 = vmatpush2.msra.mxu0 0.0
      %4250 = vmatprep.subr.mxu0 0.0
      %4251 = vmatpush2.msra.mxu0 0.0
      %4252 = vmatprep.subr.mxu0 0.0
      %4253 = vmatpush2.msra.mxu0 0.0
      %4254 = vmatprep.subr.mxu0 0.0
      %4255 = vmatpush2.msra.mxu0 0.0
      %4256 = vmatprep.subr.mxu0 0.0
      %4257 = vmatpush2.msra.mxu0 0.0
      %4258 = vmatprep.subr.mxu0 0.0
      %4259 = vmatpush2.msra.mxu0 0.0
      %4260 = vmatprep.subr.mxu0 0.0
      %4261 = vmatpush2.msra.mxu0 0.0
      %4262 = vmatprep.mubr.f32.mxu0 0.0
      %4263 = vmatmul.mubr.f32.gmra.mxu0 %v4175
      %v4264 = vpop.f32.mrf.mxu0
      %v4265 = vadd.f32 0.0, %v4264
      %v4266 = vpop.f32.mrf.mxu0
      %4267 = vmatprep.mubr.f32.mxu0 0.0
      %4268 = vmatmul.mubr.f32.gmra.mxu0 %v4178
      %v4269 = vpop.f32.mrf.mxu0
      %v4270 = vadd.f32 0.0, %v4269
      %v4271 = vpop.f32.mrf.mxu0
      %4272 = vmatprep.mubr.f32.mxu0 0.0
      %4273 = vmatmul.mubr.f32.gmra.mxu0 %v4181
      %v4274 = vpop.f32.mrf.mxu0
      %v4275 = vadd.f32 0.0, %v4274
      %v4276 = vpop.f32.mrf.mxu0
      %4277 = vmatprep.mubr.f32.mxu0 0.0
      %4278 = vmatmul.mubr.f32.gmra.mxu0 %v4184
      %v4279 = vpop.f32.mrf.mxu0
      %v4280 = vadd.f32 0.0, %v4279
      %v4281 = vpop.f32.mrf.mxu0
      %4282 = vmatprep.mubr.f32.mxu0 0.0
      %4283 = vmatmul.mubr.f32.gmra.mxu0 %v4187
      %v4284 = vpop.f32.mrf.mxu0
      %v4285 = vadd.f32 0.0, %v4284
      %v4286 = vpop.f32.mrf.mxu0
      %4287 = vmatprep.mubr.f32.mxu0 0.0
      %4288 = vmatmul.mubr.f32.gmra.mxu0 %v4190
      %v4289 = vpop.f32.mrf.mxu0
      %v4290 = vadd.f32 0.0, %v4289
      %v4291 = vpop.f32.mrf.mxu0
      %4292 = vmatprep.mubr.f32.mxu0 0.0
      %4293 = vmatmul.mubr.f32.gmra.mxu0 %v4193
      %v4294 = vpop.f32.mrf.mxu0
      %v4295 = vadd.f32 0.0, %v4294
      %v4296 = vpop.f32.mrf.mxu0
      %4297 = vmatprep.mubr.f32.mxu0 0.0
      %4298 = vmatmul.mubr.f32.gmra.mxu0 %v4196
      %v4299 = vpop.f32.mrf.mxu0
      %v4300 = vadd.f32 0.0, %v4299
      %v4301 = vpop.f32.mrf.mxu0
      %4302 = vdwg.mxu0
      %v4304 = vsel %vm642, %v4149, 0
      %v4307 = vsel %vm642, %v4150, 0
      %v4310 = vsel %vm642, %v4151, 0
      %v4313 = vsel %vm642, %v4152, 0
      %v4316 = vsel %vm642, %v4153, 0
      %v4319 = vsel %vm642, %v4154, 0
      %v4322 = vsel %vm642, %v4155, 0
      %v4325 = vsel %vm642, %v4156, 0
      %4327 = vmatprep.subr.mxu0 0.0
      %4328 = vmatpush1.msra.mxu0 0.0
      %4329 = vmatprep.subr.mxu0 0.0
      %4330 = vmatpush1.msra.mxu0 0.0
      %4331 = vmatprep.subr.mxu0 0.0
      %4332 = vmatpush1.msra.mxu0 0.0
      %4333 = vmatprep.subr.mxu0 0.0
      %4334 = vmatpush1.msra.mxu0 0.0
      %4335 = vmatprep.subr.mxu0 0.0
      %4336 = vmatpush1.msra.mxu0 0.0
      %4337 = vmatprep.subr.mxu0 0.0
      %4338 = vmatpush1.msra.mxu0 0.0
      %4339 = vmatprep.subr.mxu0 0.0
      %4340 = vmatpush1.msra.mxu0 0.0
      %4341 = vmatprep.subr.mxu0 0.0
      %4342 = vmatpush1.msra.mxu0 0.0
      %4343 = vmatprep.subr.mxu0 0.0
      %4344 = vmatpush1.msra.mxu0 0.0
      %4345 = vmatprep.subr.mxu0 0.0
      %4346 = vmatpush1.msra.mxu0 0.0
      %4347 = vmatprep.subr.mxu0 0.0
      %4348 = vmatpush1.msra.mxu0 0.0
      %4349 = vmatprep.subr.mxu0 0.0
      %4350 = vmatpush1.msra.mxu0 0.0
      %4351 = vmatprep.subr.mxu0 0.0
      %4352 = vmatpush1.msra.mxu0 %v4160
      %4353 = vmatprep.subr.mxu0 0.0
      %4354 = vmatpush1.msra.mxu0 %v4159
      %4355 = vmatprep.subr.mxu0 0.0
      %4356 = vmatpush1.msra.mxu0 %v4158
      %4357 = vmatprep.subr.mxu0 0.0
      %4358 = vmatpush1.msra.mxu0 %v4157
      %4359 = vmatprep.subr.mxu0 0.0
      %4360 = vmatpush2.msra.mxu0 0.0
      %4361 = vmatprep.subr.mxu0 0.0
      %4362 = vmatpush2.msra.mxu0 0.0
      %4363 = vmatprep.subr.mxu0 0.0
      %4364 = vmatpush2.msra.mxu0 0.0
      %4365 = vmatprep.subr.mxu0 0.0
      %4366 = vmatpush2.msra.mxu0 0.0
      %4367 = vmatprep.subr.mxu0 0.0
      %4368 = vmatpush2.msra.mxu0 0.0
      %4369 = vmatprep.subr.mxu0 0.0
      %4370 = vmatpush2.msra.mxu0 0.0
      %4371 = vmatprep.subr.mxu0 0.0
      %4372 = vmatpush2.msra.mxu0 0.0
      %4373 = vmatprep.subr.mxu0 0.0
      %4374 = vmatpush2.msra.mxu0 0.0
      %4375 = vmatprep.subr.mxu0 0.0
      %4376 = vmatpush2.msra.mxu0 0.0
      %4377 = vmatprep.subr.mxu0 0.0
      %4378 = vmatpush2.msra.mxu0 0.0
      %4379 = vmatprep.subr.mxu0 0.0
      %4380 = vmatpush2.msra.mxu0 0.0
      %4381 = vmatprep.subr.mxu0 0.0
      %4382 = vmatpush2.msra.mxu0 0.0
      %4383 = vmatprep.subr.mxu0 0.0
      %4384 = vmatpush2.msra.mxu0 0.0
      %4385 = vmatprep.subr.mxu0 0.0
      %4386 = vmatpush2.msra.mxu0 0.0
      %4387 = vmatprep.subr.mxu0 0.0
      %4388 = vmatpush2.msra.mxu0 0.0
      %4389 = vmatprep.subr.mxu0 0.0
      %4390 = vmatpush2.msra.mxu0 0.0
      %4391 = vmatprep.mubr.f32.mxu0 0.0
      %4392 = vmatmul.mubr.f32.gmra.mxu0 %v4304
      %v4393 = vpop.f32.mrf.mxu0
      %v4394 = vadd.f32 %v4265, %v4393
      %v4395 = vpop.f32.mrf.mxu0
      %4396 = vmatprep.mubr.f32.mxu0 0.0
      %4397 = vmatmul.mubr.f32.gmra.mxu0 %v4307
      %v4398 = vpop.f32.mrf.mxu0
      %v4399 = vadd.f32 %v4270, %v4398
      %v4400 = vpop.f32.mrf.mxu0
      %4401 = vmatprep.mubr.f32.mxu0 0.0
      %4402 = vmatmul.mubr.f32.gmra.mxu0 %v4310
      %v4403 = vpop.f32.mrf.mxu0
      %v4404 = vadd.f32 %v4275, %v4403
      %v4405 = vpop.f32.mrf.mxu0
      %4406 = vmatprep.mubr.f32.mxu0 0.0
      %4407 = vmatmul.mubr.f32.gmra.mxu0 %v4313
      %v4408 = vpop.f32.mrf.mxu0
      %v4409 = vadd.f32 %v4280, %v4408
      %v4410 = vpop.f32.mrf.mxu0
      %4411 = vmatprep.mubr.f32.mxu0 0.0
      %4412 = vmatmul.mubr.f32.gmra.mxu0 %v4316
      %v4413 = vpop.f32.mrf.mxu0
      %v4414 = vadd.f32 %v4285, %v4413
      %v4415 = vpop.f32.mrf.mxu0
      %4416 = vmatprep.mubr.f32.mxu0 0.0
      %4417 = vmatmul.mubr.f32.gmra.mxu0 %v4319
      %v4418 = vpop.f32.mrf.mxu0
      %v4419 = vadd.f32 %v4290, %v4418
      %v4420 = vpop.f32.mrf.mxu0
      %4421 = vmatprep.mubr.f32.mxu0 0.0
      %4422 = vmatmul.mubr.f32.gmra.mxu0 %v4322
      %v4423 = vpop.f32.mrf.mxu0
      %v4424 = vadd.f32 %v4295, %v4423
      %v4425 = vpop.f32.mrf.mxu0
      %4426 = vmatprep.mubr.f32.mxu0 0.0
      %4427 = vmatmul.mubr.f32.gmra.mxu0 %v4325
      %v4428 = vpop.f32.mrf.mxu0
      %v4429 = vadd.f32 %v4300, %v4428
      %v4430 = vpop.f32.mrf.mxu0
      %4431 = vdwg.mxu0
      %v4432 = vld [vmem:[#allocation4 + $0x2] sm:$0xff]
      %v4433 = vld [vmem:[#allocation4 + $0x12] sm:$0xff]
      %v4434 = vld [vmem:[#allocation4 + $0x22] sm:$0xff]
      %v4435 = vld [vmem:[#allocation4 + $0x32] sm:$0xff]
      %v4436 = vld [vmem:[#allocation4 + $0x42] sm:$0xff]
      %v4437 = vld [vmem:[#allocation4 + $0x52] sm:$0xff]
      %v4438 = vld [vmem:[#allocation4 + $0x62] sm:$0xff]
      %v4439 = vld [vmem:[#allocation4 + $0x72] sm:$0xff]
      %s4440 = scalar_lea.vmem %s9, 64
      %v4441 = vld [vmem:[%s4440] sm:$0xff]
      %v4442 = vld [vmem:[%s4440 + $0x8] sm:$0xff]
      %v4443 = vld [vmem:[%s4440 + $0x10] sm:$0xff]
      %v4444 = vld [vmem:[%s4440 + $0x18] sm:$0xff]
      %v4446 = vsel %vm642, %v4432, 0
      %v4449 = vsel %vm642, %v4433, 0
      %v4452 = vsel %vm642, %v4434, 0
      %v4455 = vsel %vm642, %v4435, 0
      %v4458 = vsel %vm642, %v4436, 0
      %v4461 = vsel %vm642, %v4437, 0
      %v4464 = vsel %vm642, %v4438, 0
      %v4467 = vsel %vm642, %v4439, 0
      %4469 = vmatprep.subr.mxu0 0.0
      %4470 = vmatpush1.msra.mxu0 0.0
      %4471 = vmatprep.subr.mxu0 0.0
      %4472 = vmatpush1.msra.mxu0 0.0
      %4473 = vmatprep.subr.mxu0 0.0
      %4474 = vmatpush1.msra.mxu0 0.0
      %4475 = vmatprep.subr.mxu0 0.0
      %4476 = vmatpush1.msra.mxu0 0.0
      %4477 = vmatprep.subr.mxu0 0.0
      %4478 = vmatpush1.msra.mxu0 0.0
      %4479 = vmatprep.subr.mxu0 0.0
      %4480 = vmatpush1.msra.mxu0 0.0
      %4481 = vmatprep.subr.mxu0 0.0
      %4482 = vmatpush1.msra.mxu0 0.0
      %4483 = vmatprep.subr.mxu0 0.0
      %4484 = vmatpush1.msra.mxu0 0.0
      %4485 = vmatprep.subr.mxu0 0.0
      %4486 = vmatpush1.msra.mxu0 0.0
      %4487 = vmatprep.subr.mxu0 0.0
      %4488 = vmatpush1.msra.mxu0 0.0
      %4489 = vmatprep.subr.mxu0 0.0
      %4490 = vmatpush1.msra.mxu0 0.0
      %4491 = vmatprep.subr.mxu0 0.0
      %4492 = vmatpush1.msra.mxu0 0.0
      %4493 = vmatprep.subr.mxu0 0.0
      %4494 = vmatpush1.msra.mxu0 %v4444
      %4495 = vmatprep.subr.mxu0 0.0
      %4496 = vmatpush1.msra.mxu0 %v4443
      %4497 = vmatprep.subr.mxu0 0.0
      %4498 = vmatpush1.msra.mxu0 %v4442
      %4499 = vmatprep.subr.mxu0 0.0
      %4500 = vmatpush1.msra.mxu0 %v4441
      %4501 = vmatprep.subr.mxu0 0.0
      %4502 = vmatpush2.msra.mxu0 0.0
      %4503 = vmatprep.subr.mxu0 0.0
      %4504 = vmatpush2.msra.mxu0 0.0
      %4505 = vmatprep.subr.mxu0 0.0
      %4506 = vmatpush2.msra.mxu0 0.0
      %4507 = vmatprep.subr.mxu0 0.0
      %4508 = vmatpush2.msra.mxu0 0.0
      %4509 = vmatprep.subr.mxu0 0.0
      %4510 = vmatpush2.msra.mxu0 0.0
      %4511 = vmatprep.subr.mxu0 0.0
      %4512 = vmatpush2.msra.mxu0 0.0
      %4513 = vmatprep.subr.mxu0 0.0
      %4514 = vmatpush2.msra.mxu0 0.0
      %4515 = vmatprep.subr.mxu0 0.0
      %4516 = vmatpush2.msra.mxu0 0.0
      %4517 = vmatprep.subr.mxu0 0.0
      %4518 = vmatpush2.msra.mxu0 0.0
      %4519 = vmatprep.subr.mxu0 0.0
      %4520 = vmatpush2.msra.mxu0 0.0
      %4521 = vmatprep.subr.mxu0 0.0
      %4522 = vmatpush2.msra.mxu0 0.0
      %4523 = vmatprep.subr.mxu0 0.0
      %4524 = vmatpush2.msra.mxu0 0.0
      %4525 = vmatprep.subr.mxu0 0.0
      %4526 = vmatpush2.msra.mxu0 0.0
      %4527 = vmatprep.subr.mxu0 0.0
      %4528 = vmatpush2.msra.mxu0 0.0
      %4529 = vmatprep.subr.mxu0 0.0
      %4530 = vmatpush2.msra.mxu0 0.0
      %4531 = vmatprep.subr.mxu0 0.0
      %4532 = vmatpush2.msra.mxu0 0.0
      %4533 = vmatprep.mubr.f32.mxu0 0.0
      %4534 = vmatmul.mubr.f32.gmra.mxu0 %v4446
      %v4535 = vpop.f32.mrf.mxu0
      %v4536 = vadd.f32 0.0, %v4535
      %v4537 = vpop.f32.mrf.mxu0
      %4538 = vmatprep.mubr.f32.mxu0 0.0
      %4539 = vmatmul.mubr.f32.gmra.mxu0 %v4449
      %v4540 = vpop.f32.mrf.mxu0
      %v4541 = vadd.f32 0.0, %v4540
      %v4542 = vpop.f32.mrf.mxu0
      %4543 = vmatprep.mubr.f32.mxu0 0.0
      %4544 = vmatmul.mubr.f32.gmra.mxu0 %v4452
      %v4545 = vpop.f32.mrf.mxu0
      %v4546 = vadd.f32 0.0, %v4545
      %v4547 = vpop.f32.mrf.mxu0
      %4548 = vmatprep.mubr.f32.mxu0 0.0
      %4549 = vmatmul.mubr.f32.gmra.mxu0 %v4455
      %v4550 = vpop.f32.mrf.mxu0
      %v4551 = vadd.f32 0.0, %v4550
      %v4552 = vpop.f32.mrf.mxu0
      %4553 = vmatprep.mubr.f32.mxu0 0.0
      %4554 = vmatmul.mubr.f32.gmra.mxu0 %v4458
      %v4555 = vpop.f32.mrf.mxu0
      %v4556 = vadd.f32 0.0, %v4555
      %v4557 = vpop.f32.mrf.mxu0
      %4558 = vmatprep.mubr.f32.mxu0 0.0
      %4559 = vmatmul.mubr.f32.gmra.mxu0 %v4461
      %v4560 = vpop.f32.mrf.mxu0
      %v4561 = vadd.f32 0.0, %v4560
      %v4562 = vpop.f32.mrf.mxu0
      %4563 = vmatprep.mubr.f32.mxu0 0.0
      %4564 = vmatmul.mubr.f32.gmra.mxu0 %v4464
      %v4565 = vpop.f32.mrf.mxu0
      %v4566 = vadd.f32 0.0, %v4565
      %v4567 = vpop.f32.mrf.mxu0
      %4568 = vmatprep.mubr.f32.mxu0 0.0
      %4569 = vmatmul.mubr.f32.gmra.mxu0 %v4467
      %v4570 = vpop.f32.mrf.mxu0
      %v4571 = vadd.f32 0.0, %v4570
      %v4572 = vpop.f32.mrf.mxu0
      %4573 = vdwg.mxu0
      %v4574 = vadd.f32 %v4394, %v4536
      %v4575 = vadd.f32 %v4399, %v4541
      %v4576 = vadd.f32 %v4404, %v4546
      %v4577 = vadd.f32 %v4409, %v4551
      %v4578 = vadd.f32 %v4414, %v4556
      %v4579 = vadd.f32 %v4419, %v4561
      %v4580 = vadd.f32 %v4424, %v4566
      %v4581 = vadd.f32 %v4429, %v4571
      %v4582 = vld [vmem:[%s4140] sm:$0xff]
      %v4583 = vld [vmem:[%s4140 + $0x10] sm:$0xff]
      %v4584 = vld [vmem:[%s4140 + $0x20] sm:$0xff]
      %v4585 = vld [vmem:[%s4140 + $0x30] sm:$0xff]
      %v4586 = vld [vmem:[%s4140 + $0x40] sm:$0xff]
      %v4587 = vld [vmem:[%s4140 + $0x50] sm:$0xff]
      %v4588 = vld [vmem:[%s4140 + $0x60] sm:$0xff]
      %v4589 = vld [vmem:[%s4140 + $0x70] sm:$0xff]
      %s4590 = scalar_lea.vmem %s9, 96
      %v4591 = vld [vmem:[%s4590] sm:$0xff]
      %v4592 = vld [vmem:[%s4590 + $0x8] sm:$0xff]
      %v4593 = vld [vmem:[%s4590 + $0x10] sm:$0xff]
      %v4594 = vld [vmem:[%s4590 + $0x18] sm:$0xff]
      %v4596 = vsel %vm642, %v4582, 0
      %v4599 = vsel %vm642, %v4583, 0
      %v4602 = vsel %vm642, %v4584, 0
      %v4605 = vsel %vm642, %v4585, 0
      %v4608 = vsel %vm642, %v4586, 0
      %v4611 = vsel %vm642, %v4587, 0
      %v4614 = vsel %vm642, %v4588, 0
      %v4617 = vsel %vm642, %v4589, 0
      %4619 = vmatprep.subr.mxu0 0.0
      %4620 = vmatpush1.msra.mxu0 0.0
      %4621 = vmatprep.subr.mxu0 0.0
      %4622 = vmatpush1.msra.mxu0 0.0
      %4623 = vmatprep.subr.mxu0 0.0
      %4624 = vmatpush1.msra.mxu0 0.0
      %4625 = vmatprep.subr.mxu0 0.0
      %4626 = vmatpush1.msra.mxu0 0.0
      %4627 = vmatprep.subr.mxu0 0.0
      %4628 = vmatpush1.msra.mxu0 0.0
      %4629 = vmatprep.subr.mxu0 0.0
      %4630 = vmatpush1.msra.mxu0 0.0
      %4631 = vmatprep.subr.mxu0 0.0
      %4632 = vmatpush1.msra.mxu0 0.0
      %4633 = vmatprep.subr.mxu0 0.0
      %4634 = vmatpush1.msra.mxu0 0.0
      %4635 = vmatprep.subr.mxu0 0.0
      %4636 = vmatpush1.msra.mxu0 0.0
      %4637 = vmatprep.subr.mxu0 0.0
      %4638 = vmatpush1.msra.mxu0 0.0
      %4639 = vmatprep.subr.mxu0 0.0
      %4640 = vmatpush1.msra.mxu0 0.0
      %4641 = vmatprep.subr.mxu0 0.0
      %4642 = vmatpush1.msra.mxu0 0.0
      %4643 = vmatprep.subr.mxu0 0.0
      %4644 = vmatpush1.msra.mxu0 %v4594
      %4645 = vmatprep.subr.mxu0 0.0
      %4646 = vmatpush1.msra.mxu0 %v4593
      %4647 = vmatprep.subr.mxu0 0.0
      %4648 = vmatpush1.msra.mxu0 %v4592
      %4649 = vmatprep.subr.mxu0 0.0
      %4650 = vmatpush1.msra.mxu0 %v4591
      %4651 = vmatprep.subr.mxu0 0.0
      %4652 = vmatpush2.msra.mxu0 0.0
      %4653 = vmatprep.subr.mxu0 0.0
      %4654 = vmatpush2.msra.mxu0 0.0
      %4655 = vmatprep.subr.mxu0 0.0
      %4656 = vmatpush2.msra.mxu0 0.0
      %4657 = vmatprep.subr.mxu0 0.0
      %4658 = vmatpush2.msra.mxu0 0.0
      %4659 = vmatprep.subr.mxu0 0.0
      %4660 = vmatpush2.msra.mxu0 0.0
      %4661 = vmatprep.subr.mxu0 0.0
      %4662 = vmatpush2.msra.mxu0 0.0
      %4663 = vmatprep.subr.mxu0 0.0
      %4664 = vmatpush2.msra.mxu0 0.0
      %4665 = vmatprep.subr.mxu0 0.0
      %4666 = vmatpush2.msra.mxu0 0.0
      %4667 = vmatprep.subr.mxu0 0.0
      %4668 = vmatpush2.msra.mxu0 0.0
      %4669 = vmatprep.subr.mxu0 0.0
      %4670 = vmatpush2.msra.mxu0 0.0
      %4671 = vmatprep.subr.mxu0 0.0
      %4672 = vmatpush2.msra.mxu0 0.0
      %4673 = vmatprep.subr.mxu0 0.0
      %4674 = vmatpush2.msra.mxu0 0.0
      %4675 = vmatprep.subr.mxu0 0.0
      %4676 = vmatpush2.msra.mxu0 0.0
      %4677 = vmatprep.subr.mxu0 0.0
      %4678 = vmatpush2.msra.mxu0 0.0
      %4679 = vmatprep.subr.mxu0 0.0
      %4680 = vmatpush2.msra.mxu0 0.0
      %4681 = vmatprep.subr.mxu0 0.0
      %4682 = vmatpush2.msra.mxu0 0.0
      %4683 = vmatprep.mubr.f32.mxu0 0.0
      %4684 = vmatmul.mubr.f32.gmra.mxu0 %v4596
      %v4685 = vpop.f32.mrf.mxu0
      %v4686 = vadd.f32 0.0, %v4685
      %v4687 = vpop.f32.mrf.mxu0
      %4688 = vmatprep.mubr.f32.mxu0 0.0
      %4689 = vmatmul.mubr.f32.gmra.mxu0 %v4599
      %v4690 = vpop.f32.mrf.mxu0
      %v4691 = vadd.f32 0.0, %v4690
      %v4692 = vpop.f32.mrf.mxu0
      %4693 = vmatprep.mubr.f32.mxu0 0.0
      %4694 = vmatmul.mubr.f32.gmra.mxu0 %v4602
      %v4695 = vpop.f32.mrf.mxu0
      %v4696 = vadd.f32 0.0, %v4695
      %v4697 = vpop.f32.mrf.mxu0
      %4698 = vmatprep.mubr.f32.mxu0 0.0
      %4699 = vmatmul.mubr.f32.gmra.mxu0 %v4605
      %v4700 = vpop.f32.mrf.mxu0
      %v4701 = vadd.f32 0.0, %v4700
      %v4702 = vpop.f32.mrf.mxu0
      %4703 = vmatprep.mubr.f32.mxu0 0.0
      %4704 = vmatmul.mubr.f32.gmra.mxu0 %v4608
      %v4705 = vpop.f32.mrf.mxu0
      %v4706 = vadd.f32 0.0, %v4705
      %v4707 = vpop.f32.mrf.mxu0
      %4708 = vmatprep.mubr.f32.mxu0 0.0
      %4709 = vmatmul.mubr.f32.gmra.mxu0 %v4611
      %v4710 = vpop.f32.mrf.mxu0
      %v4711 = vadd.f32 0.0, %v4710
      %v4712 = vpop.f32.mrf.mxu0
      %4713 = vmatprep.mubr.f32.mxu0 0.0
      %4714 = vmatmul.mubr.f32.gmra.mxu0 %v4614
      %v4715 = vpop.f32.mrf.mxu0
      %v4716 = vadd.f32 0.0, %v4715
      %v4717 = vpop.f32.mrf.mxu0
      %4718 = vmatprep.mubr.f32.mxu0 0.0
      %4719 = vmatmul.mubr.f32.gmra.mxu0 %v4617
      %v4720 = vpop.f32.mrf.mxu0
      %v4721 = vadd.f32 0.0, %v4720
      %v4722 = vpop.f32.mrf.mxu0
      %4723 = vdwg.mxu0
      %v4724 = vadd.f32 %v4574, %v4686
      %v4725 = vadd.f32 %v4575, %v4691
      %v4726 = vadd.f32 %v4576, %v4696
      %v4727 = vadd.f32 %v4577, %v4701
      %v4728 = vadd.f32 %v4578, %v4706
      %v4729 = vadd.f32 %v4579, %v4711
      %v4730 = vadd.f32 %v4580, %v4716
      %v4731 = vadd.f32 %v4581, %v4721
      %v4732 = vld [vmem:[%s4140 + $0x1] sm:$0xff]
      %v4733 = vld [vmem:[%s4140 + $0x11] sm:$0xff]
      %v4734 = vld [vmem:[%s4140 + $0x21] sm:$0xff]
      %v4735 = vld [vmem:[%s4140 + $0x31] sm:$0xff]
      %v4736 = vld [vmem:[%s4140 + $0x41] sm:$0xff]
      %v4737 = vld [vmem:[%s4140 + $0x51] sm:$0xff]
      %v4738 = vld [vmem:[%s4140 + $0x61] sm:$0xff]
      %v4739 = vld [vmem:[%s4140 + $0x71] sm:$0xff]
      %s4740 = scalar_lea.vmem %s9, 128
      %v4741 = vld [vmem:[%s4740] sm:$0xff]
      %v4742 = vld [vmem:[%s4740 + $0x8] sm:$0xff]
      %v4743 = vld [vmem:[%s4740 + $0x10] sm:$0xff]
      %v4744 = vld [vmem:[%s4740 + $0x18] sm:$0xff]
      %v4746 = vsel %vm642, %v4732, 0
      %v4749 = vsel %vm642, %v4733, 0
      %v4752 = vsel %vm642, %v4734, 0
      %v4755 = vsel %vm642, %v4735, 0
      %v4758 = vsel %vm642, %v4736, 0
      %v4761 = vsel %vm642, %v4737, 0
      %v4764 = vsel %vm642, %v4738, 0
      %v4767 = vsel %vm642, %v4739, 0
      %4769 = vmatprep.subr.mxu0 0.0
      %4770 = vmatpush1.msra.mxu0 0.0
      %4771 = vmatprep.subr.mxu0 0.0
      %4772 = vmatpush1.msra.mxu0 0.0
      %4773 = vmatprep.subr.mxu0 0.0
      %4774 = vmatpush1.msra.mxu0 0.0
      %4775 = vmatprep.subr.mxu0 0.0
      %4776 = vmatpush1.msra.mxu0 0.0
      %4777 = vmatprep.subr.mxu0 0.0
      %4778 = vmatpush1.msra.mxu0 0.0
      %4779 = vmatprep.subr.mxu0 0.0
      %4780 = vmatpush1.msra.mxu0 0.0
      %4781 = vmatprep.subr.mxu0 0.0
      %4782 = vmatpush1.msra.mxu0 0.0
      %4783 = vmatprep.subr.mxu0 0.0
      %4784 = vmatpush1.msra.mxu0 0.0
      %4785 = vmatprep.subr.mxu0 0.0
      %4786 = vmatpush1.msra.mxu0 0.0
      %4787 = vmatprep.subr.mxu0 0.0
      %4788 = vmatpush1.msra.mxu0 0.0
      %4789 = vmatprep.subr.mxu0 0.0
      %4790 = vmatpush1.msra.mxu0 0.0
      %4791 = vmatprep.subr.mxu0 0.0
      %4792 = vmatpush1.msra.mxu0 0.0
      %4793 = vmatprep.subr.mxu0 0.0
      %4794 = vmatpush1.msra.mxu0 %v4744
      %4795 = vmatprep.subr.mxu0 0.0
      %4796 = vmatpush1.msra.mxu0 %v4743
      %4797 = vmatprep.subr.mxu0 0.0
      %4798 = vmatpush1.msra.mxu0 %v4742
      %4799 = vmatprep.subr.mxu0 0.0
      %4800 = vmatpush1.msra.mxu0 %v4741
      %4801 = vmatprep.subr.mxu0 0.0
      %4802 = vmatpush2.msra.mxu0 0.0
      %4803 = vmatprep.subr.mxu0 0.0
      %4804 = vmatpush2.msra.mxu0 0.0
      %4805 = vmatprep.subr.mxu0 0.0
      %4806 = vmatpush2.msra.mxu0 0.0
      %4807 = vmatprep.subr.mxu0 0.0
      %4808 = vmatpush2.msra.mxu0 0.0
      %4809 = vmatprep.subr.mxu0 0.0
      %4810 = vmatpush2.msra.mxu0 0.0
      %4811 = vmatprep.subr.mxu0 0.0
      %4812 = vmatpush2.msra.mxu0 0.0
      %4813 = vmatprep.subr.mxu0 0.0
      %4814 = vmatpush2.msra.mxu0 0.0
      %4815 = vmatprep.subr.mxu0 0.0
      %4816 = vmatpush2.msra.mxu0 0.0
      %4817 = vmatprep.subr.mxu0 0.0
      %4818 = vmatpush2.msra.mxu0 0.0
      %4819 = vmatprep.subr.mxu0 0.0
      %4820 = vmatpush2.msra.mxu0 0.0
      %4821 = vmatprep.subr.mxu0 0.0
      %4822 = vmatpush2.msra.mxu0 0.0
      %4823 = vmatprep.subr.mxu0 0.0
      %4824 = vmatpush2.msra.mxu0 0.0
      %4825 = vmatprep.subr.mxu0 0.0
      %4826 = vmatpush2.msra.mxu0 0.0
      %4827 = vmatprep.subr.mxu0 0.0
      %4828 = vmatpush2.msra.mxu0 0.0
      %4829 = vmatprep.subr.mxu0 0.0
      %4830 = vmatpush2.msra.mxu0 0.0
      %4831 = vmatprep.subr.mxu0 0.0
      %4832 = vmatpush2.msra.mxu0 0.0
      %4833 = vmatprep.mubr.f32.mxu0 0.0
      %4834 = vmatmul.mubr.f32.gmra.mxu0 %v4746
      %v4835 = vpop.f32.mrf.mxu0
      %v4836 = vadd.f32 0.0, %v4835
      %v4837 = vpop.f32.mrf.mxu0
      %4838 = vmatprep.mubr.f32.mxu0 0.0
      %4839 = vmatmul.mubr.f32.gmra.mxu0 %v4749
      %v4840 = vpop.f32.mrf.mxu0
      %v4841 = vadd.f32 0.0, %v4840
      %v4842 = vpop.f32.mrf.mxu0
      %4843 = vmatprep.mubr.f32.mxu0 0.0
      %4844 = vmatmul.mubr.f32.gmra.mxu0 %v4752
      %v4845 = vpop.f32.mrf.mxu0
      %v4846 = vadd.f32 0.0, %v4845
      %v4847 = vpop.f32.mrf.mxu0
      %4848 = vmatprep.mubr.f32.mxu0 0.0
      %4849 = vmatmul.mubr.f32.gmra.mxu0 %v4755
      %v4850 = vpop.f32.mrf.mxu0
      %v4851 = vadd.f32 0.0, %v4850
      %v4852 = vpop.f32.mrf.mxu0
      %4853 = vmatprep.mubr.f32.mxu0 0.0
      %4854 = vmatmul.mubr.f32.gmra.mxu0 %v4758
      %v4855 = vpop.f32.mrf.mxu0
      %v4856 = vadd.f32 0.0, %v4855
      %v4857 = vpop.f32.mrf.mxu0
      %4858 = vmatprep.mubr.f32.mxu0 0.0
      %4859 = vmatmul.mubr.f32.gmra.mxu0 %v4761
      %v4860 = vpop.f32.mrf.mxu0
      %v4861 = vadd.f32 0.0, %v4860
      %v4862 = vpop.f32.mrf.mxu0
      %4863 = vmatprep.mubr.f32.mxu0 0.0
      %4864 = vmatmul.mubr.f32.gmra.mxu0 %v4764
      %v4865 = vpop.f32.mrf.mxu0
      %v4866 = vadd.f32 0.0, %v4865
      %v4867 = vpop.f32.mrf.mxu0
      %4868 = vmatprep.mubr.f32.mxu0 0.0
      %4869 = vmatmul.mubr.f32.gmra.mxu0 %v4767
      %v4870 = vpop.f32.mrf.mxu0
      %v4871 = vadd.f32 0.0, %v4870
      %v4872 = vpop.f32.mrf.mxu0
      %4873 = vdwg.mxu0
      %v4874 = vadd.f32 %v4724, %v4836
      %v4875 = vadd.f32 %v4725, %v4841
      %v4876 = vadd.f32 %v4726, %v4846
      %v4877 = vadd.f32 %v4727, %v4851
      %v4878 = vadd.f32 %v4728, %v4856
      %v4879 = vadd.f32 %v4729, %v4861
      %v4880 = vadd.f32 %v4730, %v4866
      %v4881 = vadd.f32 %v4731, %v4871
      %v4882 = vld [vmem:[%s4140 + $0x2] sm:$0xff]
      %v4883 = vld [vmem:[%s4140 + $0x12] sm:$0xff]
      %v4884 = vld [vmem:[%s4140 + $0x22] sm:$0xff]
      %v4885 = vld [vmem:[%s4140 + $0x32] sm:$0xff]
      %v4886 = vld [vmem:[%s4140 + $0x42] sm:$0xff]
      %v4887 = vld [vmem:[%s4140 + $0x52] sm:$0xff]
      %v4888 = vld [vmem:[%s4140 + $0x62] sm:$0xff]
      %v4889 = vld [vmem:[%s4140 + $0x72] sm:$0xff]
      %s4890 = scalar_lea.vmem %s9, 160
      %v4891 = vld [vmem:[%s4890] sm:$0xff]
      %v4892 = vld [vmem:[%s4890 + $0x8] sm:$0xff]
      %v4893 = vld [vmem:[%s4890 + $0x10] sm:$0xff]
      %v4894 = vld [vmem:[%s4890 + $0x18] sm:$0xff]
      %v4896 = vsel %vm642, %v4882, 0
      %v4899 = vsel %vm642, %v4883, 0
      %v4902 = vsel %vm642, %v4884, 0
      %v4905 = vsel %vm642, %v4885, 0
      %v4908 = vsel %vm642, %v4886, 0
      %v4911 = vsel %vm642, %v4887, 0
      %v4914 = vsel %vm642, %v4888, 0
      %v4917 = vsel %vm642, %v4889, 0
      %4919 = vmatprep.subr.mxu0 0.0
      %4920 = vmatpush1.msra.mxu0 0.0
      %4921 = vmatprep.subr.mxu0 0.0
      %4922 = vmatpush1.msra.mxu0 0.0
      %4923 = vmatprep.subr.mxu0 0.0
      %4924 = vmatpush1.msra.mxu0 0.0
      %4925 = vmatprep.subr.mxu0 0.0
      %4926 = vmatpush1.msra.mxu0 0.0
      %4927 = vmatprep.subr.mxu0 0.0
      %4928 = vmatpush1.msra.mxu0 0.0
      %4929 = vmatprep.subr.mxu0 0.0
      %4930 = vmatpush1.msra.mxu0 0.0
      %4931 = vmatprep.subr.mxu0 0.0
      %4932 = vmatpush1.msra.mxu0 0.0
      %4933 = vmatprep.subr.mxu0 0.0
      %4934 = vmatpush1.msra.mxu0 0.0
      %4935 = vmatprep.subr.mxu0 0.0
      %4936 = vmatpush1.msra.mxu0 0.0
      %4937 = vmatprep.subr.mxu0 0.0
      %4938 = vmatpush1.msra.mxu0 0.0
      %4939 = vmatprep.subr.mxu0 0.0
      %4940 = vmatpush1.msra.mxu0 0.0
      %4941 = vmatprep.subr.mxu0 0.0
      %4942 = vmatpush1.msra.mxu0 0.0
      %4943 = vmatprep.subr.mxu0 0.0
      %4944 = vmatpush1.msra.mxu0 %v4894
      %4945 = vmatprep.subr.mxu0 0.0
      %4946 = vmatpush1.msra.mxu0 %v4893
      %4947 = vmatprep.subr.mxu0 0.0
      %4948 = vmatpush1.msra.mxu0 %v4892
      %4949 = vmatprep.subr.mxu0 0.0
      %4950 = vmatpush1.msra.mxu0 %v4891
      %4951 = vmatprep.subr.mxu0 0.0
      %4952 = vmatpush2.msra.mxu0 0.0
      %4953 = vmatprep.subr.mxu0 0.0
      %4954 = vmatpush2.msra.mxu0 0.0
      %4955 = vmatprep.subr.mxu0 0.0
      %4956 = vmatpush2.msra.mxu0 0.0
      %4957 = vmatprep.subr.mxu0 0.0
      %4958 = vmatpush2.msra.mxu0 0.0
      %4959 = vmatprep.subr.mxu0 0.0
      %4960 = vmatpush2.msra.mxu0 0.0
      %4961 = vmatprep.subr.mxu0 0.0
      %4962 = vmatpush2.msra.mxu0 0.0
      %4963 = vmatprep.subr.mxu0 0.0
      %4964 = vmatpush2.msra.mxu0 0.0
      %4965 = vmatprep.subr.mxu0 0.0
      %4966 = vmatpush2.msra.mxu0 0.0
      %4967 = vmatprep.subr.mxu0 0.0
      %4968 = vmatpush2.msra.mxu0 0.0
      %4969 = vmatprep.subr.mxu0 0.0
      %4970 = vmatpush2.msra.mxu0 0.0
      %4971 = vmatprep.subr.mxu0 0.0
      %4972 = vmatpush2.msra.mxu0 0.0
      %4973 = vmatprep.subr.mxu0 0.0
      %4974 = vmatpush2.msra.mxu0 0.0
      %4975 = vmatprep.subr.mxu0 0.0
      %4976 = vmatpush2.msra.mxu0 0.0
      %4977 = vmatprep.subr.mxu0 0.0
      %4978 = vmatpush2.msra.mxu0 0.0
      %4979 = vmatprep.subr.mxu0 0.0
      %4980 = vmatpush2.msra.mxu0 0.0
      %4981 = vmatprep.subr.mxu0 0.0
      %4982 = vmatpush2.msra.mxu0 0.0
      %4983 = vmatprep.mubr.f32.mxu0 0.0
      %4984 = vmatmul.mubr.f32.gmra.mxu0 %v4896
      %v4985 = vpop.f32.mrf.mxu0
      %v4986 = vadd.f32 0.0, %v4985
      %v4987 = vpop.f32.mrf.mxu0
      %4988 = vmatprep.mubr.f32.mxu0 0.0
      %4989 = vmatmul.mubr.f32.gmra.mxu0 %v4899
      %v4990 = vpop.f32.mrf.mxu0
      %v4991 = vadd.f32 0.0, %v4990
      %v4992 = vpop.f32.mrf.mxu0
      %4993 = vmatprep.mubr.f32.mxu0 0.0
      %4994 = vmatmul.mubr.f32.gmra.mxu0 %v4902
      %v4995 = vpop.f32.mrf.mxu0
      %v4996 = vadd.f32 0.0, %v4995
      %v4997 = vpop.f32.mrf.mxu0
      %4998 = vmatprep.mubr.f32.mxu0 0.0
      %4999 = vmatmul.mubr.f32.gmra.mxu0 %v4905
      %v5000 = vpop.f32.mrf.mxu0
      %v5001 = vadd.f32 0.0, %v5000
      %v5002 = vpop.f32.mrf.mxu0
      %5003 = vmatprep.mubr.f32.mxu0 0.0
      %5004 = vmatmul.mubr.f32.gmra.mxu0 %v4908
      %v5005 = vpop.f32.mrf.mxu0
      %v5006 = vadd.f32 0.0, %v5005
      %v5007 = vpop.f32.mrf.mxu0
      %5008 = vmatprep.mubr.f32.mxu0 0.0
      %5009 = vmatmul.mubr.f32.gmra.mxu0 %v4911
      %v5010 = vpop.f32.mrf.mxu0
      %v5011 = vadd.f32 0.0, %v5010
      %v5012 = vpop.f32.mrf.mxu0
      %5013 = vmatprep.mubr.f32.mxu0 0.0
      %5014 = vmatmul.mubr.f32.gmra.mxu0 %v4914
      %v5015 = vpop.f32.mrf.mxu0
      %v5016 = vadd.f32 0.0, %v5015
      %v5017 = vpop.f32.mrf.mxu0
      %5018 = vmatprep.mubr.f32.mxu0 0.0
      %5019 = vmatmul.mubr.f32.gmra.mxu0 %v4917
      %v5020 = vpop.f32.mrf.mxu0
      %v5021 = vadd.f32 0.0, %v5020
      %v5022 = vpop.f32.mrf.mxu0
      %5023 = vdwg.mxu0
      %v5024 = vadd.f32 %v4874, %v4986
      %v5025 = vadd.f32 %v4875, %v4991
      %v5026 = vadd.f32 %v4876, %v4996
      %v5027 = vadd.f32 %v4877, %v5001
      %v5028 = vadd.f32 %v4878, %v5006
      %v5029 = vadd.f32 %v4879, %v5011
      %v5030 = vadd.f32 %v4880, %v5016
      %v5031 = vadd.f32 %v4881, %v5021
      %s5032 = scalar_lea.vmem [#allocation4], 32
      %v5033 = vld [vmem:[%s5032] sm:$0xff]
      %v5034 = vld [vmem:[%s5032 + $0x10] sm:$0xff]
      %v5035 = vld [vmem:[%s5032 + $0x20] sm:$0xff]
      %v5036 = vld [vmem:[%s5032 + $0x30] sm:$0xff]
      %v5037 = vld [vmem:[%s5032 + $0x40] sm:$0xff]
      %v5038 = vld [vmem:[%s5032 + $0x50] sm:$0xff]
      %v5039 = vld [vmem:[%s5032 + $0x60] sm:$0xff]
      %v5040 = vld [vmem:[%s5032 + $0x70] sm:$0xff]
      %s5041 = scalar_lea.vmem %s9, 192
      %v5042 = vld [vmem:[%s5041] sm:$0xff]
      %v5043 = vld [vmem:[%s5041 + $0x8] sm:$0xff]
      %v5044 = vld [vmem:[%s5041 + $0x10] sm:$0xff]
      %v5045 = vld [vmem:[%s5041 + $0x18] sm:$0xff]
      %v5047 = vsel %vm642, %v5033, 0
      %v5050 = vsel %vm642, %v5034, 0
      %v5053 = vsel %vm642, %v5035, 0
      %v5056 = vsel %vm642, %v5036, 0
      %v5059 = vsel %vm642, %v5037, 0
      %v5062 = vsel %vm642, %v5038, 0
      %v5065 = vsel %vm642, %v5039, 0
      %v5068 = vsel %vm642, %v5040, 0
      %5070 = vmatprep.subr.mxu0 0.0
      %5071 = vmatpush1.msra.mxu0 0.0
      %5072 = vmatprep.subr.mxu0 0.0
      %5073 = vmatpush1.msra.mxu0 0.0
      %5074 = vmatprep.subr.mxu0 0.0
      %5075 = vmatpush1.msra.mxu0 0.0
      %5076 = vmatprep.subr.mxu0 0.0
      %5077 = vmatpush1.msra.mxu0 0.0
      %5078 = vmatprep.subr.mxu0 0.0
      %5079 = vmatpush1.msra.mxu0 0.0
      %5080 = vmatprep.subr.mxu0 0.0
      %5081 = vmatpush1.msra.mxu0 0.0
      %5082 = vmatprep.subr.mxu0 0.0
      %5083 = vmatpush1.msra.mxu0 0.0
      %5084 = vmatprep.subr.mxu0 0.0
      %5085 = vmatpush1.msra.mxu0 0.0
      %5086 = vmatprep.subr.mxu0 0.0
      %5087 = vmatpush1.msra.mxu0 0.0
      %5088 = vmatprep.subr.mxu0 0.0
      %5089 = vmatpush1.msra.mxu0 0.0
      %5090 = vmatprep.subr.mxu0 0.0
      %5091 = vmatpush1.msra.mxu0 0.0
      %5092 = vmatprep.subr.mxu0 0.0
      %5093 = vmatpush1.msra.mxu0 0.0
      %5094 = vmatprep.subr.mxu0 0.0
      %5095 = vmatpush1.msra.mxu0 %v5045
      %5096 = vmatprep.subr.mxu0 0.0
      %5097 = vmatpush1.msra.mxu0 %v5044
      %5098 = vmatprep.subr.mxu0 0.0
      %5099 = vmatpush1.msra.mxu0 %v5043
      %5100 = vmatprep.subr.mxu0 0.0
      %5101 = vmatpush1.msra.mxu0 %v5042
      %5102 = vmatprep.subr.mxu0 0.0
      %5103 = vmatpush2.msra.mxu0 0.0
      %5104 = vmatprep.subr.mxu0 0.0
      %5105 = vmatpush2.msra.mxu0 0.0
      %5106 = vmatprep.subr.mxu0 0.0
      %5107 = vmatpush2.msra.mxu0 0.0
      %5108 = vmatprep.subr.mxu0 0.0
      %5109 = vmatpush2.msra.mxu0 0.0
      %5110 = vmatprep.subr.mxu0 0.0
      %5111 = vmatpush2.msra.mxu0 0.0
      %5112 = vmatprep.subr.mxu0 0.0
      %5113 = vmatpush2.msra.mxu0 0.0
      %5114 = vmatprep.subr.mxu0 0.0
      %5115 = vmatpush2.msra.mxu0 0.0
      %5116 = vmatprep.subr.mxu0 0.0
      %5117 = vmatpush2.msra.mxu0 0.0
      %5118 = vmatprep.subr.mxu0 0.0
      %5119 = vmatpush2.msra.mxu0 0.0
      %5120 = vmatprep.subr.mxu0 0.0
      %5121 = vmatpush2.msra.mxu0 0.0
      %5122 = vmatprep.subr.mxu0 0.0
      %5123 = vmatpush2.msra.mxu0 0.0
      %5124 = vmatprep.subr.mxu0 0.0
      %5125 = vmatpush2.msra.mxu0 0.0
      %5126 = vmatprep.subr.mxu0 0.0
      %5127 = vmatpush2.msra.mxu0 0.0
      %5128 = vmatprep.subr.mxu0 0.0
      %5129 = vmatpush2.msra.mxu0 0.0
      %5130 = vmatprep.subr.mxu0 0.0
      %5131 = vmatpush2.msra.mxu0 0.0
      %5132 = vmatprep.subr.mxu0 0.0
      %5133 = vmatpush2.msra.mxu0 0.0
      %5134 = vmatprep.mubr.f32.mxu0 0.0
      %5135 = vmatmul.mubr.f32.gmra.mxu0 %v5047
      %v5136 = vpop.f32.mrf.mxu0
      %v5137 = vadd.f32 0.0, %v5136
      %v5138 = vpop.f32.mrf.mxu0
      %5139 = vmatprep.mubr.f32.mxu0 0.0
      %5140 = vmatmul.mubr.f32.gmra.mxu0 %v5050
      %v5141 = vpop.f32.mrf.mxu0
      %v5142 = vadd.f32 0.0, %v5141
      %v5143 = vpop.f32.mrf.mxu0
      %5144 = vmatprep.mubr.f32.mxu0 0.0
      %5145 = vmatmul.mubr.f32.gmra.mxu0 %v5053
      %v5146 = vpop.f32.mrf.mxu0
      %v5147 = vadd.f32 0.0, %v5146
      %v5148 = vpop.f32.mrf.mxu0
      %5149 = vmatprep.mubr.f32.mxu0 0.0
      %5150 = vmatmul.mubr.f32.gmra.mxu0 %v5056
      %v5151 = vpop.f32.mrf.mxu0
      %v5152 = vadd.f32 0.0, %v5151
      %v5153 = vpop.f32.mrf.mxu0
      %5154 = vmatprep.mubr.f32.mxu0 0.0
      %5155 = vmatmul.mubr.f32.gmra.mxu0 %v5059
      %v5156 = vpop.f32.mrf.mxu0
      %v5157 = vadd.f32 0.0, %v5156
      %v5158 = vpop.f32.mrf.mxu0
      %5159 = vmatprep.mubr.f32.mxu0 0.0
      %5160 = vmatmul.mubr.f32.gmra.mxu0 %v5062
      %v5161 = vpop.f32.mrf.mxu0
      %v5162 = vadd.f32 0.0, %v5161
      %v5163 = vpop.f32.mrf.mxu0
      %5164 = vmatprep.mubr.f32.mxu0 0.0
      %5165 = vmatmul.mubr.f32.gmra.mxu0 %v5065
      %v5166 = vpop.f32.mrf.mxu0
      %v5167 = vadd.f32 0.0, %v5166
      %v5168 = vpop.f32.mrf.mxu0
      %5169 = vmatprep.mubr.f32.mxu0 0.0
      %5170 = vmatmul.mubr.f32.gmra.mxu0 %v5068
      %v5171 = vpop.f32.mrf.mxu0
      %v5172 = vadd.f32 0.0, %v5171
      %v5173 = vpop.f32.mrf.mxu0
      %5174 = vdwg.mxu0
      %v5175 = vadd.f32 %v5024, %v5137
      %v5176 = vadd.f32 %v5025, %v5142
      %v5177 = vadd.f32 %v5026, %v5147
      %v5178 = vadd.f32 %v5027, %v5152
      %v5179 = vadd.f32 %v5028, %v5157
      %v5180 = vadd.f32 %v5029, %v5162
      %v5181 = vadd.f32 %v5030, %v5167
      %v5182 = vadd.f32 %v5031, %v5172
      %v5183 = vld [vmem:[%s5032 + $0x1] sm:$0xff]
      %v5184 = vld [vmem:[%s5032 + $0x11] sm:$0xff]
      %v5185 = vld [vmem:[%s5032 + $0x21] sm:$0xff]
      %v5186 = vld [vmem:[%s5032 + $0x31] sm:$0xff]
      %v5187 = vld [vmem:[%s5032 + $0x41] sm:$0xff]
      %v5188 = vld [vmem:[%s5032 + $0x51] sm:$0xff]
      %v5189 = vld [vmem:[%s5032 + $0x61] sm:$0xff]
      %v5190 = vld [vmem:[%s5032 + $0x71] sm:$0xff]
      %s5191 = scalar_lea.vmem %s9, 224
      %v5192 = vld [vmem:[%s5191] sm:$0xff]
      %v5193 = vld [vmem:[%s5191 + $0x8] sm:$0xff]
      %v5194 = vld [vmem:[%s5191 + $0x10] sm:$0xff]
      %v5195 = vld [vmem:[%s5191 + $0x18] sm:$0xff]
      %v5197 = vsel %vm642, %v5183, 0
      %v5200 = vsel %vm642, %v5184, 0
      %v5203 = vsel %vm642, %v5185, 0
      %v5206 = vsel %vm642, %v5186, 0
      %v5209 = vsel %vm642, %v5187, 0
      %v5212 = vsel %vm642, %v5188, 0
      %v5215 = vsel %vm642, %v5189, 0
      %v5218 = vsel %vm642, %v5190, 0
      %5220 = vmatprep.subr.mxu0 0.0
      %5221 = vmatpush1.msra.mxu0 0.0
      %5222 = vmatprep.subr.mxu0 0.0
      %5223 = vmatpush1.msra.mxu0 0.0
      %5224 = vmatprep.subr.mxu0 0.0
      %5225 = vmatpush1.msra.mxu0 0.0
      %5226 = vmatprep.subr.mxu0 0.0
      %5227 = vmatpush1.msra.mxu0 0.0
      %5228 = vmatprep.subr.mxu0 0.0
      %5229 = vmatpush1.msra.mxu0 0.0
      %5230 = vmatprep.subr.mxu0 0.0
      %5231 = vmatpush1.msra.mxu0 0.0
      %5232 = vmatprep.subr.mxu0 0.0
      %5233 = vmatpush1.msra.mxu0 0.0
      %5234 = vmatprep.subr.mxu0 0.0
      %5235 = vmatpush1.msra.mxu0 0.0
      %5236 = vmatprep.subr.mxu0 0.0
      %5237 = vmatpush1.msra.mxu0 0.0
      %5238 = vmatprep.subr.mxu0 0.0
      %5239 = vmatpush1.msra.mxu0 0.0
      %5240 = vmatprep.subr.mxu0 0.0
      %5241 = vmatpush1.msra.mxu0 0.0
      %5242 = vmatprep.subr.mxu0 0.0
      %5243 = vmatpush1.msra.mxu0 0.0
      %5244 = vmatprep.subr.mxu0 0.0
      %5245 = vmatpush1.msra.mxu0 %v5195
      %5246 = vmatprep.subr.mxu0 0.0
      %5247 = vmatpush1.msra.mxu0 %v5194
      %5248 = vmatprep.subr.mxu0 0.0
      %5249 = vmatpush1.msra.mxu0 %v5193
      %5250 = vmatprep.subr.mxu0 0.0
      %5251 = vmatpush1.msra.mxu0 %v5192
      %5252 = vmatprep.subr.mxu0 0.0
      %5253 = vmatpush2.msra.mxu0 0.0
      %5254 = vmatprep.subr.mxu0 0.0
      %5255 = vmatpush2.msra.mxu0 0.0
      %5256 = vmatprep.subr.mxu0 0.0
      %5257 = vmatpush2.msra.mxu0 0.0
      %5258 = vmatprep.subr.mxu0 0.0
      %5259 = vmatpush2.msra.mxu0 0.0
      %5260 = vmatprep.subr.mxu0 0.0
      %5261 = vmatpush2.msra.mxu0 0.0
      %5262 = vmatprep.subr.mxu0 0.0
      %5263 = vmatpush2.msra.mxu0 0.0
      %5264 = vmatprep.subr.mxu0 0.0
      %5265 = vmatpush2.msra.mxu0 0.0
      %5266 = vmatprep.subr.mxu0 0.0
      %5267 = vmatpush2.msra.mxu0 0.0
      %5268 = vmatprep.subr.mxu0 0.0
      %5269 = vmatpush2.msra.mxu0 0.0
      %5270 = vmatprep.subr.mxu0 0.0
      %5271 = vmatpush2.msra.mxu0 0.0
      %5272 = vmatprep.subr.mxu0 0.0
      %5273 = vmatpush2.msra.mxu0 0.0
      %5274 = vmatprep.subr.mxu0 0.0
      %5275 = vmatpush2.msra.mxu0 0.0
      %5276 = vmatprep.subr.mxu0 0.0
      %5277 = vmatpush2.msra.mxu0 0.0
      %5278 = vmatprep.subr.mxu0 0.0
      %5279 = vmatpush2.msra.mxu0 0.0
      %5280 = vmatprep.subr.mxu0 0.0
      %5281 = vmatpush2.msra.mxu0 0.0
      %5282 = vmatprep.subr.mxu0 0.0
      %5283 = vmatpush2.msra.mxu0 0.0
      %5284 = vmatprep.mubr.f32.mxu0 0.0
      %5285 = vmatmul.mubr.f32.gmra.mxu0 %v5197
      %v5286 = vpop.f32.mrf.mxu0
      %v5287 = vadd.f32 0.0, %v5286
      %v5288 = vpop.f32.mrf.mxu0
      %5289 = vmatprep.mubr.f32.mxu0 0.0
      %5290 = vmatmul.mubr.f32.gmra.mxu0 %v5200
      %v5291 = vpop.f32.mrf.mxu0
      %v5292 = vadd.f32 0.0, %v5291
      %v5293 = vpop.f32.mrf.mxu0
      %5294 = vmatprep.mubr.f32.mxu0 0.0
      %5295 = vmatmul.mubr.f32.gmra.mxu0 %v5203
      %v5296 = vpop.f32.mrf.mxu0
      %v5297 = vadd.f32 0.0, %v5296
      %v5298 = vpop.f32.mrf.mxu0
      %5299 = vmatprep.mubr.f32.mxu0 0.0
      %5300 = vmatmul.mubr.f32.gmra.mxu0 %v5206
      %v5301 = vpop.f32.mrf.mxu0
      %v5302 = vadd.f32 0.0, %v5301
      %v5303 = vpop.f32.mrf.mxu0
      %5304 = vmatprep.mubr.f32.mxu0 0.0
      %5305 = vmatmul.mubr.f32.gmra.mxu0 %v5209
      %v5306 = vpop.f32.mrf.mxu0
      %v5307 = vadd.f32 0.0, %v5306
      %v5308 = vpop.f32.mrf.mxu0
      %5309 = vmatprep.mubr.f32.mxu0 0.0
      %5310 = vmatmul.mubr.f32.gmra.mxu0 %v5212
      %v5311 = vpop.f32.mrf.mxu0
      %v5312 = vadd.f32 0.0, %v5311
      %v5313 = vpop.f32.mrf.mxu0
      %5314 = vmatprep.mubr.f32.mxu0 0.0
      %5315 = vmatmul.mubr.f32.gmra.mxu0 %v5215
      %v5316 = vpop.f32.mrf.mxu0
      %v5317 = vadd.f32 0.0, %v5316
      %v5318 = vpop.f32.mrf.mxu0
      %5319 = vmatprep.mubr.f32.mxu0 0.0
      %5320 = vmatmul.mubr.f32.gmra.mxu0 %v5218
      %v5321 = vpop.f32.mrf.mxu0
      %v5322 = vadd.f32 0.0, %v5321
      %v5323 = vpop.f32.mrf.mxu0
      %5324 = vdwg.mxu0
      %v5325 = vadd.f32 %v5175, %v5287
      %v5326 = vadd.f32 %v5176, %v5292
      %v5327 = vadd.f32 %v5177, %v5297
      %v5328 = vadd.f32 %v5178, %v5302
      %v5329 = vadd.f32 %v5179, %v5307
      %v5330 = vadd.f32 %v5180, %v5312
      %v5331 = vadd.f32 %v5181, %v5317
      %v5332 = vadd.f32 %v5182, %v5322
      %v5333 = vld [vmem:[%s5032 + $0x2] sm:$0xff]
      %v5334 = vld [vmem:[%s5032 + $0x12] sm:$0xff]
      %v5335 = vld [vmem:[%s5032 + $0x22] sm:$0xff]
      %v5336 = vld [vmem:[%s5032 + $0x32] sm:$0xff]
      %v5337 = vld [vmem:[%s5032 + $0x42] sm:$0xff]
      %v5338 = vld [vmem:[%s5032 + $0x52] sm:$0xff]
      %v5339 = vld [vmem:[%s5032 + $0x62] sm:$0xff]
      %v5340 = vld [vmem:[%s5032 + $0x72] sm:$0xff]
      %s5341 = scalar_lea.vmem %s9, 256
      %v5342 = vld [vmem:[%s5341] sm:$0xff]
      %v5343 = vld [vmem:[%s5341 + $0x8] sm:$0xff]
      %v5344 = vld [vmem:[%s5341 + $0x10] sm:$0xff]
      %v5345 = vld [vmem:[%s5341 + $0x18] sm:$0xff]
      %v5347 = vsel %vm642, %v5333, 0
      %v5350 = vsel %vm642, %v5334, 0
      %v5353 = vsel %vm642, %v5335, 0
      %v5356 = vsel %vm642, %v5336, 0
      %v5359 = vsel %vm642, %v5337, 0
      %v5362 = vsel %vm642, %v5338, 0
      %v5365 = vsel %vm642, %v5339, 0
      %v5368 = vsel %vm642, %v5340, 0
      %5370 = vmatprep.subr.mxu0 0.0
      %5371 = vmatpush1.msra.mxu0 0.0
      %5372 = vmatprep.subr.mxu0 0.0
      %5373 = vmatpush1.msra.mxu0 0.0
      %5374 = vmatprep.subr.mxu0 0.0
      %5375 = vmatpush1.msra.mxu0 0.0
      %5376 = vmatprep.subr.mxu0 0.0
      %5377 = vmatpush1.msra.mxu0 0.0
      %5378 = vmatprep.subr.mxu0 0.0
      %5379 = vmatpush1.msra.mxu0 0.0
      %5380 = vmatprep.subr.mxu0 0.0
      %5381 = vmatpush1.msra.mxu0 0.0
      %5382 = vmatprep.subr.mxu0 0.0
      %5383 = vmatpush1.msra.mxu0 0.0
      %5384 = vmatprep.subr.mxu0 0.0
      %5385 = vmatpush1.msra.mxu0 0.0
      %5386 = vmatprep.subr.mxu0 0.0
      %5387 = vmatpush1.msra.mxu0 0.0
      %5388 = vmatprep.subr.mxu0 0.0
      %5389 = vmatpush1.msra.mxu0 0.0
      %5390 = vmatprep.subr.mxu0 0.0
      %5391 = vmatpush1.msra.mxu0 0.0
      %5392 = vmatprep.subr.mxu0 0.0
      %5393 = vmatpush1.msra.mxu0 0.0
      %5394 = vmatprep.subr.mxu0 0.0
      %5395 = vmatpush1.msra.mxu0 %v5345
      %5396 = vmatprep.subr.mxu0 0.0
      %5397 = vmatpush1.msra.mxu0 %v5344
      %5398 = vmatprep.subr.mxu0 0.0
      %5399 = vmatpush1.msra.mxu0 %v5343
      %5400 = vmatprep.subr.mxu0 0.0
      %5401 = vmatpush1.msra.mxu0 %v5342
      %5402 = vmatprep.subr.mxu0 0.0
      %5403 = vmatpush2.msra.mxu0 0.0
      %5404 = vmatprep.subr.mxu0 0.0
      %5405 = vmatpush2.msra.mxu0 0.0
      %5406 = vmatprep.subr.mxu0 0.0
      %5407 = vmatpush2.msra.mxu0 0.0
      %5408 = vmatprep.subr.mxu0 0.0
      %5409 = vmatpush2.msra.mxu0 0.0
      %5410 = vmatprep.subr.mxu0 0.0
      %5411 = vmatpush2.msra.mxu0 0.0
      %5412 = vmatprep.subr.mxu0 0.0
      %5413 = vmatpush2.msra.mxu0 0.0
      %5414 = vmatprep.subr.mxu0 0.0
      %5415 = vmatpush2.msra.mxu0 0.0
      %5416 = vmatprep.subr.mxu0 0.0
      %5417 = vmatpush2.msra.mxu0 0.0
      %5418 = vmatprep.subr.mxu0 0.0
      %5419 = vmatpush2.msra.mxu0 0.0
      %5420 = vmatprep.subr.mxu0 0.0
      %5421 = vmatpush2.msra.mxu0 0.0
      %5422 = vmatprep.subr.mxu0 0.0
      %5423 = vmatpush2.msra.mxu0 0.0
      %5424 = vmatprep.subr.mxu0 0.0
      %5425 = vmatpush2.msra.mxu0 0.0
      %5426 = vmatprep.subr.mxu0 0.0
      %5427 = vmatpush2.msra.mxu0 0.0
      %5428 = vmatprep.subr.mxu0 0.0
      %5429 = vmatpush2.msra.mxu0 0.0
      %5430 = vmatprep.subr.mxu0 0.0
      %5431 = vmatpush2.msra.mxu0 0.0
      %5432 = vmatprep.subr.mxu0 0.0
      %5433 = vmatpush2.msra.mxu0 0.0
      %5434 = vmatprep.mubr.f32.mxu0 0.0
      %5435 = vmatmul.mubr.f32.gmra.mxu0 %v5347
      %v5436 = vpop.f32.mrf.mxu0
      %v5437 = vadd.f32 0.0, %v5436
      %v5438 = vpop.f32.mrf.mxu0
      %5439 = vmatprep.mubr.f32.mxu0 0.0
      %5440 = vmatmul.mubr.f32.gmra.mxu0 %v5350
      %v5441 = vpop.f32.mrf.mxu0
      %v5442 = vadd.f32 0.0, %v5441
      %v5443 = vpop.f32.mrf.mxu0
      %5444 = vmatprep.mubr.f32.mxu0 0.0
      %5445 = vmatmul.mubr.f32.gmra.mxu0 %v5353
      %v5446 = vpop.f32.mrf.mxu0
      %v5447 = vadd.f32 0.0, %v5446
      %v5448 = vpop.f32.mrf.mxu0
      %5449 = vmatprep.mubr.f32.mxu0 0.0
      %5450 = vmatmul.mubr.f32.gmra.mxu0 %v5356
      %v5451 = vpop.f32.mrf.mxu0
      %v5452 = vadd.f32 0.0, %v5451
      %v5453 = vpop.f32.mrf.mxu0
      %5454 = vmatprep.mubr.f32.mxu0 0.0
      %5455 = vmatmul.mubr.f32.gmra.mxu0 %v5359
      %v5456 = vpop.f32.mrf.mxu0
      %v5457 = vadd.f32 0.0, %v5456
      %v5458 = vpop.f32.mrf.mxu0
      %5459 = vmatprep.mubr.f32.mxu0 0.0
      %5460 = vmatmul.mubr.f32.gmra.mxu0 %v5362
      %v5461 = vpop.f32.mrf.mxu0
      %v5462 = vadd.f32 0.0, %v5461
      %v5463 = vpop.f32.mrf.mxu0
      %5464 = vmatprep.mubr.f32.mxu0 0.0
      %5465 = vmatmul.mubr.f32.gmra.mxu0 %v5365
      %v5466 = vpop.f32.mrf.mxu0
      %v5467 = vadd.f32 0.0, %v5466
      %v5468 = vpop.f32.mrf.mxu0
      %5469 = vmatprep.mubr.f32.mxu0 0.0
      %5470 = vmatmul.mubr.f32.gmra.mxu0 %v5368
      %v5471 = vpop.f32.mrf.mxu0
      %v5472 = vadd.f32 0.0, %v5471
      %v5473 = vpop.f32.mrf.mxu0
      %5474 = vdwg.mxu0
      %v5475 = vadd.f32 %v5325, %v5437
      %v5476 = vadd.f32 %v5326, %v5442
      %v5477 = vadd.f32 %v5327, %v5447
      %v5478 = vadd.f32 %v5328, %v5452
      %v5479 = vadd.f32 %v5329, %v5457
      %v5480 = vadd.f32 %v5330, %v5462
      %v5481 = vadd.f32 %v5331, %v5467
      %v5482 = vadd.f32 %v5332, %v5472
      %5483 = vst.msk [vmem:[#allocation5] sm:$0xff] %vm642, 0.0
      %5484 = vst.msk [vmem:[#allocation5 + $0x8] sm:$0xff] %vm642, 0.0
      %5485 = vst.msk [vmem:[#allocation5 + $0x10] sm:$0x3] %vm2421, 0.0
      %s5486 = scalar_lea.vmem [#allocation5], 408
      %5487 = vst.msk [vmem:[%s5486] sm:$0xff] %vm642, 0.0
      %5488 = vst.msk [vmem:[%s5486 + $0x8] sm:$0xff] %vm642, 0.0
      %5489 = vst.msk [vmem:[%s5486 + $0x10] sm:$0x3] %vm2421, 0.0
      %5490 = vst.msk [vmem:[#allocation5] sm:$0x1] %vm2401, 0.0
      %5491 = vst.msk [vmem:[#allocation5 + $0x18] sm:$0x1] %vm2401, 0.0
      %5492 = vst.msk [vmem:[#allocation5 + $0x30] sm:$0x1] %vm2401, 0.0
      %5493 = vst.msk [vmem:[#allocation5 + $0x48] sm:$0x1] %vm2401, 0.0
      %5494 = vst.msk [vmem:[#allocation5 + $0x60] sm:$0x1] %vm2401, 0.0
      %5495 = vst.msk [vmem:[#allocation5 + $0x78] sm:$0x1] %vm2401, 0.0
      %5496 = vst.msk [vmem:[#allocation5 + $0x90] sm:$0x1] %vm2401, 0.0
      %5497 = vst.msk [vmem:[#allocation5 + $0xa8] sm:$0x1] %vm2401, 0.0
      %5498 = vst.msk [vmem:[#allocation5 + $0xc0] sm:$0x1] %vm2401, 0.0
      %5499 = vst.msk [vmem:[#allocation5 + $0xd8] sm:$0x1] %vm2401, 0.0
      %5500 = vst.msk [vmem:[#allocation5 + $0xf0] sm:$0x1] %vm2401, 0.0
      %5501 = vst.msk [vmem:[#allocation5 + $0x108] sm:$0x1] %vm2401, 0.0
      %5502 = vst.msk [vmem:[#allocation5 + $0x120] sm:$0x1] %vm2401, 0.0
      %5503 = vst.msk [vmem:[#allocation5 + $0x138] sm:$0x1] %vm2401, 0.0
      %5504 = vst.msk [vmem:[#allocation5 + $0x150] sm:$0x1] %vm2401, 0.0
      %5505 = vst.msk [vmem:[#allocation5 + $0x168] sm:$0x1] %vm2401, 0.0
      %5506 = vst.msk [vmem:[#allocation5 + $0x180] sm:$0x1] %vm2401, 0.0
      %5507 = vst.msk [vmem:[#allocation5 + $0x198] sm:$0x1] %vm2401, 0.0
      %5508 = vst.msk [vmem:[#allocation5 + $0x11] sm:$0x1] %vm2401, 0.0
      %5509 = vst.msk [vmem:[#allocation5 + $0x29] sm:$0x1] %vm2401, 0.0
      %5510 = vst.msk [vmem:[#allocation5 + $0x41] sm:$0x1] %vm2401, 0.0
      %5511 = vst.msk [vmem:[#allocation5 + $0x59] sm:$0x1] %vm2401, 0.0
      %5512 = vst.msk [vmem:[#allocation5 + $0x71] sm:$0x1] %vm2401, 0.0
      %5513 = vst.msk [vmem:[#allocation5 + $0x89] sm:$0x1] %vm2401, 0.0
      %5514 = vst.msk [vmem:[#allocation5 + $0xa1] sm:$0x1] %vm2401, 0.0
      %5515 = vst.msk [vmem:[#allocation5 + $0xb9] sm:$0x1] %vm2401, 0.0
      %5516 = vst.msk [vmem:[#allocation5 + $0xd1] sm:$0x1] %vm2401, 0.0
      %5517 = vst.msk [vmem:[#allocation5 + $0xe9] sm:$0x1] %vm2401, 0.0
      %5518 = vst.msk [vmem:[#allocation5 + $0x101] sm:$0x1] %vm2401, 0.0
      %5519 = vst.msk [vmem:[#allocation5 + $0x119] sm:$0x1] %vm2401, 0.0
      %5520 = vst.msk [vmem:[#allocation5 + $0x131] sm:$0x1] %vm2401, 0.0
      %5521 = vst.msk [vmem:[#allocation5 + $0x149] sm:$0x1] %vm2401, 0.0
      %5522 = vst.msk [vmem:[#allocation5 + $0x161] sm:$0x1] %vm2401, 0.0
      %5523 = vst.msk [vmem:[#allocation5 + $0x179] sm:$0x1] %vm2401, 0.0
      %5524 = vst.msk [vmem:[#allocation5 + $0x191] sm:$0x1] %vm2401, 0.0
      %5525 = vst.msk [vmem:[#allocation5 + $0x1a9] sm:$0x1] %vm2401, 0.0
      %s5526 = scalar_lea.vmem [#allocation5], 24
      %5527 = vst.msk [vmem:[%s5526 + $0x1] sm:$0xff] %vm642, %v2239
      %5528 = vst.msk [vmem:[%s5526 + $0x9] sm:$0xff] %vm642, %v2244
      %5529 = vst.msk [vmem:[%s5526 + $0x19] sm:$0xff] %vm642, %v2249
      %5530 = vst.msk [vmem:[%s5526 + $0x21] sm:$0xff] %vm642, %v2254
      %5531 = vst.msk [vmem:[%s5526 + $0x31] sm:$0xff] %vm642, %v2259
      %5532 = vst.msk [vmem:[%s5526 + $0x39] sm:$0xff] %vm642, %v2264
      %5533 = vst.msk [vmem:[%s5526 + $0x49] sm:$0xff] %vm642, %v2269
      %5534 = vst.msk [vmem:[%s5526 + $0x51] sm:$0xff] %vm642, %v2274
      %5535 = vst.msk [vmem:[%s5526 + $0x61] sm:$0xff] %vm642, %v2279
      %5536 = vst.msk [vmem:[%s5526 + $0x69] sm:$0xff] %vm642, %v2284
      %5537 = vst.msk [vmem:[%s5526 + $0x79] sm:$0xff] %vm642, %v2289
      %5538 = vst.msk [vmem:[%s5526 + $0x81] sm:$0xff] %vm642, %v2294
      %5539 = vst.msk [vmem:[%s5526 + $0x91] sm:$0xff] %vm642, %v2299
      %5540 = vst.msk [vmem:[%s5526 + $0x99] sm:$0xff] %vm642, %v2304
      %5541 = vst.msk [vmem:[%s5526 + $0xa9] sm:$0xff] %vm642, %v2309
      %5542 = vst.msk [vmem:[%s5526 + $0xb1] sm:$0xff] %vm642, %v2314
      %5543 = vst.msk [vmem:[%s5526 + $0xc1] sm:$0xff] %vm642, %v2319
      %5544 = vst.msk [vmem:[%s5526 + $0xc9] sm:$0xff] %vm642, %v2324
      %5545 = vst.msk [vmem:[%s5526 + $0xd9] sm:$0xff] %vm642, %v2329
      %5546 = vst.msk [vmem:[%s5526 + $0xe1] sm:$0xff] %vm642, %v2334
      %5547 = vst.msk [vmem:[%s5526 + $0xf1] sm:$0xff] %vm642, %v2339
      %5548 = vst.msk [vmem:[%s5526 + $0xf9] sm:$0xff] %vm642, %v2344
      %5549 = vst.msk [vmem:[%s5526 + $0x109] sm:$0xff] %vm642, %v2349
      %5550 = vst.msk [vmem:[%s5526 + $0x111] sm:$0xff] %vm642, %v2354
      %5551 = vst.msk [vmem:[%s5526 + $0x121] sm:$0xff] %vm642, %v2359
      %5552 = vst.msk [vmem:[%s5526 + $0x129] sm:$0xff] %vm642, %v2364
      %5553 = vst.msk [vmem:[%s5526 + $0x139] sm:$0xff] %vm642, %v2369
      %5554 = vst.msk [vmem:[%s5526 + $0x141] sm:$0xff] %vm642, %v2374
      %5555 = vst.msk [vmem:[%s5526 + $0x151] sm:$0xff] %vm642, %v2379
      %5556 = vst.msk [vmem:[%s5526 + $0x159] sm:$0xff] %vm642, %v2384
      %5557 = vst.msk [vmem:[%s5526 + $0x169] sm:$0xff] %vm642, %v2389
      %5558 = vst.msk [vmem:[%s5526 + $0x171] sm:$0xff] %vm642, %v2394
      %v5559 = vld [vmem:[#allocation5] sm:$0xff]
      %v5560 = vld [vmem:[#allocation5 + $0x8] sm:$0xff]
      %v5561 = vld [vmem:[#allocation5 + $0x18] sm:$0xff]
      %v5562 = vld [vmem:[#allocation5 + $0x20] sm:$0xff]
      %v5563 = vld [vmem:[#allocation5 + $0x30] sm:$0xff]
      %v5564 = vld [vmem:[#allocation5 + $0x38] sm:$0xff]
      %v5565 = vld [vmem:[#allocation5 + $0x48] sm:$0xff]
      %v5566 = vld [vmem:[#allocation5 + $0x50] sm:$0xff]
      %v5567 = vld [vmem:[#allocation5 + $0x60] sm:$0xff]
      %v5568 = vld [vmem:[#allocation5 + $0x68] sm:$0xff]
      %v5569 = vld [vmem:[#allocation5 + $0x78] sm:$0xff]
      %v5570 = vld [vmem:[#allocation5 + $0x80] sm:$0xff]
      %v5571 = vld [vmem:[#allocation5 + $0x90] sm:$0xff]
      %v5572 = vld [vmem:[#allocation5 + $0x98] sm:$0xff]
      %v5573 = vld [vmem:[#allocation5 + $0xa8] sm:$0xff]
      %v5574 = vld [vmem:[#allocation5 + $0xb0] sm:$0xff]
      %v5575 = vld [vmem:[#allocation5 + $0xc0] sm:$0xff]
      %v5576 = vld [vmem:[#allocation5 + $0xc8] sm:$0xff]
      %v5577 = vld [vmem:[#allocation5 + $0xd8] sm:$0xff]
      %v5578 = vld [vmem:[#allocation5 + $0xe0] sm:$0xff]
      %v5579 = vld [vmem:[#allocation5 + $0xf0] sm:$0xff]
      %v5580 = vld [vmem:[#allocation5 + $0xf8] sm:$0xff]
      %v5581 = vld [vmem:[#allocation5 + $0x108] sm:$0xff]
      %v5582 = vld [vmem:[#allocation5 + $0x110] sm:$0xff]
      %v5583 = vld [vmem:[#allocation5 + $0x120] sm:$0xff]
      %v5584 = vld [vmem:[#allocation5 + $0x128] sm:$0xff]
      %v5585 = vld [vmem:[#allocation5 + $0x138] sm:$0xff]
      %v5586 = vld [vmem:[#allocation5 + $0x140] sm:$0xff]
      %v5587 = vld [vmem:[#allocation5 + $0x150] sm:$0xff]
      %v5588 = vld [vmem:[#allocation5 + $0x158] sm:$0xff]
      %v5589 = vld [vmem:[#allocation5 + $0x168] sm:$0xff]
      %v5590 = vld [vmem:[#allocation5 + $0x170] sm:$0xff]
      %v5591 = vld [vmem:[%s8] sm:$0xff]
      %v5592 = vld [vmem:[%s8 + $0x8] sm:$0xff]
      %v5593 = vld [vmem:[%s8 + $0x10] sm:$0xff]
      %v5594 = vld [vmem:[%s8 + $0x18] sm:$0xff]
      %v5595 = vld [vmem:[#allocation5 + $0x1] sm:$0xff]
      %v5596 = vld [vmem:[#allocation5 + $0x9] sm:$0xff]
      %v5597 = vld [vmem:[#allocation5 + $0x19] sm:$0xff]
      %v5598 = vld [vmem:[#allocation5 + $0x21] sm:$0xff]
      %v5599 = vld [vmem:[#allocation5 + $0x31] sm:$0xff]
      %v5600 = vld [vmem:[#allocation5 + $0x39] sm:$0xff]
      %v5601 = vld [vmem:[#allocation5 + $0x49] sm:$0xff]
      %v5602 = vld [vmem:[#allocation5 + $0x51] sm:$0xff]
      %v5603 = vld [vmem:[#allocation5 + $0x61] sm:$0xff]
      %v5604 = vld [vmem:[#allocation5 + $0x69] sm:$0xff]
      %v5605 = vld [vmem:[#allocation5 + $0x79] sm:$0xff]
      %v5606 = vld [vmem:[#allocation5 + $0x81] sm:$0xff]
      %v5607 = vld [vmem:[#allocation5 + $0x91] sm:$0xff]
      %v5608 = vld [vmem:[#allocation5 + $0x99] sm:$0xff]
      %v5609 = vld [vmem:[#allocation5 + $0xa9] sm:$0xff]
      %v5610 = vld [vmem:[#allocation5 + $0xb1] sm:$0xff]
      %v5611 = vld [vmem:[#allocation5 + $0xc1] sm:$0xff]
      %v5612 = vld [vmem:[#allocation5 + $0xc9] sm:$0xff]
      %v5613 = vld [vmem:[#allocation5 + $0xd9] sm:$0xff]
      %v5614 = vld [vmem:[#allocation5 + $0xe1] sm:$0xff]
      %v5615 = vld [vmem:[#allocation5 + $0xf1] sm:$0xff]
      %v5616 = vld [vmem:[#allocation5 + $0xf9] sm:$0xff]
      %v5617 = vld [vmem:[#allocation5 + $0x109] sm:$0xff]
      %v5618 = vld [vmem:[#allocation5 + $0x111] sm:$0xff]
      %v5619 = vld [vmem:[#allocation5 + $0x121] sm:$0xff]
      %v5620 = vld [vmem:[#allocation5 + $0x129] sm:$0xff]
      %v5621 = vld [vmem:[#allocation5 + $0x139] sm:$0xff]
      %v5622 = vld [vmem:[#allocation5 + $0x141] sm:$0xff]
      %v5623 = vld [vmem:[#allocation5 + $0x151] sm:$0xff]
      %v5624 = vld [vmem:[#allocation5 + $0x159] sm:$0xff]
      %v5625 = vld [vmem:[#allocation5 + $0x169] sm:$0xff]
      %v5626 = vld [vmem:[#allocation5 + $0x171] sm:$0xff]
      %s5627 = scalar_lea.vmem %s8, 32
      %v5628 = vld [vmem:[%s5627] sm:$0xff]
      %v5629 = vld [vmem:[%s5627 + $0x8] sm:$0xff]
      %v5630 = vld [vmem:[%s5627 + $0x10] sm:$0xff]
      %v5631 = vld [vmem:[%s5627 + $0x18] sm:$0xff]
      %v5633 = vsel %vm642, %v5595, 0
      %v5636 = vsel %vm642, %v5596, 0
      %v5639 = vsel %vm642, %v5597, 0
      %v5642 = vsel %vm642, %v5598, 0
      %v5645 = vsel %vm642, %v5599, 0
      %v5648 = vsel %vm642, %v5600, 0
      %v5651 = vsel %vm642, %v5601, 0
      %v5654 = vsel %vm642, %v5602, 0
      %v5657 = vsel %vm642, %v5603, 0
      %v5660 = vsel %vm642, %v5604, 0
      %v5663 = vsel %vm642, %v5605, 0
      %v5666 = vsel %vm642, %v5606, 0
      %v5669 = vsel %vm642, %v5607, 0
      %v5672 = vsel %vm642, %v5608, 0
      %v5675 = vsel %vm642, %v5609, 0
      %v5678 = vsel %vm642, %v5610, 0
      %v5681 = vsel %vm642, %v5611, 0
      %v5684 = vsel %vm642, %v5612, 0
      %v5687 = vsel %vm642, %v5613, 0
      %v5690 = vsel %vm642, %v5614, 0
      %v5693 = vsel %vm642, %v5615, 0
      %v5696 = vsel %vm642, %v5616, 0
      %v5699 = vsel %vm642, %v5617, 0
      %v5702 = vsel %vm642, %v5618, 0
      %v5705 = vsel %vm642, %v5619, 0
      %v5708 = vsel %vm642, %v5620, 0
      %v5711 = vsel %vm642, %v5621, 0
      %v5714 = vsel %vm642, %v5622, 0
      %v5717 = vsel %vm642, %v5623, 0
      %v5720 = vsel %vm642, %v5624, 0
      %v5723 = vsel %vm642, %v5625, 0
      %v5726 = vsel %vm642, %v5626, 0
      %5728 = vmatprep.subr.mxu0 0.0
      %5729 = vmatpush1.msra.mxu0 0.0
      %5730 = vmatprep.subr.mxu0 0.0
      %5731 = vmatpush1.msra.mxu0 0.0
      %5732 = vmatprep.subr.mxu0 0.0
      %5733 = vmatpush1.msra.mxu0 0.0
      %5734 = vmatprep.subr.mxu0 0.0
      %5735 = vmatpush1.msra.mxu0 0.0
      %5736 = vmatprep.subr.mxu0 0.0
      %5737 = vmatpush1.msra.mxu0 0.0
      %5738 = vmatprep.subr.mxu0 0.0
      %5739 = vmatpush1.msra.mxu0 0.0
      %5740 = vmatprep.subr.mxu0 0.0
      %5741 = vmatpush1.msra.mxu0 0.0
      %5742 = vmatprep.subr.mxu0 0.0
      %5743 = vmatpush1.msra.mxu0 0.0
      %5744 = vmatprep.subr.mxu0 0.0
      %5745 = vmatpush1.msra.mxu0 0.0
      %5746 = vmatprep.subr.mxu0 0.0
      %5747 = vmatpush1.msra.mxu0 0.0
      %5748 = vmatprep.subr.mxu0 0.0
      %5749 = vmatpush1.msra.mxu0 0.0
      %5750 = vmatprep.subr.mxu0 0.0
      %5751 = vmatpush1.msra.mxu0 0.0
      %5752 = vmatprep.subr.mxu0 0.0
      %5753 = vmatpush1.msra.mxu0 %v5631
      %5754 = vmatprep.subr.mxu0 0.0
      %5755 = vmatpush1.msra.mxu0 %v5630
      %5756 = vmatprep.subr.mxu0 0.0
      %5757 = vmatpush1.msra.mxu0 %v5629
      %5758 = vmatprep.subr.mxu0 0.0
      %5759 = vmatpush1.msra.mxu0 %v5628
      %5760 = vmatprep.subr.mxu0 0.0
      %5761 = vmatpush2.msra.mxu0 0.0
      %5762 = vmatprep.subr.mxu0 0.0
      %5763 = vmatpush2.msra.mxu0 0.0
      %5764 = vmatprep.subr.mxu0 0.0
      %5765 = vmatpush2.msra.mxu0 0.0
      %5766 = vmatprep.subr.mxu0 0.0
      %5767 = vmatpush2.msra.mxu0 0.0
      %5768 = vmatprep.subr.mxu0 0.0
      %5769 = vmatpush2.msra.mxu0 0.0
      %5770 = vmatprep.subr.mxu0 0.0
      %5771 = vmatpush2.msra.mxu0 0.0
      %5772 = vmatprep.subr.mxu0 0.0
      %5773 = vmatpush2.msra.mxu0 0.0
      %5774 = vmatprep.subr.mxu0 0.0
      %5775 = vmatpush2.msra.mxu0 0.0
      %5776 = vmatprep.subr.mxu0 0.0
      %5777 = vmatpush2.msra.mxu0 0.0
      %5778 = vmatprep.subr.mxu0 0.0
      %5779 = vmatpush2.msra.mxu0 0.0
      %5780 = vmatprep.subr.mxu0 0.0
      %5781 = vmatpush2.msra.mxu0 0.0
      %5782 = vmatprep.subr.mxu0 0.0
      %5783 = vmatpush2.msra.mxu0 0.0
      %5784 = vmatprep.subr.mxu0 0.0
      %5785 = vmatpush2.msra.mxu0 0.0
      %5786 = vmatprep.subr.mxu0 0.0
      %5787 = vmatpush2.msra.mxu0 0.0
      %5788 = vmatprep.subr.mxu0 0.0
      %5789 = vmatpush2.msra.mxu0 0.0
      %5790 = vmatprep.subr.mxu0 0.0
      %5791 = vmatpush2.msra.mxu0 0.0
      %5792 = vmatprep.mubr.f32.mxu0 0.0
      %5793 = vmatmul.mubr.f32.gmra.mxu0 %v5633
      %v5794 = vpop.f32.mrf.mxu0
      %v5795 = vadd.f32 0.0, %v5794
      %v5796 = vpop.f32.mrf.mxu0
      %5797 = vmatprep.mubr.f32.mxu0 0.0
      %5798 = vmatmul.mubr.f32.gmra.mxu0 %v5636
      %v5799 = vpop.f32.mrf.mxu0
      %v5800 = vadd.f32 0.0, %v5799
      %v5801 = vpop.f32.mrf.mxu0
      %5802 = vmatprep.mubr.f32.mxu0 0.0
      %5803 = vmatmul.mubr.f32.gmra.mxu0 %v5639
      %v5804 = vpop.f32.mrf.mxu0
      %v5805 = vadd.f32 0.0, %v5804
      %v5806 = vpop.f32.mrf.mxu0
      %5807 = vmatprep.mubr.f32.mxu0 0.0
      %5808 = vmatmul.mubr.f32.gmra.mxu0 %v5642
      %v5809 = vpop.f32.mrf.mxu0
      %v5810 = vadd.f32 0.0, %v5809
      %v5811 = vpop.f32.mrf.mxu0
      %5812 = vmatprep.mubr.f32.mxu0 0.0
      %5813 = vmatmul.mubr.f32.gmra.mxu0 %v5645
      %v5814 = vpop.f32.mrf.mxu0
      %v5815 = vadd.f32 0.0, %v5814
      %v5816 = vpop.f32.mrf.mxu0
      %5817 = vmatprep.mubr.f32.mxu0 0.0
      %5818 = vmatmul.mubr.f32.gmra.mxu0 %v5648
      %v5819 = vpop.f32.mrf.mxu0
      %v5820 = vadd.f32 0.0, %v5819
      %v5821 = vpop.f32.mrf.mxu0
      %5822 = vmatprep.mubr.f32.mxu0 0.0
      %5823 = vmatmul.mubr.f32.gmra.mxu0 %v5651
      %v5824 = vpop.f32.mrf.mxu0
      %v5825 = vadd.f32 0.0, %v5824
      %v5826 = vpop.f32.mrf.mxu0
      %5827 = vmatprep.mubr.f32.mxu0 0.0
      %5828 = vmatmul.mubr.f32.gmra.mxu0 %v5654
      %v5829 = vpop.f32.mrf.mxu0
      %v5830 = vadd.f32 0.0, %v5829
      %v5831 = vpop.f32.mrf.mxu0
      %5832 = vmatprep.mubr.f32.mxu0 0.0
      %5833 = vmatmul.mubr.f32.gmra.mxu0 %v5657
      %v5834 = vpop.f32.mrf.mxu0
      %v5835 = vadd.f32 0.0, %v5834
      %v5836 = vpop.f32.mrf.mxu0
      %5837 = vmatprep.mubr.f32.mxu0 0.0
      %5838 = vmatmul.mubr.f32.gmra.mxu0 %v5660
      %v5839 = vpop.f32.mrf.mxu0
      %v5840 = vadd.f32 0.0, %v5839
      %v5841 = vpop.f32.mrf.mxu0
      %5842 = vmatprep.mubr.f32.mxu0 0.0
      %5843 = vmatmul.mubr.f32.gmra.mxu0 %v5663
      %v5844 = vpop.f32.mrf.mxu0
      %v5845 = vadd.f32 0.0, %v5844
      %v5846 = vpop.f32.mrf.mxu0
      %5847 = vmatprep.mubr.f32.mxu0 0.0
      %5848 = vmatmul.mubr.f32.gmra.mxu0 %v5666
      %v5849 = vpop.f32.mrf.mxu0
      %v5850 = vadd.f32 0.0, %v5849
      %v5851 = vpop.f32.mrf.mxu0
      %5852 = vmatprep.mubr.f32.mxu0 0.0
      %5853 = vmatmul.mubr.f32.gmra.mxu0 %v5669
      %v5854 = vpop.f32.mrf.mxu0
      %v5855 = vadd.f32 0.0, %v5854
      %v5856 = vpop.f32.mrf.mxu0
      %5857 = vmatprep.mubr.f32.mxu0 0.0
      %5858 = vmatmul.mubr.f32.gmra.mxu0 %v5672
      %v5859 = vpop.f32.mrf.mxu0
      %v5860 = vadd.f32 0.0, %v5859
      %v5861 = vpop.f32.mrf.mxu0
      %5862 = vmatprep.mubr.f32.mxu0 0.0
      %5863 = vmatmul.mubr.f32.gmra.mxu0 %v5675
      %v5864 = vpop.f32.mrf.mxu0
      %v5865 = vadd.f32 0.0, %v5864
      %v5866 = vpop.f32.mrf.mxu0
      %5867 = vmatprep.mubr.f32.mxu0 0.0
      %5868 = vmatmul.mubr.f32.gmra.mxu0 %v5678
      %v5869 = vpop.f32.mrf.mxu0
      %v5870 = vadd.f32 0.0, %v5869
      %v5871 = vpop.f32.mrf.mxu0
      %5872 = vmatprep.mubr.f32.mxu0 0.0
      %5873 = vmatmul.mubr.f32.gmra.mxu0 %v5681
      %v5874 = vpop.f32.mrf.mxu0
      %v5875 = vadd.f32 0.0, %v5874
      %v5876 = vpop.f32.mrf.mxu0
      %5877 = vmatprep.mubr.f32.mxu0 0.0
      %5878 = vmatmul.mubr.f32.gmra.mxu0 %v5684
      %v5879 = vpop.f32.mrf.mxu0
      %v5880 = vadd.f32 0.0, %v5879
      %v5881 = vpop.f32.mrf.mxu0
      %5882 = vmatprep.mubr.f32.mxu0 0.0
      %5883 = vmatmul.mubr.f32.gmra.mxu0 %v5687
      %v5884 = vpop.f32.mrf.mxu0
      %v5885 = vadd.f32 0.0, %v5884
      %v5886 = vpop.f32.mrf.mxu0
      %5887 = vmatprep.mubr.f32.mxu0 0.0
      %5888 = vmatmul.mubr.f32.gmra.mxu0 %v5690
      %v5889 = vpop.f32.mrf.mxu0
      %v5890 = vadd.f32 0.0, %v5889
      %v5891 = vpop.f32.mrf.mxu0
      %5892 = vmatprep.mubr.f32.mxu0 0.0
      %5893 = vmatmul.mubr.f32.gmra.mxu0 %v5693
      %v5894 = vpop.f32.mrf.mxu0
      %v5895 = vadd.f32 0.0, %v5894
      %v5896 = vpop.f32.mrf.mxu0
      %5897 = vmatprep.mubr.f32.mxu0 0.0
      %5898 = vmatmul.mubr.f32.gmra.mxu0 %v5696
      %v5899 = vpop.f32.mrf.mxu0
      %v5900 = vadd.f32 0.0, %v5899
      %v5901 = vpop.f32.mrf.mxu0
      %5902 = vmatprep.mubr.f32.mxu0 0.0
      %5903 = vmatmul.mubr.f32.gmra.mxu0 %v5699
      %v5904 = vpop.f32.mrf.mxu0
      %v5905 = vadd.f32 0.0, %v5904
      %v5906 = vpop.f32.mrf.mxu0
      %5907 = vmatprep.mubr.f32.mxu0 0.0
      %5908 = vmatmul.mubr.f32.gmra.mxu0 %v5702
      %v5909 = vpop.f32.mrf.mxu0
      %v5910 = vadd.f32 0.0, %v5909
      %v5911 = vpop.f32.mrf.mxu0
      %5912 = vmatprep.mubr.f32.mxu0 0.0
      %5913 = vmatmul.mubr.f32.gmra.mxu0 %v5705
      %v5914 = vpop.f32.mrf.mxu0
      %v5915 = vadd.f32 0.0, %v5914
      %v5916 = vpop.f32.mrf.mxu0
      %5917 = vmatprep.mubr.f32.mxu0 0.0
      %5918 = vmatmul.mubr.f32.gmra.mxu0 %v5708
      %v5919 = vpop.f32.mrf.mxu0
      %v5920 = vadd.f32 0.0, %v5919
      %v5921 = vpop.f32.mrf.mxu0
      %5922 = vmatprep.mubr.f32.mxu0 0.0
      %5923 = vmatmul.mubr.f32.gmra.mxu0 %v5711
      %v5924 = vpop.f32.mrf.mxu0
      %v5925 = vadd.f32 0.0, %v5924
      %v5926 = vpop.f32.mrf.mxu0
      %5927 = vmatprep.mubr.f32.mxu0 0.0
      %5928 = vmatmul.mubr.f32.gmra.mxu0 %v5714
      %v5929 = vpop.f32.mrf.mxu0
      %v5930 = vadd.f32 0.0, %v5929
      %v5931 = vpop.f32.mrf.mxu0
      %5932 = vmatprep.mubr.f32.mxu0 0.0
      %5933 = vmatmul.mubr.f32.gmra.mxu0 %v5717
      %v5934 = vpop.f32.mrf.mxu0
      %v5935 = vadd.f32 0.0, %v5934
      %v5936 = vpop.f32.mrf.mxu0
      %5937 = vmatprep.mubr.f32.mxu0 0.0
      %5938 = vmatmul.mubr.f32.gmra.mxu0 %v5720
      %v5939 = vpop.f32.mrf.mxu0
      %v5940 = vadd.f32 0.0, %v5939
      %v5941 = vpop.f32.mrf.mxu0
      %5942 = vmatprep.mubr.f32.mxu0 0.0
      %5943 = vmatmul.mubr.f32.gmra.mxu0 %v5723
      %v5944 = vpop.f32.mrf.mxu0
      %v5945 = vadd.f32 0.0, %v5944
      %v5946 = vpop.f32.mrf.mxu0
      %5947 = vmatprep.mubr.f32.mxu0 0.0
      %5948 = vmatmul.mubr.f32.gmra.mxu0 %v5726
      %v5949 = vpop.f32.mrf.mxu0
      %v5950 = vadd.f32 0.0, %v5949
      %v5951 = vpop.f32.mrf.mxu0
      %5952 = vdwg.mxu0
      %v5954 = vsel %vm642, %v5559, 0
      %v5957 = vsel %vm642, %v5560, 0
      %v5960 = vsel %vm642, %v5561, 0
      %v5963 = vsel %vm642, %v5562, 0
      %v5966 = vsel %vm642, %v5563, 0
      %v5969 = vsel %vm642, %v5564, 0
      %v5972 = vsel %vm642, %v5565, 0
      %v5975 = vsel %vm642, %v5566, 0
      %v5978 = vsel %vm642, %v5567, 0
      %v5981 = vsel %vm642, %v5568, 0
      %v5984 = vsel %vm642, %v5569, 0
      %v5987 = vsel %vm642, %v5570, 0
      %v5990 = vsel %vm642, %v5571, 0
      %v5993 = vsel %vm642, %v5572, 0
      %v5996 = vsel %vm642, %v5573, 0
      %v5999 = vsel %vm642, %v5574, 0
      %v6002 = vsel %vm642, %v5575, 0
      %v6005 = vsel %vm642, %v5576, 0
      %v6008 = vsel %vm642, %v5577, 0
      %v6011 = vsel %vm642, %v5578, 0
      %v6014 = vsel %vm642, %v5579, 0
      %v6017 = vsel %vm642, %v5580, 0
      %v6020 = vsel %vm642, %v5581, 0
      %v6023 = vsel %vm642, %v5582, 0
      %v6026 = vsel %vm642, %v5583, 0
      %v6029 = vsel %vm642, %v5584, 0
      %v6032 = vsel %vm642, %v5585, 0
      %v6035 = vsel %vm642, %v5586, 0
      %v6038 = vsel %vm642, %v5587, 0
      %v6041 = vsel %vm642, %v5588, 0
      %v6044 = vsel %vm642, %v5589, 0
      %v6047 = vsel %vm642, %v5590, 0
      %6049 = vmatprep.subr.mxu0 0.0
      %6050 = vmatpush1.msra.mxu0 0.0
      %6051 = vmatprep.subr.mxu0 0.0
      %6052 = vmatpush1.msra.mxu0 0.0
      %6053 = vmatprep.subr.mxu0 0.0
      %6054 = vmatpush1.msra.mxu0 0.0
      %6055 = vmatprep.subr.mxu0 0.0
      %6056 = vmatpush1.msra.mxu0 0.0
      %6057 = vmatprep.subr.mxu0 0.0
      %6058 = vmatpush1.msra.mxu0 0.0
      %6059 = vmatprep.subr.mxu0 0.0
      %6060 = vmatpush1.msra.mxu0 0.0
      %6061 = vmatprep.subr.mxu0 0.0
      %6062 = vmatpush1.msra.mxu0 0.0
      %6063 = vmatprep.subr.mxu0 0.0
      %6064 = vmatpush1.msra.mxu0 0.0
      %6065 = vmatprep.subr.mxu0 0.0
      %6066 = vmatpush1.msra.mxu0 0.0
      %6067 = vmatprep.subr.mxu0 0.0
      %6068 = vmatpush1.msra.mxu0 0.0
      %6069 = vmatprep.subr.mxu0 0.0
      %6070 = vmatpush1.msra.mxu0 0.0
      %6071 = vmatprep.subr.mxu0 0.0
      %6072 = vmatpush1.msra.mxu0 0.0
      %6073 = vmatprep.subr.mxu0 0.0
      %6074 = vmatpush1.msra.mxu0 %v5594
      %6075 = vmatprep.subr.mxu0 0.0
      %6076 = vmatpush1.msra.mxu0 %v5593
      %6077 = vmatprep.subr.mxu0 0.0
      %6078 = vmatpush1.msra.mxu0 %v5592
      %6079 = vmatprep.subr.mxu0 0.0
      %6080 = vmatpush1.msra.mxu0 %v5591
      %6081 = vmatprep.subr.mxu0 0.0
      %6082 = vmatpush2.msra.mxu0 0.0
      %6083 = vmatprep.subr.mxu0 0.0
      %6084 = vmatpush2.msra.mxu0 0.0
      %6085 = vmatprep.subr.mxu0 0.0
      %6086 = vmatpush2.msra.mxu0 0.0
      %6087 = vmatprep.subr.mxu0 0.0
      %6088 = vmatpush2.msra.mxu0 0.0
      %6089 = vmatprep.subr.mxu0 0.0
      %6090 = vmatpush2.msra.mxu0 0.0
      %6091 = vmatprep.subr.mxu0 0.0
      %6092 = vmatpush2.msra.mxu0 0.0
      %6093 = vmatprep.subr.mxu0 0.0
      %6094 = vmatpush2.msra.mxu0 0.0
      %6095 = vmatprep.subr.mxu0 0.0
      %6096 = vmatpush2.msra.mxu0 0.0
      %6097 = vmatprep.subr.mxu0 0.0
      %6098 = vmatpush2.msra.mxu0 0.0
      %6099 = vmatprep.subr.mxu0 0.0
      %6100 = vmatpush2.msra.mxu0 0.0
      %6101 = vmatprep.subr.mxu0 0.0
      %6102 = vmatpush2.msra.mxu0 0.0
      %6103 = vmatprep.subr.mxu0 0.0
      %6104 = vmatpush2.msra.mxu0 0.0
      %6105 = vmatprep.subr.mxu0 0.0
      %6106 = vmatpush2.msra.mxu0 0.0
      %6107 = vmatprep.subr.mxu0 0.0
      %6108 = vmatpush2.msra.mxu0 0.0
      %6109 = vmatprep.subr.mxu0 0.0
      %6110 = vmatpush2.msra.mxu0 0.0
      %6111 = vmatprep.subr.mxu0 0.0
      %6112 = vmatpush2.msra.mxu0 0.0
      %6113 = vmatprep.mubr.f32.mxu0 0.0
      %6114 = vmatmul.mubr.f32.gmra.mxu0 %v5954
      %v6115 = vpop.f32.mrf.mxu0
      %v6116 = vadd.f32 %v5795, %v6115
      %v6117 = vpop.f32.mrf.mxu0
      %6118 = vmatprep.mubr.f32.mxu0 0.0
      %6119 = vmatmul.mubr.f32.gmra.mxu0 %v5957
      %v6120 = vpop.f32.mrf.mxu0
      %v6121 = vadd.f32 %v5800, %v6120
      %v6122 = vpop.f32.mrf.mxu0
      %6123 = vmatprep.mubr.f32.mxu0 0.0
      %6124 = vmatmul.mubr.f32.gmra.mxu0 %v5960
      %v6125 = vpop.f32.mrf.mxu0
      %v6126 = vadd.f32 %v5805, %v6125
      %v6127 = vpop.f32.mrf.mxu0
      %6128 = vmatprep.mubr.f32.mxu0 0.0
      %6129 = vmatmul.mubr.f32.gmra.mxu0 %v5963
      %v6130 = vpop.f32.mrf.mxu0
      %v6131 = vadd.f32 %v5810, %v6130
      %v6132 = vpop.f32.mrf.mxu0
      %6133 = vmatprep.mubr.f32.mxu0 0.0
      %6134 = vmatmul.mubr.f32.gmra.mxu0 %v5966
      %v6135 = vpop.f32.mrf.mxu0
      %v6136 = vadd.f32 %v5815, %v6135
      %v6137 = vpop.f32.mrf.mxu0
      %6138 = vmatprep.mubr.f32.mxu0 0.0
      %6139 = vmatmul.mubr.f32.gmra.mxu0 %v5969
      %v6140 = vpop.f32.mrf.mxu0
      %v6141 = vadd.f32 %v5820, %v6140
      %v6142 = vpop.f32.mrf.mxu0
      %6143 = vmatprep.mubr.f32.mxu0 0.0
      %6144 = vmatmul.mubr.f32.gmra.mxu0 %v5972
      %v6145 = vpop.f32.mrf.mxu0
      %v6146 = vadd.f32 %v5825, %v6145
      %v6147 = vpop.f32.mrf.mxu0
      %6148 = vmatprep.mubr.f32.mxu0 0.0
      %6149 = vmatmul.mubr.f32.gmra.mxu0 %v5975
      %v6150 = vpop.f32.mrf.mxu0
      %v6151 = vadd.f32 %v5830, %v6150
      %v6152 = vpop.f32.mrf.mxu0
      %6153 = vmatprep.mubr.f32.mxu0 0.0
      %6154 = vmatmul.mubr.f32.gmra.mxu0 %v5978
      %v6155 = vpop.f32.mrf.mxu0
      %v6156 = vadd.f32 %v5835, %v6155
      %v6157 = vpop.f32.mrf.mxu0
      %6158 = vmatprep.mubr.f32.mxu0 0.0
      %6159 = vmatmul.mubr.f32.gmra.mxu0 %v5981
      %v6160 = vpop.f32.mrf.mxu0
      %v6161 = vadd.f32 %v5840, %v6160
      %v6162 = vpop.f32.mrf.mxu0
      %6163 = vmatprep.mubr.f32.mxu0 0.0
      %6164 = vmatmul.mubr.f32.gmra.mxu0 %v5984
      %v6165 = vpop.f32.mrf.mxu0
      %v6166 = vadd.f32 %v5845, %v6165
      %v6167 = vpop.f32.mrf.mxu0
      %6168 = vmatprep.mubr.f32.mxu0 0.0
      %6169 = vmatmul.mubr.f32.gmra.mxu0 %v5987
      %v6170 = vpop.f32.mrf.mxu0
      %v6171 = vadd.f32 %v5850, %v6170
      %v6172 = vpop.f32.mrf.mxu0
      %6173 = vmatprep.mubr.f32.mxu0 0.0
      %6174 = vmatmul.mubr.f32.gmra.mxu0 %v5990
      %v6175 = vpop.f32.mrf.mxu0
      %v6176 = vadd.f32 %v5855, %v6175
      %v6177 = vpop.f32.mrf.mxu0
      %6178 = vmatprep.mubr.f32.mxu0 0.0
      %6179 = vmatmul.mubr.f32.gmra.mxu0 %v5993
      %v6180 = vpop.f32.mrf.mxu0
      %v6181 = vadd.f32 %v5860, %v6180
      %v6182 = vpop.f32.mrf.mxu0
      %6183 = vmatprep.mubr.f32.mxu0 0.0
      %6184 = vmatmul.mubr.f32.gmra.mxu0 %v5996
      %v6185 = vpop.f32.mrf.mxu0
      %v6186 = vadd.f32 %v5865, %v6185
      %v6187 = vpop.f32.mrf.mxu0
      %6188 = vmatprep.mubr.f32.mxu0 0.0
      %6189 = vmatmul.mubr.f32.gmra.mxu0 %v5999
      %v6190 = vpop.f32.mrf.mxu0
      %v6191 = vadd.f32 %v5870, %v6190
      %v6192 = vpop.f32.mrf.mxu0
      %6193 = vmatprep.mubr.f32.mxu0 0.0
      %6194 = vmatmul.mubr.f32.gmra.mxu0 %v6002
      %v6195 = vpop.f32.mrf.mxu0
      %v6196 = vadd.f32 %v5875, %v6195
      %v6197 = vpop.f32.mrf.mxu0
      %6198 = vmatprep.mubr.f32.mxu0 0.0
      %6199 = vmatmul.mubr.f32.gmra.mxu0 %v6005
      %v6200 = vpop.f32.mrf.mxu0
      %v6201 = vadd.f32 %v5880, %v6200
      %v6202 = vpop.f32.mrf.mxu0
      %6203 = vmatprep.mubr.f32.mxu0 0.0
      %6204 = vmatmul.mubr.f32.gmra.mxu0 %v6008
      %v6205 = vpop.f32.mrf.mxu0
      %v6206 = vadd.f32 %v5885, %v6205
      %v6207 = vpop.f32.mrf.mxu0
      %6208 = vmatprep.mubr.f32.mxu0 0.0
      %6209 = vmatmul.mubr.f32.gmra.mxu0 %v6011
      %v6210 = vpop.f32.mrf.mxu0
      %v6211 = vadd.f32 %v5890, %v6210
      %v6212 = vpop.f32.mrf.mxu0
      %6213 = vmatprep.mubr.f32.mxu0 0.0
      %6214 = vmatmul.mubr.f32.gmra.mxu0 %v6014
      %v6215 = vpop.f32.mrf.mxu0
      %v6216 = vadd.f32 %v5895, %v6215
      %v6217 = vpop.f32.mrf.mxu0
      %6218 = vmatprep.mubr.f32.mxu0 0.0
      %6219 = vmatmul.mubr.f32.gmra.mxu0 %v6017
      %v6220 = vpop.f32.mrf.mxu0
      %v6221 = vadd.f32 %v5900, %v6220
      %v6222 = vpop.f32.mrf.mxu0
      %6223 = vmatprep.mubr.f32.mxu0 0.0
      %6224 = vmatmul.mubr.f32.gmra.mxu0 %v6020
      %v6225 = vpop.f32.mrf.mxu0
      %v6226 = vadd.f32 %v5905, %v6225
      %v6227 = vpop.f32.mrf.mxu0
      %6228 = vmatprep.mubr.f32.mxu0 0.0
      %6229 = vmatmul.mubr.f32.gmra.mxu0 %v6023
      %v6230 = vpop.f32.mrf.mxu0
      %v6231 = vadd.f32 %v5910, %v6230
      %v6232 = vpop.f32.mrf.mxu0
      %6233 = vmatprep.mubr.f32.mxu0 0.0
      %6234 = vmatmul.mubr.f32.gmra.mxu0 %v6026
      %v6235 = vpop.f32.mrf.mxu0
      %v6236 = vadd.f32 %v5915, %v6235
      %v6237 = vpop.f32.mrf.mxu0
      %6238 = vmatprep.mubr.f32.mxu0 0.0
      %6239 = vmatmul.mubr.f32.gmra.mxu0 %v6029
      %v6240 = vpop.f32.mrf.mxu0
      %v6241 = vadd.f32 %v5920, %v6240
      %v6242 = vpop.f32.mrf.mxu0
      %6243 = vmatprep.mubr.f32.mxu0 0.0
      %6244 = vmatmul.mubr.f32.gmra.mxu0 %v6032
      %v6245 = vpop.f32.mrf.mxu0
      %v6246 = vadd.f32 %v5925, %v6245
      %v6247 = vpop.f32.mrf.mxu0
      %6248 = vmatprep.mubr.f32.mxu0 0.0
      %6249 = vmatmul.mubr.f32.gmra.mxu0 %v6035
      %v6250 = vpop.f32.mrf.mxu0
      %v6251 = vadd.f32 %v5930, %v6250
      %v6252 = vpop.f32.mrf.mxu0
      %6253 = vmatprep.mubr.f32.mxu0 0.0
      %6254 = vmatmul.mubr.f32.gmra.mxu0 %v6038
      %v6255 = vpop.f32.mrf.mxu0
      %v6256 = vadd.f32 %v5935, %v6255
      %v6257 = vpop.f32.mrf.mxu0
      %6258 = vmatprep.mubr.f32.mxu0 0.0
      %6259 = vmatmul.mubr.f32.gmra.mxu0 %v6041
      %v6260 = vpop.f32.mrf.mxu0
      %v6261 = vadd.f32 %v5940, %v6260
      %v6262 = vpop.f32.mrf.mxu0
      %6263 = vmatprep.mubr.f32.mxu0 0.0
      %6264 = vmatmul.mubr.f32.gmra.mxu0 %v6044
      %v6265 = vpop.f32.mrf.mxu0
      %v6266 = vadd.f32 %v5945, %v6265
      %v6267 = vpop.f32.mrf.mxu0
      %6268 = vmatprep.mubr.f32.mxu0 0.0
      %6269 = vmatmul.mubr.f32.gmra.mxu0 %v6047
      %v6270 = vpop.f32.mrf.mxu0
      %v6271 = vadd.f32 %v5950, %v6270
      %v6272 = vpop.f32.mrf.mxu0
      %6273 = vdwg.mxu0
      %v6274 = vld [vmem:[#allocation5 + $0x2] sm:$0xff]
      %v6275 = vld [vmem:[#allocation5 + $0xa] sm:$0xff]
      %v6276 = vld [vmem:[#allocation5 + $0x1a] sm:$0xff]
      %v6277 = vld [vmem:[#allocation5 + $0x22] sm:$0xff]
      %v6278 = vld [vmem:[#allocation5 + $0x32] sm:$0xff]
      %v6279 = vld [vmem:[#allocation5 + $0x3a] sm:$0xff]
      %v6280 = vld [vmem:[#allocation5 + $0x4a] sm:$0xff]
      %v6281 = vld [vmem:[#allocation5 + $0x52] sm:$0xff]
      %v6282 = vld [vmem:[#allocation5 + $0x62] sm:$0xff]
      %v6283 = vld [vmem:[#allocation5 + $0x6a] sm:$0xff]
      %v6284 = vld [vmem:[#allocation5 + $0x7a] sm:$0xff]
      %v6285 = vld [vmem:[#allocation5 + $0x82] sm:$0xff]
      %v6286 = vld [vmem:[#allocation5 + $0x92] sm:$0xff]
      %v6287 = vld [vmem:[#allocation5 + $0x9a] sm:$0xff]
      %v6288 = vld [vmem:[#allocation5 + $0xaa] sm:$0xff]
      %v6289 = vld [vmem:[#allocation5 + $0xb2] sm:$0xff]
      %v6290 = vld [vmem:[#allocation5 + $0xc2] sm:$0xff]
      %v6291 = vld [vmem:[#allocation5 + $0xca] sm:$0xff]
      %v6292 = vld [vmem:[#allocation5 + $0xda] sm:$0xff]
      %v6293 = vld [vmem:[#allocation5 + $0xe2] sm:$0xff]
      %v6294 = vld [vmem:[#allocation5 + $0xf2] sm:$0xff]
      %v6295 = vld [vmem:[#allocation5 + $0xfa] sm:$0xff]
      %v6296 = vld [vmem:[#allocation5 + $0x10a] sm:$0xff]
      %v6297 = vld [vmem:[#allocation5 + $0x112] sm:$0xff]
      %v6298 = vld [vmem:[#allocation5 + $0x122] sm:$0xff]
      %v6299 = vld [vmem:[#allocation5 + $0x12a] sm:$0xff]
      %v6300 = vld [vmem:[#allocation5 + $0x13a] sm:$0xff]
      %v6301 = vld [vmem:[#allocation5 + $0x142] sm:$0xff]
      %v6302 = vld [vmem:[#allocation5 + $0x152] sm:$0xff]
      %v6303 = vld [vmem:[#allocation5 + $0x15a] sm:$0xff]
      %v6304 = vld [vmem:[#allocation5 + $0x16a] sm:$0xff]
      %v6305 = vld [vmem:[#allocation5 + $0x172] sm:$0xff]
      %s6306 = scalar_lea.vmem %s8, 64
      %v6307 = vld [vmem:[%s6306] sm:$0xff]
      %v6308 = vld [vmem:[%s6306 + $0x8] sm:$0xff]
      %v6309 = vld [vmem:[%s6306 + $0x10] sm:$0xff]
      %v6310 = vld [vmem:[%s6306 + $0x18] sm:$0xff]
      %v6312 = vsel %vm642, %v6274, 0
      %v6315 = vsel %vm642, %v6275, 0
      %v6318 = vsel %vm642, %v6276, 0
      %v6321 = vsel %vm642, %v6277, 0
      %v6324 = vsel %vm642, %v6278, 0
      %v6327 = vsel %vm642, %v6279, 0
      %v6330 = vsel %vm642, %v6280, 0
      %v6333 = vsel %vm642, %v6281, 0
      %v6336 = vsel %vm642, %v6282, 0
      %v6339 = vsel %vm642, %v6283, 0
      %v6342 = vsel %vm642, %v6284, 0
      %v6345 = vsel %vm642, %v6285, 0
      %v6348 = vsel %vm642, %v6286, 0
      %v6351 = vsel %vm642, %v6287, 0
      %v6354 = vsel %vm642, %v6288, 0
      %v6357 = vsel %vm642, %v6289, 0
      %v6360 = vsel %vm642, %v6290, 0
      %v6363 = vsel %vm642, %v6291, 0
      %v6366 = vsel %vm642, %v6292, 0
      %v6369 = vsel %vm642, %v6293, 0
      %v6372 = vsel %vm642, %v6294, 0
      %v6375 = vsel %vm642, %v6295, 0
      %v6378 = vsel %vm642, %v6296, 0
      %v6381 = vsel %vm642, %v6297, 0
      %v6384 = vsel %vm642, %v6298, 0
      %v6387 = vsel %vm642, %v6299, 0
      %v6390 = vsel %vm642, %v6300, 0
      %v6393 = vsel %vm642, %v6301, 0
      %v6396 = vsel %vm642, %v6302, 0
      %v6399 = vsel %vm642, %v6303, 0
      %v6402 = vsel %vm642, %v6304, 0
      %v6405 = vsel %vm642, %v6305, 0
      %6407 = vmatprep.subr.mxu0 0.0
      %6408 = vmatpush1.msra.mxu0 0.0
      %6409 = vmatprep.subr.mxu0 0.0
      %6410 = vmatpush1.msra.mxu0 0.0
      %6411 = vmatprep.subr.mxu0 0.0
      %6412 = vmatpush1.msra.mxu0 0.0
      %6413 = vmatprep.subr.mxu0 0.0
      %6414 = vmatpush1.msra.mxu0 0.0
      %6415 = vmatprep.subr.mxu0 0.0
      %6416 = vmatpush1.msra.mxu0 0.0
      %6417 = vmatprep.subr.mxu0 0.0
      %6418 = vmatpush1.msra.mxu0 0.0
      %6419 = vmatprep.subr.mxu0 0.0
      %6420 = vmatpush1.msra.mxu0 0.0
      %6421 = vmatprep.subr.mxu0 0.0
      %6422 = vmatpush1.msra.mxu0 0.0
      %6423 = vmatprep.subr.mxu0 0.0
      %6424 = vmatpush1.msra.mxu0 0.0
      %6425 = vmatprep.subr.mxu0 0.0
      %6426 = vmatpush1.msra.mxu0 0.0
      %6427 = vmatprep.subr.mxu0 0.0
      %6428 = vmatpush1.msra.mxu0 0.0
      %6429 = vmatprep.subr.mxu0 0.0
      %6430 = vmatpush1.msra.mxu0 0.0
      %6431 = vmatprep.subr.mxu0 0.0
      %6432 = vmatpush1.msra.mxu0 %v6310
      %6433 = vmatprep.subr.mxu0 0.0
      %6434 = vmatpush1.msra.mxu0 %v6309
      %6435 = vmatprep.subr.mxu0 0.0
      %6436 = vmatpush1.msra.mxu0 %v6308
      %6437 = vmatprep.subr.mxu0 0.0
      %6438 = vmatpush1.msra.mxu0 %v6307
      %6439 = vmatprep.subr.mxu0 0.0
      %6440 = vmatpush2.msra.mxu0 0.0
      %6441 = vmatprep.subr.mxu0 0.0
      %6442 = vmatpush2.msra.mxu0 0.0
      %6443 = vmatprep.subr.mxu0 0.0
      %6444 = vmatpush2.msra.mxu0 0.0
      %6445 = vmatprep.subr.mxu0 0.0
      %6446 = vmatpush2.msra.mxu0 0.0
      %6447 = vmatprep.subr.mxu0 0.0
      %6448 = vmatpush2.msra.mxu0 0.0
      %6449 = vmatprep.subr.mxu0 0.0
      %6450 = vmatpush2.msra.mxu0 0.0
      %6451 = vmatprep.subr.mxu0 0.0
      %6452 = vmatpush2.msra.mxu0 0.0
      %6453 = vmatprep.subr.mxu0 0.0
      %6454 = vmatpush2.msra.mxu0 0.0
      %6455 = vmatprep.subr.mxu0 0.0
      %6456 = vmatpush2.msra.mxu0 0.0
      %6457 = vmatprep.subr.mxu0 0.0
      %6458 = vmatpush2.msra.mxu0 0.0
      %6459 = vmatprep.subr.mxu0 0.0
      %6460 = vmatpush2.msra.mxu0 0.0
      %6461 = vmatprep.subr.mxu0 0.0
      %6462 = vmatpush2.msra.mxu0 0.0
      %6463 = vmatprep.subr.mxu0 0.0
      %6464 = vmatpush2.msra.mxu0 0.0
      %6465 = vmatprep.subr.mxu0 0.0
      %6466 = vmatpush2.msra.mxu0 0.0
      %6467 = vmatprep.subr.mxu0 0.0
      %6468 = vmatpush2.msra.mxu0 0.0
      %6469 = vmatprep.subr.mxu0 0.0
      %6470 = vmatpush2.msra.mxu0 0.0
      %6471 = vmatprep.mubr.f32.mxu0 0.0
      %6472 = vmatmul.mubr.f32.gmra.mxu0 %v6312
      %v6473 = vpop.f32.mrf.mxu0
      %v6474 = vadd.f32 0.0, %v6473
      %v6475 = vpop.f32.mrf.mxu0
      %6476 = vmatprep.mubr.f32.mxu0 0.0
      %6477 = vmatmul.mubr.f32.gmra.mxu0 %v6315
      %v6478 = vpop.f32.mrf.mxu0
      %v6479 = vadd.f32 0.0, %v6478
      %v6480 = vpop.f32.mrf.mxu0
      %6481 = vmatprep.mubr.f32.mxu0 0.0
      %6482 = vmatmul.mubr.f32.gmra.mxu0 %v6318
      %v6483 = vpop.f32.mrf.mxu0
      %v6484 = vadd.f32 0.0, %v6483
      %v6485 = vpop.f32.mrf.mxu0
      %6486 = vmatprep.mubr.f32.mxu0 0.0
      %6487 = vmatmul.mubr.f32.gmra.mxu0 %v6321
      %v6488 = vpop.f32.mrf.mxu0
      %v6489 = vadd.f32 0.0, %v6488
      %v6490 = vpop.f32.mrf.mxu0
      %6491 = vmatprep.mubr.f32.mxu0 0.0
      %6492 = vmatmul.mubr.f32.gmra.mxu0 %v6324
      %v6493 = vpop.f32.mrf.mxu0
      %v6494 = vadd.f32 0.0, %v6493
      %v6495 = vpop.f32.mrf.mxu0
      %6496 = vmatprep.mubr.f32.mxu0 0.0
      %6497 = vmatmul.mubr.f32.gmra.mxu0 %v6327
      %v6498 = vpop.f32.mrf.mxu0
      %v6499 = vadd.f32 0.0, %v6498
      %v6500 = vpop.f32.mrf.mxu0
      %6501 = vmatprep.mubr.f32.mxu0 0.0
      %6502 = vmatmul.mubr.f32.gmra.mxu0 %v6330
      %v6503 = vpop.f32.mrf.mxu0
      %v6504 = vadd.f32 0.0, %v6503
      %v6505 = vpop.f32.mrf.mxu0
      %6506 = vmatprep.mubr.f32.mxu0 0.0
      %6507 = vmatmul.mubr.f32.gmra.mxu0 %v6333
      %v6508 = vpop.f32.mrf.mxu0
      %v6509 = vadd.f32 0.0, %v6508
      %v6510 = vpop.f32.mrf.mxu0
      %6511 = vmatprep.mubr.f32.mxu0 0.0
      %6512 = vmatmul.mubr.f32.gmra.mxu0 %v6336
      %v6513 = vpop.f32.mrf.mxu0
      %v6514 = vadd.f32 0.0, %v6513
      %v6515 = vpop.f32.mrf.mxu0
      %6516 = vmatprep.mubr.f32.mxu0 0.0
      %6517 = vmatmul.mubr.f32.gmra.mxu0 %v6339
      %v6518 = vpop.f32.mrf.mxu0
      %v6519 = vadd.f32 0.0, %v6518
      %v6520 = vpop.f32.mrf.mxu0
      %6521 = vmatprep.mubr.f32.mxu0 0.0
      %6522 = vmatmul.mubr.f32.gmra.mxu0 %v6342
      %v6523 = vpop.f32.mrf.mxu0
      %v6524 = vadd.f32 0.0, %v6523
      %v6525 = vpop.f32.mrf.mxu0
      %6526 = vmatprep.mubr.f32.mxu0 0.0
      %6527 = vmatmul.mubr.f32.gmra.mxu0 %v6345
      %v6528 = vpop.f32.mrf.mxu0
      %v6529 = vadd.f32 0.0, %v6528
      %v6530 = vpop.f32.mrf.mxu0
      %6531 = vmatprep.mubr.f32.mxu0 0.0
      %6532 = vmatmul.mubr.f32.gmra.mxu0 %v6348
      %v6533 = vpop.f32.mrf.mxu0
      %v6534 = vadd.f32 0.0, %v6533
      %v6535 = vpop.f32.mrf.mxu0
      %6536 = vmatprep.mubr.f32.mxu0 0.0
      %6537 = vmatmul.mubr.f32.gmra.mxu0 %v6351
      %v6538 = vpop.f32.mrf.mxu0
      %v6539 = vadd.f32 0.0, %v6538
      %v6540 = vpop.f32.mrf.mxu0
      %6541 = vmatprep.mubr.f32.mxu0 0.0
      %6542 = vmatmul.mubr.f32.gmra.mxu0 %v6354
      %v6543 = vpop.f32.mrf.mxu0
      %v6544 = vadd.f32 0.0, %v6543
      %v6545 = vpop.f32.mrf.mxu0
      %6546 = vmatprep.mubr.f32.mxu0 0.0
      %6547 = vmatmul.mubr.f32.gmra.mxu0 %v6357
      %v6548 = vpop.f32.mrf.mxu0
      %v6549 = vadd.f32 0.0, %v6548
      %v6550 = vpop.f32.mrf.mxu0
      %6551 = vmatprep.mubr.f32.mxu0 0.0
      %6552 = vmatmul.mubr.f32.gmra.mxu0 %v6360
      %v6553 = vpop.f32.mrf.mxu0
      %v6554 = vadd.f32 0.0, %v6553
      %v6555 = vpop.f32.mrf.mxu0
      %6556 = vmatprep.mubr.f32.mxu0 0.0
      %6557 = vmatmul.mubr.f32.gmra.mxu0 %v6363
      %v6558 = vpop.f32.mrf.mxu0
      %v6559 = vadd.f32 0.0, %v6558
      %v6560 = vpop.f32.mrf.mxu0
      %6561 = vmatprep.mubr.f32.mxu0 0.0
      %6562 = vmatmul.mubr.f32.gmra.mxu0 %v6366
      %v6563 = vpop.f32.mrf.mxu0
      %v6564 = vadd.f32 0.0, %v6563
      %v6565 = vpop.f32.mrf.mxu0
      %6566 = vmatprep.mubr.f32.mxu0 0.0
      %6567 = vmatmul.mubr.f32.gmra.mxu0 %v6369
      %v6568 = vpop.f32.mrf.mxu0
      %v6569 = vadd.f32 0.0, %v6568
      %v6570 = vpop.f32.mrf.mxu0
      %6571 = vmatprep.mubr.f32.mxu0 0.0
      %6572 = vmatmul.mubr.f32.gmra.mxu0 %v6372
      %v6573 = vpop.f32.mrf.mxu0
      %v6574 = vadd.f32 0.0, %v6573
      %v6575 = vpop.f32.mrf.mxu0
      %6576 = vmatprep.mubr.f32.mxu0 0.0
      %6577 = vmatmul.mubr.f32.gmra.mxu0 %v6375
      %v6578 = vpop.f32.mrf.mxu0
      %v6579 = vadd.f32 0.0, %v6578
      %v6580 = vpop.f32.mrf.mxu0
      %6581 = vmatprep.mubr.f32.mxu0 0.0
      %6582 = vmatmul.mubr.f32.gmra.mxu0 %v6378
      %v6583 = vpop.f32.mrf.mxu0
      %v6584 = vadd.f32 0.0, %v6583
      %v6585 = vpop.f32.mrf.mxu0
      %6586 = vmatprep.mubr.f32.mxu0 0.0
      %6587 = vmatmul.mubr.f32.gmra.mxu0 %v6381
      %v6588 = vpop.f32.mrf.mxu0
      %v6589 = vadd.f32 0.0, %v6588
      %v6590 = vpop.f32.mrf.mxu0
      %6591 = vmatprep.mubr.f32.mxu0 0.0
      %6592 = vmatmul.mubr.f32.gmra.mxu0 %v6384
      %v6593 = vpop.f32.mrf.mxu0
      %v6594 = vadd.f32 0.0, %v6593
      %v6595 = vpop.f32.mrf.mxu0
      %6596 = vmatprep.mubr.f32.mxu0 0.0
      %6597 = vmatmul.mubr.f32.gmra.mxu0 %v6387
      %v6598 = vpop.f32.mrf.mxu0
      %v6599 = vadd.f32 0.0, %v6598
      %v6600 = vpop.f32.mrf.mxu0
      %6601 = vmatprep.mubr.f32.mxu0 0.0
      %6602 = vmatmul.mubr.f32.gmra.mxu0 %v6390
      %v6603 = vpop.f32.mrf.mxu0
      %v6604 = vadd.f32 0.0, %v6603
      %v6605 = vpop.f32.mrf.mxu0
      %6606 = vmatprep.mubr.f32.mxu0 0.0
      %6607 = vmatmul.mubr.f32.gmra.mxu0 %v6393
      %v6608 = vpop.f32.mrf.mxu0
      %v6609 = vadd.f32 0.0, %v6608
      %v6610 = vpop.f32.mrf.mxu0
      %6611 = vmatprep.mubr.f32.mxu0 0.0
      %6612 = vmatmul.mubr.f32.gmra.mxu0 %v6396
      %v6613 = vpop.f32.mrf.mxu0
      %v6614 = vadd.f32 0.0, %v6613
      %v6615 = vpop.f32.mrf.mxu0
      %6616 = vmatprep.mubr.f32.mxu0 0.0
      %6617 = vmatmul.mubr.f32.gmra.mxu0 %v6399
      %v6618 = vpop.f32.mrf.mxu0
      %v6619 = vadd.f32 0.0, %v6618
      %v6620 = vpop.f32.mrf.mxu0
      %6621 = vmatprep.mubr.f32.mxu0 0.0
      %6622 = vmatmul.mubr.f32.gmra.mxu0 %v6402
      %v6623 = vpop.f32.mrf.mxu0
      %v6624 = vadd.f32 0.0, %v6623
      %v6625 = vpop.f32.mrf.mxu0
      %6626 = vmatprep.mubr.f32.mxu0 0.0
      %6627 = vmatmul.mubr.f32.gmra.mxu0 %v6405
      %v6628 = vpop.f32.mrf.mxu0
      %v6629 = vadd.f32 0.0, %v6628
      %v6630 = vpop.f32.mrf.mxu0
      %6631 = vdwg.mxu0
      %v6632 = vadd.f32 %v6116, %v6474
      %v6633 = vadd.f32 %v6121, %v6479
      %v6634 = vadd.f32 %v6126, %v6484
      %v6635 = vadd.f32 %v6131, %v6489
      %v6636 = vadd.f32 %v6136, %v6494
      %v6637 = vadd.f32 %v6141, %v6499
      %v6638 = vadd.f32 %v6146, %v6504
      %v6639 = vadd.f32 %v6151, %v6509
      %v6640 = vadd.f32 %v6156, %v6514
      %v6641 = vadd.f32 %v6161, %v6519
      %v6642 = vadd.f32 %v6166, %v6524
      %v6643 = vadd.f32 %v6171, %v6529
      %v6644 = vadd.f32 %v6176, %v6534
      %v6645 = vadd.f32 %v6181, %v6539
      %v6646 = vadd.f32 %v6186, %v6544
      %v6647 = vadd.f32 %v6191, %v6549
      %v6648 = vadd.f32 %v6196, %v6554
      %v6649 = vadd.f32 %v6201, %v6559
      %v6650 = vadd.f32 %v6206, %v6564
      %v6651 = vadd.f32 %v6211, %v6569
      %v6652 = vadd.f32 %v6216, %v6574
      %v6653 = vadd.f32 %v6221, %v6579
      %v6654 = vadd.f32 %v6226, %v6584
      %v6655 = vadd.f32 %v6231, %v6589
      %v6656 = vadd.f32 %v6236, %v6594
      %v6657 = vadd.f32 %v6241, %v6599
      %v6658 = vadd.f32 %v6246, %v6604
      %v6659 = vadd.f32 %v6251, %v6609
      %v6660 = vadd.f32 %v6256, %v6614
      %v6661 = vadd.f32 %v6261, %v6619
      %v6662 = vadd.f32 %v6266, %v6624
      %v6663 = vadd.f32 %v6271, %v6629
      %v6664 = vld [vmem:[%s5526] sm:$0xff]
      %v6665 = vld [vmem:[%s5526 + $0x8] sm:$0xff]
      %v6666 = vld [vmem:[%s5526 + $0x18] sm:$0xff]
      %v6667 = vld [vmem:[%s5526 + $0x20] sm:$0xff]
      %v6668 = vld [vmem:[%s5526 + $0x30] sm:$0xff]
      %v6669 = vld [vmem:[%s5526 + $0x38] sm:$0xff]
      %v6670 = vld [vmem:[%s5526 + $0x48] sm:$0xff]
      %v6671 = vld [vmem:[%s5526 + $0x50] sm:$0xff]
      %v6672 = vld [vmem:[%s5526 + $0x60] sm:$0xff]
      %v6673 = vld [vmem:[%s5526 + $0x68] sm:$0xff]
      %v6674 = vld [vmem:[%s5526 + $0x78] sm:$0xff]
      %v6675 = vld [vmem:[%s5526 + $0x80] sm:$0xff]
      %v6676 = vld [vmem:[%s5526 + $0x90] sm:$0xff]
      %v6677 = vld [vmem:[%s5526 + $0x98] sm:$0xff]
      %v6678 = vld [vmem:[%s5526 + $0xa8] sm:$0xff]
      %v6679 = vld [vmem:[%s5526 + $0xb0] sm:$0xff]
      %v6680 = vld [vmem:[%s5526 + $0xc0] sm:$0xff]
      %v6681 = vld [vmem:[%s5526 + $0xc8] sm:$0xff]
      %v6682 = vld [vmem:[%s5526 + $0xd8] sm:$0xff]
      %v6683 = vld [vmem:[%s5526 + $0xe0] sm:$0xff]
      %v6684 = vld [vmem:[%s5526 + $0xf0] sm:$0xff]
      %v6685 = vld [vmem:[%s5526 + $0xf8] sm:$0xff]
      %v6686 = vld [vmem:[%s5526 + $0x108] sm:$0xff]
      %v6687 = vld [vmem:[%s5526 + $0x110] sm:$0xff]
      %v6688 = vld [vmem:[%s5526 + $0x120] sm:$0xff]
      %v6689 = vld [vmem:[%s5526 + $0x128] sm:$0xff]
      %v6690 = vld [vmem:[%s5526 + $0x138] sm:$0xff]
      %v6691 = vld [vmem:[%s5526 + $0x140] sm:$0xff]
      %v6692 = vld [vmem:[%s5526 + $0x150] sm:$0xff]
      %v6693 = vld [vmem:[%s5526 + $0x158] sm:$0xff]
      %v6694 = vld [vmem:[%s5526 + $0x168] sm:$0xff]
      %v6695 = vld [vmem:[%s5526 + $0x170] sm:$0xff]
      %s6696 = scalar_lea.vmem %s8, 96
      %v6697 = vld [vmem:[%s6696] sm:$0xff]
      %v6698 = vld [vmem:[%s6696 + $0x8] sm:$0xff]
      %v6699 = vld [vmem:[%s6696 + $0x10] sm:$0xff]
      %v6700 = vld [vmem:[%s6696 + $0x18] sm:$0xff]
      %v6702 = vsel %vm642, %v6664, 0
      %v6705 = vsel %vm642, %v6665, 0
      %v6708 = vsel %vm642, %v6666, 0
      %v6711 = vsel %vm642, %v6667, 0
      %v6714 = vsel %vm642, %v6668, 0
      %v6717 = vsel %vm642, %v6669, 0
      %v6720 = vsel %vm642, %v6670, 0
      %v6723 = vsel %vm642, %v6671, 0
      %v6726 = vsel %vm642, %v6672, 0
      %v6729 = vsel %vm642, %v6673, 0
      %v6732 = vsel %vm642, %v6674, 0
      %v6735 = vsel %vm642, %v6675, 0
      %v6738 = vsel %vm642, %v6676, 0
      %v6741 = vsel %vm642, %v6677, 0
      %v6744 = vsel %vm642, %v6678, 0
      %v6747 = vsel %vm642, %v6679, 0
      %v6750 = vsel %vm642, %v6680, 0
      %v6753 = vsel %vm642, %v6681, 0
      %v6756 = vsel %vm642, %v6682, 0
      %v6759 = vsel %vm642, %v6683, 0
      %v6762 = vsel %vm642, %v6684, 0
      %v6765 = vsel %vm642, %v6685, 0
      %v6768 = vsel %vm642, %v6686, 0
      %v6771 = vsel %vm642, %v6687, 0
      %v6774 = vsel %vm642, %v6688, 0
      %v6777 = vsel %vm642, %v6689, 0
      %v6780 = vsel %vm642, %v6690, 0
      %v6783 = vsel %vm642, %v6691, 0
      %v6786 = vsel %vm642, %v6692, 0
      %v6789 = vsel %vm642, %v6693, 0
      %v6792 = vsel %vm642, %v6694, 0
      %v6795 = vsel %vm642, %v6695, 0
      %6797 = vmatprep.subr.mxu0 0.0
      %6798 = vmatpush1.msra.mxu0 0.0
      %6799 = vmatprep.subr.mxu0 0.0
      %6800 = vmatpush1.msra.mxu0 0.0
      %6801 = vmatprep.subr.mxu0 0.0
      %6802 = vmatpush1.msra.mxu0 0.0
      %6803 = vmatprep.subr.mxu0 0.0
      %6804 = vmatpush1.msra.mxu0 0.0
      %6805 = vmatprep.subr.mxu0 0.0
      %6806 = vmatpush1.msra.mxu0 0.0
      %6807 = vmatprep.subr.mxu0 0.0
      %6808 = vmatpush1.msra.mxu0 0.0
      %6809 = vmatprep.subr.mxu0 0.0
      %6810 = vmatpush1.msra.mxu0 0.0
      %6811 = vmatprep.subr.mxu0 0.0
      %6812 = vmatpush1.msra.mxu0 0.0
      %6813 = vmatprep.subr.mxu0 0.0
      %6814 = vmatpush1.msra.mxu0 0.0
      %6815 = vmatprep.subr.mxu0 0.0
      %6816 = vmatpush1.msra.mxu0 0.0
      %6817 = vmatprep.subr.mxu0 0.0
      %6818 = vmatpush1.msra.mxu0 0.0
      %6819 = vmatprep.subr.mxu0 0.0
      %6820 = vmatpush1.msra.mxu0 0.0
      %6821 = vmatprep.subr.mxu0 0.0
      %6822 = vmatpush1.msra.mxu0 %v6700
      %6823 = vmatprep.subr.mxu0 0.0
      %6824 = vmatpush1.msra.mxu0 %v6699
      %6825 = vmatprep.subr.mxu0 0.0
      %6826 = vmatpush1.msra.mxu0 %v6698
      %6827 = vmatprep.subr.mxu0 0.0
      %6828 = vmatpush1.msra.mxu0 %v6697
      %6829 = vmatprep.subr.mxu0 0.0
      %6830 = vmatpush2.msra.mxu0 0.0
      %6831 = vmatprep.subr.mxu0 0.0
      %6832 = vmatpush2.msra.mxu0 0.0
      %6833 = vmatprep.subr.mxu0 0.0
      %6834 = vmatpush2.msra.mxu0 0.0
      %6835 = vmatprep.subr.mxu0 0.0
      %6836 = vmatpush2.msra.mxu0 0.0
      %6837 = vmatprep.subr.mxu0 0.0
      %6838 = vmatpush2.msra.mxu0 0.0
      %6839 = vmatprep.subr.mxu0 0.0
      %6840 = vmatpush2.msra.mxu0 0.0
      %6841 = vmatprep.subr.mxu0 0.0
      %6842 = vmatpush2.msra.mxu0 0.0
      %6843 = vmatprep.subr.mxu0 0.0
      %6844 = vmatpush2.msra.mxu0 0.0
      %6845 = vmatprep.subr.mxu0 0.0
      %6846 = vmatpush2.msra.mxu0 0.0
      %6847 = vmatprep.subr.mxu0 0.0
      %6848 = vmatpush2.msra.mxu0 0.0
      %6849 = vmatprep.subr.mxu0 0.0
      %6850 = vmatpush2.msra.mxu0 0.0
      %6851 = vmatprep.subr.mxu0 0.0
      %6852 = vmatpush2.msra.mxu0 0.0
      %6853 = vmatprep.subr.mxu0 0.0
      %6854 = vmatpush2.msra.mxu0 0.0
      %6855 = vmatprep.subr.mxu0 0.0
      %6856 = vmatpush2.msra.mxu0 0.0
      %6857 = vmatprep.subr.mxu0 0.0
      %6858 = vmatpush2.msra.mxu0 0.0
      %6859 = vmatprep.subr.mxu0 0.0
      %6860 = vmatpush2.msra.mxu0 0.0
      %6861 = vmatprep.mubr.f32.mxu0 0.0
      %6862 = vmatmul.mubr.f32.gmra.mxu0 %v6702
      %v6863 = vpop.f32.mrf.mxu0
      %v6864 = vadd.f32 0.0, %v6863
      %v6865 = vpop.f32.mrf.mxu0
      %6866 = vmatprep.mubr.f32.mxu0 0.0
      %6867 = vmatmul.mubr.f32.gmra.mxu0 %v6705
      %v6868 = vpop.f32.mrf.mxu0
      %v6869 = vadd.f32 0.0, %v6868
      %v6870 = vpop.f32.mrf.mxu0
      %6871 = vmatprep.mubr.f32.mxu0 0.0
      %6872 = vmatmul.mubr.f32.gmra.mxu0 %v6708
      %v6873 = vpop.f32.mrf.mxu0
      %v6874 = vadd.f32 0.0, %v6873
      %v6875 = vpop.f32.mrf.mxu0
      %6876 = vmatprep.mubr.f32.mxu0 0.0
      %6877 = vmatmul.mubr.f32.gmra.mxu0 %v6711
      %v6878 = vpop.f32.mrf.mxu0
      %v6879 = vadd.f32 0.0, %v6878
      %v6880 = vpop.f32.mrf.mxu0
      %6881 = vmatprep.mubr.f32.mxu0 0.0
      %6882 = vmatmul.mubr.f32.gmra.mxu0 %v6714
      %v6883 = vpop.f32.mrf.mxu0
      %v6884 = vadd.f32 0.0, %v6883
      %v6885 = vpop.f32.mrf.mxu0
      %6886 = vmatprep.mubr.f32.mxu0 0.0
      %6887 = vmatmul.mubr.f32.gmra.mxu0 %v6717
      %v6888 = vpop.f32.mrf.mxu0
      %v6889 = vadd.f32 0.0, %v6888
      %v6890 = vpop.f32.mrf.mxu0
      %6891 = vmatprep.mubr.f32.mxu0 0.0
      %6892 = vmatmul.mubr.f32.gmra.mxu0 %v6720
      %v6893 = vpop.f32.mrf.mxu0
      %v6894 = vadd.f32 0.0, %v6893
      %v6895 = vpop.f32.mrf.mxu0
      %6896 = vmatprep.mubr.f32.mxu0 0.0
      %6897 = vmatmul.mubr.f32.gmra.mxu0 %v6723
      %v6898 = vpop.f32.mrf.mxu0
      %v6899 = vadd.f32 0.0, %v6898
      %v6900 = vpop.f32.mrf.mxu0
      %6901 = vmatprep.mubr.f32.mxu0 0.0
      %6902 = vmatmul.mubr.f32.gmra.mxu0 %v6726
      %v6903 = vpop.f32.mrf.mxu0
      %v6904 = vadd.f32 0.0, %v6903
      %v6905 = vpop.f32.mrf.mxu0
      %6906 = vmatprep.mubr.f32.mxu0 0.0
      %6907 = vmatmul.mubr.f32.gmra.mxu0 %v6729
      %v6908 = vpop.f32.mrf.mxu0
      %v6909 = vadd.f32 0.0, %v6908
      %v6910 = vpop.f32.mrf.mxu0
      %6911 = vmatprep.mubr.f32.mxu0 0.0
      %6912 = vmatmul.mubr.f32.gmra.mxu0 %v6732
      %v6913 = vpop.f32.mrf.mxu0
      %v6914 = vadd.f32 0.0, %v6913
      %v6915 = vpop.f32.mrf.mxu0
      %6916 = vmatprep.mubr.f32.mxu0 0.0
      %6917 = vmatmul.mubr.f32.gmra.mxu0 %v6735
      %v6918 = vpop.f32.mrf.mxu0
      %v6919 = vadd.f32 0.0, %v6918
      %v6920 = vpop.f32.mrf.mxu0
      %6921 = vmatprep.mubr.f32.mxu0 0.0
      %6922 = vmatmul.mubr.f32.gmra.mxu0 %v6738
      %v6923 = vpop.f32.mrf.mxu0
      %v6924 = vadd.f32 0.0, %v6923
      %v6925 = vpop.f32.mrf.mxu0
      %6926 = vmatprep.mubr.f32.mxu0 0.0
      %6927 = vmatmul.mubr.f32.gmra.mxu0 %v6741
      %v6928 = vpop.f32.mrf.mxu0
      %v6929 = vadd.f32 0.0, %v6928
      %v6930 = vpop.f32.mrf.mxu0
      %6931 = vmatprep.mubr.f32.mxu0 0.0
      %6932 = vmatmul.mubr.f32.gmra.mxu0 %v6744
      %v6933 = vpop.f32.mrf.mxu0
      %v6934 = vadd.f32 0.0, %v6933
      %v6935 = vpop.f32.mrf.mxu0
      %6936 = vmatprep.mubr.f32.mxu0 0.0
      %6937 = vmatmul.mubr.f32.gmra.mxu0 %v6747
      %v6938 = vpop.f32.mrf.mxu0
      %v6939 = vadd.f32 0.0, %v6938
      %v6940 = vpop.f32.mrf.mxu0
      %6941 = vmatprep.mubr.f32.mxu0 0.0
      %6942 = vmatmul.mubr.f32.gmra.mxu0 %v6750
      %v6943 = vpop.f32.mrf.mxu0
      %v6944 = vadd.f32 0.0, %v6943
      %v6945 = vpop.f32.mrf.mxu0
      %6946 = vmatprep.mubr.f32.mxu0 0.0
      %6947 = vmatmul.mubr.f32.gmra.mxu0 %v6753
      %v6948 = vpop.f32.mrf.mxu0
      %v6949 = vadd.f32 0.0, %v6948
      %v6950 = vpop.f32.mrf.mxu0
      %6951 = vmatprep.mubr.f32.mxu0 0.0
      %6952 = vmatmul.mubr.f32.gmra.mxu0 %v6756
      %v6953 = vpop.f32.mrf.mxu0
      %v6954 = vadd.f32 0.0, %v6953
      %v6955 = vpop.f32.mrf.mxu0
      %6956 = vmatprep.mubr.f32.mxu0 0.0
      %6957 = vmatmul.mubr.f32.gmra.mxu0 %v6759
      %v6958 = vpop.f32.mrf.mxu0
      %v6959 = vadd.f32 0.0, %v6958
      %v6960 = vpop.f32.mrf.mxu0
      %6961 = vmatprep.mubr.f32.mxu0 0.0
      %6962 = vmatmul.mubr.f32.gmra.mxu0 %v6762
      %v6963 = vpop.f32.mrf.mxu0
      %v6964 = vadd.f32 0.0, %v6963
      %v6965 = vpop.f32.mrf.mxu0
      %6966 = vmatprep.mubr.f32.mxu0 0.0
      %6967 = vmatmul.mubr.f32.gmra.mxu0 %v6765
      %v6968 = vpop.f32.mrf.mxu0
      %v6969 = vadd.f32 0.0, %v6968
      %v6970 = vpop.f32.mrf.mxu0
      %6971 = vmatprep.mubr.f32.mxu0 0.0
      %6972 = vmatmul.mubr.f32.gmra.mxu0 %v6768
      %v6973 = vpop.f32.mrf.mxu0
      %v6974 = vadd.f32 0.0, %v6973
      %v6975 = vpop.f32.mrf.mxu0
      %6976 = vmatprep.mubr.f32.mxu0 0.0
      %6977 = vmatmul.mubr.f32.gmra.mxu0 %v6771
      %v6978 = vpop.f32.mrf.mxu0
      %v6979 = vadd.f32 0.0, %v6978
      %v6980 = vpop.f32.mrf.mxu0
      %6981 = vmatprep.mubr.f32.mxu0 0.0
      %6982 = vmatmul.mubr.f32.gmra.mxu0 %v6774
      %v6983 = vpop.f32.mrf.mxu0
      %v6984 = vadd.f32 0.0, %v6983
      %v6985 = vpop.f32.mrf.mxu0
      %6986 = vmatprep.mubr.f32.mxu0 0.0
      %6987 = vmatmul.mubr.f32.gmra.mxu0 %v6777
      %v6988 = vpop.f32.mrf.mxu0
      %v6989 = vadd.f32 0.0, %v6988
      %v6990 = vpop.f32.mrf.mxu0
      %6991 = vmatprep.mubr.f32.mxu0 0.0
      %6992 = vmatmul.mubr.f32.gmra.mxu0 %v6780
      %v6993 = vpop.f32.mrf.mxu0
      %v6994 = vadd.f32 0.0, %v6993
      %v6995 = vpop.f32.mrf.mxu0
      %6996 = vmatprep.mubr.f32.mxu0 0.0
      %6997 = vmatmul.mubr.f32.gmra.mxu0 %v6783
      %v6998 = vpop.f32.mrf.mxu0
      %v6999 = vadd.f32 0.0, %v6998
      %v7000 = vpop.f32.mrf.mxu0
      %7001 = vmatprep.mubr.f32.mxu0 0.0
      %7002 = vmatmul.mubr.f32.gmra.mxu0 %v6786
      %v7003 = vpop.f32.mrf.mxu0
      %v7004 = vadd.f32 0.0, %v7003
      %v7005 = vpop.f32.mrf.mxu0
      %7006 = vmatprep.mubr.f32.mxu0 0.0
      %7007 = vmatmul.mubr.f32.gmra.mxu0 %v6789
      %v7008 = vpop.f32.mrf.mxu0
      %v7009 = vadd.f32 0.0, %v7008
      %v7010 = vpop.f32.mrf.mxu0
      %7011 = vmatprep.mubr.f32.mxu0 0.0
      %7012 = vmatmul.mubr.f32.gmra.mxu0 %v6792
      %v7013 = vpop.f32.mrf.mxu0
      %v7014 = vadd.f32 0.0, %v7013
      %v7015 = vpop.f32.mrf.mxu0
      %7016 = vmatprep.mubr.f32.mxu0 0.0
      %7017 = vmatmul.mubr.f32.gmra.mxu0 %v6795
      %v7018 = vpop.f32.mrf.mxu0
      %v7019 = vadd.f32 0.0, %v7018
      %v7020 = vpop.f32.mrf.mxu0
      %7021 = vdwg.mxu0
      %v7022 = vadd.f32 %v6632, %v6864
      %v7023 = vadd.f32 %v6633, %v6869
      %v7024 = vadd.f32 %v6634, %v6874
      %v7025 = vadd.f32 %v6635, %v6879
      %v7026 = vadd.f32 %v6636, %v6884
      %v7027 = vadd.f32 %v6637, %v6889
      %v7028 = vadd.f32 %v6638, %v6894
      %v7029 = vadd.f32 %v6639, %v6899
      %v7030 = vadd.f32 %v6640, %v6904
      %v7031 = vadd.f32 %v6641, %v6909
      %v7032 = vadd.f32 %v6642, %v6914
      %v7033 = vadd.f32 %v6643, %v6919
      %v7034 = vadd.f32 %v6644, %v6924
      %v7035 = vadd.f32 %v6645, %v6929
      %v7036 = vadd.f32 %v6646, %v6934
      %v7037 = vadd.f32 %v6647, %v6939
      %v7038 = vadd.f32 %v6648, %v6944
      %v7039 = vadd.f32 %v6649, %v6949
      %v7040 = vadd.f32 %v6650, %v6954
      %v7041 = vadd.f32 %v6651, %v6959
      %v7042 = vadd.f32 %v6652, %v6964
      %v7043 = vadd.f32 %v6653, %v6969
      %v7044 = vadd.f32 %v6654, %v6974
      %v7045 = vadd.f32 %v6655, %v6979
      %v7046 = vadd.f32 %v6656, %v6984
      %v7047 = vadd.f32 %v6657, %v6989
      %v7048 = vadd.f32 %v6658, %v6994
      %v7049 = vadd.f32 %v6659, %v6999
      %v7050 = vadd.f32 %v6660, %v7004
      %v7051 = vadd.f32 %v6661, %v7009
      %v7052 = vadd.f32 %v6662, %v7014
      %v7053 = vadd.f32 %v6663, %v7019
      %v7054 = vld [vmem:[%s5526 + $0x1] sm:$0xff]
      %v7055 = vld [vmem:[%s5526 + $0x9] sm:$0xff]
      %v7056 = vld [vmem:[%s5526 + $0x19] sm:$0xff]
      %v7057 = vld [vmem:[%s5526 + $0x21] sm:$0xff]
      %v7058 = vld [vmem:[%s5526 + $0x31] sm:$0xff]
      %v7059 = vld [vmem:[%s5526 + $0x39] sm:$0xff]
      %v7060 = vld [vmem:[%s5526 + $0x49] sm:$0xff]
      %v7061 = vld [vmem:[%s5526 + $0x51] sm:$0xff]
      %v7062 = vld [vmem:[%s5526 + $0x61] sm:$0xff]
      %v7063 = vld [vmem:[%s5526 + $0x69] sm:$0xff]
      %v7064 = vld [vmem:[%s5526 + $0x79] sm:$0xff]
      %v7065 = vld [vmem:[%s5526 + $0x81] sm:$0xff]
      %v7066 = vld [vmem:[%s5526 + $0x91] sm:$0xff]
      %v7067 = vld [vmem:[%s5526 + $0x99] sm:$0xff]
      %v7068 = vld [vmem:[%s5526 + $0xa9] sm:$0xff]
      %v7069 = vld [vmem:[%s5526 + $0xb1] sm:$0xff]
      %v7070 = vld [vmem:[%s5526 + $0xc1] sm:$0xff]
      %v7071 = vld [vmem:[%s5526 + $0xc9] sm:$0xff]
      %v7072 = vld [vmem:[%s5526 + $0xd9] sm:$0xff]
      %v7073 = vld [vmem:[%s5526 + $0xe1] sm:$0xff]
      %v7074 = vld [vmem:[%s5526 + $0xf1] sm:$0xff]
      %v7075 = vld [vmem:[%s5526 + $0xf9] sm:$0xff]
      %v7076 = vld [vmem:[%s5526 + $0x109] sm:$0xff]
      %v7077 = vld [vmem:[%s5526 + $0x111] sm:$0xff]
      %v7078 = vld [vmem:[%s5526 + $0x121] sm:$0xff]
      %v7079 = vld [vmem:[%s5526 + $0x129] sm:$0xff]
      %v7080 = vld [vmem:[%s5526 + $0x139] sm:$0xff]
      %v7081 = vld [vmem:[%s5526 + $0x141] sm:$0xff]
      %v7082 = vld [vmem:[%s5526 + $0x151] sm:$0xff]
      %v7083 = vld [vmem:[%s5526 + $0x159] sm:$0xff]
      %v7084 = vld [vmem:[%s5526 + $0x169] sm:$0xff]
      %v7085 = vld [vmem:[%s5526 + $0x171] sm:$0xff]
      %s7086 = scalar_lea.vmem %s8, 128
      %v7087 = vld [vmem:[%s7086] sm:$0xff]
      %v7088 = vld [vmem:[%s7086 + $0x8] sm:$0xff]
      %v7089 = vld [vmem:[%s7086 + $0x10] sm:$0xff]
      %v7090 = vld [vmem:[%s7086 + $0x18] sm:$0xff]
      %v7092 = vsel %vm642, %v7054, 0
      %v7095 = vsel %vm642, %v7055, 0
      %v7098 = vsel %vm642, %v7056, 0
      %v7101 = vsel %vm642, %v7057, 0
      %v7104 = vsel %vm642, %v7058, 0
      %v7107 = vsel %vm642, %v7059, 0
      %v7110 = vsel %vm642, %v7060, 0
      %v7113 = vsel %vm642, %v7061, 0
      %v7116 = vsel %vm642, %v7062, 0
      %v7119 = vsel %vm642, %v7063, 0
      %v7122 = vsel %vm642, %v7064, 0
      %v7125 = vsel %vm642, %v7065, 0
      %v7128 = vsel %vm642, %v7066, 0
      %v7131 = vsel %vm642, %v7067, 0
      %v7134 = vsel %vm642, %v7068, 0
      %v7137 = vsel %vm642, %v7069, 0
      %v7140 = vsel %vm642, %v7070, 0
      %v7143 = vsel %vm642, %v7071, 0
      %v7146 = vsel %vm642, %v7072, 0
      %v7149 = vsel %vm642, %v7073, 0
      %v7152 = vsel %vm642, %v7074, 0
      %v7155 = vsel %vm642, %v7075, 0
      %v7158 = vsel %vm642, %v7076, 0
      %v7161 = vsel %vm642, %v7077, 0
      %v7164 = vsel %vm642, %v7078, 0
      %v7167 = vsel %vm642, %v7079, 0
      %v7170 = vsel %vm642, %v7080, 0
      %v7173 = vsel %vm642, %v7081, 0
      %v7176 = vsel %vm642, %v7082, 0
      %v7179 = vsel %vm642, %v7083, 0
      %v7182 = vsel %vm642, %v7084, 0
      %v7185 = vsel %vm642, %v7085, 0
      %7187 = vmatprep.subr.mxu0 0.0
      %7188 = vmatpush1.msra.mxu0 0.0
      %7189 = vmatprep.subr.mxu0 0.0
      %7190 = vmatpush1.msra.mxu0 0.0
      %7191 = vmatprep.subr.mxu0 0.0
      %7192 = vmatpush1.msra.mxu0 0.0
      %7193 = vmatprep.subr.mxu0 0.0
      %7194 = vmatpush1.msra.mxu0 0.0
      %7195 = vmatprep.subr.mxu0 0.0
      %7196 = vmatpush1.msra.mxu0 0.0
      %7197 = vmatprep.subr.mxu0 0.0
      %7198 = vmatpush1.msra.mxu0 0.0
      %7199 = vmatprep.subr.mxu0 0.0
      %7200 = vmatpush1.msra.mxu0 0.0
      %7201 = vmatprep.subr.mxu0 0.0
      %7202 = vmatpush1.msra.mxu0 0.0
      %7203 = vmatprep.subr.mxu0 0.0
      %7204 = vmatpush1.msra.mxu0 0.0
      %7205 = vmatprep.subr.mxu0 0.0
      %7206 = vmatpush1.msra.mxu0 0.0
      %7207 = vmatprep.subr.mxu0 0.0
      %7208 = vmatpush1.msra.mxu0 0.0
      %7209 = vmatprep.subr.mxu0 0.0
      %7210 = vmatpush1.msra.mxu0 0.0
      %7211 = vmatprep.subr.mxu0 0.0
      %7212 = vmatpush1.msra.mxu0 %v7090
      %7213 = vmatprep.subr.mxu0 0.0
      %7214 = vmatpush1.msra.mxu0 %v7089
      %7215 = vmatprep.subr.mxu0 0.0
      %7216 = vmatpush1.msra.mxu0 %v7088
      %7217 = vmatprep.subr.mxu0 0.0
      %7218 = vmatpush1.msra.mxu0 %v7087
      %7219 = vmatprep.subr.mxu0 0.0
      %7220 = vmatpush2.msra.mxu0 0.0
      %7221 = vmatprep.subr.mxu0 0.0
      %7222 = vmatpush2.msra.mxu0 0.0
      %7223 = vmatprep.subr.mxu0 0.0
      %7224 = vmatpush2.msra.mxu0 0.0
      %7225 = vmatprep.subr.mxu0 0.0
      %7226 = vmatpush2.msra.mxu0 0.0
      %7227 = vmatprep.subr.mxu0 0.0
      %7228 = vmatpush2.msra.mxu0 0.0
      %7229 = vmatprep.subr.mxu0 0.0
      %7230 = vmatpush2.msra.mxu0 0.0
      %7231 = vmatprep.subr.mxu0 0.0
      %7232 = vmatpush2.msra.mxu0 0.0
      %7233 = vmatprep.subr.mxu0 0.0
      %7234 = vmatpush2.msra.mxu0 0.0
      %7235 = vmatprep.subr.mxu0 0.0
      %7236 = vmatpush2.msra.mxu0 0.0
      %7237 = vmatprep.subr.mxu0 0.0
      %7238 = vmatpush2.msra.mxu0 0.0
      %7239 = vmatprep.subr.mxu0 0.0
      %7240 = vmatpush2.msra.mxu0 0.0
      %7241 = vmatprep.subr.mxu0 0.0
      %7242 = vmatpush2.msra.mxu0 0.0
      %7243 = vmatprep.subr.mxu0 0.0
      %7244 = vmatpush2.msra.mxu0 0.0
      %7245 = vmatprep.subr.mxu0 0.0
      %7246 = vmatpush2.msra.mxu0 0.0
      %7247 = vmatprep.subr.mxu0 0.0
      %7248 = vmatpush2.msra.mxu0 0.0
      %7249 = vmatprep.subr.mxu0 0.0
      %7250 = vmatpush2.msra.mxu0 0.0
      %7251 = vmatprep.mubr.f32.mxu0 0.0
      %7252 = vmatmul.mubr.f32.gmra.mxu0 %v7092
      %v7253 = vpop.f32.mrf.mxu0
      %v7254 = vadd.f32 0.0, %v7253
      %v7255 = vpop.f32.mrf.mxu0
      %7256 = vmatprep.mubr.f32.mxu0 0.0
      %7257 = vmatmul.mubr.f32.gmra.mxu0 %v7095
      %v7258 = vpop.f32.mrf.mxu0
      %v7259 = vadd.f32 0.0, %v7258
      %v7260 = vpop.f32.mrf.mxu0
      %7261 = vmatprep.mubr.f32.mxu0 0.0
      %7262 = vmatmul.mubr.f32.gmra.mxu0 %v7098
      %v7263 = vpop.f32.mrf.mxu0
      %v7264 = vadd.f32 0.0, %v7263
      %v7265 = vpop.f32.mrf.mxu0
      %7266 = vmatprep.mubr.f32.mxu0 0.0
      %7267 = vmatmul.mubr.f32.gmra.mxu0 %v7101
      %v7268 = vpop.f32.mrf.mxu0
      %v7269 = vadd.f32 0.0, %v7268
      %v7270 = vpop.f32.mrf.mxu0
      %7271 = vmatprep.mubr.f32.mxu0 0.0
      %7272 = vmatmul.mubr.f32.gmra.mxu0 %v7104
      %v7273 = vpop.f32.mrf.mxu0
      %v7274 = vadd.f32 0.0, %v7273
      %v7275 = vpop.f32.mrf.mxu0
      %7276 = vmatprep.mubr.f32.mxu0 0.0
      %7277 = vmatmul.mubr.f32.gmra.mxu0 %v7107
      %v7278 = vpop.f32.mrf.mxu0
      %v7279 = vadd.f32 0.0, %v7278
      %v7280 = vpop.f32.mrf.mxu0
      %7281 = vmatprep.mubr.f32.mxu0 0.0
      %7282 = vmatmul.mubr.f32.gmra.mxu0 %v7110
      %v7283 = vpop.f32.mrf.mxu0
      %v7284 = vadd.f32 0.0, %v7283
      %v7285 = vpop.f32.mrf.mxu0
      %7286 = vmatprep.mubr.f32.mxu0 0.0
      %7287 = vmatmul.mubr.f32.gmra.mxu0 %v7113
      %v7288 = vpop.f32.mrf.mxu0
      %v7289 = vadd.f32 0.0, %v7288
      %v7290 = vpop.f32.mrf.mxu0
      %7291 = vmatprep.mubr.f32.mxu0 0.0
      %7292 = vmatmul.mubr.f32.gmra.mxu0 %v7116
      %v7293 = vpop.f32.mrf.mxu0
      %v7294 = vadd.f32 0.0, %v7293
      %v7295 = vpop.f32.mrf.mxu0
      %7296 = vmatprep.mubr.f32.mxu0 0.0
      %7297 = vmatmul.mubr.f32.gmra.mxu0 %v7119
      %v7298 = vpop.f32.mrf.mxu0
      %v7299 = vadd.f32 0.0, %v7298
      %v7300 = vpop.f32.mrf.mxu0
      %7301 = vmatprep.mubr.f32.mxu0 0.0
      %7302 = vmatmul.mubr.f32.gmra.mxu0 %v7122
      %v7303 = vpop.f32.mrf.mxu0
      %v7304 = vadd.f32 0.0, %v7303
      %v7305 = vpop.f32.mrf.mxu0
      %7306 = vmatprep.mubr.f32.mxu0 0.0
      %7307 = vmatmul.mubr.f32.gmra.mxu0 %v7125
      %v7308 = vpop.f32.mrf.mxu0
      %v7309 = vadd.f32 0.0, %v7308
      %v7310 = vpop.f32.mrf.mxu0
      %7311 = vmatprep.mubr.f32.mxu0 0.0
      %7312 = vmatmul.mubr.f32.gmra.mxu0 %v7128
      %v7313 = vpop.f32.mrf.mxu0
      %v7314 = vadd.f32 0.0, %v7313
      %v7315 = vpop.f32.mrf.mxu0
      %7316 = vmatprep.mubr.f32.mxu0 0.0
      %7317 = vmatmul.mubr.f32.gmra.mxu0 %v7131
      %v7318 = vpop.f32.mrf.mxu0
      %v7319 = vadd.f32 0.0, %v7318
      %v7320 = vpop.f32.mrf.mxu0
      %7321 = vmatprep.mubr.f32.mxu0 0.0
      %7322 = vmatmul.mubr.f32.gmra.mxu0 %v7134
      %v7323 = vpop.f32.mrf.mxu0
      %v7324 = vadd.f32 0.0, %v7323
      %v7325 = vpop.f32.mrf.mxu0
      %7326 = vmatprep.mubr.f32.mxu0 0.0
      %7327 = vmatmul.mubr.f32.gmra.mxu0 %v7137
      %v7328 = vpop.f32.mrf.mxu0
      %v7329 = vadd.f32 0.0, %v7328
      %v7330 = vpop.f32.mrf.mxu0
      %7331 = vmatprep.mubr.f32.mxu0 0.0
      %7332 = vmatmul.mubr.f32.gmra.mxu0 %v7140
      %v7333 = vpop.f32.mrf.mxu0
      %v7334 = vadd.f32 0.0, %v7333
      %v7335 = vpop.f32.mrf.mxu0
      %7336 = vmatprep.mubr.f32.mxu0 0.0
      %7337 = vmatmul.mubr.f32.gmra.mxu0 %v7143
      %v7338 = vpop.f32.mrf.mxu0
      %v7339 = vadd.f32 0.0, %v7338
      %v7340 = vpop.f32.mrf.mxu0
      %7341 = vmatprep.mubr.f32.mxu0 0.0
      %7342 = vmatmul.mubr.f32.gmra.mxu0 %v7146
      %v7343 = vpop.f32.mrf.mxu0
      %v7344 = vadd.f32 0.0, %v7343
      %v7345 = vpop.f32.mrf.mxu0
      %7346 = vmatprep.mubr.f32.mxu0 0.0
      %7347 = vmatmul.mubr.f32.gmra.mxu0 %v7149
      %v7348 = vpop.f32.mrf.mxu0
      %v7349 = vadd.f32 0.0, %v7348
      %v7350 = vpop.f32.mrf.mxu0
      %7351 = vmatprep.mubr.f32.mxu0 0.0
      %7352 = vmatmul.mubr.f32.gmra.mxu0 %v7152
      %v7353 = vpop.f32.mrf.mxu0
      %v7354 = vadd.f32 0.0, %v7353
      %v7355 = vpop.f32.mrf.mxu0
      %7356 = vmatprep.mubr.f32.mxu0 0.0
      %7357 = vmatmul.mubr.f32.gmra.mxu0 %v7155
      %v7358 = vpop.f32.mrf.mxu0
      %v7359 = vadd.f32 0.0, %v7358
      %v7360 = vpop.f32.mrf.mxu0
      %7361 = vmatprep.mubr.f32.mxu0 0.0
      %7362 = vmatmul.mubr.f32.gmra.mxu0 %v7158
      %v7363 = vpop.f32.mrf.mxu0
      %v7364 = vadd.f32 0.0, %v7363
      %v7365 = vpop.f32.mrf.mxu0
      %7366 = vmatprep.mubr.f32.mxu0 0.0
      %7367 = vmatmul.mubr.f32.gmra.mxu0 %v7161
      %v7368 = vpop.f32.mrf.mxu0
      %v7369 = vadd.f32 0.0, %v7368
      %v7370 = vpop.f32.mrf.mxu0
      %7371 = vmatprep.mubr.f32.mxu0 0.0
      %7372 = vmatmul.mubr.f32.gmra.mxu0 %v7164
      %v7373 = vpop.f32.mrf.mxu0
      %v7374 = vadd.f32 0.0, %v7373
      %v7375 = vpop.f32.mrf.mxu0
      %7376 = vmatprep.mubr.f32.mxu0 0.0
      %7377 = vmatmul.mubr.f32.gmra.mxu0 %v7167
      %v7378 = vpop.f32.mrf.mxu0
      %v7379 = vadd.f32 0.0, %v7378
      %v7380 = vpop.f32.mrf.mxu0
      %7381 = vmatprep.mubr.f32.mxu0 0.0
      %7382 = vmatmul.mubr.f32.gmra.mxu0 %v7170
      %v7383 = vpop.f32.mrf.mxu0
      %v7384 = vadd.f32 0.0, %v7383
      %v7385 = vpop.f32.mrf.mxu0
      %7386 = vmatprep.mubr.f32.mxu0 0.0
      %7387 = vmatmul.mubr.f32.gmra.mxu0 %v7173
      %v7388 = vpop.f32.mrf.mxu0
      %v7389 = vadd.f32 0.0, %v7388
      %v7390 = vpop.f32.mrf.mxu0
      %7391 = vmatprep.mubr.f32.mxu0 0.0
      %7392 = vmatmul.mubr.f32.gmra.mxu0 %v7176
      %v7393 = vpop.f32.mrf.mxu0
      %v7394 = vadd.f32 0.0, %v7393
      %v7395 = vpop.f32.mrf.mxu0
      %7396 = vmatprep.mubr.f32.mxu0 0.0
      %7397 = vmatmul.mubr.f32.gmra.mxu0 %v7179
      %v7398 = vpop.f32.mrf.mxu0
      %v7399 = vadd.f32 0.0, %v7398
      %v7400 = vpop.f32.mrf.mxu0
      %7401 = vmatprep.mubr.f32.mxu0 0.0
      %7402 = vmatmul.mubr.f32.gmra.mxu0 %v7182
      %v7403 = vpop.f32.mrf.mxu0
      %v7404 = vadd.f32 0.0, %v7403
      %v7405 = vpop.f32.mrf.mxu0
      %7406 = vmatprep.mubr.f32.mxu0 0.0
      %7407 = vmatmul.mubr.f32.gmra.mxu0 %v7185
      %v7408 = vpop.f32.mrf.mxu0
      %v7409 = vadd.f32 0.0, %v7408
      %v7410 = vpop.f32.mrf.mxu0
      %7411 = vdwg.mxu0
      %v7412 = vadd.f32 %v7022, %v7254
      %v7413 = vadd.f32 %v7023, %v7259
      %v7414 = vadd.f32 %v7024, %v7264
      %v7415 = vadd.f32 %v7025, %v7269
      %v7416 = vadd.f32 %v7026, %v7274
      %v7417 = vadd.f32 %v7027, %v7279
      %v7418 = vadd.f32 %v7028, %v7284
      %v7419 = vadd.f32 %v7029, %v7289
      %v7420 = vadd.f32 %v7030, %v7294
      %v7421 = vadd.f32 %v7031, %v7299
      %v7422 = vadd.f32 %v7032, %v7304
      %v7423 = vadd.f32 %v7033, %v7309
      %v7424 = vadd.f32 %v7034, %v7314
      %v7425 = vadd.f32 %v7035, %v7319
      %v7426 = vadd.f32 %v7036, %v7324
      %v7427 = vadd.f32 %v7037, %v7329
      %v7428 = vadd.f32 %v7038, %v7334
      %v7429 = vadd.f32 %v7039, %v7339
      %v7430 = vadd.f32 %v7040, %v7344
      %v7431 = vadd.f32 %v7041, %v7349
      %v7432 = vadd.f32 %v7042, %v7354
      %v7433 = vadd.f32 %v7043, %v7359
      %v7434 = vadd.f32 %v7044, %v7364
      %v7435 = vadd.f32 %v7045, %v7369
      %v7436 = vadd.f32 %v7046, %v7374
      %v7437 = vadd.f32 %v7047, %v7379
      %v7438 = vadd.f32 %v7048, %v7384
      %v7439 = vadd.f32 %v7049, %v7389
      %v7440 = vadd.f32 %v7050, %v7394
      %v7441 = vadd.f32 %v7051, %v7399
      %v7442 = vadd.f32 %v7052, %v7404
      %v7443 = vadd.f32 %v7053, %v7409
      %v7444 = vld [vmem:[%s5526 + $0x2] sm:$0xff]
      %v7445 = vld [vmem:[%s5526 + $0xa] sm:$0xff]
      %v7446 = vld [vmem:[%s5526 + $0x1a] sm:$0xff]
      %v7447 = vld [vmem:[%s5526 + $0x22] sm:$0xff]
      %v7448 = vld [vmem:[%s5526 + $0x32] sm:$0xff]
      %v7449 = vld [vmem:[%s5526 + $0x3a] sm:$0xff]
      %v7450 = vld [vmem:[%s5526 + $0x4a] sm:$0xff]
      %v7451 = vld [vmem:[%s5526 + $0x52] sm:$0xff]
      %v7452 = vld [vmem:[%s5526 + $0x62] sm:$0xff]
      %v7453 = vld [vmem:[%s5526 + $0x6a] sm:$0xff]
      %v7454 = vld [vmem:[%s5526 + $0x7a] sm:$0xff]
      %v7455 = vld [vmem:[%s5526 + $0x82] sm:$0xff]
      %v7456 = vld [vmem:[%s5526 + $0x92] sm:$0xff]
      %v7457 = vld [vmem:[%s5526 + $0x9a] sm:$0xff]
      %v7458 = vld [vmem:[%s5526 + $0xaa] sm:$0xff]
      %v7459 = vld [vmem:[%s5526 + $0xb2] sm:$0xff]
      %v7460 = vld [vmem:[%s5526 + $0xc2] sm:$0xff]
      %v7461 = vld [vmem:[%s5526 + $0xca] sm:$0xff]
      %v7462 = vld [vmem:[%s5526 + $0xda] sm:$0xff]
      %v7463 = vld [vmem:[%s5526 + $0xe2] sm:$0xff]
      %v7464 = vld [vmem:[%s5526 + $0xf2] sm:$0xff]
      %v7465 = vld [vmem:[%s5526 + $0xfa] sm:$0xff]
      %v7466 = vld [vmem:[%s5526 + $0x10a] sm:$0xff]
      %v7467 = vld [vmem:[%s5526 + $0x112] sm:$0xff]
      %v7468 = vld [vmem:[%s5526 + $0x122] sm:$0xff]
      %v7469 = vld [vmem:[%s5526 + $0x12a] sm:$0xff]
      %v7470 = vld [vmem:[%s5526 + $0x13a] sm:$0xff]
      %v7471 = vld [vmem:[%s5526 + $0x142] sm:$0xff]
      %v7472 = vld [vmem:[%s5526 + $0x152] sm:$0xff]
      %v7473 = vld [vmem:[%s5526 + $0x15a] sm:$0xff]
      %v7474 = vld [vmem:[%s5526 + $0x16a] sm:$0xff]
      %v7475 = vld [vmem:[%s5526 + $0x172] sm:$0xff]
      %s7476 = scalar_lea.vmem %s8, 160
      %v7477 = vld [vmem:[%s7476] sm:$0xff]
      %v7478 = vld [vmem:[%s7476 + $0x8] sm:$0xff]
      %v7479 = vld [vmem:[%s7476 + $0x10] sm:$0xff]
      %v7480 = vld [vmem:[%s7476 + $0x18] sm:$0xff]
      %v7482 = vsel %vm642, %v7444, 0
      %v7485 = vsel %vm642, %v7445, 0
      %v7488 = vsel %vm642, %v7446, 0
      %v7491 = vsel %vm642, %v7447, 0
      %v7494 = vsel %vm642, %v7448, 0
      %v7497 = vsel %vm642, %v7449, 0
      %v7500 = vsel %vm642, %v7450, 0
      %v7503 = vsel %vm642, %v7451, 0
      %v7506 = vsel %vm642, %v7452, 0
      %v7509 = vsel %vm642, %v7453, 0
      %v7512 = vsel %vm642, %v7454, 0
      %v7515 = vsel %vm642, %v7455, 0
      %v7518 = vsel %vm642, %v7456, 0
      %v7521 = vsel %vm642, %v7457, 0
      %v7524 = vsel %vm642, %v7458, 0
      %v7527 = vsel %vm642, %v7459, 0
      %v7530 = vsel %vm642, %v7460, 0
      %v7533 = vsel %vm642, %v7461, 0
      %v7536 = vsel %vm642, %v7462, 0
      %v7539 = vsel %vm642, %v7463, 0
      %v7542 = vsel %vm642, %v7464, 0
      %v7545 = vsel %vm642, %v7465, 0
      %v7548 = vsel %vm642, %v7466, 0
      %v7551 = vsel %vm642, %v7467, 0
      %v7554 = vsel %vm642, %v7468, 0
      %v7557 = vsel %vm642, %v7469, 0
      %v7560 = vsel %vm642, %v7470, 0
      %v7563 = vsel %vm642, %v7471, 0
      %v7566 = vsel %vm642, %v7472, 0
      %v7569 = vsel %vm642, %v7473, 0
      %v7572 = vsel %vm642, %v7474, 0
      %v7575 = vsel %vm642, %v7475, 0
      %7577 = vmatprep.subr.mxu0 0.0
      %7578 = vmatpush1.msra.mxu0 0.0
      %7579 = vmatprep.subr.mxu0 0.0
      %7580 = vmatpush1.msra.mxu0 0.0
      %7581 = vmatprep.subr.mxu0 0.0
      %7582 = vmatpush1.msra.mxu0 0.0
      %7583 = vmatprep.subr.mxu0 0.0
      %7584 = vmatpush1.msra.mxu0 0.0
      %7585 = vmatprep.subr.mxu0 0.0
      %7586 = vmatpush1.msra.mxu0 0.0
      %7587 = vmatprep.subr.mxu0 0.0
      %7588 = vmatpush1.msra.mxu0 0.0
      %7589 = vmatprep.subr.mxu0 0.0
      %7590 = vmatpush1.msra.mxu0 0.0
      %7591 = vmatprep.subr.mxu0 0.0
      %7592 = vmatpush1.msra.mxu0 0.0
      %7593 = vmatprep.subr.mxu0 0.0
      %7594 = vmatpush1.msra.mxu0 0.0
      %7595 = vmatprep.subr.mxu0 0.0
      %7596 = vmatpush1.msra.mxu0 0.0
      %7597 = vmatprep.subr.mxu0 0.0
      %7598 = vmatpush1.msra.mxu0 0.0
      %7599 = vmatprep.subr.mxu0 0.0
      %7600 = vmatpush1.msra.mxu0 0.0
      %7601 = vmatprep.subr.mxu0 0.0
      %7602 = vmatpush1.msra.mxu0 %v7480
      %7603 = vmatprep.subr.mxu0 0.0
      %7604 = vmatpush1.msra.mxu0 %v7479
      %7605 = vmatprep.subr.mxu0 0.0
      %7606 = vmatpush1.msra.mxu0 %v7478
      %7607 = vmatprep.subr.mxu0 0.0
      %7608 = vmatpush1.msra.mxu0 %v7477
      %7609 = vmatprep.subr.mxu0 0.0
      %7610 = vmatpush2.msra.mxu0 0.0
      %7611 = vmatprep.subr.mxu0 0.0
      %7612 = vmatpush2.msra.mxu0 0.0
      %7613 = vmatprep.subr.mxu0 0.0
      %7614 = vmatpush2.msra.mxu0 0.0
      %7615 = vmatprep.subr.mxu0 0.0
      %7616 = vmatpush2.msra.mxu0 0.0
      %7617 = vmatprep.subr.mxu0 0.0
      %7618 = vmatpush2.msra.mxu0 0.0
      %7619 = vmatprep.subr.mxu0 0.0
      %7620 = vmatpush2.msra.mxu0 0.0
      %7621 = vmatprep.subr.mxu0 0.0
      %7622 = vmatpush2.msra.mxu0 0.0
      %7623 = vmatprep.subr.mxu0 0.0
      %7624 = vmatpush2.msra.mxu0 0.0
      %7625 = vmatprep.subr.mxu0 0.0
      %7626 = vmatpush2.msra.mxu0 0.0
      %7627 = vmatprep.subr.mxu0 0.0
      %7628 = vmatpush2.msra.mxu0 0.0
      %7629 = vmatprep.subr.mxu0 0.0
      %7630 = vmatpush2.msra.mxu0 0.0
      %7631 = vmatprep.subr.mxu0 0.0
      %7632 = vmatpush2.msra.mxu0 0.0
      %7633 = vmatprep.subr.mxu0 0.0
      %7634 = vmatpush2.msra.mxu0 0.0
      %7635 = vmatprep.subr.mxu0 0.0
      %7636 = vmatpush2.msra.mxu0 0.0
      %7637 = vmatprep.subr.mxu0 0.0
      %7638 = vmatpush2.msra.mxu0 0.0
      %7639 = vmatprep.subr.mxu0 0.0
      %7640 = vmatpush2.msra.mxu0 0.0
      %7641 = vmatprep.mubr.f32.mxu0 0.0
      %7642 = vmatmul.mubr.f32.gmra.mxu0 %v7482
      %v7643 = vpop.f32.mrf.mxu0
      %v7644 = vadd.f32 0.0, %v7643
      %v7645 = vpop.f32.mrf.mxu0
      %7646 = vmatprep.mubr.f32.mxu0 0.0
      %7647 = vmatmul.mubr.f32.gmra.mxu0 %v7485
      %v7648 = vpop.f32.mrf.mxu0
      %v7649 = vadd.f32 0.0, %v7648
      %v7650 = vpop.f32.mrf.mxu0
      %7651 = vmatprep.mubr.f32.mxu0 0.0
      %7652 = vmatmul.mubr.f32.gmra.mxu0 %v7488
      %v7653 = vpop.f32.mrf.mxu0
      %v7654 = vadd.f32 0.0, %v7653
      %v7655 = vpop.f32.mrf.mxu0
      %7656 = vmatprep.mubr.f32.mxu0 0.0
      %7657 = vmatmul.mubr.f32.gmra.mxu0 %v7491
      %v7658 = vpop.f32.mrf.mxu0
      %v7659 = vadd.f32 0.0, %v7658
      %v7660 = vpop.f32.mrf.mxu0
      %7661 = vmatprep.mubr.f32.mxu0 0.0
      %7662 = vmatmul.mubr.f32.gmra.mxu0 %v7494
      %v7663 = vpop.f32.mrf.mxu0
      %v7664 = vadd.f32 0.0, %v7663
      %v7665 = vpop.f32.mrf.mxu0
      %7666 = vmatprep.mubr.f32.mxu0 0.0
      %7667 = vmatmul.mubr.f32.gmra.mxu0 %v7497
      %v7668 = vpop.f32.mrf.mxu0
      %v7669 = vadd.f32 0.0, %v7668
      %v7670 = vpop.f32.mrf.mxu0
      %7671 = vmatprep.mubr.f32.mxu0 0.0
      %7672 = vmatmul.mubr.f32.gmra.mxu0 %v7500
      %v7673 = vpop.f32.mrf.mxu0
      %v7674 = vadd.f32 0.0, %v7673
      %v7675 = vpop.f32.mrf.mxu0
      %7676 = vmatprep.mubr.f32.mxu0 0.0
      %7677 = vmatmul.mubr.f32.gmra.mxu0 %v7503
      %v7678 = vpop.f32.mrf.mxu0
      %v7679 = vadd.f32 0.0, %v7678
      %v7680 = vpop.f32.mrf.mxu0
      %7681 = vmatprep.mubr.f32.mxu0 0.0
      %7682 = vmatmul.mubr.f32.gmra.mxu0 %v7506
      %v7683 = vpop.f32.mrf.mxu0
      %v7684 = vadd.f32 0.0, %v7683
      %v7685 = vpop.f32.mrf.mxu0
      %7686 = vmatprep.mubr.f32.mxu0 0.0
      %7687 = vmatmul.mubr.f32.gmra.mxu0 %v7509
      %v7688 = vpop.f32.mrf.mxu0
      %v7689 = vadd.f32 0.0, %v7688
      %v7690 = vpop.f32.mrf.mxu0
      %7691 = vmatprep.mubr.f32.mxu0 0.0
      %7692 = vmatmul.mubr.f32.gmra.mxu0 %v7512
      %v7693 = vpop.f32.mrf.mxu0
      %v7694 = vadd.f32 0.0, %v7693
      %v7695 = vpop.f32.mrf.mxu0
      %7696 = vmatprep.mubr.f32.mxu0 0.0
      %7697 = vmatmul.mubr.f32.gmra.mxu0 %v7515
      %v7698 = vpop.f32.mrf.mxu0
      %v7699 = vadd.f32 0.0, %v7698
      %v7700 = vpop.f32.mrf.mxu0
      %7701 = vmatprep.mubr.f32.mxu0 0.0
      %7702 = vmatmul.mubr.f32.gmra.mxu0 %v7518
      %v7703 = vpop.f32.mrf.mxu0
      %v7704 = vadd.f32 0.0, %v7703
      %v7705 = vpop.f32.mrf.mxu0
      %7706 = vmatprep.mubr.f32.mxu0 0.0
      %7707 = vmatmul.mubr.f32.gmra.mxu0 %v7521
      %v7708 = vpop.f32.mrf.mxu0
      %v7709 = vadd.f32 0.0, %v7708
      %v7710 = vpop.f32.mrf.mxu0
      %7711 = vmatprep.mubr.f32.mxu0 0.0
      %7712 = vmatmul.mubr.f32.gmra.mxu0 %v7524
      %v7713 = vpop.f32.mrf.mxu0
      %v7714 = vadd.f32 0.0, %v7713
      %v7715 = vpop.f32.mrf.mxu0
      %7716 = vmatprep.mubr.f32.mxu0 0.0
      %7717 = vmatmul.mubr.f32.gmra.mxu0 %v7527
      %v7718 = vpop.f32.mrf.mxu0
      %v7719 = vadd.f32 0.0, %v7718
      %v7720 = vpop.f32.mrf.mxu0
      %7721 = vmatprep.mubr.f32.mxu0 0.0
      %7722 = vmatmul.mubr.f32.gmra.mxu0 %v7530
      %v7723 = vpop.f32.mrf.mxu0
      %v7724 = vadd.f32 0.0, %v7723
      %v7725 = vpop.f32.mrf.mxu0
      %7726 = vmatprep.mubr.f32.mxu0 0.0
      %7727 = vmatmul.mubr.f32.gmra.mxu0 %v7533
      %v7728 = vpop.f32.mrf.mxu0
      %v7729 = vadd.f32 0.0, %v7728
      %v7730 = vpop.f32.mrf.mxu0
      %7731 = vmatprep.mubr.f32.mxu0 0.0
      %7732 = vmatmul.mubr.f32.gmra.mxu0 %v7536
      %v7733 = vpop.f32.mrf.mxu0
      %v7734 = vadd.f32 0.0, %v7733
      %v7735 = vpop.f32.mrf.mxu0
      %7736 = vmatprep.mubr.f32.mxu0 0.0
      %7737 = vmatmul.mubr.f32.gmra.mxu0 %v7539
      %v7738 = vpop.f32.mrf.mxu0
      %v7739 = vadd.f32 0.0, %v7738
      %v7740 = vpop.f32.mrf.mxu0
      %7741 = vmatprep.mubr.f32.mxu0 0.0
      %7742 = vmatmul.mubr.f32.gmra.mxu0 %v7542
      %v7743 = vpop.f32.mrf.mxu0
      %v7744 = vadd.f32 0.0, %v7743
      %v7745 = vpop.f32.mrf.mxu0
      %7746 = vmatprep.mubr.f32.mxu0 0.0
      %7747 = vmatmul.mubr.f32.gmra.mxu0 %v7545
      %v7748 = vpop.f32.mrf.mxu0
      %v7749 = vadd.f32 0.0, %v7748
      %v7750 = vpop.f32.mrf.mxu0
      %7751 = vmatprep.mubr.f32.mxu0 0.0
      %7752 = vmatmul.mubr.f32.gmra.mxu0 %v7548
      %v7753 = vpop.f32.mrf.mxu0
      %v7754 = vadd.f32 0.0, %v7753
      %v7755 = vpop.f32.mrf.mxu0
      %7756 = vmatprep.mubr.f32.mxu0 0.0
      %7757 = vmatmul.mubr.f32.gmra.mxu0 %v7551
      %v7758 = vpop.f32.mrf.mxu0
      %v7759 = vadd.f32 0.0, %v7758
      %v7760 = vpop.f32.mrf.mxu0
      %7761 = vmatprep.mubr.f32.mxu0 0.0
      %7762 = vmatmul.mubr.f32.gmra.mxu0 %v7554
      %v7763 = vpop.f32.mrf.mxu0
      %v7764 = vadd.f32 0.0, %v7763
      %v7765 = vpop.f32.mrf.mxu0
      %7766 = vmatprep.mubr.f32.mxu0 0.0
      %7767 = vmatmul.mubr.f32.gmra.mxu0 %v7557
      %v7768 = vpop.f32.mrf.mxu0
      %v7769 = vadd.f32 0.0, %v7768
      %v7770 = vpop.f32.mrf.mxu0
      %7771 = vmatprep.mubr.f32.mxu0 0.0
      %7772 = vmatmul.mubr.f32.gmra.mxu0 %v7560
      %v7773 = vpop.f32.mrf.mxu0
      %v7774 = vadd.f32 0.0, %v7773
      %v7775 = vpop.f32.mrf.mxu0
      %7776 = vmatprep.mubr.f32.mxu0 0.0
      %7777 = vmatmul.mubr.f32.gmra.mxu0 %v7563
      %v7778 = vpop.f32.mrf.mxu0
      %v7779 = vadd.f32 0.0, %v7778
      %v7780 = vpop.f32.mrf.mxu0
      %7781 = vmatprep.mubr.f32.mxu0 0.0
      %7782 = vmatmul.mubr.f32.gmra.mxu0 %v7566
      %v7783 = vpop.f32.mrf.mxu0
      %v7784 = vadd.f32 0.0, %v7783
      %v7785 = vpop.f32.mrf.mxu0
      %7786 = vmatprep.mubr.f32.mxu0 0.0
      %7787 = vmatmul.mubr.f32.gmra.mxu0 %v7569
      %v7788 = vpop.f32.mrf.mxu0
      %v7789 = vadd.f32 0.0, %v7788
      %v7790 = vpop.f32.mrf.mxu0
      %7791 = vmatprep.mubr.f32.mxu0 0.0
      %7792 = vmatmul.mubr.f32.gmra.mxu0 %v7572
      %v7793 = vpop.f32.mrf.mxu0
      %v7794 = vadd.f32 0.0, %v7793
      %v7795 = vpop.f32.mrf.mxu0
      %7796 = vmatprep.mubr.f32.mxu0 0.0
      %7797 = vmatmul.mubr.f32.gmra.mxu0 %v7575
      %v7798 = vpop.f32.mrf.mxu0
      %v7799 = vadd.f32 0.0, %v7798
      %v7800 = vpop.f32.mrf.mxu0
      %7801 = vdwg.mxu0
      %v7802 = vadd.f32 %v7412, %v7644
      %v7803 = vadd.f32 %v7413, %v7649
      %v7804 = vadd.f32 %v7414, %v7654
      %v7805 = vadd.f32 %v7415, %v7659
      %v7806 = vadd.f32 %v7416, %v7664
      %v7807 = vadd.f32 %v7417, %v7669
      %v7808 = vadd.f32 %v7418, %v7674
      %v7809 = vadd.f32 %v7419, %v7679
      %v7810 = vadd.f32 %v7420, %v7684
      %v7811 = vadd.f32 %v7421, %v7689
      %v7812 = vadd.f32 %v7422, %v7694
      %v7813 = vadd.f32 %v7423, %v7699
      %v7814 = vadd.f32 %v7424, %v7704
      %v7815 = vadd.f32 %v7425, %v7709
      %v7816 = vadd.f32 %v7426, %v7714
      %v7817 = vadd.f32 %v7427, %v7719
      %v7818 = vadd.f32 %v7428, %v7724
      %v7819 = vadd.f32 %v7429, %v7729
      %v7820 = vadd.f32 %v7430, %v7734
      %v7821 = vadd.f32 %v7431, %v7739
      %v7822 = vadd.f32 %v7432, %v7744
      %v7823 = vadd.f32 %v7433, %v7749
      %v7824 = vadd.f32 %v7434, %v7754
      %v7825 = vadd.f32 %v7435, %v7759
      %v7826 = vadd.f32 %v7436, %v7764
      %v7827 = vadd.f32 %v7437, %v7769
      %v7828 = vadd.f32 %v7438, %v7774
      %v7829 = vadd.f32 %v7439, %v7779
      %v7830 = vadd.f32 %v7440, %v7784
      %v7831 = vadd.f32 %v7441, %v7789
      %v7832 = vadd.f32 %v7442, %v7794
      %v7833 = vadd.f32 %v7443, %v7799
      %s7834 = scalar_lea.vmem [#allocation5], 48
      %v7835 = vld [vmem:[%s7834] sm:$0xff]
      %v7836 = vld [vmem:[%s7834 + $0x8] sm:$0xff]
      %v7837 = vld [vmem:[%s7834 + $0x18] sm:$0xff]
      %v7838 = vld [vmem:[%s7834 + $0x20] sm:$0xff]
      %v7839 = vld [vmem:[%s7834 + $0x30] sm:$0xff]
      %v7840 = vld [vmem:[%s7834 + $0x38] sm:$0xff]
      %v7841 = vld [vmem:[%s7834 + $0x48] sm:$0xff]
      %v7842 = vld [vmem:[%s7834 + $0x50] sm:$0xff]
      %v7843 = vld [vmem:[%s7834 + $0x60] sm:$0xff]
      %v7844 = vld [vmem:[%s7834 + $0x68] sm:$0xff]
      %v7845 = vld [vmem:[%s7834 + $0x78] sm:$0xff]
      %v7846 = vld [vmem:[%s7834 + $0x80] sm:$0xff]
      %v7847 = vld [vmem:[%s7834 + $0x90] sm:$0xff]
      %v7848 = vld [vmem:[%s7834 + $0x98] sm:$0xff]
      %v7849 = vld [vmem:[%s7834 + $0xa8] sm:$0xff]
      %v7850 = vld [vmem:[%s7834 + $0xb0] sm:$0xff]
      %v7851 = vld [vmem:[%s7834 + $0xc0] sm:$0xff]
      %v7852 = vld [vmem:[%s7834 + $0xc8] sm:$0xff]
      %v7853 = vld [vmem:[%s7834 + $0xd8] sm:$0xff]
      %v7854 = vld [vmem:[%s7834 + $0xe0] sm:$0xff]
      %v7855 = vld [vmem:[%s7834 + $0xf0] sm:$0xff]
      %v7856 = vld [vmem:[%s7834 + $0xf8] sm:$0xff]
      %v7857 = vld [vmem:[%s7834 + $0x108] sm:$0xff]
      %v7858 = vld [vmem:[%s7834 + $0x110] sm:$0xff]
      %v7859 = vld [vmem:[%s7834 + $0x120] sm:$0xff]
      %v7860 = vld [vmem:[%s7834 + $0x128] sm:$0xff]
      %v7861 = vld [vmem:[%s7834 + $0x138] sm:$0xff]
      %v7862 = vld [vmem:[%s7834 + $0x140] sm:$0xff]
      %v7863 = vld [vmem:[%s7834 + $0x150] sm:$0xff]
      %v7864 = vld [vmem:[%s7834 + $0x158] sm:$0xff]
      %v7865 = vld [vmem:[%s7834 + $0x168] sm:$0xff]
      %v7866 = vld [vmem:[%s7834 + $0x170] sm:$0xff]
      %s7867 = scalar_lea.vmem %s8, 192
      %v7868 = vld [vmem:[%s7867] sm:$0xff]
      %v7869 = vld [vmem:[%s7867 + $0x8] sm:$0xff]
      %v7870 = vld [vmem:[%s7867 + $0x10] sm:$0xff]
      %v7871 = vld [vmem:[%s7867 + $0x18] sm:$0xff]
      %v7873 = vsel %vm642, %v7835, 0
      %v7876 = vsel %vm642, %v7836, 0
      %v7879 = vsel %vm642, %v7837, 0
      %v7882 = vsel %vm642, %v7838, 0
      %v7885 = vsel %vm642, %v7839, 0
      %v7888 = vsel %vm642, %v7840, 0
      %v7891 = vsel %vm642, %v7841, 0
      %v7894 = vsel %vm642, %v7842, 0
      %v7897 = vsel %vm642, %v7843, 0
      %v7900 = vsel %vm642, %v7844, 0
      %v7903 = vsel %vm642, %v7845, 0
      %v7906 = vsel %vm642, %v7846, 0
      %v7909 = vsel %vm642, %v7847, 0
      %v7912 = vsel %vm642, %v7848, 0
      %v7915 = vsel %vm642, %v7849, 0
      %v7918 = vsel %vm642, %v7850, 0
      %v7921 = vsel %vm642, %v7851, 0
      %v7924 = vsel %vm642, %v7852, 0
      %v7927 = vsel %vm642, %v7853, 0
      %v7930 = vsel %vm642, %v7854, 0
      %v7933 = vsel %vm642, %v7855, 0
      %v7936 = vsel %vm642, %v7856, 0
      %v7939 = vsel %vm642, %v7857, 0
      %v7942 = vsel %vm642, %v7858, 0
      %v7945 = vsel %vm642, %v7859, 0
      %v7948 = vsel %vm642, %v7860, 0
      %v7951 = vsel %vm642, %v7861, 0
      %v7954 = vsel %vm642, %v7862, 0
      %v7957 = vsel %vm642, %v7863, 0
      %v7960 = vsel %vm642, %v7864, 0
      %v7963 = vsel %vm642, %v7865, 0
      %v7966 = vsel %vm642, %v7866, 0
      %7968 = vmatprep.subr.mxu0 0.0
      %7969 = vmatpush1.msra.mxu0 0.0
      %7970 = vmatprep.subr.mxu0 0.0
      %7971 = vmatpush1.msra.mxu0 0.0
      %7972 = vmatprep.subr.mxu0 0.0
      %7973 = vmatpush1.msra.mxu0 0.0
      %7974 = vmatprep.subr.mxu0 0.0
      %7975 = vmatpush1.msra.mxu0 0.0
      %7976 = vmatprep.subr.mxu0 0.0
      %7977 = vmatpush1.msra.mxu0 0.0
      %7978 = vmatprep.subr.mxu0 0.0
      %7979 = vmatpush1.msra.mxu0 0.0
      %7980 = vmatprep.subr.mxu0 0.0
      %7981 = vmatpush1.msra.mxu0 0.0
      %7982 = vmatprep.subr.mxu0 0.0
      %7983 = vmatpush1.msra.mxu0 0.0
      %7984 = vmatprep.subr.mxu0 0.0
      %7985 = vmatpush1.msra.mxu0 0.0
      %7986 = vmatprep.subr.mxu0 0.0
      %7987 = vmatpush1.msra.mxu0 0.0
      %7988 = vmatprep.subr.mxu0 0.0
      %7989 = vmatpush1.msra.mxu0 0.0
      %7990 = vmatprep.subr.mxu0 0.0
      %7991 = vmatpush1.msra.mxu0 0.0
      %7992 = vmatprep.subr.mxu0 0.0
      %7993 = vmatpush1.msra.mxu0 %v7871
      %7994 = vmatprep.subr.mxu0 0.0
      %7995 = vmatpush1.msra.mxu0 %v7870
      %7996 = vmatprep.subr.mxu0 0.0
      %7997 = vmatpush1.msra.mxu0 %v7869
      %7998 = vmatprep.subr.mxu0 0.0
      %7999 = vmatpush1.msra.mxu0 %v7868
      %8000 = vmatprep.subr.mxu0 0.0
      %8001 = vmatpush2.msra.mxu0 0.0
      %8002 = vmatprep.subr.mxu0 0.0
      %8003 = vmatpush2.msra.mxu0 0.0
      %8004 = vmatprep.subr.mxu0 0.0
      %8005 = vmatpush2.msra.mxu0 0.0
      %8006 = vmatprep.subr.mxu0 0.0
      %8007 = vmatpush2.msra.mxu0 0.0
      %8008 = vmatprep.subr.mxu0 0.0
      %8009 = vmatpush2.msra.mxu0 0.0
      %8010 = vmatprep.subr.mxu0 0.0
      %8011 = vmatpush2.msra.mxu0 0.0
      %8012 = vmatprep.subr.mxu0 0.0
      %8013 = vmatpush2.msra.mxu0 0.0
      %8014 = vmatprep.subr.mxu0 0.0
      %8015 = vmatpush2.msra.mxu0 0.0
      %8016 = vmatprep.subr.mxu0 0.0
      %8017 = vmatpush2.msra.mxu0 0.0
      %8018 = vmatprep.subr.mxu0 0.0
      %8019 = vmatpush2.msra.mxu0 0.0
      %8020 = vmatprep.subr.mxu0 0.0
      %8021 = vmatpush2.msra.mxu0 0.0
      %8022 = vmatprep.subr.mxu0 0.0
      %8023 = vmatpush2.msra.mxu0 0.0
      %8024 = vmatprep.subr.mxu0 0.0
      %8025 = vmatpush2.msra.mxu0 0.0
      %8026 = vmatprep.subr.mxu0 0.0
      %8027 = vmatpush2.msra.mxu0 0.0
      %8028 = vmatprep.subr.mxu0 0.0
      %8029 = vmatpush2.msra.mxu0 0.0
      %8030 = vmatprep.subr.mxu0 0.0
      %8031 = vmatpush2.msra.mxu0 0.0
      %8032 = vmatprep.mubr.f32.mxu0 0.0
      %8033 = vmatmul.mubr.f32.gmra.mxu0 %v7873
      %v8034 = vpop.f32.mrf.mxu0
      %v8035 = vadd.f32 0.0, %v8034
      %v8036 = vpop.f32.mrf.mxu0
      %8037 = vmatprep.mubr.f32.mxu0 0.0
      %8038 = vmatmul.mubr.f32.gmra.mxu0 %v7876
      %v8039 = vpop.f32.mrf.mxu0
      %v8040 = vadd.f32 0.0, %v8039
      %v8041 = vpop.f32.mrf.mxu0
      %8042 = vmatprep.mubr.f32.mxu0 0.0
      %8043 = vmatmul.mubr.f32.gmra.mxu0 %v7879
      %v8044 = vpop.f32.mrf.mxu0
      %v8045 = vadd.f32 0.0, %v8044
      %v8046 = vpop.f32.mrf.mxu0
      %8047 = vmatprep.mubr.f32.mxu0 0.0
      %8048 = vmatmul.mubr.f32.gmra.mxu0 %v7882
      %v8049 = vpop.f32.mrf.mxu0
      %v8050 = vadd.f32 0.0, %v8049
      %v8051 = vpop.f32.mrf.mxu0
      %8052 = vmatprep.mubr.f32.mxu0 0.0
      %8053 = vmatmul.mubr.f32.gmra.mxu0 %v7885
      %v8054 = vpop.f32.mrf.mxu0
      %v8055 = vadd.f32 0.0, %v8054
      %v8056 = vpop.f32.mrf.mxu0
      %8057 = vmatprep.mubr.f32.mxu0 0.0
      %8058 = vmatmul.mubr.f32.gmra.mxu0 %v7888
      %v8059 = vpop.f32.mrf.mxu0
      %v8060 = vadd.f32 0.0, %v8059
      %v8061 = vpop.f32.mrf.mxu0
      %8062 = vmatprep.mubr.f32.mxu0 0.0
      %8063 = vmatmul.mubr.f32.gmra.mxu0 %v7891
      %v8064 = vpop.f32.mrf.mxu0
      %v8065 = vadd.f32 0.0, %v8064
      %v8066 = vpop.f32.mrf.mxu0
      %8067 = vmatprep.mubr.f32.mxu0 0.0
      %8068 = vmatmul.mubr.f32.gmra.mxu0 %v7894
      %v8069 = vpop.f32.mrf.mxu0
      %v8070 = vadd.f32 0.0, %v8069
      %v8071 = vpop.f32.mrf.mxu0
      %8072 = vmatprep.mubr.f32.mxu0 0.0
      %8073 = vmatmul.mubr.f32.gmra.mxu0 %v7897
      %v8074 = vpop.f32.mrf.mxu0
      %v8075 = vadd.f32 0.0, %v8074
      %v8076 = vpop.f32.mrf.mxu0
      %8077 = vmatprep.mubr.f32.mxu0 0.0
      %8078 = vmatmul.mubr.f32.gmra.mxu0 %v7900
      %v8079 = vpop.f32.mrf.mxu0
      %v8080 = vadd.f32 0.0, %v8079
      %v8081 = vpop.f32.mrf.mxu0
      %8082 = vmatprep.mubr.f32.mxu0 0.0
      %8083 = vmatmul.mubr.f32.gmra.mxu0 %v7903
      %v8084 = vpop.f32.mrf.mxu0
      %v8085 = vadd.f32 0.0, %v8084
      %v8086 = vpop.f32.mrf.mxu0
      %8087 = vmatprep.mubr.f32.mxu0 0.0
      %8088 = vmatmul.mubr.f32.gmra.mxu0 %v7906
      %v8089 = vpop.f32.mrf.mxu0
      %v8090 = vadd.f32 0.0, %v8089
      %v8091 = vpop.f32.mrf.mxu0
      %8092 = vmatprep.mubr.f32.mxu0 0.0
      %8093 = vmatmul.mubr.f32.gmra.mxu0 %v7909
      %v8094 = vpop.f32.mrf.mxu0
      %v8095 = vadd.f32 0.0, %v8094
      %v8096 = vpop.f32.mrf.mxu0
      %8097 = vmatprep.mubr.f32.mxu0 0.0
      %8098 = vmatmul.mubr.f32.gmra.mxu0 %v7912
      %v8099 = vpop.f32.mrf.mxu0
      %v8100 = vadd.f32 0.0, %v8099
      %v8101 = vpop.f32.mrf.mxu0
      %8102 = vmatprep.mubr.f32.mxu0 0.0
      %8103 = vmatmul.mubr.f32.gmra.mxu0 %v7915
      %v8104 = vpop.f32.mrf.mxu0
      %v8105 = vadd.f32 0.0, %v8104
      %v8106 = vpop.f32.mrf.mxu0
      %8107 = vmatprep.mubr.f32.mxu0 0.0
      %8108 = vmatmul.mubr.f32.gmra.mxu0 %v7918
      %v8109 = vpop.f32.mrf.mxu0
      %v8110 = vadd.f32 0.0, %v8109
      %v8111 = vpop.f32.mrf.mxu0
      %8112 = vmatprep.mubr.f32.mxu0 0.0
      %8113 = vmatmul.mubr.f32.gmra.mxu0 %v7921
      %v8114 = vpop.f32.mrf.mxu0
      %v8115 = vadd.f32 0.0, %v8114
      %v8116 = vpop.f32.mrf.mxu0
      %8117 = vmatprep.mubr.f32.mxu0 0.0
      %8118 = vmatmul.mubr.f32.gmra.mxu0 %v7924
      %v8119 = vpop.f32.mrf.mxu0
      %v8120 = vadd.f32 0.0, %v8119
      %v8121 = vpop.f32.mrf.mxu0
      %8122 = vmatprep.mubr.f32.mxu0 0.0
      %8123 = vmatmul.mubr.f32.gmra.mxu0 %v7927
      %v8124 = vpop.f32.mrf.mxu0
      %v8125 = vadd.f32 0.0, %v8124
      %v8126 = vpop.f32.mrf.mxu0
      %8127 = vmatprep.mubr.f32.mxu0 0.0
      %8128 = vmatmul.mubr.f32.gmra.mxu0 %v7930
      %v8129 = vpop.f32.mrf.mxu0
      %v8130 = vadd.f32 0.0, %v8129
      %v8131 = vpop.f32.mrf.mxu0
      %8132 = vmatprep.mubr.f32.mxu0 0.0
      %8133 = vmatmul.mubr.f32.gmra.mxu0 %v7933
      %v8134 = vpop.f32.mrf.mxu0
      %v8135 = vadd.f32 0.0, %v8134
      %v8136 = vpop.f32.mrf.mxu0
      %8137 = vmatprep.mubr.f32.mxu0 0.0
      %8138 = vmatmul.mubr.f32.gmra.mxu0 %v7936
      %v8139 = vpop.f32.mrf.mxu0
      %v8140 = vadd.f32 0.0, %v8139
      %v8141 = vpop.f32.mrf.mxu0
      %8142 = vmatprep.mubr.f32.mxu0 0.0
      %8143 = vmatmul.mubr.f32.gmra.mxu0 %v7939
      %v8144 = vpop.f32.mrf.mxu0
      %v8145 = vadd.f32 0.0, %v8144
      %v8146 = vpop.f32.mrf.mxu0
      %8147 = vmatprep.mubr.f32.mxu0 0.0
      %8148 = vmatmul.mubr.f32.gmra.mxu0 %v7942
      %v8149 = vpop.f32.mrf.mxu0
      %v8150 = vadd.f32 0.0, %v8149
      %v8151 = vpop.f32.mrf.mxu0
      %8152 = vmatprep.mubr.f32.mxu0 0.0
      %8153 = vmatmul.mubr.f32.gmra.mxu0 %v7945
      %v8154 = vpop.f32.mrf.mxu0
      %v8155 = vadd.f32 0.0, %v8154
      %v8156 = vpop.f32.mrf.mxu0
      %8157 = vmatprep.mubr.f32.mxu0 0.0
      %8158 = vmatmul.mubr.f32.gmra.mxu0 %v7948
      %v8159 = vpop.f32.mrf.mxu0
      %v8160 = vadd.f32 0.0, %v8159
      %v8161 = vpop.f32.mrf.mxu0
      %8162 = vmatprep.mubr.f32.mxu0 0.0
      %8163 = vmatmul.mubr.f32.gmra.mxu0 %v7951
      %v8164 = vpop.f32.mrf.mxu0
      %v8165 = vadd.f32 0.0, %v8164
      %v8166 = vpop.f32.mrf.mxu0
      %8167 = vmatprep.mubr.f32.mxu0 0.0
      %8168 = vmatmul.mubr.f32.gmra.mxu0 %v7954
      %v8169 = vpop.f32.mrf.mxu0
      %v8170 = vadd.f32 0.0, %v8169
      %v8171 = vpop.f32.mrf.mxu0
      %8172 = vmatprep.mubr.f32.mxu0 0.0
      %8173 = vmatmul.mubr.f32.gmra.mxu0 %v7957
      %v8174 = vpop.f32.mrf.mxu0
      %v8175 = vadd.f32 0.0, %v8174
      %v8176 = vpop.f32.mrf.mxu0
      %8177 = vmatprep.mubr.f32.mxu0 0.0
      %8178 = vmatmul.mubr.f32.gmra.mxu0 %v7960
      %v8179 = vpop.f32.mrf.mxu0
      %v8180 = vadd.f32 0.0, %v8179
      %v8181 = vpop.f32.mrf.mxu0
      %8182 = vmatprep.mubr.f32.mxu0 0.0
      %8183 = vmatmul.mubr.f32.gmra.mxu0 %v7963
      %v8184 = vpop.f32.mrf.mxu0
      %v8185 = vadd.f32 0.0, %v8184
      %v8186 = vpop.f32.mrf.mxu0
      %8187 = vmatprep.mubr.f32.mxu0 0.0
      %8188 = vmatmul.mubr.f32.gmra.mxu0 %v7966
      %v8189 = vpop.f32.mrf.mxu0
      %v8190 = vadd.f32 0.0, %v8189
      %v8191 = vpop.f32.mrf.mxu0
      %8192 = vdwg.mxu0
      %v8193 = vadd.f32 %v7802, %v8035
      %v8194 = vadd.f32 %v7803, %v8040
      %v8195 = vadd.f32 %v7804, %v8045
      %v8196 = vadd.f32 %v7805, %v8050
      %v8197 = vadd.f32 %v7806, %v8055
      %v8198 = vadd.f32 %v7807, %v8060
      %v8199 = vadd.f32 %v7808, %v8065
      %v8200 = vadd.f32 %v7809, %v8070
      %v8201 = vadd.f32 %v7810, %v8075
      %v8202 = vadd.f32 %v7811, %v8080
      %v8203 = vadd.f32 %v7812, %v8085
      %v8204 = vadd.f32 %v7813, %v8090
      %v8205 = vadd.f32 %v7814, %v8095
      %v8206 = vadd.f32 %v7815, %v8100
      %v8207 = vadd.f32 %v7816, %v8105
      %v8208 = vadd.f32 %v7817, %v8110
      %v8209 = vadd.f32 %v7818, %v8115
      %v8210 = vadd.f32 %v7819, %v8120
      %v8211 = vadd.f32 %v7820, %v8125
      %v8212 = vadd.f32 %v7821, %v8130
      %v8213 = vadd.f32 %v7822, %v8135
      %v8214 = vadd.f32 %v7823, %v8140
      %v8215 = vadd.f32 %v7824, %v8145
      %v8216 = vadd.f32 %v7825, %v8150
      %v8217 = vadd.f32 %v7826, %v8155
      %v8218 = vadd.f32 %v7827, %v8160
      %v8219 = vadd.f32 %v7828, %v8165
      %v8220 = vadd.f32 %v7829, %v8170
      %v8221 = vadd.f32 %v7830, %v8175
      %v8222 = vadd.f32 %v7831, %v8180
      %v8223 = vadd.f32 %v7832, %v8185
      %v8224 = vadd.f32 %v7833, %v8190
      %v8225 = vld [vmem:[%s7834 + $0x1] sm:$0xff]
      %v8226 = vld [vmem:[%s7834 + $0x9] sm:$0xff]
      %v8227 = vld [vmem:[%s7834 + $0x19] sm:$0xff]
      %v8228 = vld [vmem:[%s7834 + $0x21] sm:$0xff]
      %v8229 = vld [vmem:[%s7834 + $0x31] sm:$0xff]
      %v8230 = vld [vmem:[%s7834 + $0x39] sm:$0xff]
      %v8231 = vld [vmem:[%s7834 + $0x49] sm:$0xff]
      %v8232 = vld [vmem:[%s7834 + $0x51] sm:$0xff]
      %v8233 = vld [vmem:[%s7834 + $0x61] sm:$0xff]
      %v8234 = vld [vmem:[%s7834 + $0x69] sm:$0xff]
      %v8235 = vld [vmem:[%s7834 + $0x79] sm:$0xff]
      %v8236 = vld [vmem:[%s7834 + $0x81] sm:$0xff]
      %v8237 = vld [vmem:[%s7834 + $0x91] sm:$0xff]
      %v8238 = vld [vmem:[%s7834 + $0x99] sm:$0xff]
      %v8239 = vld [vmem:[%s7834 + $0xa9] sm:$0xff]
      %v8240 = vld [vmem:[%s7834 + $0xb1] sm:$0xff]
      %v8241 = vld [vmem:[%s7834 + $0xc1] sm:$0xff]
      %v8242 = vld [vmem:[%s7834 + $0xc9] sm:$0xff]
      %v8243 = vld [vmem:[%s7834 + $0xd9] sm:$0xff]
      %v8244 = vld [vmem:[%s7834 + $0xe1] sm:$0xff]
      %v8245 = vld [vmem:[%s7834 + $0xf1] sm:$0xff]
      %v8246 = vld [vmem:[%s7834 + $0xf9] sm:$0xff]
      %v8247 = vld [vmem:[%s7834 + $0x109] sm:$0xff]
      %v8248 = vld [vmem:[%s7834 + $0x111] sm:$0xff]
      %v8249 = vld [vmem:[%s7834 + $0x121] sm:$0xff]
      %v8250 = vld [vmem:[%s7834 + $0x129] sm:$0xff]
      %v8251 = vld [vmem:[%s7834 + $0x139] sm:$0xff]
      %v8252 = vld [vmem:[%s7834 + $0x141] sm:$0xff]
      %v8253 = vld [vmem:[%s7834 + $0x151] sm:$0xff]
      %v8254 = vld [vmem:[%s7834 + $0x159] sm:$0xff]
      %v8255 = vld [vmem:[%s7834 + $0x169] sm:$0xff]
      %v8256 = vld [vmem:[%s7834 + $0x171] sm:$0xff]
      %s8257 = scalar_lea.vmem %s8, 224
      %v8258 = vld [vmem:[%s8257] sm:$0xff]
      %v8259 = vld [vmem:[%s8257 + $0x8] sm:$0xff]
      %v8260 = vld [vmem:[%s8257 + $0x10] sm:$0xff]
      %v8261 = vld [vmem:[%s8257 + $0x18] sm:$0xff]
      %v8263 = vsel %vm642, %v8225, 0
      %v8266 = vsel %vm642, %v8226, 0
      %v8269 = vsel %vm642, %v8227, 0
      %v8272 = vsel %vm642, %v8228, 0
      %v8275 = vsel %vm642, %v8229, 0
      %v8278 = vsel %vm642, %v8230, 0
      %v8281 = vsel %vm642, %v8231, 0
      %v8284 = vsel %vm642, %v8232, 0
      %v8287 = vsel %vm642, %v8233, 0
      %v8290 = vsel %vm642, %v8234, 0
      %v8293 = vsel %vm642, %v8235, 0
      %v8296 = vsel %vm642, %v8236, 0
      %v8299 = vsel %vm642, %v8237, 0
      %v8302 = vsel %vm642, %v8238, 0
      %v8305 = vsel %vm642, %v8239, 0
      %v8308 = vsel %vm642, %v8240, 0
      %v8311 = vsel %vm642, %v8241, 0
      %v8314 = vsel %vm642, %v8242, 0
      %v8317 = vsel %vm642, %v8243, 0
      %v8320 = vsel %vm642, %v8244, 0
      %v8323 = vsel %vm642, %v8245, 0
      %v8326 = vsel %vm642, %v8246, 0
      %v8329 = vsel %vm642, %v8247, 0
      %v8332 = vsel %vm642, %v8248, 0
      %v8335 = vsel %vm642, %v8249, 0
      %v8338 = vsel %vm642, %v8250, 0
      %v8341 = vsel %vm642, %v8251, 0
      %v8344 = vsel %vm642, %v8252, 0
      %v8347 = vsel %vm642, %v8253, 0
      %v8350 = vsel %vm642, %v8254, 0
      %v8353 = vsel %vm642, %v8255, 0
      %v8356 = vsel %vm642, %v8256, 0
      %8358 = vmatprep.subr.mxu0 0.0
      %8359 = vmatpush1.msra.mxu0 0.0
      %8360 = vmatprep.subr.mxu0 0.0
      %8361 = vmatpush1.msra.mxu0 0.0
      %8362 = vmatprep.subr.mxu0 0.0
      %8363 = vmatpush1.msra.mxu0 0.0
      %8364 = vmatprep.subr.mxu0 0.0
      %8365 = vmatpush1.msra.mxu0 0.0
      %8366 = vmatprep.subr.mxu0 0.0
      %8367 = vmatpush1.msra.mxu0 0.0
      %8368 = vmatprep.subr.mxu0 0.0
      %8369 = vmatpush1.msra.mxu0 0.0
      %8370 = vmatprep.subr.mxu0 0.0
      %8371 = vmatpush1.msra.mxu0 0.0
      %8372 = vmatprep.subr.mxu0 0.0
      %8373 = vmatpush1.msra.mxu0 0.0
      %8374 = vmatprep.subr.mxu0 0.0
      %8375 = vmatpush1.msra.mxu0 0.0
      %8376 = vmatprep.subr.mxu0 0.0
      %8377 = vmatpush1.msra.mxu0 0.0
      %8378 = vmatprep.subr.mxu0 0.0
      %8379 = vmatpush1.msra.mxu0 0.0
      %8380 = vmatprep.subr.mxu0 0.0
      %8381 = vmatpush1.msra.mxu0 0.0
      %8382 = vmatprep.subr.mxu0 0.0
      %8383 = vmatpush1.msra.mxu0 %v8261
      %8384 = vmatprep.subr.mxu0 0.0
      %8385 = vmatpush1.msra.mxu0 %v8260
      %8386 = vmatprep.subr.mxu0 0.0
      %8387 = vmatpush1.msra.mxu0 %v8259
      %8388 = vmatprep.subr.mxu0 0.0
      %8389 = vmatpush1.msra.mxu0 %v8258
      %8390 = vmatprep.subr.mxu0 0.0
      %8391 = vmatpush2.msra.mxu0 0.0
      %8392 = vmatprep.subr.mxu0 0.0
      %8393 = vmatpush2.msra.mxu0 0.0
      %8394 = vmatprep.subr.mxu0 0.0
      %8395 = vmatpush2.msra.mxu0 0.0
      %8396 = vmatprep.subr.mxu0 0.0
      %8397 = vmatpush2.msra.mxu0 0.0
      %8398 = vmatprep.subr.mxu0 0.0
      %8399 = vmatpush2.msra.mxu0 0.0
      %8400 = vmatprep.subr.mxu0 0.0
      %8401 = vmatpush2.msra.mxu0 0.0
      %8402 = vmatprep.subr.mxu0 0.0
      %8403 = vmatpush2.msra.mxu0 0.0
      %8404 = vmatprep.subr.mxu0 0.0
      %8405 = vmatpush2.msra.mxu0 0.0
      %8406 = vmatprep.subr.mxu0 0.0
      %8407 = vmatpush2.msra.mxu0 0.0
      %8408 = vmatprep.subr.mxu0 0.0
      %8409 = vmatpush2.msra.mxu0 0.0
      %8410 = vmatprep.subr.mxu0 0.0
      %8411 = vmatpush2.msra.mxu0 0.0
      %8412 = vmatprep.subr.mxu0 0.0
      %8413 = vmatpush2.msra.mxu0 0.0
      %8414 = vmatprep.subr.mxu0 0.0
      %8415 = vmatpush2.msra.mxu0 0.0
      %8416 = vmatprep.subr.mxu0 0.0
      %8417 = vmatpush2.msra.mxu0 0.0
      %8418 = vmatprep.subr.mxu0 0.0
      %8419 = vmatpush2.msra.mxu0 0.0
      %8420 = vmatprep.subr.mxu0 0.0
      %8421 = vmatpush2.msra.mxu0 0.0
      %8422 = vmatprep.mubr.f32.mxu0 0.0
      %8423 = vmatmul.mubr.f32.gmra.mxu0 %v8263
      %v8424 = vpop.f32.mrf.mxu0
      %v8425 = vadd.f32 0.0, %v8424
      %v8426 = vpop.f32.mrf.mxu0
      %8427 = vmatprep.mubr.f32.mxu0 0.0
      %8428 = vmatmul.mubr.f32.gmra.mxu0 %v8266
      %v8429 = vpop.f32.mrf.mxu0
      %v8430 = vadd.f32 0.0, %v8429
      %v8431 = vpop.f32.mrf.mxu0
      %8432 = vmatprep.mubr.f32.mxu0 0.0
      %8433 = vmatmul.mubr.f32.gmra.mxu0 %v8269
      %v8434 = vpop.f32.mrf.mxu0
      %v8435 = vadd.f32 0.0, %v8434
      %v8436 = vpop.f32.mrf.mxu0
      %8437 = vmatprep.mubr.f32.mxu0 0.0
      %8438 = vmatmul.mubr.f32.gmra.mxu0 %v8272
      %v8439 = vpop.f32.mrf.mxu0
      %v8440 = vadd.f32 0.0, %v8439
      %v8441 = vpop.f32.mrf.mxu0
      %8442 = vmatprep.mubr.f32.mxu0 0.0
      %8443 = vmatmul.mubr.f32.gmra.mxu0 %v8275
      %v8444 = vpop.f32.mrf.mxu0
      %v8445 = vadd.f32 0.0, %v8444
      %v8446 = vpop.f32.mrf.mxu0
      %8447 = vmatprep.mubr.f32.mxu0 0.0
      %8448 = vmatmul.mubr.f32.gmra.mxu0 %v8278
      %v8449 = vpop.f32.mrf.mxu0
      %v8450 = vadd.f32 0.0, %v8449
      %v8451 = vpop.f32.mrf.mxu0
      %8452 = vmatprep.mubr.f32.mxu0 0.0
      %8453 = vmatmul.mubr.f32.gmra.mxu0 %v8281
      %v8454 = vpop.f32.mrf.mxu0
      %v8455 = vadd.f32 0.0, %v8454
      %v8456 = vpop.f32.mrf.mxu0
      %8457 = vmatprep.mubr.f32.mxu0 0.0
      %8458 = vmatmul.mubr.f32.gmra.mxu0 %v8284
      %v8459 = vpop.f32.mrf.mxu0
      %v8460 = vadd.f32 0.0, %v8459
      %v8461 = vpop.f32.mrf.mxu0
      %8462 = vmatprep.mubr.f32.mxu0 0.0
      %8463 = vmatmul.mubr.f32.gmra.mxu0 %v8287
      %v8464 = vpop.f32.mrf.mxu0
      %v8465 = vadd.f32 0.0, %v8464
      %v8466 = vpop.f32.mrf.mxu0
      %8467 = vmatprep.mubr.f32.mxu0 0.0
      %8468 = vmatmul.mubr.f32.gmra.mxu0 %v8290
      %v8469 = vpop.f32.mrf.mxu0
      %v8470 = vadd.f32 0.0, %v8469
      %v8471 = vpop.f32.mrf.mxu0
      %8472 = vmatprep.mubr.f32.mxu0 0.0
      %8473 = vmatmul.mubr.f32.gmra.mxu0 %v8293
      %v8474 = vpop.f32.mrf.mxu0
      %v8475 = vadd.f32 0.0, %v8474
      %v8476 = vpop.f32.mrf.mxu0
      %8477 = vmatprep.mubr.f32.mxu0 0.0
      %8478 = vmatmul.mubr.f32.gmra.mxu0 %v8296
      %v8479 = vpop.f32.mrf.mxu0
      %v8480 = vadd.f32 0.0, %v8479
      %v8481 = vpop.f32.mrf.mxu0
      %8482 = vmatprep.mubr.f32.mxu0 0.0
      %8483 = vmatmul.mubr.f32.gmra.mxu0 %v8299
      %v8484 = vpop.f32.mrf.mxu0
      %v8485 = vadd.f32 0.0, %v8484
      %v8486 = vpop.f32.mrf.mxu0
      %8487 = vmatprep.mubr.f32.mxu0 0.0
      %8488 = vmatmul.mubr.f32.gmra.mxu0 %v8302
      %v8489 = vpop.f32.mrf.mxu0
      %v8490 = vadd.f32 0.0, %v8489
      %v8491 = vpop.f32.mrf.mxu0
      %8492 = vmatprep.mubr.f32.mxu0 0.0
      %8493 = vmatmul.mubr.f32.gmra.mxu0 %v8305
      %v8494 = vpop.f32.mrf.mxu0
      %v8495 = vadd.f32 0.0, %v8494
      %v8496 = vpop.f32.mrf.mxu0
      %8497 = vmatprep.mubr.f32.mxu0 0.0
      %8498 = vmatmul.mubr.f32.gmra.mxu0 %v8308
      %v8499 = vpop.f32.mrf.mxu0
      %v8500 = vadd.f32 0.0, %v8499
      %v8501 = vpop.f32.mrf.mxu0
      %8502 = vmatprep.mubr.f32.mxu0 0.0
      %8503 = vmatmul.mubr.f32.gmra.mxu0 %v8311
      %v8504 = vpop.f32.mrf.mxu0
      %v8505 = vadd.f32 0.0, %v8504
      %v8506 = vpop.f32.mrf.mxu0
      %8507 = vmatprep.mubr.f32.mxu0 0.0
      %8508 = vmatmul.mubr.f32.gmra.mxu0 %v8314
      %v8509 = vpop.f32.mrf.mxu0
      %v8510 = vadd.f32 0.0, %v8509
      %v8511 = vpop.f32.mrf.mxu0
      %8512 = vmatprep.mubr.f32.mxu0 0.0
      %8513 = vmatmul.mubr.f32.gmra.mxu0 %v8317
      %v8514 = vpop.f32.mrf.mxu0
      %v8515 = vadd.f32 0.0, %v8514
      %v8516 = vpop.f32.mrf.mxu0
      %8517 = vmatprep.mubr.f32.mxu0 0.0
      %8518 = vmatmul.mubr.f32.gmra.mxu0 %v8320
      %v8519 = vpop.f32.mrf.mxu0
      %v8520 = vadd.f32 0.0, %v8519
      %v8521 = vpop.f32.mrf.mxu0
      %8522 = vmatprep.mubr.f32.mxu0 0.0
      %8523 = vmatmul.mubr.f32.gmra.mxu0 %v8323
      %v8524 = vpop.f32.mrf.mxu0
      %v8525 = vadd.f32 0.0, %v8524
      %v8526 = vpop.f32.mrf.mxu0
      %8527 = vmatprep.mubr.f32.mxu0 0.0
      %8528 = vmatmul.mubr.f32.gmra.mxu0 %v8326
      %v8529 = vpop.f32.mrf.mxu0
      %v8530 = vadd.f32 0.0, %v8529
      %v8531 = vpop.f32.mrf.mxu0
      %8532 = vmatprep.mubr.f32.mxu0 0.0
      %8533 = vmatmul.mubr.f32.gmra.mxu0 %v8329
      %v8534 = vpop.f32.mrf.mxu0
      %v8535 = vadd.f32 0.0, %v8534
      %v8536 = vpop.f32.mrf.mxu0
      %8537 = vmatprep.mubr.f32.mxu0 0.0
      %8538 = vmatmul.mubr.f32.gmra.mxu0 %v8332
      %v8539 = vpop.f32.mrf.mxu0
      %v8540 = vadd.f32 0.0, %v8539
      %v8541 = vpop.f32.mrf.mxu0
      %8542 = vmatprep.mubr.f32.mxu0 0.0
      %8543 = vmatmul.mubr.f32.gmra.mxu0 %v8335
      %v8544 = vpop.f32.mrf.mxu0
      %v8545 = vadd.f32 0.0, %v8544
      %v8546 = vpop.f32.mrf.mxu0
      %8547 = vmatprep.mubr.f32.mxu0 0.0
      %8548 = vmatmul.mubr.f32.gmra.mxu0 %v8338
      %v8549 = vpop.f32.mrf.mxu0
      %v8550 = vadd.f32 0.0, %v8549
      %v8551 = vpop.f32.mrf.mxu0
      %8552 = vmatprep.mubr.f32.mxu0 0.0
      %8553 = vmatmul.mubr.f32.gmra.mxu0 %v8341
      %v8554 = vpop.f32.mrf.mxu0
      %v8555 = vadd.f32 0.0, %v8554
      %v8556 = vpop.f32.mrf.mxu0
      %8557 = vmatprep.mubr.f32.mxu0 0.0
      %8558 = vmatmul.mubr.f32.gmra.mxu0 %v8344
      %v8559 = vpop.f32.mrf.mxu0
      %v8560 = vadd.f32 0.0, %v8559
      %v8561 = vpop.f32.mrf.mxu0
      %8562 = vmatprep.mubr.f32.mxu0 0.0
      %8563 = vmatmul.mubr.f32.gmra.mxu0 %v8347
      %v8564 = vpop.f32.mrf.mxu0
      %v8565 = vadd.f32 0.0, %v8564
      %v8566 = vpop.f32.mrf.mxu0
      %8567 = vmatprep.mubr.f32.mxu0 0.0
      %8568 = vmatmul.mubr.f32.gmra.mxu0 %v8350
      %v8569 = vpop.f32.mrf.mxu0
      %v8570 = vadd.f32 0.0, %v8569
      %v8571 = vpop.f32.mrf.mxu0
      %8572 = vmatprep.mubr.f32.mxu0 0.0
      %8573 = vmatmul.mubr.f32.gmra.mxu0 %v8353
      %v8574 = vpop.f32.mrf.mxu0
      %v8575 = vadd.f32 0.0, %v8574
      %v8576 = vpop.f32.mrf.mxu0
      %8577 = vmatprep.mubr.f32.mxu0 0.0
      %8578 = vmatmul.mubr.f32.gmra.mxu0 %v8356
      %v8579 = vpop.f32.mrf.mxu0
      %v8580 = vadd.f32 0.0, %v8579
      %v8581 = vpop.f32.mrf.mxu0
      %8582 = vdwg.mxu0
      %v8583 = vadd.f32 %v8193, %v8425
      %v8584 = vadd.f32 %v8194, %v8430
      %v8585 = vadd.f32 %v8195, %v8435
      %v8586 = vadd.f32 %v8196, %v8440
      %v8587 = vadd.f32 %v8197, %v8445
      %v8588 = vadd.f32 %v8198, %v8450
      %v8589 = vadd.f32 %v8199, %v8455
      %v8590 = vadd.f32 %v8200, %v8460
      %v8591 = vadd.f32 %v8201, %v8465
      %v8592 = vadd.f32 %v8202, %v8470
      %v8593 = vadd.f32 %v8203, %v8475
      %v8594 = vadd.f32 %v8204, %v8480
      %v8595 = vadd.f32 %v8205, %v8485
      %v8596 = vadd.f32 %v8206, %v8490
      %v8597 = vadd.f32 %v8207, %v8495
      %v8598 = vadd.f32 %v8208, %v8500
      %v8599 = vadd.f32 %v8209, %v8505
      %v8600 = vadd.f32 %v8210, %v8510
      %v8601 = vadd.f32 %v8211, %v8515
      %v8602 = vadd.f32 %v8212, %v8520
      %v8603 = vadd.f32 %v8213, %v8525
      %v8604 = vadd.f32 %v8214, %v8530
      %v8605 = vadd.f32 %v8215, %v8535
      %v8606 = vadd.f32 %v8216, %v8540
      %v8607 = vadd.f32 %v8217, %v8545
      %v8608 = vadd.f32 %v8218, %v8550
      %v8609 = vadd.f32 %v8219, %v8555
      %v8610 = vadd.f32 %v8220, %v8560
      %v8611 = vadd.f32 %v8221, %v8565
      %v8612 = vadd.f32 %v8222, %v8570
      %v8613 = vadd.f32 %v8223, %v8575
      %v8614 = vadd.f32 %v8224, %v8580
      %v8615 = vld [vmem:[%s7834 + $0x2] sm:$0xff]
      %v8616 = vld [vmem:[%s7834 + $0xa] sm:$0xff]
      %v8617 = vld [vmem:[%s7834 + $0x1a] sm:$0xff]
      %v8618 = vld [vmem:[%s7834 + $0x22] sm:$0xff]
      %v8619 = vld [vmem:[%s7834 + $0x32] sm:$0xff]
      %v8620 = vld [vmem:[%s7834 + $0x3a] sm:$0xff]
      %v8621 = vld [vmem:[%s7834 + $0x4a] sm:$0xff]
      %v8622 = vld [vmem:[%s7834 + $0x52] sm:$0xff]
      %v8623 = vld [vmem:[%s7834 + $0x62] sm:$0xff]
      %v8624 = vld [vmem:[%s7834 + $0x6a] sm:$0xff]
      %v8625 = vld [vmem:[%s7834 + $0x7a] sm:$0xff]
      %v8626 = vld [vmem:[%s7834 + $0x82] sm:$0xff]
      %v8627 = vld [vmem:[%s7834 + $0x92] sm:$0xff]
      %v8628 = vld [vmem:[%s7834 + $0x9a] sm:$0xff]
      %v8629 = vld [vmem:[%s7834 + $0xaa] sm:$0xff]
      %v8630 = vld [vmem:[%s7834 + $0xb2] sm:$0xff]
      %v8631 = vld [vmem:[%s7834 + $0xc2] sm:$0xff]
      %v8632 = vld [vmem:[%s7834 + $0xca] sm:$0xff]
      %v8633 = vld [vmem:[%s7834 + $0xda] sm:$0xff]
      %v8634 = vld [vmem:[%s7834 + $0xe2] sm:$0xff]
      %v8635 = vld [vmem:[%s7834 + $0xf2] sm:$0xff]
      %v8636 = vld [vmem:[%s7834 + $0xfa] sm:$0xff]
      %v8637 = vld [vmem:[%s7834 + $0x10a] sm:$0xff]
      %v8638 = vld [vmem:[%s7834 + $0x112] sm:$0xff]
      %v8639 = vld [vmem:[%s7834 + $0x122] sm:$0xff]
      %v8640 = vld [vmem:[%s7834 + $0x12a] sm:$0xff]
      %v8641 = vld [vmem:[%s7834 + $0x13a] sm:$0xff]
      %v8642 = vld [vmem:[%s7834 + $0x142] sm:$0xff]
      %v8643 = vld [vmem:[%s7834 + $0x152] sm:$0xff]
      %v8644 = vld [vmem:[%s7834 + $0x15a] sm:$0xff]
      %v8645 = vld [vmem:[%s7834 + $0x16a] sm:$0xff]
      %v8646 = vld [vmem:[%s7834 + $0x172] sm:$0xff]
      %s8647 = scalar_lea.vmem %s8, 256
      %v8648 = vld [vmem:[%s8647] sm:$0xff]
      %v8649 = vld [vmem:[%s8647 + $0x8] sm:$0xff]
      %v8650 = vld [vmem:[%s8647 + $0x10] sm:$0xff]
      %v8651 = vld [vmem:[%s8647 + $0x18] sm:$0xff]
      %v8653 = vsel %vm642, %v8615, 0
      %v8656 = vsel %vm642, %v8616, 0
      %v8659 = vsel %vm642, %v8617, 0
      %v8662 = vsel %vm642, %v8618, 0
      %v8665 = vsel %vm642, %v8619, 0
      %v8668 = vsel %vm642, %v8620, 0
      %v8671 = vsel %vm642, %v8621, 0
      %v8674 = vsel %vm642, %v8622, 0
      %v8677 = vsel %vm642, %v8623, 0
      %v8680 = vsel %vm642, %v8624, 0
      %v8683 = vsel %vm642, %v8625, 0
      %v8686 = vsel %vm642, %v8626, 0
      %v8689 = vsel %vm642, %v8627, 0
      %v8692 = vsel %vm642, %v8628, 0
      %v8695 = vsel %vm642, %v8629, 0
      %v8698 = vsel %vm642, %v8630, 0
      %v8701 = vsel %vm642, %v8631, 0
      %v8704 = vsel %vm642, %v8632, 0
      %v8707 = vsel %vm642, %v8633, 0
      %v8710 = vsel %vm642, %v8634, 0
      %v8713 = vsel %vm642, %v8635, 0
      %v8716 = vsel %vm642, %v8636, 0
      %v8719 = vsel %vm642, %v8637, 0
      %v8722 = vsel %vm642, %v8638, 0
      %v8725 = vsel %vm642, %v8639, 0
      %v8728 = vsel %vm642, %v8640, 0
      %v8731 = vsel %vm642, %v8641, 0
      %v8734 = vsel %vm642, %v8642, 0
      %v8737 = vsel %vm642, %v8643, 0
      %v8740 = vsel %vm642, %v8644, 0
      %v8743 = vsel %vm642, %v8645, 0
      %v8746 = vsel %vm642, %v8646, 0
      %8748 = vmatprep.subr.mxu0 0.0
      %8749 = vmatpush1.msra.mxu0 0.0
      %8750 = vmatprep.subr.mxu0 0.0
      %8751 = vmatpush1.msra.mxu0 0.0
      %8752 = vmatprep.subr.mxu0 0.0
      %8753 = vmatpush1.msra.mxu0 0.0
      %8754 = vmatprep.subr.mxu0 0.0
      %8755 = vmatpush1.msra.mxu0 0.0
      %8756 = vmatprep.subr.mxu0 0.0
      %8757 = vmatpush1.msra.mxu0 0.0
      %8758 = vmatprep.subr.mxu0 0.0
      %8759 = vmatpush1.msra.mxu0 0.0
      %8760 = vmatprep.subr.mxu0 0.0
      %8761 = vmatpush1.msra.mxu0 0.0
      %8762 = vmatprep.subr.mxu0 0.0
      %8763 = vmatpush1.msra.mxu0 0.0
      %8764 = vmatprep.subr.mxu0 0.0
      %8765 = vmatpush1.msra.mxu0 0.0
      %8766 = vmatprep.subr.mxu0 0.0
      %8767 = vmatpush1.msra.mxu0 0.0
      %8768 = vmatprep.subr.mxu0 0.0
      %8769 = vmatpush1.msra.mxu0 0.0
      %8770 = vmatprep.subr.mxu0 0.0
      %8771 = vmatpush1.msra.mxu0 0.0
      %8772 = vmatprep.subr.mxu0 0.0
      %8773 = vmatpush1.msra.mxu0 %v8651
      %8774 = vmatprep.subr.mxu0 0.0
      %8775 = vmatpush1.msra.mxu0 %v8650
      %8776 = vmatprep.subr.mxu0 0.0
      %8777 = vmatpush1.msra.mxu0 %v8649
      %8778 = vmatprep.subr.mxu0 0.0
      %8779 = vmatpush1.msra.mxu0 %v8648
      %8780 = vmatprep.subr.mxu0 0.0
      %8781 = vmatpush2.msra.mxu0 0.0
      %8782 = vmatprep.subr.mxu0 0.0
      %8783 = vmatpush2.msra.mxu0 0.0
      %8784 = vmatprep.subr.mxu0 0.0
      %8785 = vmatpush2.msra.mxu0 0.0
      %8786 = vmatprep.subr.mxu0 0.0
      %8787 = vmatpush2.msra.mxu0 0.0
      %8788 = vmatprep.subr.mxu0 0.0
      %8789 = vmatpush2.msra.mxu0 0.0
      %8790 = vmatprep.subr.mxu0 0.0
      %8791 = vmatpush2.msra.mxu0 0.0
      %8792 = vmatprep.subr.mxu0 0.0
      %8793 = vmatpush2.msra.mxu0 0.0
      %8794 = vmatprep.subr.mxu0 0.0
      %8795 = vmatpush2.msra.mxu0 0.0
      %8796 = vmatprep.subr.mxu0 0.0
      %8797 = vmatpush2.msra.mxu0 0.0
      %8798 = vmatprep.subr.mxu0 0.0
      %8799 = vmatpush2.msra.mxu0 0.0
      %8800 = vmatprep.subr.mxu0 0.0
      %8801 = vmatpush2.msra.mxu0 0.0
      %8802 = vmatprep.subr.mxu0 0.0
      %8803 = vmatpush2.msra.mxu0 0.0
      %8804 = vmatprep.subr.mxu0 0.0
      %8805 = vmatpush2.msra.mxu0 0.0
      %8806 = vmatprep.subr.mxu0 0.0
      %8807 = vmatpush2.msra.mxu0 0.0
      %8808 = vmatprep.subr.mxu0 0.0
      %8809 = vmatpush2.msra.mxu0 0.0
      %8810 = vmatprep.subr.mxu0 0.0
      %8811 = vmatpush2.msra.mxu0 0.0
      %8812 = vmatprep.mubr.f32.mxu0 0.0
      %8813 = vmatmul.mubr.f32.gmra.mxu0 %v8653
      %v8814 = vpop.f32.mrf.mxu0
      %v8815 = vadd.f32 0.0, %v8814
      %v8816 = vpop.f32.mrf.mxu0
      %8817 = vmatprep.mubr.f32.mxu0 0.0
      %8818 = vmatmul.mubr.f32.gmra.mxu0 %v8656
      %v8819 = vpop.f32.mrf.mxu0
      %v8820 = vadd.f32 0.0, %v8819
      %v8821 = vpop.f32.mrf.mxu0
      %8822 = vmatprep.mubr.f32.mxu0 0.0
      %8823 = vmatmul.mubr.f32.gmra.mxu0 %v8659
      %v8824 = vpop.f32.mrf.mxu0
      %v8825 = vadd.f32 0.0, %v8824
      %v8826 = vpop.f32.mrf.mxu0
      %8827 = vmatprep.mubr.f32.mxu0 0.0
      %8828 = vmatmul.mubr.f32.gmra.mxu0 %v8662
      %v8829 = vpop.f32.mrf.mxu0
      %v8830 = vadd.f32 0.0, %v8829
      %v8831 = vpop.f32.mrf.mxu0
      %8832 = vmatprep.mubr.f32.mxu0 0.0
      %8833 = vmatmul.mubr.f32.gmra.mxu0 %v8665
      %v8834 = vpop.f32.mrf.mxu0
      %v8835 = vadd.f32 0.0, %v8834
      %v8836 = vpop.f32.mrf.mxu0
      %8837 = vmatprep.mubr.f32.mxu0 0.0
      %8838 = vmatmul.mubr.f32.gmra.mxu0 %v8668
      %v8839 = vpop.f32.mrf.mxu0
      %v8840 = vadd.f32 0.0, %v8839
      %v8841 = vpop.f32.mrf.mxu0
      %8842 = vmatprep.mubr.f32.mxu0 0.0
      %8843 = vmatmul.mubr.f32.gmra.mxu0 %v8671
      %v8844 = vpop.f32.mrf.mxu0
      %v8845 = vadd.f32 0.0, %v8844
      %v8846 = vpop.f32.mrf.mxu0
      %8847 = vmatprep.mubr.f32.mxu0 0.0
      %8848 = vmatmul.mubr.f32.gmra.mxu0 %v8674
      %v8849 = vpop.f32.mrf.mxu0
      %v8850 = vadd.f32 0.0, %v8849
      %v8851 = vpop.f32.mrf.mxu0
      %8852 = vmatprep.mubr.f32.mxu0 0.0
      %8853 = vmatmul.mubr.f32.gmra.mxu0 %v8677
      %v8854 = vpop.f32.mrf.mxu0
      %v8855 = vadd.f32 0.0, %v8854
      %v8856 = vpop.f32.mrf.mxu0
      %8857 = vmatprep.mubr.f32.mxu0 0.0
      %8858 = vmatmul.mubr.f32.gmra.mxu0 %v8680
      %v8859 = vpop.f32.mrf.mxu0
      %v8860 = vadd.f32 0.0, %v8859
      %v8861 = vpop.f32.mrf.mxu0
      %8862 = vmatprep.mubr.f32.mxu0 0.0
      %8863 = vmatmul.mubr.f32.gmra.mxu0 %v8683
      %v8864 = vpop.f32.mrf.mxu0
      %v8865 = vadd.f32 0.0, %v8864
      %v8866 = vpop.f32.mrf.mxu0
      %8867 = vmatprep.mubr.f32.mxu0 0.0
      %8868 = vmatmul.mubr.f32.gmra.mxu0 %v8686
      %v8869 = vpop.f32.mrf.mxu0
      %v8870 = vadd.f32 0.0, %v8869
      %v8871 = vpop.f32.mrf.mxu0
      %8872 = vmatprep.mubr.f32.mxu0 0.0
      %8873 = vmatmul.mubr.f32.gmra.mxu0 %v8689
      %v8874 = vpop.f32.mrf.mxu0
      %v8875 = vadd.f32 0.0, %v8874
      %v8876 = vpop.f32.mrf.mxu0
      %8877 = vmatprep.mubr.f32.mxu0 0.0
      %8878 = vmatmul.mubr.f32.gmra.mxu0 %v8692
      %v8879 = vpop.f32.mrf.mxu0
      %v8880 = vadd.f32 0.0, %v8879
      %v8881 = vpop.f32.mrf.mxu0
      %8882 = vmatprep.mubr.f32.mxu0 0.0
      %8883 = vmatmul.mubr.f32.gmra.mxu0 %v8695
      %v8884 = vpop.f32.mrf.mxu0
      %v8885 = vadd.f32 0.0, %v8884
      %v8886 = vpop.f32.mrf.mxu0
      %8887 = vmatprep.mubr.f32.mxu0 0.0
      %8888 = vmatmul.mubr.f32.gmra.mxu0 %v8698
      %v8889 = vpop.f32.mrf.mxu0
      %v8890 = vadd.f32 0.0, %v8889
      %v8891 = vpop.f32.mrf.mxu0
      %8892 = vmatprep.mubr.f32.mxu0 0.0
      %8893 = vmatmul.mubr.f32.gmra.mxu0 %v8701
      %v8894 = vpop.f32.mrf.mxu0
      %v8895 = vadd.f32 0.0, %v8894
      %v8896 = vpop.f32.mrf.mxu0
      %8897 = vmatprep.mubr.f32.mxu0 0.0
      %8898 = vmatmul.mubr.f32.gmra.mxu0 %v8704
      %v8899 = vpop.f32.mrf.mxu0
      %v8900 = vadd.f32 0.0, %v8899
      %v8901 = vpop.f32.mrf.mxu0
      %8902 = vmatprep.mubr.f32.mxu0 0.0
      %8903 = vmatmul.mubr.f32.gmra.mxu0 %v8707
      %v8904 = vpop.f32.mrf.mxu0
      %v8905 = vadd.f32 0.0, %v8904
      %v8906 = vpop.f32.mrf.mxu0
      %8907 = vmatprep.mubr.f32.mxu0 0.0
      %8908 = vmatmul.mubr.f32.gmra.mxu0 %v8710
      %v8909 = vpop.f32.mrf.mxu0
      %v8910 = vadd.f32 0.0, %v8909
      %v8911 = vpop.f32.mrf.mxu0
      %8912 = vmatprep.mubr.f32.mxu0 0.0
      %8913 = vmatmul.mubr.f32.gmra.mxu0 %v8713
      %v8914 = vpop.f32.mrf.mxu0
      %v8915 = vadd.f32 0.0, %v8914
      %v8916 = vpop.f32.mrf.mxu0
      %8917 = vmatprep.mubr.f32.mxu0 0.0
      %8918 = vmatmul.mubr.f32.gmra.mxu0 %v8716
      %v8919 = vpop.f32.mrf.mxu0
      %v8920 = vadd.f32 0.0, %v8919
      %v8921 = vpop.f32.mrf.mxu0
      %8922 = vmatprep.mubr.f32.mxu0 0.0
      %8923 = vmatmul.mubr.f32.gmra.mxu0 %v8719
      %v8924 = vpop.f32.mrf.mxu0
      %v8925 = vadd.f32 0.0, %v8924
      %v8926 = vpop.f32.mrf.mxu0
      %8927 = vmatprep.mubr.f32.mxu0 0.0
      %8928 = vmatmul.mubr.f32.gmra.mxu0 %v8722
      %v8929 = vpop.f32.mrf.mxu0
      %v8930 = vadd.f32 0.0, %v8929
      %v8931 = vpop.f32.mrf.mxu0
      %8932 = vmatprep.mubr.f32.mxu0 0.0
      %8933 = vmatmul.mubr.f32.gmra.mxu0 %v8725
      %v8934 = vpop.f32.mrf.mxu0
      %v8935 = vadd.f32 0.0, %v8934
      %v8936 = vpop.f32.mrf.mxu0
      %8937 = vmatprep.mubr.f32.mxu0 0.0
      %8938 = vmatmul.mubr.f32.gmra.mxu0 %v8728
      %v8939 = vpop.f32.mrf.mxu0
      %v8940 = vadd.f32 0.0, %v8939
      %v8941 = vpop.f32.mrf.mxu0
      %8942 = vmatprep.mubr.f32.mxu0 0.0
      %8943 = vmatmul.mubr.f32.gmra.mxu0 %v8731
      %v8944 = vpop.f32.mrf.mxu0
      %v8945 = vadd.f32 0.0, %v8944
      %v8946 = vpop.f32.mrf.mxu0
      %8947 = vmatprep.mubr.f32.mxu0 0.0
      %8948 = vmatmul.mubr.f32.gmra.mxu0 %v8734
      %v8949 = vpop.f32.mrf.mxu0
      %v8950 = vadd.f32 0.0, %v8949
      %v8951 = vpop.f32.mrf.mxu0
      %8952 = vmatprep.mubr.f32.mxu0 0.0
      %8953 = vmatmul.mubr.f32.gmra.mxu0 %v8737
      %v8954 = vpop.f32.mrf.mxu0
      %v8955 = vadd.f32 0.0, %v8954
      %v8956 = vpop.f32.mrf.mxu0
      %8957 = vmatprep.mubr.f32.mxu0 0.0
      %8958 = vmatmul.mubr.f32.gmra.mxu0 %v8740
      %v8959 = vpop.f32.mrf.mxu0
      %v8960 = vadd.f32 0.0, %v8959
      %v8961 = vpop.f32.mrf.mxu0
      %8962 = vmatprep.mubr.f32.mxu0 0.0
      %8963 = vmatmul.mubr.f32.gmra.mxu0 %v8743
      %v8964 = vpop.f32.mrf.mxu0
      %v8965 = vadd.f32 0.0, %v8964
      %v8966 = vpop.f32.mrf.mxu0
      %8967 = vmatprep.mubr.f32.mxu0 0.0
      %8968 = vmatmul.mubr.f32.gmra.mxu0 %v8746
      %v8969 = vpop.f32.mrf.mxu0
      %v8970 = vadd.f32 0.0, %v8969
      %v8971 = vpop.f32.mrf.mxu0
      %8972 = vdwg.mxu0
      %v8973 = vadd.f32 %v8583, %v8815
      %v8974 = vadd.f32 %v8584, %v8820
      %v8975 = vadd.f32 %v8585, %v8825
      %v8976 = vadd.f32 %v8586, %v8830
      %v8977 = vadd.f32 %v8587, %v8835
      %v8978 = vadd.f32 %v8588, %v8840
      %v8979 = vadd.f32 %v8589, %v8845
      %v8980 = vadd.f32 %v8590, %v8850
      %v8981 = vadd.f32 %v8591, %v8855
      %v8982 = vadd.f32 %v8592, %v8860
      %v8983 = vadd.f32 %v8593, %v8865
      %v8984 = vadd.f32 %v8594, %v8870
      %v8985 = vadd.f32 %v8595, %v8875
      %v8986 = vadd.f32 %v8596, %v8880
      %v8987 = vadd.f32 %v8597, %v8885
      %v8988 = vadd.f32 %v8598, %v8890
      %v8989 = vadd.f32 %v8599, %v8895
      %v8990 = vadd.f32 %v8600, %v8900
      %v8991 = vadd.f32 %v8601, %v8905
      %v8992 = vadd.f32 %v8602, %v8910
      %v8993 = vadd.f32 %v8603, %v8915
      %v8994 = vadd.f32 %v8604, %v8920
      %v8995 = vadd.f32 %v8605, %v8925
      %v8996 = vadd.f32 %v8606, %v8930
      %v8997 = vadd.f32 %v8607, %v8935
      %v8998 = vadd.f32 %v8608, %v8940
      %v8999 = vadd.f32 %v8609, %v8945
      %v9000 = vadd.f32 %v8610, %v8950
      %v9001 = vadd.f32 %v8611, %v8955
      %v9002 = vadd.f32 %v8612, %v8960
      %v9003 = vadd.f32 %v8613, %v8965
      %v9004 = vadd.f32 %v8614, %v8970
      %v9007 = vunpack.c.l.s4 1966171168
      %v9008 = vunpack.c.0.s8 %v9007
      %v9009 = vlaneseq
      %v9010 = vshrl.u32 %v9009, 7
      %v9011 = vsub.s32 %v9008, %v9010
      %v9012 = vrot.slane %v3231, %v9011
      %v9013 = vcombine.high %v9012, %v9012
      %v9015 = vunpack.c.l.s4 1966171168
      %v9016 = vunpack.c.0.s8 %v9015
      %v9017 = vlaneseq
      %v9018 = vshrl.u32 %v9017, 7
      %v9019 = vsub.s32 %v9016, %v9018
      %v9020 = vrot.slane %v9012, %v9019
      %v9022 = vunpack.c.l.s4 1966171168
      %v9023 = vunpack.c.0.s8 %v9022
      %v9024 = vlaneseq
      %v9025 = vshrl.u32 %v9024, 7
      %v9026 = vsub.s32 %v9023, %v9025
      %v9027 = vrot.slane %v9013, %v9026
      %v9028 = vcombine.high %v9020, %v9020
      %v9029 = vcombine.high %v9027, %v9027
      %v9030 = vlaneseq
      %v9031 = vshrl.u32 %v9030, 7
      %v9032 = vsub.s32 0, %v9031
      %v9033 = vrot.slane %v9020, %v9032
      %v9034 = vlaneseq
      %v9035 = vshrl.u32 %v9034, 7
      %v9036 = vsub.s32 0, %v9035
      %v9037 = vrot.slane %v9027, %v9036
      %v9038 = vlaneseq
      %v9039 = vshrl.u32 %v9038, 7
      %v9040 = vsub.s32 0, %v9039
      %v9041 = vrot.slane %v9028, %v9040
      %v9042 = vlaneseq
      %v9043 = vshrl.u32 %v9042, 7
      %v9044 = vsub.s32 0, %v9043
      %v9045 = vrot.slane %v9029, %v9044
      %v9052 = vcombine.high %v4113, %v4113
      %v9054 = vunpack.c.l.s4 1966171168
      %v9055 = vunpack.c.0.s8 %v9054
      %v9056 = vlaneseq
      %v9057 = vshrl.u32 %v9056, 7
      %v9058 = vsub.s32 %v9055, %v9057
      %v9059 = vrot.slane %v4113, %v9058
      %v9061 = vunpack.c.l.s4 1966171168
      %v9062 = vunpack.c.0.s8 %v9061
      %v9063 = vlaneseq
      %v9064 = vshrl.u32 %v9063, 7
      %v9065 = vsub.s32 %v9062, %v9064
      %v9066 = vrot.slane %v9052, %v9065
      %v9067 = vcombine.high %v9059, %v9059
      %v9068 = vcombine.high %v9066, %v9066
      %v9070 = vunpack.c.l.s4 1966171168
      %v9071 = vunpack.c.0.s8 %v9070
      %v9072 = vlaneseq
      %v9073 = vshrl.u32 %v9072, 7
      %v9074 = vsub.s32 %v9071, %v9073
      %v9075 = vrot.slane %v9059, %v9074
      %v9077 = vunpack.c.l.s4 1966171168
      %v9078 = vunpack.c.0.s8 %v9077
      %v9079 = vlaneseq
      %v9080 = vshrl.u32 %v9079, 7
      %v9081 = vsub.s32 %v9078, %v9080
      %v9082 = vrot.slane %v9066, %v9081
      %v9084 = vunpack.c.l.s4 1966171168
      %v9085 = vunpack.c.0.s8 %v9084
      %v9086 = vlaneseq
      %v9087 = vshrl.u32 %v9086, 7
      %v9088 = vsub.s32 %v9085, %v9087
      %v9089 = vrot.slane %v9067, %v9088
      %v9091 = vunpack.c.l.s4 1966171168
      %v9092 = vunpack.c.0.s8 %v9091
      %v9093 = vlaneseq
      %v9094 = vshrl.u32 %v9093, 7
      %v9095 = vsub.s32 %v9092, %v9094
      %v9096 = vrot.slane %v9068, %v9095
      %v9097 = vcombine.high %v9075, %v9075
      %v9098 = vcombine.high %v9082, %v9082
      %v9099 = vcombine.high %v9089, %v9089
      %v9100 = vcombine.high %v9096, %v9096
      %v9101 = vcombine.high %v4114, %v4114
      %v9103 = vunpack.c.l.s4 1966171168
      %v9104 = vunpack.c.0.s8 %v9103
      %v9105 = vlaneseq
      %v9106 = vshrl.u32 %v9105, 7
      %v9107 = vsub.s32 %v9104, %v9106
      %v9108 = vrot.slane %v4114, %v9107
      %v9110 = vunpack.c.l.s4 1966171168
      %v9111 = vunpack.c.0.s8 %v9110
      %v9112 = vlaneseq
      %v9113 = vshrl.u32 %v9112, 7
      %v9114 = vsub.s32 %v9111, %v9113
      %v9115 = vrot.slane %v9101, %v9114
      %v9116 = vcombine.high %v9108, %v9108
      %v9117 = vcombine.high %v9115, %v9115
      %v9119 = vunpack.c.l.s4 1966171168
      %v9120 = vunpack.c.0.s8 %v9119
      %v9121 = vlaneseq
      %v9122 = vshrl.u32 %v9121, 7
      %v9123 = vsub.s32 %v9120, %v9122
      %v9124 = vrot.slane %v9108, %v9123
      %v9126 = vunpack.c.l.s4 1966171168
      %v9127 = vunpack.c.0.s8 %v9126
      %v9128 = vlaneseq
      %v9129 = vshrl.u32 %v9128, 7
      %v9130 = vsub.s32 %v9127, %v9129
      %v9131 = vrot.slane %v9115, %v9130
      %v9133 = vunpack.c.l.s4 1966171168
      %v9134 = vunpack.c.0.s8 %v9133
      %v9135 = vlaneseq
      %v9136 = vshrl.u32 %v9135, 7
      %v9137 = vsub.s32 %v9134, %v9136
      %v9138 = vrot.slane %v9116, %v9137
      %v9140 = vunpack.c.l.s4 1966171168
      %v9141 = vunpack.c.0.s8 %v9140
      %v9142 = vlaneseq
      %v9143 = vshrl.u32 %v9142, 7
      %v9144 = vsub.s32 %v9141, %v9143
      %v9145 = vrot.slane %v9117, %v9144
      %v9146 = vcombine.high %v9124, %v9124
      %v9147 = vcombine.high %v9131, %v9131
      %v9148 = vcombine.high %v9138, %v9138
      %v9149 = vcombine.high %v9145, %v9145
      %v9150 = vlaneseq
      %v9151 = vshrl.u32 %v9150, 7
      %v9152 = vsub.s32 0, %v9151
      %v9153 = vrot.slane %v9075, %v9152
      %v9154 = vlaneseq
      %v9155 = vshrl.u32 %v9154, 7
      %v9156 = vsub.s32 0, %v9155
      %v9157 = vrot.slane %v9089, %v9156
      %v9158 = vlaneseq
      %v9159 = vshrl.u32 %v9158, 7
      %v9160 = vsub.s32 0, %v9159
      %v9161 = vrot.slane %v9097, %v9160
      %v9162 = vlaneseq
      %v9163 = vshrl.u32 %v9162, 7
      %v9164 = vsub.s32 0, %v9163
      %v9165 = vrot.slane %v9099, %v9164
      %v9166 = vlaneseq
      %v9167 = vshrl.u32 %v9166, 7
      %v9168 = vsub.s32 0, %v9167
      %v9169 = vrot.slane %v9082, %v9168
      %v9170 = vlaneseq
      %v9171 = vshrl.u32 %v9170, 7
      %v9172 = vsub.s32 0, %v9171
      %v9173 = vrot.slane %v9096, %v9172
      %v9174 = vlaneseq
      %v9175 = vshrl.u32 %v9174, 7
      %v9176 = vsub.s32 0, %v9175
      %v9177 = vrot.slane %v9098, %v9176
      %v9178 = vlaneseq
      %v9179 = vshrl.u32 %v9178, 7
      %v9180 = vsub.s32 0, %v9179
      %v9181 = vrot.slane %v9100, %v9180
      %v9182 = vlaneseq
      %v9183 = vshrl.u32 %v9182, 7
      %v9184 = vsub.s32 0, %v9183
      %v9185 = vrot.slane %v9124, %v9184
      %v9186 = vlaneseq
      %v9187 = vshrl.u32 %v9186, 7
      %v9188 = vsub.s32 0, %v9187
      %v9189 = vrot.slane %v9138, %v9188
      %v9190 = vlaneseq
      %v9191 = vshrl.u32 %v9190, 7
      %v9192 = vsub.s32 0, %v9191
      %v9193 = vrot.slane %v9146, %v9192
      %v9194 = vlaneseq
      %v9195 = vshrl.u32 %v9194, 7
      %v9196 = vsub.s32 0, %v9195
      %v9197 = vrot.slane %v9148, %v9196
      %v9198 = vlaneseq
      %v9199 = vshrl.u32 %v9198, 7
      %v9200 = vsub.s32 0, %v9199
      %v9201 = vrot.slane %v9131, %v9200
      %v9202 = vlaneseq
      %v9203 = vshrl.u32 %v9202, 7
      %v9204 = vsub.s32 0, %v9203
      %v9205 = vrot.slane %v9145, %v9204
      %v9206 = vlaneseq
      %v9207 = vshrl.u32 %v9206, 7
      %v9208 = vsub.s32 0, %v9207
      %v9209 = vrot.slane %v9147, %v9208
      %v9210 = vlaneseq
      %v9211 = vshrl.u32 %v9210, 7
      %v9212 = vsub.s32 0, %v9211
      %v9213 = vrot.slane %v9149, %v9212
      %v9222 = vcombine.high %v5475, %v5475
      %v9224 = vunpack.c.l.s4 1966171168
      %v9225 = vunpack.c.0.s8 %v9224
      %v9226 = vlaneseq
      %v9227 = vshrl.u32 %v9226, 7
      %v9228 = vsub.s32 %v9225, %v9227
      %v9229 = vrot.slane %v5475, %v9228
      %v9231 = vunpack.c.l.s4 1966171168
      %v9232 = vunpack.c.0.s8 %v9231
      %v9233 = vlaneseq
      %v9234 = vshrl.u32 %v9233, 7
      %v9235 = vsub.s32 %v9232, %v9234
      %v9236 = vrot.slane %v9222, %v9235
      %v9237 = vcombine.high %v9229, %v9229
      %v9238 = vcombine.high %v9236, %v9236
      %v9240 = vunpack.c.l.s4 1966171168
      %v9241 = vunpack.c.0.s8 %v9240
      %v9242 = vlaneseq
      %v9243 = vshrl.u32 %v9242, 7
      %v9244 = vsub.s32 %v9241, %v9243
      %v9245 = vrot.slane %v9229, %v9244
      %v9247 = vunpack.c.l.s4 1966171168
      %v9248 = vunpack.c.0.s8 %v9247
      %v9249 = vlaneseq
      %v9250 = vshrl.u32 %v9249, 7
      %v9251 = vsub.s32 %v9248, %v9250
      %v9252 = vrot.slane %v9236, %v9251
      %v9254 = vunpack.c.l.s4 1966171168
      %v9255 = vunpack.c.0.s8 %v9254
      %v9256 = vlaneseq
      %v9257 = vshrl.u32 %v9256, 7
      %v9258 = vsub.s32 %v9255, %v9257
      %v9259 = vrot.slane %v9237, %v9258
      %v9261 = vunpack.c.l.s4 1966171168
      %v9262 = vunpack.c.0.s8 %v9261
      %v9263 = vlaneseq
      %v9264 = vshrl.u32 %v9263, 7
      %v9265 = vsub.s32 %v9262, %v9264
      %v9266 = vrot.slane %v9238, %v9265
      %v9267 = vcombine.high %v9245, %v9245
      %v9268 = vcombine.high %v9252, %v9252
      %v9269 = vcombine.high %v9259, %v9259
      %v9270 = vcombine.high %v9266, %v9266
      %v9271 = vcombine.high %v5476, %v5476
      %v9273 = vunpack.c.l.s4 1966171168
      %v9274 = vunpack.c.0.s8 %v9273
      %v9275 = vlaneseq
      %v9276 = vshrl.u32 %v9275, 7
      %v9277 = vsub.s32 %v9274, %v9276
      %v9278 = vrot.slane %v5476, %v9277
      %v9280 = vunpack.c.l.s4 1966171168
      %v9281 = vunpack.c.0.s8 %v9280
      %v9282 = vlaneseq
      %v9283 = vshrl.u32 %v9282, 7
      %v9284 = vsub.s32 %v9281, %v9283
      %v9285 = vrot.slane %v9271, %v9284
      %v9286 = vcombine.high %v9278, %v9278
      %v9287 = vcombine.high %v9285, %v9285
      %v9289 = vunpack.c.l.s4 1966171168
      %v9290 = vunpack.c.0.s8 %v9289
      %v9291 = vlaneseq
      %v9292 = vshrl.u32 %v9291, 7
      %v9293 = vsub.s32 %v9290, %v9292
      %v9294 = vrot.slane %v9278, %v9293
      %v9296 = vunpack.c.l.s4 1966171168
      %v9297 = vunpack.c.0.s8 %v9296
      %v9298 = vlaneseq
      %v9299 = vshrl.u32 %v9298, 7
      %v9300 = vsub.s32 %v9297, %v9299
      %v9301 = vrot.slane %v9285, %v9300
      %v9303 = vunpack.c.l.s4 1966171168
      %v9304 = vunpack.c.0.s8 %v9303
      %v9305 = vlaneseq
      %v9306 = vshrl.u32 %v9305, 7
      %v9307 = vsub.s32 %v9304, %v9306
      %v9308 = vrot.slane %v9286, %v9307
      %v9310 = vunpack.c.l.s4 1966171168
      %v9311 = vunpack.c.0.s8 %v9310
      %v9312 = vlaneseq
      %v9313 = vshrl.u32 %v9312, 7
      %v9314 = vsub.s32 %v9311, %v9313
      %v9315 = vrot.slane %v9287, %v9314
      %v9316 = vcombine.high %v9294, %v9294
      %v9317 = vcombine.high %v9301, %v9301
      %v9318 = vcombine.high %v9308, %v9308
      %v9319 = vcombine.high %v9315, %v9315
      %v9320 = vcombine.high %v5477, %v5477
      %v9322 = vunpack.c.l.s4 1966171168
      %v9323 = vunpack.c.0.s8 %v9322
      %v9324 = vlaneseq
      %v9325 = vshrl.u32 %v9324, 7
      %v9326 = vsub.s32 %v9323, %v9325
      %v9327 = vrot.slane %v5477, %v9326
      %v9329 = vunpack.c.l.s4 1966171168
      %v9330 = vunpack.c.0.s8 %v9329
      %v9331 = vlaneseq
      %v9332 = vshrl.u32 %v9331, 7
      %v9333 = vsub.s32 %v9330, %v9332
      %v9334 = vrot.slane %v9320, %v9333
      %v9335 = vcombine.high %v9327, %v9327
      %v9336 = vcombine.high %v9334, %v9334
      %v9338 = vunpack.c.l.s4 1966171168
      %v9339 = vunpack.c.0.s8 %v9338
      %v9340 = vlaneseq
      %v9341 = vshrl.u32 %v9340, 7
      %v9342 = vsub.s32 %v9339, %v9341
      %v9343 = vrot.slane %v9327, %v9342
      %v9345 = vunpack.c.l.s4 1966171168
      %v9346 = vunpack.c.0.s8 %v9345
      %v9347 = vlaneseq
      %v9348 = vshrl.u32 %v9347, 7
      %v9349 = vsub.s32 %v9346, %v9348
      %v9350 = vrot.slane %v9334, %v9349
      %v9352 = vunpack.c.l.s4 1966171168
      %v9353 = vunpack.c.0.s8 %v9352
      %v9354 = vlaneseq
      %v9355 = vshrl.u32 %v9354, 7
      %v9356 = vsub.s32 %v9353, %v9355
      %v9357 = vrot.slane %v9335, %v9356
      %v9359 = vunpack.c.l.s4 1966171168
      %v9360 = vunpack.c.0.s8 %v9359
      %v9361 = vlaneseq
      %v9362 = vshrl.u32 %v9361, 7
      %v9363 = vsub.s32 %v9360, %v9362
      %v9364 = vrot.slane %v9336, %v9363
      %v9365 = vcombine.high %v9343, %v9343
      %v9366 = vcombine.high %v9350, %v9350
      %v9367 = vcombine.high %v9357, %v9357
      %v9368 = vcombine.high %v9364, %v9364
      %v9369 = vcombine.high %v5478, %v5478
      %v9371 = vunpack.c.l.s4 1966171168
      %v9372 = vunpack.c.0.s8 %v9371
      %v9373 = vlaneseq
      %v9374 = vshrl.u32 %v9373, 7
      %v9375 = vsub.s32 %v9372, %v9374
      %v9376 = vrot.slane %v5478, %v9375
      %v9378 = vunpack.c.l.s4 1966171168
      %v9379 = vunpack.c.0.s8 %v9378
      %v9380 = vlaneseq
      %v9381 = vshrl.u32 %v9380, 7
      %v9382 = vsub.s32 %v9379, %v9381
      %v9383 = vrot.slane %v9369, %v9382
      %v9384 = vcombine.high %v9376, %v9376
      %v9385 = vcombine.high %v9383, %v9383
      %v9387 = vunpack.c.l.s4 1966171168
      %v9388 = vunpack.c.0.s8 %v9387
      %v9389 = vlaneseq
      %v9390 = vshrl.u32 %v9389, 7
      %v9391 = vsub.s32 %v9388, %v9390
      %v9392 = vrot.slane %v9376, %v9391
      %v9394 = vunpack.c.l.s4 1966171168
      %v9395 = vunpack.c.0.s8 %v9394
      %v9396 = vlaneseq
      %v9397 = vshrl.u32 %v9396, 7
      %v9398 = vsub.s32 %v9395, %v9397
      %v9399 = vrot.slane %v9383, %v9398
      %v9401 = vunpack.c.l.s4 1966171168
      %v9402 = vunpack.c.0.s8 %v9401
      %v9403 = vlaneseq
      %v9404 = vshrl.u32 %v9403, 7
      %v9405 = vsub.s32 %v9402, %v9404
      %v9406 = vrot.slane %v9384, %v9405
      %v9408 = vunpack.c.l.s4 1966171168
      %v9409 = vunpack.c.0.s8 %v9408
      %v9410 = vlaneseq
      %v9411 = vshrl.u32 %v9410, 7
      %v9412 = vsub.s32 %v9409, %v9411
      %v9413 = vrot.slane %v9385, %v9412
      %v9414 = vcombine.high %v9392, %v9392
      %v9415 = vcombine.high %v9399, %v9399
      %v9416 = vcombine.high %v9406, %v9406
      %v9417 = vcombine.high %v9413, %v9413
      %v9418 = vcombine.high %v5479, %v5479
      %v9420 = vunpack.c.l.s4 1966171168
      %v9421 = vunpack.c.0.s8 %v9420
      %v9422 = vlaneseq
      %v9423 = vshrl.u32 %v9422, 7
      %v9424 = vsub.s32 %v9421, %v9423
      %v9425 = vrot.slane %v5479, %v9424
      %v9427 = vunpack.c.l.s4 1966171168
      %v9428 = vunpack.c.0.s8 %v9427
      %v9429 = vlaneseq
      %v9430 = vshrl.u32 %v9429, 7
      %v9431 = vsub.s32 %v9428, %v9430
      %v9432 = vrot.slane %v9418, %v9431
      %v9433 = vcombine.high %v9425, %v9425
      %v9434 = vcombine.high %v9432, %v9432
      %v9436 = vunpack.c.l.s4 1966171168
      %v9437 = vunpack.c.0.s8 %v9436
      %v9438 = vlaneseq
      %v9439 = vshrl.u32 %v9438, 7
      %v9440 = vsub.s32 %v9437, %v9439
      %v9441 = vrot.slane %v9425, %v9440
      %v9443 = vunpack.c.l.s4 1966171168
      %v9444 = vunpack.c.0.s8 %v9443
      %v9445 = vlaneseq
      %v9446 = vshrl.u32 %v9445, 7
      %v9447 = vsub.s32 %v9444, %v9446
      %v9448 = vrot.slane %v9432, %v9447
      %v9450 = vunpack.c.l.s4 1966171168
      %v9451 = vunpack.c.0.s8 %v9450
      %v9452 = vlaneseq
      %v9453 = vshrl.u32 %v9452, 7
      %v9454 = vsub.s32 %v9451, %v9453
      %v9455 = vrot.slane %v9433, %v9454
      %v9457 = vunpack.c.l.s4 1966171168
      %v9458 = vunpack.c.0.s8 %v9457
      %v9459 = vlaneseq
      %v9460 = vshrl.u32 %v9459, 7
      %v9461 = vsub.s32 %v9458, %v9460
      %v9462 = vrot.slane %v9434, %v9461
      %v9463 = vcombine.high %v9441, %v9441
      %v9464 = vcombine.high %v9448, %v9448
      %v9465 = vcombine.high %v9455, %v9455
      %v9466 = vcombine.high %v9462, %v9462
      %v9467 = vcombine.high %v5480, %v5480
      %v9469 = vunpack.c.l.s4 1966171168
      %v9470 = vunpack.c.0.s8 %v9469
      %v9471 = vlaneseq
      %v9472 = vshrl.u32 %v9471, 7
      %v9473 = vsub.s32 %v9470, %v9472
      %v9474 = vrot.slane %v5480, %v9473
      %v9476 = vunpack.c.l.s4 1966171168
      %v9477 = vunpack.c.0.s8 %v9476
      %v9478 = vlaneseq
      %v9479 = vshrl.u32 %v9478, 7
      %v9480 = vsub.s32 %v9477, %v9479
      %v9481 = vrot.slane %v9467, %v9480
      %v9482 = vcombine.high %v9474, %v9474
      %v9483 = vcombine.high %v9481, %v9481
      %v9485 = vunpack.c.l.s4 1966171168
      %v9486 = vunpack.c.0.s8 %v9485
      %v9487 = vlaneseq
      %v9488 = vshrl.u32 %v9487, 7
      %v9489 = vsub.s32 %v9486, %v9488
      %v9490 = vrot.slane %v9474, %v9489
      %v9492 = vunpack.c.l.s4 1966171168
      %v9493 = vunpack.c.0.s8 %v9492
      %v9494 = vlaneseq
      %v9495 = vshrl.u32 %v9494, 7
      %v9496 = vsub.s32 %v9493, %v9495
      %v9497 = vrot.slane %v9481, %v9496
      %v9499 = vunpack.c.l.s4 1966171168
      %v9500 = vunpack.c.0.s8 %v9499
      %v9501 = vlaneseq
      %v9502 = vshrl.u32 %v9501, 7
      %v9503 = vsub.s32 %v9500, %v9502
      %v9504 = vrot.slane %v9482, %v9503
      %v9506 = vunpack.c.l.s4 1966171168
      %v9507 = vunpack.c.0.s8 %v9506
      %v9508 = vlaneseq
      %v9509 = vshrl.u32 %v9508, 7
      %v9510 = vsub.s32 %v9507, %v9509
      %v9511 = vrot.slane %v9483, %v9510
      %v9512 = vcombine.high %v9490, %v9490
      %v9513 = vcombine.high %v9497, %v9497
      %v9514 = vcombine.high %v9504, %v9504
      %v9515 = vcombine.high %v9511, %v9511
      %v9516 = vcombine.high %v5481, %v5481
      %v9518 = vunpack.c.l.s4 1966171168
      %v9519 = vunpack.c.0.s8 %v9518
      %v9520 = vlaneseq
      %v9521 = vshrl.u32 %v9520, 7
      %v9522 = vsub.s32 %v9519, %v9521
      %v9523 = vrot.slane %v5481, %v9522
      %v9525 = vunpack.c.l.s4 1966171168
      %v9526 = vunpack.c.0.s8 %v9525
      %v9527 = vlaneseq
      %v9528 = vshrl.u32 %v9527, 7
      %v9529 = vsub.s32 %v9526, %v9528
      %v9530 = vrot.slane %v9516, %v9529
      %v9531 = vcombine.high %v9523, %v9523
      %v9532 = vcombine.high %v9530, %v9530
      %v9534 = vunpack.c.l.s4 1966171168
      %v9535 = vunpack.c.0.s8 %v9534
      %v9536 = vlaneseq
      %v9537 = vshrl.u32 %v9536, 7
      %v9538 = vsub.s32 %v9535, %v9537
      %v9539 = vrot.slane %v9523, %v9538
      %v9541 = vunpack.c.l.s4 1966171168
      %v9542 = vunpack.c.0.s8 %v9541
      %v9543 = vlaneseq
      %v9544 = vshrl.u32 %v9543, 7
      %v9545 = vsub.s32 %v9542, %v9544
      %v9546 = vrot.slane %v9530, %v9545
      %v9548 = vunpack.c.l.s4 1966171168
      %v9549 = vunpack.c.0.s8 %v9548
      %v9550 = vlaneseq
      %v9551 = vshrl.u32 %v9550, 7
      %v9552 = vsub.s32 %v9549, %v9551
      %v9553 = vrot.slane %v9531, %v9552
      %v9555 = vunpack.c.l.s4 1966171168
      %v9556 = vunpack.c.0.s8 %v9555
      %v9557 = vlaneseq
      %v9558 = vshrl.u32 %v9557, 7
      %v9559 = vsub.s32 %v9556, %v9558
      %v9560 = vrot.slane %v9532, %v9559
      %v9561 = vcombine.high %v9539, %v9539
      %v9562 = vcombine.high %v9546, %v9546
      %v9563 = vcombine.high %v9553, %v9553
      %v9564 = vcombine.high %v9560, %v9560
      %v9565 = vcombine.high %v5482, %v5482
      %v9567 = vunpack.c.l.s4 1966171168
      %v9568 = vunpack.c.0.s8 %v9567
      %v9569 = vlaneseq
      %v9570 = vshrl.u32 %v9569, 7
      %v9571 = vsub.s32 %v9568, %v9570
      %v9572 = vrot.slane %v5482, %v9571
      %v9574 = vunpack.c.l.s4 1966171168
      %v9575 = vunpack.c.0.s8 %v9574
      %v9576 = vlaneseq
      %v9577 = vshrl.u32 %v9576, 7
      %v9578 = vsub.s32 %v9575, %v9577
      %v9579 = vrot.slane %v9565, %v9578
      %v9580 = vcombine.high %v9572, %v9572
      %v9581 = vcombine.high %v9579, %v9579
      %v9583 = vunpack.c.l.s4 1966171168
      %v9584 = vunpack.c.0.s8 %v9583
      %v9585 = vlaneseq
      %v9586 = vshrl.u32 %v9585, 7
      %v9587 = vsub.s32 %v9584, %v9586
      %v9588 = vrot.slane %v9572, %v9587
      %v9590 = vunpack.c.l.s4 1966171168
      %v9591 = vunpack.c.0.s8 %v9590
      %v9592 = vlaneseq
      %v9593 = vshrl.u32 %v9592, 7
      %v9594 = vsub.s32 %v9591, %v9593
      %v9595 = vrot.slane %v9579, %v9594
      %v9597 = vunpack.c.l.s4 1966171168
      %v9598 = vunpack.c.0.s8 %v9597
      %v9599 = vlaneseq
      %v9600 = vshrl.u32 %v9599, 7
      %v9601 = vsub.s32 %v9598, %v9600
      %v9602 = vrot.slane %v9580, %v9601
      %v9604 = vunpack.c.l.s4 1966171168
      %v9605 = vunpack.c.0.s8 %v9604
      %v9606 = vlaneseq
      %v9607 = vshrl.u32 %v9606, 7
      %v9608 = vsub.s32 %v9605, %v9607
      %v9609 = vrot.slane %v9581, %v9608
      %v9610 = vcombine.high %v9588, %v9588
      %v9611 = vcombine.high %v9595, %v9595
      %v9612 = vcombine.high %v9602, %v9602
      %v9613 = vcombine.high %v9609, %v9609
      %v9614 = vlaneseq
      %v9615 = vshrl.u32 %v9614, 7
      %v9616 = vsub.s32 0, %v9615
      %v9617 = vrot.slane %v9245, %v9616
      %v9618 = vlaneseq
      %v9619 = vshrl.u32 %v9618, 7
      %v9620 = vsub.s32 0, %v9619
      %v9621 = vrot.slane %v9259, %v9620
      %v9622 = vlaneseq
      %v9623 = vshrl.u32 %v9622, 7
      %v9624 = vsub.s32 0, %v9623
      %v9625 = vrot.slane %v9267, %v9624
      %v9626 = vlaneseq
      %v9627 = vshrl.u32 %v9626, 7
      %v9628 = vsub.s32 0, %v9627
      %v9629 = vrot.slane %v9269, %v9628
      %v9630 = vlaneseq
      %v9631 = vshrl.u32 %v9630, 7
      %v9632 = vsub.s32 0, %v9631
      %v9633 = vrot.slane %v9252, %v9632
      %v9634 = vlaneseq
      %v9635 = vshrl.u32 %v9634, 7
      %v9636 = vsub.s32 0, %v9635
      %v9637 = vrot.slane %v9266, %v9636
      %v9638 = vlaneseq
      %v9639 = vshrl.u32 %v9638, 7
      %v9640 = vsub.s32 0, %v9639
      %v9641 = vrot.slane %v9268, %v9640
      %v9642 = vlaneseq
      %v9643 = vshrl.u32 %v9642, 7
      %v9644 = vsub.s32 0, %v9643
      %v9645 = vrot.slane %v9270, %v9644
      %v9646 = vlaneseq
      %v9647 = vshrl.u32 %v9646, 7
      %v9648 = vsub.s32 0, %v9647
      %v9649 = vrot.slane %v9294, %v9648
      %v9650 = vlaneseq
      %v9651 = vshrl.u32 %v9650, 7
      %v9652 = vsub.s32 0, %v9651
      %v9653 = vrot.slane %v9308, %v9652
      %v9654 = vlaneseq
      %v9655 = vshrl.u32 %v9654, 7
      %v9656 = vsub.s32 0, %v9655
      %v9657 = vrot.slane %v9316, %v9656
      %v9658 = vlaneseq
      %v9659 = vshrl.u32 %v9658, 7
      %v9660 = vsub.s32 0, %v9659
      %v9661 = vrot.slane %v9318, %v9660
      %v9662 = vlaneseq
      %v9663 = vshrl.u32 %v9662, 7
      %v9664 = vsub.s32 0, %v9663
      %v9665 = vrot.slane %v9301, %v9664
      %v9666 = vlaneseq
      %v9667 = vshrl.u32 %v9666, 7
      %v9668 = vsub.s32 0, %v9667
      %v9669 = vrot.slane %v9315, %v9668
      %v9670 = vlaneseq
      %v9671 = vshrl.u32 %v9670, 7
      %v9672 = vsub.s32 0, %v9671
      %v9673 = vrot.slane %v9317, %v9672
      %v9674 = vlaneseq
      %v9675 = vshrl.u32 %v9674, 7
      %v9676 = vsub.s32 0, %v9675
      %v9677 = vrot.slane %v9319, %v9676
      %v9678 = vlaneseq
      %v9679 = vshrl.u32 %v9678, 7
      %v9680 = vsub.s32 0, %v9679
      %v9681 = vrot.slane %v9343, %v9680
      %v9682 = vlaneseq
      %v9683 = vshrl.u32 %v9682, 7
      %v9684 = vsub.s32 0, %v9683
      %v9685 = vrot.slane %v9357, %v9684
      %v9686 = vlaneseq
      %v9687 = vshrl.u32 %v9686, 7
      %v9688 = vsub.s32 0, %v9687
      %v9689 = vrot.slane %v9365, %v9688
      %v9690 = vlaneseq
      %v9691 = vshrl.u32 %v9690, 7
      %v9692 = vsub.s32 0, %v9691
      %v9693 = vrot.slane %v9367, %v9692
      %v9694 = vlaneseq
      %v9695 = vshrl.u32 %v9694, 7
      %v9696 = vsub.s32 0, %v9695
      %v9697 = vrot.slane %v9350, %v9696
      %v9698 = vlaneseq
      %v9699 = vshrl.u32 %v9698, 7
      %v9700 = vsub.s32 0, %v9699
      %v9701 = vrot.slane %v9364, %v9700
      %v9702 = vlaneseq
      %v9703 = vshrl.u32 %v9702, 7
      %v9704 = vsub.s32 0, %v9703
      %v9705 = vrot.slane %v9366, %v9704
      %v9706 = vlaneseq
      %v9707 = vshrl.u32 %v9706, 7
      %v9708 = vsub.s32 0, %v9707
      %v9709 = vrot.slane %v9368, %v9708
      %v9710 = vlaneseq
      %v9711 = vshrl.u32 %v9710, 7
      %v9712 = vsub.s32 0, %v9711
      %v9713 = vrot.slane %v9392, %v9712
      %v9714 = vlaneseq
      %v9715 = vshrl.u32 %v9714, 7
      %v9716 = vsub.s32 0, %v9715
      %v9717 = vrot.slane %v9406, %v9716
      %v9718 = vlaneseq
      %v9719 = vshrl.u32 %v9718, 7
      %v9720 = vsub.s32 0, %v9719
      %v9721 = vrot.slane %v9414, %v9720
      %v9722 = vlaneseq
      %v9723 = vshrl.u32 %v9722, 7
      %v9724 = vsub.s32 0, %v9723
      %v9725 = vrot.slane %v9416, %v9724
      %v9726 = vlaneseq
      %v9727 = vshrl.u32 %v9726, 7
      %v9728 = vsub.s32 0, %v9727
      %v9729 = vrot.slane %v9399, %v9728
      %v9730 = vlaneseq
      %v9731 = vshrl.u32 %v9730, 7
      %v9732 = vsub.s32 0, %v9731
      %v9733 = vrot.slane %v9413, %v9732
      %v9734 = vlaneseq
      %v9735 = vshrl.u32 %v9734, 7
      %v9736 = vsub.s32 0, %v9735
      %v9737 = vrot.slane %v9415, %v9736
      %v9738 = vlaneseq
      %v9739 = vshrl.u32 %v9738, 7
      %v9740 = vsub.s32 0, %v9739
      %v9741 = vrot.slane %v9417, %v9740
      %v9742 = vlaneseq
      %v9743 = vshrl.u32 %v9742, 7
      %v9744 = vsub.s32 0, %v9743
      %v9745 = vrot.slane %v9441, %v9744
      %v9746 = vlaneseq
      %v9747 = vshrl.u32 %v9746, 7
      %v9748 = vsub.s32 0, %v9747
      %v9749 = vrot.slane %v9455, %v9748
      %v9750 = vlaneseq
      %v9751 = vshrl.u32 %v9750, 7
      %v9752 = vsub.s32 0, %v9751
      %v9753 = vrot.slane %v9463, %v9752
      %v9754 = vlaneseq
      %v9755 = vshrl.u32 %v9754, 7
      %v9756 = vsub.s32 0, %v9755
      %v9757 = vrot.slane %v9465, %v9756
      %v9758 = vlaneseq
      %v9759 = vshrl.u32 %v9758, 7
      %v9760 = vsub.s32 0, %v9759
      %v9761 = vrot.slane %v9448, %v9760
      %v9762 = vlaneseq
      %v9763 = vshrl.u32 %v9762, 7
      %v9764 = vsub.s32 0, %v9763
      %v9765 = vrot.slane %v9462, %v9764
      %v9766 = vlaneseq
      %v9767 = vshrl.u32 %v9766, 7
      %v9768 = vsub.s32 0, %v9767
      %v9769 = vrot.slane %v9464, %v9768
      %v9770 = vlaneseq
      %v9771 = vshrl.u32 %v9770, 7
      %v9772 = vsub.s32 0, %v9771
      %v9773 = vrot.slane %v9466, %v9772
      %v9774 = vlaneseq
      %v9775 = vshrl.u32 %v9774, 7
      %v9776 = vsub.s32 0, %v9775
      %v9777 = vrot.slane %v9490, %v9776
      %v9778 = vlaneseq
      %v9779 = vshrl.u32 %v9778, 7
      %v9780 = vsub.s32 0, %v9779
      %v9781 = vrot.slane %v9504, %v9780
      %v9782 = vlaneseq
      %v9783 = vshrl.u32 %v9782, 7
      %v9784 = vsub.s32 0, %v9783
      %v9785 = vrot.slane %v9512, %v9784
      %v9786 = vlaneseq
      %v9787 = vshrl.u32 %v9786, 7
      %v9788 = vsub.s32 0, %v9787
      %v9789 = vrot.slane %v9514, %v9788
      %v9790 = vlaneseq
      %v9791 = vshrl.u32 %v9790, 7
      %v9792 = vsub.s32 0, %v9791
      %v9793 = vrot.slane %v9497, %v9792
      %v9794 = vlaneseq
      %v9795 = vshrl.u32 %v9794, 7
      %v9796 = vsub.s32 0, %v9795
      %v9797 = vrot.slane %v9511, %v9796
      %v9798 = vlaneseq
      %v9799 = vshrl.u32 %v9798, 7
      %v9800 = vsub.s32 0, %v9799
      %v9801 = vrot.slane %v9513, %v9800
      %v9802 = vlaneseq
      %v9803 = vshrl.u32 %v9802, 7
      %v9804 = vsub.s32 0, %v9803
      %v9805 = vrot.slane %v9515, %v9804
      %v9806 = vlaneseq
      %v9807 = vshrl.u32 %v9806, 7
      %v9808 = vsub.s32 0, %v9807
      %v9809 = vrot.slane %v9539, %v9808
      %v9810 = vlaneseq
      %v9811 = vshrl.u32 %v9810, 7
      %v9812 = vsub.s32 0, %v9811
      %v9813 = vrot.slane %v9553, %v9812
      %v9814 = vlaneseq
      %v9815 = vshrl.u32 %v9814, 7
      %v9816 = vsub.s32 0, %v9815
      %v9817 = vrot.slane %v9561, %v9816
      %v9818 = vlaneseq
      %v9819 = vshrl.u32 %v9818, 7
      %v9820 = vsub.s32 0, %v9819
      %v9821 = vrot.slane %v9563, %v9820
      %v9822 = vlaneseq
      %v9823 = vshrl.u32 %v9822, 7
      %v9824 = vsub.s32 0, %v9823
      %v9825 = vrot.slane %v9546, %v9824
      %v9826 = vlaneseq
      %v9827 = vshrl.u32 %v9826, 7
      %v9828 = vsub.s32 0, %v9827
      %v9829 = vrot.slane %v9560, %v9828
      %v9830 = vlaneseq
      %v9831 = vshrl.u32 %v9830, 7
      %v9832 = vsub.s32 0, %v9831
      %v9833 = vrot.slane %v9562, %v9832
      %v9834 = vlaneseq
      %v9835 = vshrl.u32 %v9834, 7
      %v9836 = vsub.s32 0, %v9835
      %v9837 = vrot.slane %v9564, %v9836
      %v9838 = vlaneseq
      %v9839 = vshrl.u32 %v9838, 7
      %v9840 = vsub.s32 0, %v9839
      %v9841 = vrot.slane %v9588, %v9840
      %v9842 = vlaneseq
      %v9843 = vshrl.u32 %v9842, 7
      %v9844 = vsub.s32 0, %v9843
      %v9845 = vrot.slane %v9602, %v9844
      %v9846 = vlaneseq
      %v9847 = vshrl.u32 %v9846, 7
      %v9848 = vsub.s32 0, %v9847
      %v9849 = vrot.slane %v9610, %v9848
      %v9850 = vlaneseq
      %v9851 = vshrl.u32 %v9850, 7
      %v9852 = vsub.s32 0, %v9851
      %v9853 = vrot.slane %v9612, %v9852
      %v9854 = vlaneseq
      %v9855 = vshrl.u32 %v9854, 7
      %v9856 = vsub.s32 0, %v9855
      %v9857 = vrot.slane %v9595, %v9856
      %v9858 = vlaneseq
      %v9859 = vshrl.u32 %v9858, 7
      %v9860 = vsub.s32 0, %v9859
      %v9861 = vrot.slane %v9609, %v9860
      %v9862 = vlaneseq
      %v9863 = vshrl.u32 %v9862, 7
      %v9864 = vsub.s32 0, %v9863
      %v9865 = vrot.slane %v9611, %v9864
      %v9866 = vlaneseq
      %v9867 = vshrl.u32 %v9866, 7
      %v9868 = vsub.s32 0, %v9867
      %v9869 = vrot.slane %v9613, %v9868
      %v9870 = vcombine.low %v9153, %v9157
      %v9871 = vcombine.low %v9161, %v9165
      %v9872 = vcombine.low %v9169, %v9173
      %v9873 = vcombine.low %v9177, %v9181
      %v9874 = vcombine.low %v9185, %v9189
      %v9875 = vcombine.low %v9193, %v9197
      %v9876 = vcombine.low %v9201, %v9205
      %v9877 = vcombine.low %v9209, %v9213
      %9878 = vrot.lane.b32.xlu0 %v9870, 8
      %v9879 = vpop.permute.xlu0 %9878
      %9880 = vrot.lane.b32.xlu0 %v9871, 8
      %v9881 = vpop.permute.xlu0 %9880
      %9882 = vrot.lane.b32.xlu0 %v9872, 8
      %v9883 = vpop.permute.xlu0 %9882
      %9884 = vrot.lane.b32.xlu0 %v9873, 8
      %v9885 = vpop.permute.xlu0 %9884
      %9886 = vrot.lane.b32.xlu0 %v9874, 8
      %v9887 = vpop.permute.xlu0 %9886
      %9888 = vrot.lane.b32.xlu0 %v9875, 8
      %v9889 = vpop.permute.xlu0 %9888
      %9890 = vrot.lane.b32.xlu0 %v9876, 8
      %v9891 = vpop.permute.xlu0 %9890
      %9892 = vrot.lane.b32.xlu0 %v9877, 8
      %v9893 = vpop.permute.xlu0 %9892
      %v9902 = vcombine.low %v9617, %v9621
      %v9903 = vcombine.low %v9625, %v9629
      %v9905 = vunpack.c.l.s4 1983009808
      %v9906 = vunpack.c.0.s8 %v9905
      %v9907 = vlaneseq
      %v9908 = vshrl.u32 %v9907, 7
      %v9909 = vsub.s32 %v9906, %v9908
      %v9910 = vrot.slane %v9902, %v9909
      %v9912 = vunpack.c.l.s4 1983009808
      %v9913 = vunpack.c.0.s8 %v9912
      %v9914 = vlaneseq
      %v9915 = vshrl.u32 %v9914, 7
      %v9916 = vsub.s32 %v9913, %v9915
      %v9917 = vrot.slane %v9903, %v9916
      %v9918 = vcombine.low %v9910, %v9917
      %v9919 = vcombine.low %v9633, %v9637
      %v9920 = vcombine.low %v9641, %v9645
      %v9922 = vunpack.c.l.s4 1983009808
      %v9923 = vunpack.c.0.s8 %v9922
      %v9924 = vlaneseq
      %v9925 = vshrl.u32 %v9924, 7
      %v9926 = vsub.s32 %v9923, %v9925
      %v9927 = vrot.slane %v9919, %v9926
      %v9929 = vunpack.c.l.s4 1983009808
      %v9930 = vunpack.c.0.s8 %v9929
      %v9931 = vlaneseq
      %v9932 = vshrl.u32 %v9931, 7
      %v9933 = vsub.s32 %v9930, %v9932
      %v9934 = vrot.slane %v9920, %v9933
      %v9935 = vcombine.low %v9927, %v9934
      %v9936 = vcombine.low %v9649, %v9653
      %v9937 = vcombine.low %v9657, %v9661
      %v9939 = vunpack.c.l.s4 1983009808
      %v9940 = vunpack.c.0.s8 %v9939
      %v9941 = vlaneseq
      %v9942 = vshrl.u32 %v9941, 7
      %v9943 = vsub.s32 %v9940, %v9942
      %v9944 = vrot.slane %v9936, %v9943
      %v9946 = vunpack.c.l.s4 1983009808
      %v9947 = vunpack.c.0.s8 %v9946
      %v9948 = vlaneseq
      %v9949 = vshrl.u32 %v9948, 7
      %v9950 = vsub.s32 %v9947, %v9949
      %v9951 = vrot.slane %v9937, %v9950
      %v9952 = vcombine.low %v9944, %v9951
      %v9953 = vcombine.low %v9665, %v9669
      %v9954 = vcombine.low %v9673, %v9677
      %v9956 = vunpack.c.l.s4 1983009808
      %v9957 = vunpack.c.0.s8 %v9956
      %v9958 = vlaneseq
      %v9959 = vshrl.u32 %v9958, 7
      %v9960 = vsub.s32 %v9957, %v9959
      %v9961 = vrot.slane %v9953, %v9960
      %v9963 = vunpack.c.l.s4 1983009808
      %v9964 = vunpack.c.0.s8 %v9963
      %v9965 = vlaneseq
      %v9966 = vshrl.u32 %v9965, 7
      %v9967 = vsub.s32 %v9964, %v9966
      %v9968 = vrot.slane %v9954, %v9967
      %v9969 = vcombine.low %v9961, %v9968
      %v9970 = vcombine.low %v9681, %v9685
      %v9971 = vcombine.low %v9689, %v9693
      %v9973 = vunpack.c.l.s4 1983009808
      %v9974 = vunpack.c.0.s8 %v9973
      %v9975 = vlaneseq
      %v9976 = vshrl.u32 %v9975, 7
      %v9977 = vsub.s32 %v9974, %v9976
      %v9978 = vrot.slane %v9970, %v9977
      %v9980 = vunpack.c.l.s4 1983009808
      %v9981 = vunpack.c.0.s8 %v9980
      %v9982 = vlaneseq
      %v9983 = vshrl.u32 %v9982, 7
      %v9984 = vsub.s32 %v9981, %v9983
      %v9985 = vrot.slane %v9971, %v9984
      %v9986 = vcombine.low %v9978, %v9985
      %v9987 = vcombine.low %v9697, %v9701
      %v9988 = vcombine.low %v9705, %v9709
      %v9990 = vunpack.c.l.s4 1983009808
      %v9991 = vunpack.c.0.s8 %v9990
      %v9992 = vlaneseq
      %v9993 = vshrl.u32 %v9992, 7
      %v9994 = vsub.s32 %v9991, %v9993
      %v9995 = vrot.slane %v9987, %v9994
      %v9997 = vunpack.c.l.s4 1983009808
      %v9998 = vunpack.c.0.s8 %v9997
      %v9999 = vlaneseq
      %v10000 = vshrl.u32 %v9999, 7
      %v10001 = vsub.s32 %v9998, %v10000
      %v10002 = vrot.slane %v9988, %v10001
      %v10003 = vcombine.low %v9995, %v10002
      %v10004 = vcombine.low %v9713, %v9717
      %v10005 = vcombine.low %v9721, %v9725
      %v10007 = vunpack.c.l.s4 1983009808
      %v10008 = vunpack.c.0.s8 %v10007
      %v10009 = vlaneseq
      %v10010 = vshrl.u32 %v10009, 7
      %v10011 = vsub.s32 %v10008, %v10010
      %v10012 = vrot.slane %v10004, %v10011
      %v10014 = vunpack.c.l.s4 1983009808
      %v10015 = vunpack.c.0.s8 %v10014
      %v10016 = vlaneseq
      %v10017 = vshrl.u32 %v10016, 7
      %v10018 = vsub.s32 %v10015, %v10017
      %v10019 = vrot.slane %v10005, %v10018
      %v10020 = vcombine.low %v10012, %v10019
      %v10021 = vcombine.low %v9729, %v9733
      %v10022 = vcombine.low %v9737, %v9741
      %v10024 = vunpack.c.l.s4 1983009808
      %v10025 = vunpack.c.0.s8 %v10024
      %v10026 = vlaneseq
      %v10027 = vshrl.u32 %v10026, 7
      %v10028 = vsub.s32 %v10025, %v10027
      %v10029 = vrot.slane %v10021, %v10028
      %v10031 = vunpack.c.l.s4 1983009808
      %v10032 = vunpack.c.0.s8 %v10031
      %v10033 = vlaneseq
      %v10034 = vshrl.u32 %v10033, 7
      %v10035 = vsub.s32 %v10032, %v10034
      %v10036 = vrot.slane %v10022, %v10035
      %v10037 = vcombine.low %v10029, %v10036
      %v10038 = vcombine.low %v9745, %v9749
      %v10039 = vcombine.low %v9753, %v9757
      %v10041 = vunpack.c.l.s4 1983009808
      %v10042 = vunpack.c.0.s8 %v10041
      %v10043 = vlaneseq
      %v10044 = vshrl.u32 %v10043, 7
      %v10045 = vsub.s32 %v10042, %v10044
      %v10046 = vrot.slane %v10038, %v10045
      %v10048 = vunpack.c.l.s4 1983009808
      %v10049 = vunpack.c.0.s8 %v10048
      %v10050 = vlaneseq
      %v10051 = vshrl.u32 %v10050, 7
      %v10052 = vsub.s32 %v10049, %v10051
      %v10053 = vrot.slane %v10039, %v10052
      %v10054 = vcombine.low %v10046, %v10053
      %v10055 = vcombine.low %v9761, %v9765
      %v10056 = vcombine.low %v9769, %v9773
      %v10058 = vunpack.c.l.s4 1983009808
      %v10059 = vunpack.c.0.s8 %v10058
      %v10060 = vlaneseq
      %v10061 = vshrl.u32 %v10060, 7
      %v10062 = vsub.s32 %v10059, %v10061
      %v10063 = vrot.slane %v10055, %v10062
      %v10065 = vunpack.c.l.s4 1983009808
      %v10066 = vunpack.c.0.s8 %v10065
      %v10067 = vlaneseq
      %v10068 = vshrl.u32 %v10067, 7
      %v10069 = vsub.s32 %v10066, %v10068
      %v10070 = vrot.slane %v10056, %v10069
      %v10071 = vcombine.low %v10063, %v10070
      %v10072 = vcombine.low %v9777, %v9781
      %v10073 = vcombine.low %v9785, %v9789
      %v10075 = vunpack.c.l.s4 1983009808
      %v10076 = vunpack.c.0.s8 %v10075
      %v10077 = vlaneseq
      %v10078 = vshrl.u32 %v10077, 7
      %v10079 = vsub.s32 %v10076, %v10078
      %v10080 = vrot.slane %v10072, %v10079
      %v10082 = vunpack.c.l.s4 1983009808
      %v10083 = vunpack.c.0.s8 %v10082
      %v10084 = vlaneseq
      %v10085 = vshrl.u32 %v10084, 7
      %v10086 = vsub.s32 %v10083, %v10085
      %v10087 = vrot.slane %v10073, %v10086
      %v10088 = vcombine.low %v10080, %v10087
      %v10089 = vcombine.low %v9793, %v9797
      %v10090 = vcombine.low %v9801, %v9805
      %v10092 = vunpack.c.l.s4 1983009808
      %v10093 = vunpack.c.0.s8 %v10092
      %v10094 = vlaneseq
      %v10095 = vshrl.u32 %v10094, 7
      %v10096 = vsub.s32 %v10093, %v10095
      %v10097 = vrot.slane %v10089, %v10096
      %v10099 = vunpack.c.l.s4 1983009808
      %v10100 = vunpack.c.0.s8 %v10099
      %v10101 = vlaneseq
      %v10102 = vshrl.u32 %v10101, 7
      %v10103 = vsub.s32 %v10100, %v10102
      %v10104 = vrot.slane %v10090, %v10103
      %v10105 = vcombine.low %v10097, %v10104
      %v10106 = vcombine.low %v9809, %v9813
      %v10107 = vcombine.low %v9817, %v9821
      %v10109 = vunpack.c.l.s4 1983009808
      %v10110 = vunpack.c.0.s8 %v10109
      %v10111 = vlaneseq
      %v10112 = vshrl.u32 %v10111, 7
      %v10113 = vsub.s32 %v10110, %v10112
      %v10114 = vrot.slane %v10106, %v10113
      %v10116 = vunpack.c.l.s4 1983009808
      %v10117 = vunpack.c.0.s8 %v10116
      %v10118 = vlaneseq
      %v10119 = vshrl.u32 %v10118, 7
      %v10120 = vsub.s32 %v10117, %v10119
      %v10121 = vrot.slane %v10107, %v10120
      %v10122 = vcombine.low %v10114, %v10121
      %v10123 = vcombine.low %v9825, %v9829
      %v10124 = vcombine.low %v9833, %v9837
      %v10126 = vunpack.c.l.s4 1983009808
      %v10127 = vunpack.c.0.s8 %v10126
      %v10128 = vlaneseq
      %v10129 = vshrl.u32 %v10128, 7
      %v10130 = vsub.s32 %v10127, %v10129
      %v10131 = vrot.slane %v10123, %v10130
      %v10133 = vunpack.c.l.s4 1983009808
      %v10134 = vunpack.c.0.s8 %v10133
      %v10135 = vlaneseq
      %v10136 = vshrl.u32 %v10135, 7
      %v10137 = vsub.s32 %v10134, %v10136
      %v10138 = vrot.slane %v10124, %v10137
      %v10139 = vcombine.low %v10131, %v10138
      %v10140 = vcombine.low %v9841, %v9845
      %v10141 = vcombine.low %v9849, %v9853
      %v10143 = vunpack.c.l.s4 1983009808
      %v10144 = vunpack.c.0.s8 %v10143
      %v10145 = vlaneseq
      %v10146 = vshrl.u32 %v10145, 7
      %v10147 = vsub.s32 %v10144, %v10146
      %v10148 = vrot.slane %v10140, %v10147
      %v10150 = vunpack.c.l.s4 1983009808
      %v10151 = vunpack.c.0.s8 %v10150
      %v10152 = vlaneseq
      %v10153 = vshrl.u32 %v10152, 7
      %v10154 = vsub.s32 %v10151, %v10153
      %v10155 = vrot.slane %v10141, %v10154
      %v10156 = vcombine.low %v10148, %v10155
      %v10157 = vcombine.low %v9857, %v9861
      %v10158 = vcombine.low %v9865, %v9869
      %v10160 = vunpack.c.l.s4 1983009808
      %v10161 = vunpack.c.0.s8 %v10160
      %v10162 = vlaneseq
      %v10163 = vshrl.u32 %v10162, 7
      %v10164 = vsub.s32 %v10161, %v10163
      %v10165 = vrot.slane %v10157, %v10164
      %v10167 = vunpack.c.l.s4 1983009808
      %v10168 = vunpack.c.0.s8 %v10167
      %v10169 = vlaneseq
      %v10170 = vshrl.u32 %v10169, 7
      %v10171 = vsub.s32 %v10168, %v10170
      %v10172 = vrot.slane %v10158, %v10171
      %v10173 = vcombine.low %v10165, %v10172
      %10174 = vrot.lane.b32.xlu0 %v9918, 16
      %v10175 = vpop.permute.xlu0 %10174
      %10176 = vrot.lane.b32.xlu0 %v9935, 16
      %v10177 = vpop.permute.xlu0 %10176
      %10178 = vrot.lane.b32.xlu0 %v9952, 16
      %v10179 = vpop.permute.xlu0 %10178
      %10180 = vrot.lane.b32.xlu0 %v9969, 16
      %v10181 = vpop.permute.xlu0 %10180
      %10182 = vrot.lane.b32.xlu0 %v9986, 16
      %v10183 = vpop.permute.xlu0 %10182
      %10184 = vrot.lane.b32.xlu0 %v10003, 16
      %v10185 = vpop.permute.xlu0 %10184
      %10186 = vrot.lane.b32.xlu0 %v10020, 16
      %v10187 = vpop.permute.xlu0 %10186
      %10188 = vrot.lane.b32.xlu0 %v10037, 16
      %v10189 = vpop.permute.xlu0 %10188
      %10190 = vrot.lane.b32.xlu0 %v10054, 16
      %v10191 = vpop.permute.xlu0 %10190
      %10192 = vrot.lane.b32.xlu0 %v10071, 16
      %v10193 = vpop.permute.xlu0 %10192
      %10194 = vrot.lane.b32.xlu0 %v10088, 16
      %v10195 = vpop.permute.xlu0 %10194
      %10196 = vrot.lane.b32.xlu0 %v10105, 16
      %v10197 = vpop.permute.xlu0 %10196
      %10198 = vrot.lane.b32.xlu0 %v10122, 16
      %v10199 = vpop.permute.xlu0 %10198
      %10200 = vrot.lane.b32.xlu0 %v10139, 16
      %v10201 = vpop.permute.xlu0 %10200
      %10202 = vrot.lane.b32.xlu0 %v10156, 16
      %v10203 = vpop.permute.xlu0 %10202
      %10204 = vrot.lane.b32.xlu0 %v10173, 16
      %v10205 = vpop.permute.xlu0 %10204
      %10254 = vrot.lane.b32.xlu0 %v8973, 24
      %v10255 = vpop.permute.xlu0 %10254
      %10256 = vrot.lane.b32.xlu0 %v8974, 24
      %v10257 = vpop.permute.xlu0 %10256
      %10258 = vrot.lane.b32.xlu0 %v8975, 24
      %v10259 = vpop.permute.xlu0 %10258
      %10260 = vrot.lane.b32.xlu0 %v8976, 24
      %v10261 = vpop.permute.xlu0 %10260
      %10262 = vrot.lane.b32.xlu0 %v8977, 24
      %v10263 = vpop.permute.xlu0 %10262
      %10264 = vrot.lane.b32.xlu0 %v8978, 24
      %v10265 = vpop.permute.xlu0 %10264
      %10266 = vrot.lane.b32.xlu0 %v8979, 24
      %v10267 = vpop.permute.xlu0 %10266
      %10268 = vrot.lane.b32.xlu0 %v8980, 24
      %v10269 = vpop.permute.xlu0 %10268
      %10270 = vrot.lane.b32.xlu0 %v8981, 24
      %v10271 = vpop.permute.xlu0 %10270
      %10272 = vrot.lane.b32.xlu0 %v8982, 24
      %v10273 = vpop.permute.xlu0 %10272
      %10274 = vrot.lane.b32.xlu0 %v8983, 24
      %v10275 = vpop.permute.xlu0 %10274
      %10276 = vrot.lane.b32.xlu0 %v8984, 24
      %v10277 = vpop.permute.xlu0 %10276
      %10278 = vrot.lane.b32.xlu0 %v8985, 24
      %v10279 = vpop.permute.xlu0 %10278
      %10280 = vrot.lane.b32.xlu0 %v8986, 24
      %v10281 = vpop.permute.xlu0 %10280
      %10282 = vrot.lane.b32.xlu0 %v8987, 24
      %v10283 = vpop.permute.xlu0 %10282
      %10284 = vrot.lane.b32.xlu0 %v8988, 24
      %v10285 = vpop.permute.xlu0 %10284
      %10286 = vrot.lane.b32.xlu0 %v8989, 24
      %v10287 = vpop.permute.xlu0 %10286
      %10288 = vrot.lane.b32.xlu0 %v8990, 24
      %v10289 = vpop.permute.xlu0 %10288
      %10290 = vrot.lane.b32.xlu0 %v8991, 24
      %v10291 = vpop.permute.xlu0 %10290
      %10292 = vrot.lane.b32.xlu0 %v8992, 24
      %v10293 = vpop.permute.xlu0 %10292
      %10294 = vrot.lane.b32.xlu0 %v8993, 24
      %v10295 = vpop.permute.xlu0 %10294
      %10296 = vrot.lane.b32.xlu0 %v8994, 24
      %v10297 = vpop.permute.xlu0 %10296
      %10298 = vrot.lane.b32.xlu0 %v8995, 24
      %v10299 = vpop.permute.xlu0 %10298
      %10300 = vrot.lane.b32.xlu0 %v8996, 24
      %v10301 = vpop.permute.xlu0 %10300
      %10302 = vrot.lane.b32.xlu0 %v8997, 24
      %v10303 = vpop.permute.xlu0 %10302
      %10304 = vrot.lane.b32.xlu0 %v8998, 24
      %v10305 = vpop.permute.xlu0 %10304
      %10306 = vrot.lane.b32.xlu0 %v8999, 24
      %v10307 = vpop.permute.xlu0 %10306
      %10308 = vrot.lane.b32.xlu0 %v9000, 24
      %v10309 = vpop.permute.xlu0 %10308
      %10310 = vrot.lane.b32.xlu0 %v9001, 24
      %v10311 = vpop.permute.xlu0 %10310
      %10312 = vrot.lane.b32.xlu0 %v9002, 24
      %v10313 = vpop.permute.xlu0 %10312
      %10314 = vrot.lane.b32.xlu0 %v9003, 24
      %v10315 = vpop.permute.xlu0 %10314
      %10316 = vrot.lane.b32.xlu0 %v9004, 24
      %v10317 = vpop.permute.xlu0 %10316
      %v10350 = vsel %vm2075, %v9033, %v9879
      %v10351 = vsel %vm2075, %v9037, %v9881
      %v10352 = vsel %vm2075, %v9033, %v9883
      %v10353 = vsel %vm2075, %v9037, %v9885
      %v10354 = vsel %vm2075, %v9041, %v9887
      %v10355 = vsel %vm2075, %v9045, %v9889
      %v10356 = vsel %vm2075, %v9041, %v9891
      %v10357 = vsel %vm2075, %v9045, %v9893
      %v10358 = vsel %vm968, %v10350, %v10175
      %v10359 = vsel %vm968, %v10351, %v10177
      %v10360 = vsel %vm968, %v10350, %v10179
      %v10361 = vsel %vm968, %v10351, %v10181
      %v10362 = vsel %vm968, %v10352, %v10183
      %v10363 = vsel %vm968, %v10353, %v10185
      %v10364 = vsel %vm968, %v10352, %v10187
      %v10365 = vsel %vm968, %v10353, %v10189
      %v10366 = vsel %vm968, %v10354, %v10191
      %v10367 = vsel %vm968, %v10355, %v10193
      %v10368 = vsel %vm968, %v10354, %v10195
      %v10369 = vsel %vm968, %v10355, %v10197
      %v10370 = vsel %vm968, %v10356, %v10199
      %v10371 = vsel %vm968, %v10357, %v10201
      %v10372 = vsel %vm968, %v10356, %v10203
      %v10373 = vsel %vm968, %v10357, %v10205
      %vm10374 = vcmask 195584
      %v10375 = vsel %vm10374, %v10358, %v10255
      %v10376 = vsel %vm10374, %v10359, %v10257
      %v10377 = vsel %vm10374, %v10358, %v10259
      %v10378 = vsel %vm10374, %v10359, %v10261
      %v10379 = vsel %vm10374, %v10360, %v10263
      %v10380 = vsel %vm10374, %v10361, %v10265
      %v10381 = vsel %vm10374, %v10360, %v10267
      %v10382 = vsel %vm10374, %v10361, %v10269
      %v10383 = vsel %vm10374, %v10362, %v10271
      %v10384 = vsel %vm10374, %v10363, %v10273
      %v10385 = vsel %vm10374, %v10362, %v10275
      %v10386 = vsel %vm10374, %v10363, %v10277
      %v10387 = vsel %vm10374, %v10364, %v10279
      %v10388 = vsel %vm10374, %v10365, %v10281
      %v10389 = vsel %vm10374, %v10364, %v10283
      %v10390 = vsel %vm10374, %v10365, %v10285
      %v10391 = vsel %vm10374, %v10366, %v10287
      %v10392 = vsel %vm10374, %v10367, %v10289
      %v10393 = vsel %vm10374, %v10366, %v10291
      %v10394 = vsel %vm10374, %v10367, %v10293
      %v10395 = vsel %vm10374, %v10368, %v10295
      %v10396 = vsel %vm10374, %v10369, %v10297
      %v10397 = vsel %vm10374, %v10368, %v10299
      %v10398 = vsel %vm10374, %v10369, %v10301
      %v10399 = vsel %vm10374, %v10370, %v10303
      %v10400 = vsel %vm10374, %v10371, %v10305
      %v10401 = vsel %vm10374, %v10370, %v10307
      %v10402 = vsel %vm10374, %v10371, %v10309
      %v10403 = vsel %vm10374, %v10372, %v10311
      %v10404 = vsel %vm10374, %v10373, %v10313
      %v10405 = vsel %vm10374, %v10372, %v10315
      %v10406 = vsel %vm10374, %v10373, %v10317
      %10407 = vst.msk [vmem:[%s473] sm:$0xff] %vm642, 0.0
      %10408 = vst.msk [vmem:[%s473 + $0x8] sm:$0xff] %vm642, 0.0
      %10409 = vst.msk [vmem:[%s473 + $0x10] sm:$0x3] %vm2421, 0.0
      %s10410 = scalar_lea.vmem %s473, 408
      %10411 = vst.msk [vmem:[%s10410] sm:$0xff] %vm642, 0.0
      %10412 = vst.msk [vmem:[%s10410 + $0x8] sm:$0xff] %vm642, 0.0
      %10413 = vst.msk [vmem:[%s10410 + $0x10] sm:$0x3] %vm2421, 0.0
      %10414 = vst.msk [vmem:[%s473] sm:$0x1] %vm2401, 0.0
      %10415 = vst.msk [vmem:[%s473 + $0x18] sm:$0x1] %vm2401, 0.0
      %10416 = vst.msk [vmem:[%s473 + $0x30] sm:$0x1] %vm2401, 0.0
      %10417 = vst.msk [vmem:[%s473 + $0x48] sm:$0x1] %vm2401, 0.0
      %10418 = vst.msk [vmem:[%s473 + $0x60] sm:$0x1] %vm2401, 0.0
      %10419 = vst.msk [vmem:[%s473 + $0x78] sm:$0x1] %vm2401, 0.0
      %10420 = vst.msk [vmem:[%s473 + $0x90] sm:$0x1] %vm2401, 0.0
      %10421 = vst.msk [vmem:[%s473 + $0xa8] sm:$0x1] %vm2401, 0.0
      %10422 = vst.msk [vmem:[%s473 + $0xc0] sm:$0x1] %vm2401, 0.0
      %10423 = vst.msk [vmem:[%s473 + $0xd8] sm:$0x1] %vm2401, 0.0
      %10424 = vst.msk [vmem:[%s473 + $0xf0] sm:$0x1] %vm2401, 0.0
      %10425 = vst.msk [vmem:[%s473 + $0x108] sm:$0x1] %vm2401, 0.0
      %10426 = vst.msk [vmem:[%s473 + $0x120] sm:$0x1] %vm2401, 0.0
      %10427 = vst.msk [vmem:[%s473 + $0x138] sm:$0x1] %vm2401, 0.0
      %10428 = vst.msk [vmem:[%s473 + $0x150] sm:$0x1] %vm2401, 0.0
      %10429 = vst.msk [vmem:[%s473 + $0x168] sm:$0x1] %vm2401, 0.0
      %10430 = vst.msk [vmem:[%s473 + $0x180] sm:$0x1] %vm2401, 0.0
      %10431 = vst.msk [vmem:[%s473 + $0x198] sm:$0x1] %vm2401, 0.0
      %10432 = vst.msk [vmem:[%s473 + $0x11] sm:$0x1] %vm2401, 0.0
      %10433 = vst.msk [vmem:[%s473 + $0x29] sm:$0x1] %vm2401, 0.0
      %10434 = vst.msk [vmem:[%s473 + $0x41] sm:$0x1] %vm2401, 0.0
      %10435 = vst.msk [vmem:[%s473 + $0x59] sm:$0x1] %vm2401, 0.0
      %10436 = vst.msk [vmem:[%s473 + $0x71] sm:$0x1] %vm2401, 0.0
      %10437 = vst.msk [vmem:[%s473 + $0x89] sm:$0x1] %vm2401, 0.0
      %10438 = vst.msk [vmem:[%s473 + $0xa1] sm:$0x1] %vm2401, 0.0
      %10439 = vst.msk [vmem:[%s473 + $0xb9] sm:$0x1] %vm2401, 0.0
      %10440 = vst.msk [vmem:[%s473 + $0xd1] sm:$0x1] %vm2401, 0.0
      %10441 = vst.msk [vmem:[%s473 + $0xe9] sm:$0x1] %vm2401, 0.0
      %10442 = vst.msk [vmem:[%s473 + $0x101] sm:$0x1] %vm2401, 0.0
      %10443 = vst.msk [vmem:[%s473 + $0x119] sm:$0x1] %vm2401, 0.0
      %10444 = vst.msk [vmem:[%s473 + $0x131] sm:$0x1] %vm2401, 0.0
      %10445 = vst.msk [vmem:[%s473 + $0x149] sm:$0x1] %vm2401, 0.0
      %10446 = vst.msk [vmem:[%s473 + $0x161] sm:$0x1] %vm2401, 0.0
      %10447 = vst.msk [vmem:[%s473 + $0x179] sm:$0x1] %vm2401, 0.0
      %10448 = vst.msk [vmem:[%s473 + $0x191] sm:$0x1] %vm2401, 0.0
      %10449 = vst.msk [vmem:[%s473 + $0x1a9] sm:$0x1] %vm2401, 0.0
      %s10450 = scalar_lea.vmem %s473, 24
      %10451 = vst.msk [vmem:[%s10450 + $0x1] sm:$0xff] %vm642, %v10375
      %10452 = vst.msk [vmem:[%s10450 + $0x9] sm:$0xff] %vm642, %v10376
      %10453 = vst.msk [vmem:[%s10450 + $0x19] sm:$0xff] %vm642, %v10377
      %10454 = vst.msk [vmem:[%s10450 + $0x21] sm:$0xff] %vm642, %v10378
      %10455 = vst.msk [vmem:[%s10450 + $0x31] sm:$0xff] %vm642, %v10379
      %10456 = vst.msk [vmem:[%s10450 + $0x39] sm:$0xff] %vm642, %v10380
      %10457 = vst.msk [vmem:[%s10450 + $0x49] sm:$0xff] %vm642, %v10381
      %10458 = vst.msk [vmem:[%s10450 + $0x51] sm:$0xff] %vm642, %v10382
      %10459 = vst.msk [vmem:[%s10450 + $0x61] sm:$0xff] %vm642, %v10383
      %10460 = vst.msk [vmem:[%s10450 + $0x69] sm:$0xff] %vm642, %v10384
      %10461 = vst.msk [vmem:[%s10450 + $0x79] sm:$0xff] %vm642, %v10385
      %10462 = vst.msk [vmem:[%s10450 + $0x81] sm:$0xff] %vm642, %v10386
      %10463 = vst.msk [vmem:[%s10450 + $0x91] sm:$0xff] %vm642, %v10387
      %10464 = vst.msk [vmem:[%s10450 + $0x99] sm:$0xff] %vm642, %v10388
      %10465 = vst.msk [vmem:[%s10450 + $0xa9] sm:$0xff] %vm642, %v10389
      %10466 = vst.msk [vmem:[%s10450 + $0xb1] sm:$0xff] %vm642, %v10390
      %10467 = vst.msk [vmem:[%s10450 + $0xc1] sm:$0xff] %vm642, %v10391
      %10468 = vst.msk [vmem:[%s10450 + $0xc9] sm:$0xff] %vm642, %v10392
      %10469 = vst.msk [vmem:[%s10450 + $0xd9] sm:$0xff] %vm642, %v10393
      %10470 = vst.msk [vmem:[%s10450 + $0xe1] sm:$0xff] %vm642, %v10394
      %10471 = vst.msk [vmem:[%s10450 + $0xf1] sm:$0xff] %vm642, %v10395
      %10472 = vst.msk [vmem:[%s10450 + $0xf9] sm:$0xff] %vm642, %v10396
      %10473 = vst.msk [vmem:[%s10450 + $0x109] sm:$0xff] %vm642, %v10397
      %10474 = vst.msk [vmem:[%s10450 + $0x111] sm:$0xff] %vm642, %v10398
      %10475 = vst.msk [vmem:[%s10450 + $0x121] sm:$0xff] %vm642, %v10399
      %10476 = vst.msk [vmem:[%s10450 + $0x129] sm:$0xff] %vm642, %v10400
      %10477 = vst.msk [vmem:[%s10450 + $0x139] sm:$0xff] %vm642, %v10401
      %10478 = vst.msk [vmem:[%s10450 + $0x141] sm:$0xff] %vm642, %v10402
      %10479 = vst.msk [vmem:[%s10450 + $0x151] sm:$0xff] %vm642, %v10403
      %10480 = vst.msk [vmem:[%s10450 + $0x159] sm:$0xff] %vm642, %v10404
      %10481 = vst.msk [vmem:[%s10450 + $0x169] sm:$0xff] %vm642, %v10405
      %10482 = vst.msk [vmem:[%s10450 + $0x171] sm:$0xff] %vm642, %v10406
      %p10483 = scmp.lt.s32.totalorder %s23, 1
      %s10484 = scalar_select %p10483, %s23, 1
      %s10485 = smul.addr %s10484, 54
      %s10486 = smul.addr %s10485, 8
      %s10487 = scalar_lea.vmem %s12, %s10486
      // Predicated region
      $region69: #{tpu_custom_call.1} parent=67 // pred_check
        %p10488 = pneg %p313
      $region70: #{tpu_custom_call.1} parent=67 // pred_check_branch
        %10490 = sbr.rel (%p10488) target = $region72
      $region71: #{tpu_custom_call.1} parent=67 // pred_region
        _
      $region72: #{tpu_custom_call.1} parent=67 // pred_fallthru
        _
    $region68: #{tpu_custom_call.1} parent=5 // pred_fallthru
      _
    %p10491 = scmp.le.s32.totalorder 2, %s18
    // Predicated region
    $region73: #{tpu_custom_call.1} parent=5 // pred_check
      %p10492 = pneg %p10491
    $region74: #{tpu_custom_call.1} parent=5 // pred_check_branch
      %10494 = sbr.rel (%p10492) target = $region76
    $region75: #{tpu_custom_call.1} parent=5 // pred_region
      %s10495 = ssub.s32 %s18, 2
      // Predicated region
      $region77: #{tpu_custom_call.1} parent=75 // pred_check
        %p10496 = pneg %p319
      $region78: #{tpu_custom_call.1} parent=75 // pred_check_branch
        %10498 = sbr.rel (%p10496) target = $region80
      $region79: #{tpu_custom_call.1} parent=75 // pred_region
        %p10499 = scmp.lt.s32.totalorder %s24, 1
        %s10500 = scalar_select %p10499, %s24, 1
        %s10501 = smul.addr %s10500, 54
        %s10502 = smul.addr %s10501, 8
        %s10503 = scalar_lea.vmem %s12, %s10502
      $region80: #{tpu_custom_call.1} parent=75 // pred_fallthru
        _
    $region76: #{tpu_custom_call.1} parent=5 // pred_fallthru
      _
  $region6: #{tpu_custom_call.1} parent=0 // loop_footer
    %s22 = sadd.s32 1, %s18
  $region7: #{tpu_custom_call.1} parent=0 // loop_footer_branch
    %17 = sbr.rel target = $region3
  $region8: #{tpu_custom_call.1} parent=0 // loop_exit
    _

</llo_original>
